<compile_context>
chip_gen: v7x
topology: tpu7x:2x2x1
jax: 0.10.0
libtpu: 0.0.40
codegen_flags: <defaults>
</compile_context>

<pallas_src>
import functools

import jax
import jax.numpy as jnp
from jax.experimental import pallas as pl
from jax.experimental.pallas import tpu as pltpu

# ---- model hyper-params (from the PyTorch script) ----------------------------
FILTER_MULTIPLIER = 2
INITIAL_FILTERS = 16
NUM_LAYERS = 5
INPUT_CHANNELS = 2
LATENT_DIM = 20

BN_EPS = 1e-5  # PyTorch BatchNorm1d default eps


# ---- generation-aware compiler params -----------------------------------------
def _vmem_limit_bytes():
    cap = 64 * 1024 * 1024  # conservative default (v7x physical VMEM per core)
    get_info = getattr(pltpu, "get_tpu_info", None)
    if get_info is not None:
        try:
            cap = int(getattr(get_info(), "vmem_capacity_bytes", cap)) or cap
        except Exception:
            pass
    # leave headroom: 3/4 of physical, capped at 100 MiB, never below 32 MiB
    return int(max(32 * 1024 * 1024, min(cap * 3 // 4, 100 * 1024 * 1024)))


_VMEM_LIMIT = _vmem_limit_bytes()


def _compiler_params(**kw):
    return pltpu.CompilerParams(vmem_limit_bytes=_VMEM_LIMIT, **kw)


def _vmem_specs(n):
    return [pl.BlockSpec(memory_space=pltpu.MemorySpace.VMEM) for _ in range(n)]


def _elu(a):
    # ELU(alpha=1); clamp the exp argument so the discarded branch never overflows.
    return jnp.where(a > 0, a, jnp.exp(jnp.minimum(a, 0.0)) - 1.0)


def _pick_grid(n_batch, total_rows, min_rows=512):
    """Largest batch-aligned grid whose tiles keep >= min_rows rows (per-step
    overhead ~0.35us) and an 8-aligned row count (f32 sublane tiling)."""
    rows_per_item = total_rows // n_batch
    g = 1
    for cand in range(1, n_batch + 1):
        if n_batch % cand:
            continue
        tile = (n_batch // cand) * rows_per_item
        if tile % 8 == 0 and tile >= min_rows:
            g = cand
    return g


# ---- Pallas kernels -----------------------------------------------------------
def _enc_conv_kernel(x_ref, s_ref, t_ref, wp_ref, wc_ref, b_ref,
                     y_ref, st_ref, *, lh):
    """Conv1d(k3,s2,p1) + ELU on one tile of sample-pair rows.

    x_ref:  (tile, 2*C_in)  rows = (n, t), cols = [x_{2t} | x_{2t+1}]
    s_ref/t_ref: (1, 2*C_in) previous layer's deferred BatchNorm affine.
    wp_ref: (2*C_in, C_out) = [[0], [W0^T]]   (picks x_{2t-1} from the rolled row)
    wc_ref: (2*C_in, C_out) = [[W1^T], [W2^T]]
    Outputs pre-BN activations and per-tile [sum; sum^2] channel statistics so
    this layer's BN affine is applied by its consumer (deferred BN).
    """
    x = x_ref[...]
    xh = x * s_ref[...] + t_ref[...]
    rows = x.shape[0]
    tpos = jax.lax.broadcasted_iota(jnp.int32, (rows, 1), 0) % lh
    first = (tpos != 0).astype(jnp.float32)
    # previous sample pair (x_{2t-2}, x_{2t-1}); XLU roll, wrap/sequence-start
    # rows zeroed by the iota mask (conv zero padding in normalized space).
    xs = pltpu.roll(xh, shift=1, axis=0) * first
    a = (jnp.dot(xs.astype(jnp.bfloat16), wp_ref[...],
                 preferred_element_type=jnp.float32)
         + jnp.dot(xh.astype(jnp.bfloat16), wc_ref[...],
                   preferred_element_type=jnp.float32)
         + b_ref[...])
    a = _elu(a)
    y_ref[...] = a
    st_ref[0] = jnp.concatenate(
        [jnp.sum(a, axis=0, keepdims=True),
         jnp.sum(a * a, axis=0, keepdims=True)], axis=0)


def _dec_convt_kernel(x_ref, s_ref, t_ref, wc_ref, wn_ref, b_ref,
                      y_ref, st_ref, *, lc):
    """ConvTranspose1d(k3,s2,p1,op1) + ELU, two-phase form, one row tile.

    x_ref: (tile, C_in), wc_ref: (C_in, 2*C_out) = [W1 | W2],
    wn_ref: (C_in, 2*C_out) = [0 | W0] (odd phase from x_{t+1}).
    Output: (tile, 2*C_out) = [even | odd] pre-BN + per-tile statistics.
    """
    x = x_ref[...]
    xh = x * s_ref[...] + t_ref[...]
    rows = x.shape[0]
    tpos = jax.lax.broadcasted_iota(jnp.int32, (rows, 1), 0) % lc
    notlast = (tpos != lc - 1).astype(jnp.float32)
    xn = pltpu.roll(xh, shift=rows - 1, axis=0) * notlast
    a = (jnp.dot(xh.astype(jnp.bfloat16), wc_ref[...],
                 preferred_element_type=jnp.float32)
         + jnp.dot(xn.astype(jnp.bfloat16), wn_ref[...],
                   preferred_element_type=jnp.float32)
         + b_ref[...])
    a = _elu(a)
    y_ref[...] = a
    st_ref[0] = jnp.concatenate(
        [jnp.sum(a, axis=0, keepdims=True),
         jnp.sum(a * a, axis=0, keepdims=True)], axis=0)


def _fused_mid_kernel(x_ref, s_ref, t_ref, eps_ref,
                      wp5_ref, wc5_ref, b5_ref, g5_ref, be5_ref,
                      wml_ref, bml_ref, wim_ref, win_ref, bi_ref,
                      wdc_ref, wdn_ref, bd_ref,
                      ml_ref, yd_ref, std_ref, *, l_seq):
    """Fused: encoder layer 5 (conv+ELU+BN) -> conv_mu/conv_logvar ->
    reparameterize -> conv_initial -> decoder layer 1 (convT+ELU, pre-BN).

    Whole-slab (N*L_enc rows, the 32x-smallest activation of the network).
    eps_ref is (M, 40) with gaussian noise in the logvar lanes [20:40] and
    zeros elsewhere, so no lane slicing is needed for the reparameterization.
    """
    x = x_ref[...]
    xh = x * s_ref[...] + t_ref[...]
    rows = x.shape[0]
    tpos = jax.lax.broadcasted_iota(jnp.int32, (rows, 1), 0) % l_seq
    first = (tpos != 0).astype(jnp.float32)
    notlast = (tpos != l_seq - 1).astype(jnp.float32)

    # ---- encoder layer 5: conv + ELU + (internal) training-mode BN ----
    xs = pltpu.roll(xh, shift=1, axis=0) * first
    a5 = (jnp.dot(xs.astype(jnp.bfloat16), wp5_ref[...],
                  preferred_element_type=jnp.float32)
          + jnp.dot(xh.astype(jnp.bfloat16), wc5_ref[...],
                    preferred_element_type=jnp.float32)
          + b5_ref[...])
    a5 = _elu(a5)
    inv_m = 1.0 / rows
    mean5 = jnp.sum(a5, axis=0, keepdims=True) * inv_m
    var5 = jnp.maximum(
        jnp.sum(a5 * a5, axis=0, keepdims=True) * inv_m - mean5 * mean5, 0.0)
    h5 = (a5 - mean5) * (jax.lax.rsqrt(var5 + BN_EPS) * g5_ref[...]) + be5_ref[...]

    # ---- latent head: [mu | logvar], reparameterize, conv_initial ----
    ml = jnp.dot(h5.astype(jnp.bfloat16), wml_ref[...],
                 preferred_element_type=jnp.float32) + bml_ref[...]
    ml_ref[...] = ml
    noise = eps_ref[...] * jnp.exp(0.5 * jnp.minimum(ml, 80.0))
    h0 = (jnp.dot(ml.astype(jnp.bfloat16), wim_ref[...],
                  preferred_element_type=jnp.float32)
          + jnp.dot(noise.astype(jnp.bfloat16), win_ref[...],
                    preferred_element_type=jnp.float32)
          + bi_ref[...])

    # ---- decoder layer 1: convT + ELU, pre-BN output + statistics ----
    h0n = pltpu.roll(h0, shift=rows - 1, axis=0) * notlast
    ad = (jnp.dot(h0.astype(jnp.bfloat16), wdc_ref[...],
                  preferred_element_type=jnp.float32)
          + jnp.dot(h0n.astype(jnp.bfloat16), wdn_ref[...],
                    preferred_element_type=jnp.float32)
          + bd_ref[...])
    ad = _elu(ad)
    yd_ref[...] = ad
    std_ref[0] = jnp.concatenate(
        [jnp.sum(ad, axis=0, keepdims=True),
         jnp.sum(ad * ad, axis=0, keepdims=True)], axis=0)


def _dec_final_kernel(x_ref, s_ref, t_ref, w1t_ref, w2t_ref, w0t_ref, b_ref,
                      o_ref):
    """Final ConvTranspose1d (no ELU/BN), one batch element per program.

    Emits the output directly in NCL layout (C_out, 2*L) so the HBM store is
    lane-dense and no wrapper transpose is needed.  The previous layer's BN
    affine is folded into the input here."""
    x = x_ref[0]                                    # (L, C_in)
    l = x.shape[0]
    xh = x * s_ref[...] + t_ref[...]
    tpos = jax.lax.broadcasted_iota(jnp.int32, (l, 1), 0)
    notlast = (tpos != l - 1).astype(jnp.float32)
    xn = pltpu.roll(xh, shift=l - 1, axis=0) * notlast
    # channel-major (C_out, L) phase results: lanes carry the length axis.
    even_t = jnp.einsum("oc,lc->ol", w1t_ref[...], xh,
                        preferred_element_type=jnp.float32)
    odd_t = (jnp.einsum("oc,lc->ol", w2t_ref[...], xh,
                        preferred_element_type=jnp.float32)
             + jnp.einsum("oc,lc->ol", w0t_ref[...], xn,
                          preferred_element_type=jnp.float32))
    # interleave even/odd along lanes with tiny constant scatter matmuls.
    dst = jax.lax.broadcasted_iota(jnp.int32, (l, 2 * l), 1)
    src = jax.lax.broadcasted_iota(jnp.int32, (l, 2 * l), 0)
    esel = (dst == 2 * src).astype(jnp.float32)
    osel = (dst == 2 * src + 1).astype(jnp.float32)
    o_ref[0] = (jnp.dot(even_t, esel, preferred_element_type=jnp.float32)
                + jnp.dot(odd_t, osel, preferred_element_type=jnp.float32)
                + b_ref[...])


# ---- wrappers -------------------------------------------------------------------
def enc_conv_layer(x2, s_in, t_in, w_prev, w_cur, b, *, lh, n_batch):
    m, two_c = x2.shape
    c_out = w_cur.shape[1]
    g = _pick_grid(n_batch, m)
    tile = m // g
    flops = 4 * m * two_c * c_out + 10 * m * c_out
    nbytes = 4 * (x2.size + m * c_out) + 2 * (w_prev.size + w_cur.size)
    return pl.pallas_call(
        functools.partial(_enc_conv_kernel, lh=lh),
        out_shape=(jax.ShapeDtypeStruct((m, c_out), jnp.float32),
                   jax.ShapeDtypeStruct((g, 2, c_out), jnp.float32)),
        grid=(g,),
        in_specs=[
            pl.BlockSpec((tile, two_c), lambda i: (i, 0)),
            pl.BlockSpec((1, two_c), lambda i: (0, 0)),
            pl.BlockSpec((1, two_c), lambda i: (0, 0)),
            pl.BlockSpec((two_c, c_out), lambda i: (0, 0)),
            pl.BlockSpec((two_c, c_out), lambda i: (0, 0)),
            pl.BlockSpec((1, c_out), lambda i: (0, 0)),
        ],
        out_specs=(pl.BlockSpec((tile, c_out), lambda i: (i, 0)),
                   pl.BlockSpec((1, 2, c_out), lambda i: (i, 0, 0))),
        compiler_params=_compiler_params(dimension_semantics=("parallel",)),
        cost_estimate=pl.CostEstimate(flops=flops, transcendentals=m * c_out,
                                      bytes_accessed=nbytes),
    )(x2, s_in, t_in, w_prev, w_cur, b)


def dec_convt_layer(x2, s_in, t_in, w_cur, w_nxt, b2, *, lc, n_batch):
    m, c_in = x2.shape
    c_out2 = w_cur.shape[1]
    g = _pick_grid(n_batch, m)
    tile = m // g
    flops = 4 * m * c_in * c_out2 + 10 * m * c_out2
    nbytes = 4 * (x2.size + m * c_out2) + 2 * (w_cur.size + w_nxt.size)
    return pl.pallas_call(
        functools.partial(_dec_convt_kernel, lc=lc),
        out_shape=(jax.ShapeDtypeStruct((m, c_out2), jnp.float32),
                   jax.ShapeDtypeStruct((g, 2, c_out2), jnp.float32)),
        grid=(g,),
        in_specs=[
            pl.BlockSpec((tile, c_in), lambda i: (i, 0)),
            pl.BlockSpec((1, c_in), lambda i: (0, 0)),
            pl.BlockSpec((1, c_in), lambda i: (0, 0)),
            pl.BlockSpec((c_in, c_out2), lambda i: (0, 0)),
            pl.BlockSpec((c_in, c_out2), lambda i: (0, 0)),
            pl.BlockSpec((1, c_out2), lambda i: (0, 0)),
        ],
        out_specs=(pl.BlockSpec((tile, c_out2), lambda i: (i, 0)),
                   pl.BlockSpec((1, 2, c_out2), lambda i: (i, 0, 0))),
        compiler_params=_compiler_params(dimension_semantics=("parallel",)),
        cost_estimate=pl.CostEstimate(flops=flops, transcendentals=m * c_out2,
                                      bytes_accessed=nbytes),
    )(x2, s_in, t_in, w_cur, w_nxt, b2)


def fused_mid(x2, s_in, t_in, eps40, mid, *, l_seq):
    m, two_c = x2.shape
    c_f = mid["w_cur5"].shape[1]
    two_l = mid["w_ml"].shape[1]
    two_co = mid["wd_cur"].shape[1]
    flops = (4 * m * two_c * c_f + 2 * m * c_f * two_l
             + 4 * m * two_l * c_f + 4 * m * c_f * two_co)
    nbytes = 4 * (x2.size + eps40.size + m * (two_l + two_co) + m * c_f)
    return pl.pallas_call(
        functools.partial(_fused_mid_kernel, l_seq=l_seq),
        out_shape=(jax.ShapeDtypeStruct((m, two_l), jnp.float32),
                   jax.ShapeDtypeStruct((m, two_co), jnp.float32),
                   jax.ShapeDtypeStruct((1, 2, two_co), jnp.float32)),
        in_specs=_vmem_specs(17),
        out_specs=tuple(_vmem_specs(3)),
        compiler_params=_compiler_params(),
        cost_estimate=pl.CostEstimate(
            flops=flops, transcendentals=m * (c_f + two_l + two_co),
            bytes_accessed=nbytes),
    )(x2, s_in, t_in, eps40,
      mid["w_prev5"], mid["w_cur5"], mid["b5"], mid["g5"], mid["be5"],
      mid["w_ml"], mid["b_ml"], mid["w_init_mu"], mid["w_init_noise"],
      mid["b_init"], mid["wd_cur"], mid["wd_nxt"], mid["bd"])


def dec_final(h, s_in, t_in, w1t, w2t, w0t, b_col):
    n, lc, ci = h.shape
    co = w1t.shape[0]
    flops = n * (6 * lc * ci * co + 4 * co * lc * 2 * lc)
    nbytes = 4 * (h.size + n * co * 2 * lc)
    return pl.pallas_call(
        _dec_final_kernel,
        out_shape=jax.ShapeDtypeStruct((n, co, 2 * lc), jnp.float32),
        grid=(n,),
        in_specs=[
            pl.BlockSpec((1, lc, ci), lambda i: (i, 0, 0)),
            pl.BlockSpec((1, ci), lambda i: (0, 0)),
            pl.BlockSpec((1, ci), lambda i: (0, 0)),
            pl.BlockSpec((co, ci), lambda i: (0, 0)),
            pl.BlockSpec((co, ci), lambda i: (0, 0)),
            pl.BlockSpec((co, ci), lambda i: (0, 0)),
            pl.BlockSpec((co, 1), lambda i: (0, 0)),
        ],
        out_specs=pl.BlockSpec((1, co, 2 * lc), lambda i: (i, 0, 0)),
        compiler_params=_compiler_params(dimension_semantics=("parallel",)),
        cost_estimate=pl.CostEstimate(flops=flops, transcendentals=0,
                                      bytes_accessed=nbytes),
    )(h, s_in, t_in, w1t, w2t, w0t, b_col)


# ---- deferred-BN affine (tiny per-channel math, runs as plain XLA) --------------
def _bn_affine(stats, gamma, beta, count, fold_pairs=False):
    """stats: (G, 2, width) per-tile [sum; sum^2] -> per-channel scale/shift."""
    s = jnp.sum(stats, axis=0)                      # (2, width)
    if fold_pairs:                                  # fold [even | odd] halves
        c = s.shape[1] // 2
        s = s[:, :c] + s[:, c:]
        count = count * 2
    mean = s[0] / count
    var = jnp.maximum(s[1] / count - mean * mean, 0.0)
    scale = gamma * jax.lax.rsqrt(var + BN_EPS)
    shift = beta - mean * scale
    return scale, shift


# ---- deterministic parameter initialization ------------------------------------
def init_params(key):
    f32, bf16 = jnp.float32, jnp.bfloat16

    def _init(k, shape, fan_in):
        return (1.0 / jnp.sqrt(jnp.float32(fan_in))) * jax.random.normal(
            k, shape, dtype=f32)

    def _enc_pack(w):                    # w: (co, ci, 3) PyTorch Conv1d layout
        wt = jnp.transpose(w, (2, 1, 0))                     # (3, ci, co)
        ci, co = wt.shape[1], wt.shape[2]
        w_prev = jnp.concatenate([jnp.zeros((ci, co), f32), wt[0]], axis=0)
        w_cur = jnp.concatenate([wt[1], wt[2]], axis=0)
        return w_prev.astype(bf16), w_cur.astype(bf16)

    def _dec_pack(w):                    # w: (ci, co, 3) ConvTranspose1d layout
        ci, co = w.shape[0], w.shape[1]
        w_cur = jnp.concatenate([w[:, :, 1], w[:, :, 2]], axis=1)
        w_nxt = jnp.concatenate([jnp.zeros((ci, co), f32), w[:, :, 0]], axis=1)
        return w_cur.astype(bf16), w_nxt.astype(bf16)

    params = {"encoder": [], "decoder": []}

    enc_in = [INPUT_CHANNELS] + [
        INITIAL_FILTERS * FILTER_MULTIPLIER**i for i in range(NUM_LAYERS - 1)]
    enc_out = [INITIAL_FILTERS * FILTER_MULTIPLIER**i for i in range(NUM_LAYERS)]
    enc_layers = []
    for ci, co in zip(enc_in, enc_out):
        key, kw, kb = jax.random.split(key, 3)
        w = _init(kw, (co, ci, 3), ci * 3)
        b = _init(kb, (1, co), ci * 3)
        w_prev, w_cur = _enc_pack(w)
        enc_layers.append(dict(w_prev=w_prev, w_cur=w_cur, b=b,
                               gamma=jnp.ones((co,), f32),
                               beta=jnp.zeros((co,), f32)))
    params["encoder"] = enc_layers[:-1]            # layers 1..4 (deferred BN)
    c_f = enc_out[-1]

    # fused middle block: encoder layer 5 (+ its BN applied in-kernel)
    enc5 = enc_layers[-1]
    mid = dict(w_prev5=enc5["w_prev"], w_cur5=enc5["w_cur"], b5=enc5["b"],
               g5=jnp.ones((1, c_f), f32), be5=jnp.zeros((1, c_f), f32))

    # latent head (conv_mu / conv_logvar fused into one (c_f, 40) matmul;
    # conv_initial split so the reparameterization needs no lane slicing).
    key, kmw, kmb, klw, klb, kiw, kib = jax.random.split(key, 7)
    w_mu = _init(kmw, (LATENT_DIM, c_f, 1), c_f)[:, :, 0]
    w_lv = _init(klw, (LATENT_DIM, c_f, 1), c_f)[:, :, 0]
    b_mu = _init(kmb, (1, LATENT_DIM), c_f)
    b_lv = _init(klb, (1, LATENT_DIM), c_f)
    w_in = _init(kiw, (c_f, LATENT_DIM, 1), LATENT_DIM)[:, :, 0]
    b_in = _init(kib, (1, c_f), LATENT_DIM)
    zeros_lcf = jnp.zeros((LATENT_DIM, c_f), f32)
    mid.update(
        w_ml=jnp.concatenate([w_mu.T, w_lv.T], axis=1).astype(bf16),
        b_ml=jnp.concatenate([b_mu, b_lv], axis=1),
        w_init_mu=jnp.concatenate([w_in.T, zeros_lcf], axis=0).astype(bf16),
        w_init_noise=jnp.concatenate([zeros_lcf, w_in.T], axis=0).astype(bf16),
        b_init=b_in)

    # decoder
    dec_in = [INITIAL_FILTERS * FILTER_MULTIPLIER ** (NUM_LAYERS - i - 1)
              for i in range(NUM_LAYERS)]
    dec_out = [INITIAL_FILTERS * FILTER_MULTIPLIER ** (NUM_LAYERS - i - 2)
               if i != NUM_LAYERS - 1 else INPUT_CHANNELS
               for i in range(NUM_LAYERS)]
    dec_raw = []
    for ci, co in zip(dec_in, dec_out):
        key, kw, kb = jax.random.split(key, 3)
        w = _init(kw, (ci, co, 3), ci * 3)
        b = _init(kb, (1, co), ci * 3)
        dec_raw.append((w, b, ci, co))

    # decoder layer 1 lives inside the fused middle block (deferred BN out).
    w, b, ci, co = dec_raw[0]
    wd_cur, wd_nxt = _dec_pack(w)
    mid.update(wd_cur=wd_cur, wd_nxt=wd_nxt,
               bd=jnp.concatenate([b, b], axis=1),
               gd=jnp.ones((co,), f32), bed=jnp.zeros((co,), f32))
    params["mid"] = mid

    # decoder layers 2..4: standalone deferred-BN kernels.
    for w, b, ci, co in dec_raw[1:-1]:
        w_cur, w_nxt = _dec_pack(w)
        params["decoder"].append(dict(
            w_cur=w_cur, w_nxt=w_nxt, b2=jnp.concatenate([b, b], axis=1),
            gamma=jnp.ones((co,), f32), beta=jnp.zeros((co,), f32)))

    # final decoder layer: f32 weights pre-transposed (C_out, C_in) for the
    # lane-dense NCL kernel; bias as a (C_out, 1) column.
    w, b, ci, co = dec_raw[-1]
    params["final"] = dict(w1t=w[:, :, 1].T, w2t=w[:, :, 2].T, w0t=w[:, :, 0].T,
                           b_col=b.T)
    return params


# ---- forward pass ----------------------------------------------------------------
@jax.jit
def vae_forward(params, x, eps):
    """x: (N, C_in, L) NCL as in PyTorch (L divisible by 2**NUM_LAYERS).
    eps: (N*L_enc, latent_dim) reparameterization noise.
    Returns (recon_x (N, C_in, L), mu (N, latent, L_enc), logvar (N, latent, L_enc))."""
    n, cin, length = x.shape
    assert length % (2 ** NUM_LAYERS) == 0, \
        "input_length must be divisible by 2**NUM_LAYERS"
    h = jnp.transpose(x, (0, 2, 1)).astype(jnp.float32)     # -> (N, L, C)

    # identity affine for the raw network input
    scale = jnp.ones((cin,), jnp.float32)
    shift = jnp.zeros((cin,), jnp.float32)

    # ---- encoder layers 1..4 (gridded, deferred BN) ----
    for layer in params["encoder"]:
        nn, lc, cc = h.shape
        lh = lc // 2
        m = nn * lh
        x2 = h.reshape(m, 2 * cc)                            # free reshape
        s_in = jnp.concatenate([scale, scale])[None, :]
        t_in = jnp.concatenate([shift, shift])[None, :]
        y, stats = enc_conv_layer(x2, s_in, t_in, layer["w_prev"],
                                  layer["w_cur"], layer["b"],
                                  lh=lh, n_batch=nn)
        scale, shift = _bn_affine(stats, layer["gamma"], layer["beta"], m)
        h = y.reshape(nn, lh, -1)

    # ---- fused: encoder layer 5 + latent head + decoder layer 1 ----
    nn, lc, cc = h.shape
    l_enc = lc // 2
    m_mid = nn * l_enc
    x2 = h.reshape(m_mid, 2 * cc)
    s_in = jnp.concatenate([scale, scale])[None, :]
    t_in = jnp.concatenate([shift, shift])[None, :]
    eps40 = jnp.pad(eps.astype(jnp.float32), ((0, 0), (LATENT_DIM, 0)))
    ml, y_d1, st_d1 = fused_mid(x2, s_in, t_in, eps40, params["mid"],
                                l_seq=l_enc)
    mu = jnp.transpose(ml[:, :LATENT_DIM].reshape(nn, l_enc, LATENT_DIM),
                       (0, 2, 1))
    logvar = jnp.transpose(ml[:, LATENT_DIM:].reshape(nn, l_enc, LATENT_DIM),
                           (0, 2, 1))
    scale, shift = _bn_affine(st_d1, params["mid"]["gd"], params["mid"]["bed"],
                              m_mid, fold_pairs=True)
    co = params["mid"]["wd_cur"].shape[1] // 2
    h = y_d1.reshape(nn, 2 * l_enc, co)                      # free interleave

    # ---- decoder layers 2..4 (gridded, deferred BN) ----
    for layer in params["decoder"]:
        nn, lc, ci = h.shape
        m = nn * lc
        co = layer["w_cur"].shape[1] // 2
        x2 = h.reshape(m, ci)
        y, stats = dec_convt_layer(x2, scale[None, :], shift[None, :],
                                   layer["w_cur"], layer["w_nxt"], layer["b2"],
                                   lc=lc, n_batch=nn)
        scale, shift = _bn_affine(stats, layer["gamma"], layer["beta"], m,
                                  fold_pairs=True)
        h = y.reshape(nn, 2 * lc, co)                        # free interleave

    # ---- final decoder layer: lane-dense NCL output (no wrapper transpose) ----
    fin = params["final"]
    recon_x = dec_final(h, scale[None, :], shift[None, :],
                        fin["w1t"], fin["w2t"], fin["w0t"], fin["b_col"])
    return recon_x, mu, logvar


# ---- demo -------------------------------------------------------------------------
if __name__ == "__main__":
    key = jax.random.PRNGKey(0)
    k_param, k_x, k_eps = jax.random.split(key, 3)

    batch = 2
    input_length = 128  # must be divisible by 2**NUM_LAYERS
    l_enc = input_length // (2 ** NUM_LAYERS)

    params = init_params(k_param)
    x = jax.random.normal(k_x, (batch, INPUT_CHANNELS, input_length), jnp.float32)
    eps = jax.random.normal(k_eps, (batch * l_enc, LATENT_DIM), jnp.float32)

    recon_x, mu, logvar = jax.block_until_ready(vae_forward(params, x, eps))

    assert recon_x.shape == x.shape, recon_x.shape
    assert mu.shape == (batch, LATENT_DIM, l_enc), mu.shape
    assert logvar.shape == (batch, LATENT_DIM, l_enc), logvar.shape
    assert bool(jnp.all(jnp.isfinite(recon_x)))
    assert bool(jnp.all(jnp.isfinite(mu)))
    assert bool(jnp.all(jnp.isfinite(logvar)))
    print("KERNEL_OK")
</pallas_src>

<mosaic_0001>
module attributes {stable_mosaic.version = 11 : i64} {
  func.func @_enc_conv_kernel(%arg0: i32, %arg1: memref<128x4xf32, #tpu.memory_space<vmem>>, %arg2: memref<1x4xf32, #tpu.memory_space<vmem>>, %arg3: memref<1x4xf32, #tpu.memory_space<vmem>>, %arg4: memref<4x16xbf16, #tpu.memory_space<vmem>>, %arg5: memref<4x16xbf16, #tpu.memory_space<vmem>>, %arg6: memref<1x16xf32, #tpu.memory_space<vmem>>, %arg7: memref<128x16xf32, #tpu.memory_space<vmem>>, %arg8: memref<1x2x16xf32, #tpu.memory_space<vmem>>) attributes {dimension_semantics = [#tpu.dimension_semantics<parallel>], iteration_bounds = array<i64: 1>, scalar_prefetch = 0 : i64, scratch_operands = 0 : i64, tpu.core_type = #tpu.core_type<tc>, window_params = [{transform_indices = @transform_0, window_bounds = array<i64: 128, 4>}, {pipeline_mode = #tpu.pipeline_mode<synchronous>, transform_indices = @transform_1, window_bounds = array<i64: 1, 4>}, {pipeline_mode = #tpu.pipeline_mode<synchronous>, transform_indices = @transform_2, window_bounds = array<i64: 1, 4>}, {pipeline_mode = #tpu.pipeline_mode<synchronous>, transform_indices = @transform_3, window_bounds = array<i64: 4, 16>}, {pipeline_mode = #tpu.pipeline_mode<synchronous>, transform_indices = @transform_4, window_bounds = array<i64: 4, 16>}, {pipeline_mode = #tpu.pipeline_mode<synchronous>, transform_indices = @transform_5, window_bounds = array<i64: 1, 16>}, {transform_indices = @transform_6, window_bounds = array<i64: 128, 16>}, {transform_indices = @transform_7, window_bounds = array<i64: 1, 2, 16>}]} {
    %c0 = arith.constant 0 : index
    %c0_0 = arith.constant 0 : index
    %0 = vector.load %arg1[%c0, %c0_0] : memref<128x4xf32, #tpu.memory_space<vmem>>, vector<128x4xf32>
    %c0_1 = arith.constant 0 : index
    %c0_2 = arith.constant 0 : index
    %1 = vector.load %arg2[%c0_1, %c0_2] : memref<1x4xf32, #tpu.memory_space<vmem>>, vector<1x4xf32>
    %2 = vector.broadcast %1 : vector<1x4xf32> to vector<128x4xf32>
    %3 = arith.mulf %0, %2 : vector<128x4xf32>
    %c0_3 = arith.constant 0 : index
    %c0_4 = arith.constant 0 : index
    %4 = vector.load %arg3[%c0_3, %c0_4] : memref<1x4xf32, #tpu.memory_space<vmem>>, vector<1x4xf32>
    %5 = vector.broadcast %4 : vector<1x4xf32> to vector<128x4xf32>
    %6 = arith.addf %3, %5 : vector<128x4xf32>
    %7 = tpu.iota {dimensions = array<i32: 0>} : vector<128x1xi32>
    %c64_i32 = arith.constant 64 : i32
    %c0_i32 = arith.constant 0 : i32
    %8 = arith.cmpi eq, %c64_i32, %c0_i32 : i32
    %c1_i32 = arith.constant 1 : i32
    %9 = arith.select %8, %c1_i32, %c64_i32 : i32
    %10 = vector.broadcast %9 : i32 to vector<128x1xi32>
    %11 = arith.remsi %7, %10 : vector<128x1xi32>
    %c0_i32_5 = arith.constant 0 : i32
    %12 = vector.broadcast %c0_i32_5 : i32 to vector<128x1xi32>
    %13 = arith.cmpi ne, %11, %12 : vector<128x1xi32>
    %c0_i32_6 = arith.constant 0 : i32
    %14 = vector.broadcast %c0_i32_6 : i32 to vector<128x1xi32>
    %15 = arith.cmpi slt, %11, %14 : vector<128x1xi32>
    %c0_i32_7 = arith.constant 0 : i32
    %16 = arith.cmpi slt, %9, %c0_i32_7 : i32
    %17 = vector.broadcast %16 : i1 to vector<128x1xi1>
    %18 = vector.broadcast %17 : vector<128x1xi1> to vector<128x1xi1>
    %19 = arith.xori %15, %18 : vector<128x1xi1>
    %20 = arith.andi %19, %13 : vector<128x1xi1>
    %21 = vector.broadcast %9 : i32 to vector<128x1xi32>
    %22 = arith.addi %11, %21 : vector<128x1xi32>
    %23 = arith.select %20, %22, %11 : vector<128x1xi1>, vector<128x1xi32>
    %c0_i32_8 = arith.constant 0 : i32
    %24 = vector.broadcast %c0_i32_8 : i32 to vector<128x1xi32>
    %25 = arith.cmpi ne, %23, %24 : vector<128x1xi32>
    %26 = arith.extui %25 : vector<128x1xi1> to vector<128x1xi32>
    %27 = arith.sitofp %26 : vector<128x1xi32> to vector<128x1xf32>
    %c1_i32_9 = arith.constant 1 : i32
    %28 = tpu.dynamic_rotate %6 by %c1_i32_9 dim 0 : vector<128x4xf32>, i32 -> vector<128x4xf32>
    %29 = vector.broadcast %27 : vector<128x1xf32> to vector<128x4xf32>
    %30 = arith.mulf %28, %29 : vector<128x4xf32>
    %31 = arith.truncf %30 : vector<128x4xf32> to vector<128x4xbf16>
    %c0_10 = arith.constant 0 : index
    %c0_11 = arith.constant 0 : index
    %32 = vector.load %arg4[%c0_10, %c0_11] : memref<4x16xbf16, #tpu.memory_space<vmem>>, vector<4x16xbf16>
    %cst = arith.constant dense<0.000000e+00> : vector<128x16xf32>
    %33 = tpu.matmul %31, %32, %cst {dimension_numbers = #tpu.dot_dimension_numbers<[1], [0], [0], [1], [0, 0, 1, 1], [], []>} : vector<128x4xbf16>, vector<4x16xbf16>, vector<128x16xf32> -> vector<128x16xf32>
    %34 = arith.truncf %6 : vector<128x4xf32> to vector<128x4xbf16>
    %c0_12 = arith.constant 0 : index
    %c0_13 = arith.constant 0 : index
    %35 = vector.load %arg5[%c0_12, %c0_13] : memref<4x16xbf16, #tpu.memory_space<vmem>>, vector<4x16xbf16>
    %cst_14 = arith.constant dense<0.000000e+00> : vector<128x16xf32>
    %36 = tpu.matmul %34, %35, %cst_14 {dimension_numbers = #tpu.dot_dimension_numbers<[1], [0], [0], [1], [0, 0, 1, 1], [], []>} : vector<128x4xbf16>, vector<4x16xbf16>, vector<128x16xf32> -> vector<128x16xf32>
    %37 = arith.addf %33, %36 : vector<128x16xf32>
    %c0_15 = arith.constant 0 : index
    %c0_16 = arith.constant 0 : index
    %38 = vector.load %arg6[%c0_15, %c0_16] : memref<1x16xf32, #tpu.memory_space<vmem>>, vector<1x16xf32>
    %39 = vector.broadcast %38 : vector<1x16xf32> to vector<128x16xf32>
    %40 = arith.addf %37, %39 : vector<128x16xf32>
    %cst_17 = arith.constant 0.000000e+00 : f32
    %41 = vector.broadcast %cst_17 : f32 to vector<128x16xf32>
    %42 = arith.cmpf ogt, %40, %41 : vector<128x16xf32>
    %cst_18 = arith.constant 0.000000e+00 : f32
    %43 = vector.broadcast %cst_18 : f32 to vector<128x16xf32>
    %44 = arith.minimumf %40, %43 : vector<128x16xf32>
    %45 = math.exp %44 : vector<128x16xf32>
    %cst_19 = arith.constant 1.000000e+00 : f32
    %46 = vector.broadcast %cst_19 : f32 to vector<128x16xf32>
    %47 = arith.subf %45, %46 : vector<128x16xf32>
    %48 = arith.select %42, %40, %47 : vector<128x16xi1>, vector<128x16xf32>
    %c0_20 = arith.constant 0 : index
    %c0_21 = arith.constant 0 : index
    %49 = vector.load %arg7[%c0_20, %c0_21] : memref<128x16xf32, #tpu.memory_space<vmem>>, vector<128x16xf32>
    tpu.vector_store %arg7[%c0_20, %c0_21], %48 {strides = array<i32>} : memref<128x16xf32, #tpu.memory_space<vmem>>, vector<128x16xf32>,
    %cst_22 = arith.constant dense<0.000000e+00> : vector<16xf32>
    %50 = vector.multi_reduction <add>, %48, %cst_22 [0] : vector<128x16xf32> to vector<16xf32>
    %51 = vector.shape_cast %50 : vector<16xf32> to vector<1x16xf32>
    %52 = arith.mulf %48, %48 : vector<128x16xf32>
    %cst_23 = arith.constant dense<0.000000e+00> : vector<16xf32>
    %53 = vector.multi_reduction <add>, %52, %cst_23 [0] : vector<128x16xf32> to vector<16xf32>
    %54 = vector.shape_cast %53 : vector<16xf32> to vector<1x16xf32>
    %55 = tpu.concatenate %51, %54 in 0 : vector<1x16xf32>, vector<1x16xf32> -> vector<2x16xf32>
    %c0_24 = arith.constant 0 : index
    %c0_25 = arith.constant 0 : index
    %c0_26 = arith.constant 0 : index
    %56 = vector.load %arg8[%c0_24, %c0_25, %c0_26] : memref<1x2x16xf32, #tpu.memory_space<vmem>>, vector<1x2x16xf32>
    %57 = vector.shape_cast %56 : vector<1x2x16xf32> to vector<2x16xf32>
    %58 = vector.shape_cast %55 : vector<2x16xf32> to vector<1x2x16xf32>
    tpu.vector_store %arg8[%c0_24, %c0_25, %c0_26], %58 {strides = array<i32>} : memref<1x2x16xf32, #tpu.memory_space<vmem>>, vector<1x2x16xf32>,
    return
  }
  func.func @transform_0(%arg0: i32) -> (i32, i32) {
    %c0_i32 = arith.constant 0 : i32
    %c0_i32_0 = arith.constant 0 : i32
    return %arg0, %c0_i32 : i32, i32
  }
  func.func @transform_1(%arg0: i32) -> (i32, i32) {
    %c0_i32 = arith.constant 0 : i32
    %c0_i32_0 = arith.constant 0 : i32
    %c0_i32_1 = arith.constant 0 : i32
    return %c0_i32, %c0_i32_0 : i32, i32
  }
  func.func @transform_2(%arg0: i32) -> (i32, i32) {
    %c0_i32 = arith.constant 0 : i32
    %c0_i32_0 = arith.constant 0 : i32
    %c0_i32_1 = arith.constant 0 : i32
    return %c0_i32, %c0_i32_0 : i32, i32
  }
  func.func @transform_3(%arg0: i32) -> (i32, i32) {
    %c0_i32 = arith.constant 0 : i32
    %c0_i32_0 = arith.constant 0 : i32
    %c0_i32_1 = arith.constant 0 : i32
    return %c0_i32, %c0_i32_0 : i32, i32
  }
  func.func @transform_4(%arg0: i32) -> (i32, i32) {
    %c0_i32 = arith.constant 0 : i32
    %c0_i32_0 = arith.constant 0 : i32
    %c0_i32_1 = arith.constant 0 : i32
    return %c0_i32, %c0_i32_0 : i32, i32
  }
  func.func @transform_5(%arg0: i32) -> (i32, i32) {
    %c0_i32 = arith.constant 0 : i32
    %c0_i32_0 = arith.constant 0 : i32
    %c0_i32_1 = arith.constant 0 : i32
    return %c0_i32, %c0_i32_0 : i32, i32
  }
  func.func @transform_6(%arg0: i32) -> (i32, i32) {
    %c0_i32 = arith.constant 0 : i32
    %c0_i32_0 = arith.constant 0 : i32
    return %arg0, %c0_i32 : i32, i32
  }
  func.func @transform_7(%arg0: i32) -> (i32, i32, i32) {
    %c0_i32 = arith.constant 0 : i32
    %c0_i32_0 = arith.constant 0 : i32
    %c0_i32_1 = arith.constant 0 : i32
    return %arg0, %c0_i32, %c0_i32_0 : i32, i32, i32
  }
}

module attributes {stable_mosaic.version = 11 : i64} {
  func.func @_enc_conv_kernel(%arg0: i32, %arg1: memref<64x32xf32, #tpu.memory_space<vmem>>, %arg2: memref<1x32xf32, #tpu.memory_space<vmem>>, %arg3: memref<1x32xf32, #tpu.memory_space<vmem>>, %arg4: memref<32x32xbf16, #tpu.memory_space<vmem>>, %arg5: memref<32x32xbf16, #tpu.memory_space<vmem>>, %arg6: memref<1x32xf32, #tpu.memory_space<vmem>>, %arg7: memref<64x32xf32, #tpu.memory_space<vmem>>, %arg8: memref<1x2x32xf32, #tpu.memory_space<vmem>>) attributes {dimension_semantics = [#tpu.dimension_semantics<parallel>], iteration_bounds = array<i64: 1>, scalar_prefetch = 0 : i64, scratch_operands = 0 : i64, tpu.core_type = #tpu.core_type<tc>, window_params = [{transform_indices = @transform_0, window_bounds = array<i64: 64, 32>}, {pipeline_mode = #tpu.pipeline_mode<synchronous>, transform_indices = @transform_1, window_bounds = array<i64: 1, 32>}, {pipeline_mode = #tpu.pipeline_mode<synchronous>, transform_indices = @transform_2, window_bounds = array<i64: 1, 32>}, {pipeline_mode = #tpu.pipeline_mode<synchronous>, transform_indices = @transform_3, window_bounds = array<i64: 32, 32>}, {pipeline_mode = #tpu.pipeline_mode<synchronous>, transform_indices = @transform_4, window_bounds = array<i64: 32, 32>}, {pipeline_mode = #tpu.pipeline_mode<synchronous>, transform_indices = @transform_5, window_bounds = array<i64: 1, 32>}, {transform_indices = @transform_6, window_bounds = array<i64: 64, 32>}, {transform_indices = @transform_7, window_bounds = array<i64: 1, 2, 32>}]} {
    %c0 = arith.constant 0 : index
    %c0_0 = arith.constant 0 : index
    %0 = vector.load %arg1[%c0, %c0_0] : memref<64x32xf32, #tpu.memory_space<vmem>>, vector<64x32xf32>
    %c0_1 = arith.constant 0 : index
    %c0_2 = arith.constant 0 : index
    %1 = vector.load %arg2[%c0_1, %c0_2] : memref<1x32xf32, #tpu.memory_space<vmem>>, vector<1x32xf32>
    %2 = vector.broadcast %1 : vector<1x32xf32> to vector<64x32xf32>
    %3 = arith.mulf %0, %2 : vector<64x32xf32>
    %c0_3 = arith.constant 0 : index
    %c0_4 = arith.constant 0 : index
    %4 = vector.load %arg3[%c0_3, %c0_4] : memref<1x32xf32, #tpu.memory_space<vmem>>, vector<1x32xf32>
    %5 = vector.broadcast %4 : vector<1x32xf32> to vector<64x32xf32>
    %6 = arith.addf %3, %5 : vector<64x32xf32>
    %7 = tpu.iota {dimensions = array<i32: 0>} : vector<64x1xi32>
    %c32_i32 = arith.constant 32 : i32
    %c0_i32 = arith.constant 0 : i32
    %8 = arith.cmpi eq, %c32_i32, %c0_i32 : i32
    %c1_i32 = arith.constant 1 : i32
    %9 = arith.select %8, %c1_i32, %c32_i32 : i32
    %10 = vector.broadcast %9 : i32 to vector<64x1xi32>
    %11 = arith.remsi %7, %10 : vector<64x1xi32>
    %c0_i32_5 = arith.constant 0 : i32
    %12 = vector.broadcast %c0_i32_5 : i32 to vector<64x1xi32>
    %13 = arith.cmpi ne, %11, %12 : vector<64x1xi32>
    %c0_i32_6 = arith.constant 0 : i32
    %14 = vector.broadcast %c0_i32_6 : i32 to vector<64x1xi32>
    %15 = arith.cmpi slt, %11, %14 : vector<64x1xi32>
    %c0_i32_7 = arith.constant 0 : i32
    %16 = arith.cmpi slt, %9, %c0_i32_7 : i32
    %17 = vector.broadcast %16 : i1 to vector<64x1xi1>
    %18 = vector.broadcast %17 : vector<64x1xi1> to vector<64x1xi1>
    %19 = arith.xori %15, %18 : vector<64x1xi1>
    %20 = arith.andi %19, %13 : vector<64x1xi1>
    %21 = vector.broadcast %9 : i32 to vector<64x1xi32>
    %22 = arith.addi %11, %21 : vector<64x1xi32>
    %23 = arith.select %20, %22, %11 : vector<64x1xi1>, vector<64x1xi32>
    %c0_i32_8 = arith.constant 0 : i32
    %24 = vector.broadcast %c0_i32_8 : i32 to vector<64x1xi32>
    %25 = arith.cmpi ne, %23, %24 : vector<64x1xi32>
    %26 = arith.extui %25 : vector<64x1xi1> to vector<64x1xi32>
    %27 = arith.sitofp %26 : vector<64x1xi32> to vector<64x1xf32>
    %c1_i32_9 = arith.constant 1 : i32
    %28 = tpu.dynamic_rotate %6 by %c1_i32_9 dim 0 : vector<64x32xf32>, i32 -> vector<64x32xf32>
    %29 = vector.broadcast %27 : vector<64x1xf32> to vector<64x32xf32>
    %30 = arith.mulf %28, %29 : vector<64x32xf32>
    %31 = arith.truncf %30 : vector<64x32xf32> to vector<64x32xbf16>
    %c0_10 = arith.constant 0 : index
    %c0_11 = arith.constant 0 : index
    %32 = vector.load %arg4[%c0_10, %c0_11] : memref<32x32xbf16, #tpu.memory_space<vmem>>, vector<32x32xbf16>
    %cst = arith.constant dense<0.000000e+00> : vector<64x32xf32>
    %33 = tpu.matmul %31, %32, %cst {dimension_numbers = #tpu.dot_dimension_numbers<[1], [0], [0], [1], [0, 0, 1, 1], [], []>} : vector<64x32xbf16>, vector<32x32xbf16>, vector<64x32xf32> -> vector<64x32xf32>
    %34 = arith.truncf %6 : vector<64x32xf32> to vector<64x32xbf16>
    %c0_12 = arith.constant 0 : index
    %c0_13 = arith.constant 0 : index
    %35 = vector.load %arg5[%c0_12, %c0_13] : memref<32x32xbf16, #tpu.memory_space<vmem>>, vector<32x32xbf16>
    %cst_14 = arith.constant dense<0.000000e+00> : vector<64x32xf32>
    %36 = tpu.matmul %34, %35, %cst_14 {dimension_numbers = #tpu.dot_dimension_numbers<[1], [0], [0], [1], [0, 0, 1, 1], [], []>} : vector<64x32xbf16>, vector<32x32xbf16>, vector<64x32xf32> -> vector<64x32xf32>
    %37 = arith.addf %33, %36 : vector<64x32xf32>
    %c0_15 = arith.constant 0 : index
    %c0_16 = arith.constant 0 : index
    %38 = vector.load %arg6[%c0_15, %c0_16] : memref<1x32xf32, #tpu.memory_space<vmem>>, vector<1x32xf32>
    %39 = vector.broadcast %38 : vector<1x32xf32> to vector<64x32xf32>
    %40 = arith.addf %37, %39 : vector<64x32xf32>
    %cst_17 = arith.constant 0.000000e+00 : f32
    %41 = vector.broadcast %cst_17 : f32 to vector<64x32xf32>
    %42 = arith.cmpf ogt, %40, %41 : vector<64x32xf32>
    %cst_18 = arith.constant 0.000000e+00 : f32
    %43 = vector.broadcast %cst_18 : f32 to vector<64x32xf32>
    %44 = arith.minimumf %40, %43 : vector<64x32xf32>
    %45 = math.exp %44 : vector<64x32xf32>
    %cst_19 = arith.constant 1.000000e+00 : f32
    %46 = vector.broadcast %cst_19 : f32 to vector<64x32xf32>
    %47 = arith.subf %45, %46 : vector<64x32xf32>
    %48 = arith.select %42, %40, %47 : vector<64x32xi1>, vector<64x32xf32>
    %c0_20 = arith.constant 0 : index
    %c0_21 = arith.constant 0 : index
    %49 = vector.load %arg7[%c0_20, %c0_21] : memref<64x32xf32, #tpu.memory_space<vmem>>, vector<64x32xf32>
    tpu.vector_store %arg7[%c0_20, %c0_21], %48 {strides = array<i32>} : memref<64x32xf32, #tpu.memory_space<vmem>>, vector<64x32xf32>,
    %cst_22 = arith.constant dense<0.000000e+00> : vector<32xf32>
    %50 = vector.multi_reduction <add>, %48, %cst_22 [0] : vector<64x32xf32> to vector<32xf32>
    %51 = vector.shape_cast %50 : vector<32xf32> to vector<1x32xf32>
    %52 = arith.mulf %48, %48 : vector<64x32xf32>
    %cst_23 = arith.constant dense<0.000000e+00> : vector<32xf32>
    %53 = vector.multi_reduction <add>, %52, %cst_23 [0] : vector<64x32xf32> to vector<32xf32>
    %54 = vector.shape_cast %53 : vector<32xf32> to vector<1x32xf32>
    %55 = tpu.concatenate %51, %54 in 0 : vector<1x32xf32>, vector<1x32xf32> -> vector<2x32xf32>
    %c0_24 = arith.constant 0 : index
    %c0_25 = arith.constant 0 : index
    %c0_26 = arith.constant 0 : index
    %56 = vector.load %arg8[%c0_24, %c0_25, %c0_26] : memref<1x2x32xf32, #tpu.memory_space<vmem>>, vector<1x2x32xf32>
    %57 = vector.shape_cast %56 : vector<1x2x32xf32> to vector<2x32xf32>
    %58 = vector.shape_cast %55 : vector<2x32xf32> to vector<1x2x32xf32>
    tpu.vector_store %arg8[%c0_24, %c0_25, %c0_26], %58 {strides = array<i32>} : memref<1x2x32xf32, #tpu.memory_space<vmem>>, vector<1x2x32xf32>,
    return
  }
  func.func @transform_0(%arg0: i32) -> (i32, i32) {
    %c0_i32 = arith.constant 0 : i32
    %c0_i32_0 = arith.constant 0 : i32
    return %arg0, %c0_i32 : i32, i32
  }
  func.func @transform_1(%arg0: i32) -> (i32, i32) {
    %c0_i32 = arith.constant 0 : i32
    %c0_i32_0 = arith.constant 0 : i32
    %c0_i32_1 = arith.constant 0 : i32
    return %c0_i32, %c0_i32_0 : i32, i32
  }
  func.func @transform_2(%arg0: i32) -> (i32, i32) {
    %c0_i32 = arith.constant 0 : i32
    %c0_i32_0 = arith.constant 0 : i32
    %c0_i32_1 = arith.constant 0 : i32
    return %c0_i32, %c0_i32_0 : i32, i32
  }
  func.func @transform_3(%arg0: i32) -> (i32, i32) {
    %c0_i32 = arith.constant 0 : i32
    %c0_i32_0 = arith.constant 0 : i32
    %c0_i32_1 = arith.constant 0 : i32
    return %c0_i32, %c0_i32_0 : i32, i32
  }
  func.func @transform_4(%arg0: i32) -> (i32, i32) {
    %c0_i32 = arith.constant 0 : i32
    %c0_i32_0 = arith.constant 0 : i32
    %c0_i32_1 = arith.constant 0 : i32
    return %c0_i32, %c0_i32_0 : i32, i32
  }
  func.func @transform_5(%arg0: i32) -> (i32, i32) {
    %c0_i32 = arith.constant 0 : i32
    %c0_i32_0 = arith.constant 0 : i32
    %c0_i32_1 = arith.constant 0 : i32
    return %c0_i32, %c0_i32_0 : i32, i32
  }
  func.func @transform_6(%arg0: i32) -> (i32, i32) {
    %c0_i32 = arith.constant 0 : i32
    %c0_i32_0 = arith.constant 0 : i32
    return %arg0, %c0_i32 : i32, i32
  }
  func.func @transform_7(%arg0: i32) -> (i32, i32, i32) {
    %c0_i32 = arith.constant 0 : i32
    %c0_i32_0 = arith.constant 0 : i32
    %c0_i32_1 = arith.constant 0 : i32
    return %arg0, %c0_i32, %c0_i32_0 : i32, i32, i32
  }
}

module attributes {stable_mosaic.version = 11 : i64} {
  func.func @_enc_conv_kernel(%arg0: i32, %arg1: memref<32x64xf32, #tpu.memory_space<vmem>>, %arg2: memref<1x64xf32, #tpu.memory_space<vmem>>, %arg3: memref<1x64xf32, #tpu.memory_space<vmem>>, %arg4: memref<64x64xbf16, #tpu.memory_space<vmem>>, %arg5: memref<64x64xbf16, #tpu.memory_space<vmem>>, %arg6: memref<1x64xf32, #tpu.memory_space<vmem>>, %arg7: memref<32x64xf32, #tpu.memory_space<vmem>>, %arg8: memref<1x2x64xf32, #tpu.memory_space<vmem>>) attributes {dimension_semantics = [#tpu.dimension_semantics<parallel>], iteration_bounds = array<i64: 1>, scalar_prefetch = 0 : i64, scratch_operands = 0 : i64, tpu.core_type = #tpu.core_type<tc>, window_params = [{transform_indices = @transform_0, window_bounds = array<i64: 32, 64>}, {pipeline_mode = #tpu.pipeline_mode<synchronous>, transform_indices = @transform_1, window_bounds = array<i64: 1, 64>}, {pipeline_mode = #tpu.pipeline_mode<synchronous>, transform_indices = @transform_2, window_bounds = array<i64: 1, 64>}, {pipeline_mode = #tpu.pipeline_mode<synchronous>, transform_indices = @transform_3, window_bounds = array<i64: 64, 64>}, {pipeline_mode = #tpu.pipeline_mode<synchronous>, transform_indices = @transform_4, window_bounds = array<i64: 64, 64>}, {pipeline_mode = #tpu.pipeline_mode<synchronous>, transform_indices = @transform_5, window_bounds = array<i64: 1, 64>}, {transform_indices = @transform_6, window_bounds = array<i64: 32, 64>}, {transform_indices = @transform_7, window_bounds = array<i64: 1, 2, 64>}]} {
    %c0 = arith.constant 0 : index
    %c0_0 = arith.constant 0 : index
    %0 = vector.load %arg1[%c0, %c0_0] : memref<32x64xf32, #tpu.memory_space<vmem>>, vector<32x64xf32>
    %c0_1 = arith.constant 0 : index
    %c0_2 = arith.constant 0 : index
    %1 = vector.load %arg2[%c0_1, %c0_2] : memref<1x64xf32, #tpu.memory_space<vmem>>, vector<1x64xf32>
    %2 = vector.broadcast %1 : vector<1x64xf32> to vector<32x64xf32>
    %3 = arith.mulf %0, %2 : vector<32x64xf32>
    %c0_3 = arith.constant 0 : index
    %c0_4 = arith.constant 0 : index
    %4 = vector.load %arg3[%c0_3, %c0_4] : memref<1x64xf32, #tpu.memory_space<vmem>>, vector<1x64xf32>
    %5 = vector.broadcast %4 : vector<1x64xf32> to vector<32x64xf32>
    %6 = arith.addf %3, %5 : vector<32x64xf32>
    %7 = tpu.iota {dimensions = array<i32: 0>} : vector<32x1xi32>
    %c16_i32 = arith.constant 16 : i32
    %c0_i32 = arith.constant 0 : i32
    %8 = arith.cmpi eq, %c16_i32, %c0_i32 : i32
    %c1_i32 = arith.constant 1 : i32
    %9 = arith.select %8, %c1_i32, %c16_i32 : i32
    %10 = vector.broadcast %9 : i32 to vector<32x1xi32>
    %11 = arith.remsi %7, %10 : vector<32x1xi32>
    %c0_i32_5 = arith.constant 0 : i32
    %12 = vector.broadcast %c0_i32_5 : i32 to vector<32x1xi32>
    %13 = arith.cmpi ne, %11, %12 : vector<32x1xi32>
    %c0_i32_6 = arith.constant 0 : i32
    %14 = vector.broadcast %c0_i32_6 : i32 to vector<32x1xi32>
    %15 = arith.cmpi slt, %11, %14 : vector<32x1xi32>
    %c0_i32_7 = arith.constant 0 : i32
    %16 = arith.cmpi slt, %9, %c0_i32_7 : i32
    %17 = vector.broadcast %16 : i1 to vector<32x1xi1>
    %18 = vector.broadcast %17 : vector<32x1xi1> to vector<32x1xi1>
    %19 = arith.xori %15, %18 : vector<32x1xi1>
    %20 = arith.andi %19, %13 : vector<32x1xi1>
    %21 = vector.broadcast %9 : i32 to vector<32x1xi32>
    %22 = arith.addi %11, %21 : vector<32x1xi32>
    %23 = arith.select %20, %22, %11 : vector<32x1xi1>, vector<32x1xi32>
    %c0_i32_8 = arith.constant 0 : i32
    %24 = vector.broadcast %c0_i32_8 : i32 to vector<32x1xi32>
    %25 = arith.cmpi ne, %23, %24 : vector<32x1xi32>
    %26 = arith.extui %25 : vector<32x1xi1> to vector<32x1xi32>
    %27 = arith.sitofp %26 : vector<32x1xi32> to vector<32x1xf32>
    %c1_i32_9 = arith.constant 1 : i32
    %28 = tpu.dynamic_rotate %6 by %c1_i32_9 dim 0 : vector<32x64xf32>, i32 -> vector<32x64xf32>
    %29 = vector.broadcast %27 : vector<32x1xf32> to vector<32x64xf32>
    %30 = arith.mulf %28, %29 : vector<32x64xf32>
    %31 = arith.truncf %30 : vector<32x64xf32> to vector<32x64xbf16>
    %c0_10 = arith.constant 0 : index
    %c0_11 = arith.constant 0 : index
    %32 = vector.load %arg4[%c0_10, %c0_11] : memref<64x64xbf16, #tpu.memory_space<vmem>>, vector<64x64xbf16>
    %cst = arith.constant dense<0.000000e+00> : vector<32x64xf32>
    %33 = tpu.matmul %31, %32, %cst {dimension_numbers = #tpu.dot_dimension_numbers<[1], [0], [0], [1], [0, 0, 1, 1], [], []>} : vector<32x64xbf16>, vector<64x64xbf16>, vector<32x64xf32> -> vector<32x64xf32>
    %34 = arith.truncf %6 : vector<32x64xf32> to vector<32x64xbf16>
    %c0_12 = arith.constant 0 : index
    %c0_13 = arith.constant 0 : index
    %35 = vector.load %arg5[%c0_12, %c0_13] : memref<64x64xbf16, #tpu.memory_space<vmem>>, vector<64x64xbf16>
    %cst_14 = arith.constant dense<0.000000e+00> : vector<32x64xf32>
    %36 = tpu.matmul %34, %35, %cst_14 {dimension_numbers = #tpu.dot_dimension_numbers<[1], [0], [0], [1], [0, 0, 1, 1], [], []>} : vector<32x64xbf16>, vector<64x64xbf16>, vector<32x64xf32> -> vector<32x64xf32>
    %37 = arith.addf %33, %36 : vector<32x64xf32>
    %c0_15 = arith.constant 0 : index
    %c0_16 = arith.constant 0 : index
    %38 = vector.load %arg6[%c0_15, %c0_16] : memref<1x64xf32, #tpu.memory_space<vmem>>, vector<1x64xf32>
    %39 = vector.broadcast %38 : vector<1x64xf32> to vector<32x64xf32>
    %40 = arith.addf %37, %39 : vector<32x64xf32>
    %cst_17 = arith.constant 0.000000e+00 : f32
    %41 = vector.broadcast %cst_17 : f32 to vector<32x64xf32>
    %42 = arith.cmpf ogt, %40, %41 : vector<32x64xf32>
    %cst_18 = arith.constant 0.000000e+00 : f32
    %43 = vector.broadcast %cst_18 : f32 to vector<32x64xf32>
    %44 = arith.minimumf %40, %43 : vector<32x64xf32>
    %45 = math.exp %44 : vector<32x64xf32>
    %cst_19 = arith.constant 1.000000e+00 : f32
    %46 = vector.broadcast %cst_19 : f32 to vector<32x64xf32>
    %47 = arith.subf %45, %46 : vector<32x64xf32>
    %48 = arith.select %42, %40, %47 : vector<32x64xi1>, vector<32x64xf32>
    %c0_20 = arith.constant 0 : index
    %c0_21 = arith.constant 0 : index
    %49 = vector.load %arg7[%c0_20, %c0_21] : memref<32x64xf32, #tpu.memory_space<vmem>>, vector<32x64xf32>
    tpu.vector_store %arg7[%c0_20, %c0_21], %48 {strides = array<i32>} : memref<32x64xf32, #tpu.memory_space<vmem>>, vector<32x64xf32>,
    %cst_22 = arith.constant dense<0.000000e+00> : vector<64xf32>
    %50 = vector.multi_reduction <add>, %48, %cst_22 [0] : vector<32x64xf32> to vector<64xf32>
    %51 = vector.shape_cast %50 : vector<64xf32> to vector<1x64xf32>
    %52 = arith.mulf %48, %48 : vector<32x64xf32>
    %cst_23 = arith.constant dense<0.000000e+00> : vector<64xf32>
    %53 = vector.multi_reduction <add>, %52, %cst_23 [0] : vector<32x64xf32> to vector<64xf32>
    %54 = vector.shape_cast %53 : vector<64xf32> to vector<1x64xf32>
    %55 = tpu.concatenate %51, %54 in 0 : vector<1x64xf32>, vector<1x64xf32> -> vector<2x64xf32>
    %c0_24 = arith.constant 0 : index
    %c0_25 = arith.constant 0 : index
    %c0_26 = arith.constant 0 : index
    %56 = vector.load %arg8[%c0_24, %c0_25, %c0_26] : memref<1x2x64xf32, #tpu.memory_space<vmem>>, vector<1x2x64xf32>
    %57 = vector.shape_cast %56 : vector<1x2x64xf32> to vector<2x64xf32>
    %58 = vector.shape_cast %55 : vector<2x64xf32> to vector<1x2x64xf32>
    tpu.vector_store %arg8[%c0_24, %c0_25, %c0_26], %58 {strides = array<i32>} : memref<1x2x64xf32, #tpu.memory_space<vmem>>, vector<1x2x64xf32>,
    return
  }
  func.func @transform_0(%arg0: i32) -> (i32, i32) {
    %c0_i32 = arith.constant 0 : i32
    %c0_i32_0 = arith.constant 0 : i32
    return %arg0, %c0_i32 : i32, i32
  }
  func.func @transform_1(%arg0: i32) -> (i32, i32) {
    %c0_i32 = arith.constant 0 : i32
    %c0_i32_0 = arith.constant 0 : i32
    %c0_i32_1 = arith.constant 0 : i32
    return %c0_i32, %c0_i32_0 : i32, i32
  }
  func.func @transform_2(%arg0: i32) -> (i32, i32) {
    %c0_i32 = arith.constant 0 : i32
    %c0_i32_0 = arith.constant 0 : i32
    %c0_i32_1 = arith.constant 0 : i32
    return %c0_i32, %c0_i32_0 : i32, i32
  }
  func.func @transform_3(%arg0: i32) -> (i32, i32) {
    %c0_i32 = arith.constant 0 : i32
    %c0_i32_0 = arith.constant 0 : i32
    %c0_i32_1 = arith.constant 0 : i32
    return %c0_i32, %c0_i32_0 : i32, i32
  }
  func.func @transform_4(%arg0: i32) -> (i32, i32) {
    %c0_i32 = arith.constant 0 : i32
    %c0_i32_0 = arith.constant 0 : i32
    %c0_i32_1 = arith.constant 0 : i32
    return %c0_i32, %c0_i32_0 : i32, i32
  }
  func.func @transform_5(%arg0: i32) -> (i32, i32) {
    %c0_i32 = arith.constant 0 : i32
    %c0_i32_0 = arith.constant 0 : i32
    %c0_i32_1 = arith.constant 0 : i32
    return %c0_i32, %c0_i32_0 : i32, i32
  }
  func.func @transform_6(%arg0: i32) -> (i32, i32) {
    %c0_i32 = arith.constant 0 : i32
    %c0_i32_0 = arith.constant 0 : i32
    return %arg0, %c0_i32 : i32, i32
  }
  func.func @transform_7(%arg0: i32) -> (i32, i32, i32) {
    %c0_i32 = arith.constant 0 : i32
    %c0_i32_0 = arith.constant 0 : i32
    %c0_i32_1 = arith.constant 0 : i32
    return %arg0, %c0_i32, %c0_i32_0 : i32, i32, i32
  }
}

module attributes {stable_mosaic.version = 11 : i64} {
  func.func @_enc_conv_kernel(%arg0: i32, %arg1: memref<16x128xf32, #tpu.memory_space<vmem>>, %arg2: memref<1x128xf32, #tpu.memory_space<vmem>>, %arg3: memref<1x128xf32, #tpu.memory_space<vmem>>, %arg4: memref<128x128xbf16, #tpu.memory_space<vmem>>, %arg5: memref<128x128xbf16, #tpu.memory_space<vmem>>, %arg6: memref<1x128xf32, #tpu.memory_space<vmem>>, %arg7: memref<16x128xf32, #tpu.memory_space<vmem>>, %arg8: memref<1x2x128xf32, #tpu.memory_space<vmem>>) attributes {dimension_semantics = [#tpu.dimension_semantics<parallel>], iteration_bounds = array<i64: 1>, scalar_prefetch = 0 : i64, scratch_operands = 0 : i64, tpu.core_type = #tpu.core_type<tc>, window_params = [{transform_indices = @transform_0, window_bounds = array<i64: 16, 128>}, {pipeline_mode = #tpu.pipeline_mode<synchronous>, transform_indices = @transform_1, window_bounds = array<i64: 1, 128>}, {pipeline_mode = #tpu.pipeline_mode<synchronous>, transform_indices = @transform_2, window_bounds = array<i64: 1, 128>}, {pipeline_mode = #tpu.pipeline_mode<synchronous>, transform_indices = @transform_3, window_bounds = array<i64: 128, 128>}, {pipeline_mode = #tpu.pipeline_mode<synchronous>, transform_indices = @transform_4, window_bounds = array<i64: 128, 128>}, {pipeline_mode = #tpu.pipeline_mode<synchronous>, transform_indices = @transform_5, window_bounds = array<i64: 1, 128>}, {transform_indices = @transform_6, window_bounds = array<i64: 16, 128>}, {transform_indices = @transform_7, window_bounds = array<i64: 1, 2, 128>}]} {
    %c0 = arith.constant 0 : index
    %c0_0 = arith.constant 0 : index
    %0 = vector.load %arg1[%c0, %c0_0] : memref<16x128xf32, #tpu.memory_space<vmem>>, vector<16x128xf32>
    %c0_1 = arith.constant 0 : index
    %c0_2 = arith.constant 0 : index
    %1 = vector.load %arg2[%c0_1, %c0_2] : memref<1x128xf32, #tpu.memory_space<vmem>>, vector<1x128xf32>
    %2 = vector.broadcast %1 : vector<1x128xf32> to vector<16x128xf32>
    %3 = arith.mulf %0, %2 : vector<16x128xf32>
    %c0_3 = arith.constant 0 : index
    %c0_4 = arith.constant 0 : index
    %4 = vector.load %arg3[%c0_3, %c0_4] : memref<1x128xf32, #tpu.memory_space<vmem>>, vector<1x128xf32>
    %5 = vector.broadcast %4 : vector<1x128xf32> to vector<16x128xf32>
    %6 = arith.addf %3, %5 : vector<16x128xf32>
    %7 = tpu.iota {dimensions = array<i32: 0>} : vector<16x1xi32>
    %c8_i32 = arith.constant 8 : i32
    %c0_i32 = arith.constant 0 : i32
    %8 = arith.cmpi eq, %c8_i32, %c0_i32 : i32
    %c1_i32 = arith.constant 1 : i32
    %9 = arith.select %8, %c1_i32, %c8_i32 : i32
    %10 = vector.broadcast %9 : i32 to vector<16x1xi32>
    %11 = arith.remsi %7, %10 : vector<16x1xi32>
    %c0_i32_5 = arith.constant 0 : i32
    %12 = vector.broadcast %c0_i32_5 : i32 to vector<16x1xi32>
    %13 = arith.cmpi ne, %11, %12 : vector<16x1xi32>
    %c0_i32_6 = arith.constant 0 : i32
    %14 = vector.broadcast %c0_i32_6 : i32 to vector<16x1xi32>
    %15 = arith.cmpi slt, %11, %14 : vector<16x1xi32>
    %c0_i32_7 = arith.constant 0 : i32
    %16 = arith.cmpi slt, %9, %c0_i32_7 : i32
    %17 = vector.broadcast %16 : i1 to vector<16x1xi1>
    %18 = vector.broadcast %17 : vector<16x1xi1> to vector<16x1xi1>
    %19 = arith.xori %15, %18 : vector<16x1xi1>
    %20 = arith.andi %19, %13 : vector<16x1xi1>
    %21 = vector.broadcast %9 : i32 to vector<16x1xi32>
    %22 = arith.addi %11, %21 : vector<16x1xi32>
    %23 = arith.select %20, %22, %11 : vector<16x1xi1>, vector<16x1xi32>
    %c0_i32_8 = arith.constant 0 : i32
    %24 = vector.broadcast %c0_i32_8 : i32 to vector<16x1xi32>
    %25 = arith.cmpi ne, %23, %24 : vector<16x1xi32>
    %26 = arith.extui %25 : vector<16x1xi1> to vector<16x1xi32>
    %27 = arith.sitofp %26 : vector<16x1xi32> to vector<16x1xf32>
    %c1_i32_9 = arith.constant 1 : i32
    %28 = tpu.dynamic_rotate %6 by %c1_i32_9 dim 0 : vector<16x128xf32>, i32 -> vector<16x128xf32>
    %29 = vector.broadcast %27 : vector<16x1xf32> to vector<16x128xf32>
    %30 = arith.mulf %28, %29 : vector<16x128xf32>
    %31 = arith.truncf %30 : vector<16x128xf32> to vector<16x128xbf16>
    %c0_10 = arith.constant 0 : index
    %c0_11 = arith.constant 0 : index
    %32 = vector.load %arg4[%c0_10, %c0_11] : memref<128x128xbf16, #tpu.memory_space<vmem>>, vector<128x128xbf16>
    %cst = arith.constant dense<0.000000e+00> : vector<16x128xf32>
    %33 = tpu.matmul %31, %32, %cst {dimension_numbers = #tpu.dot_dimension_numbers<[1], [0], [0], [1], [0, 0, 1, 1], [], []>} : vector<16x128xbf16>, vector<128x128xbf16>, vector<16x128xf32> -> vector<16x128xf32>
    %34 = arith.truncf %6 : vector<16x128xf32> to vector<16x128xbf16>
    %c0_12 = arith.constant 0 : index
    %c0_13 = arith.constant 0 : index
    %35 = vector.load %arg5[%c0_12, %c0_13] : memref<128x128xbf16, #tpu.memory_space<vmem>>, vector<128x128xbf16>
    %cst_14 = arith.constant dense<0.000000e+00> : vector<16x128xf32>
    %36 = tpu.matmul %34, %35, %cst_14 {dimension_numbers = #tpu.dot_dimension_numbers<[1], [0], [0], [1], [0, 0, 1, 1], [], []>} : vector<16x128xbf16>, vector<128x128xbf16>, vector<16x128xf32> -> vector<16x128xf32>
    %37 = arith.addf %33, %36 : vector<16x128xf32>
    %c0_15 = arith.constant 0 : index
    %c0_16 = arith.constant 0 : index
    %38 = vector.load %arg6[%c0_15, %c0_16] : memref<1x128xf32, #tpu.memory_space<vmem>>, vector<1x128xf32>
    %39 = vector.broadcast %38 : vector<1x128xf32> to vector<16x128xf32>
    %40 = arith.addf %37, %39 : vector<16x128xf32>
    %cst_17 = arith.constant 0.000000e+00 : f32
    %41 = vector.broadcast %cst_17 : f32 to vector<16x128xf32>
    %42 = arith.cmpf ogt, %40, %41 : vector<16x128xf32>
    %cst_18 = arith.constant 0.000000e+00 : f32
    %43 = vector.broadcast %cst_18 : f32 to vector<16x128xf32>
    %44 = arith.minimumf %40, %43 : vector<16x128xf32>
    %45 = math.exp %44 : vector<16x128xf32>
    %cst_19 = arith.constant 1.000000e+00 : f32
    %46 = vector.broadcast %cst_19 : f32 to vector<16x128xf32>
    %47 = arith.subf %45, %46 : vector<16x128xf32>
    %48 = arith.select %42, %40, %47 : vector<16x128xi1>, vector<16x128xf32>
    %c0_20 = arith.constant 0 : index
    %c0_21 = arith.constant 0 : index
    %49 = vector.load %arg7[%c0_20, %c0_21] : memref<16x128xf32, #tpu.memory_space<vmem>>, vector<16x128xf32>
    tpu.vector_store %arg7[%c0_20, %c0_21], %48 {strides = array<i32>} : memref<16x128xf32, #tpu.memory_space<vmem>>, vector<16x128xf32>,
    %cst_22 = arith.constant dense<0.000000e+00> : vector<128xf32>
    %50 = vector.multi_reduction <add>, %48, %cst_22 [0] : vector<16x128xf32> to vector<128xf32>
    %51 = vector.shape_cast %50 : vector<128xf32> to vector<1x128xf32>
    %52 = arith.mulf %48, %48 : vector<16x128xf32>
    %cst_23 = arith.constant dense<0.000000e+00> : vector<128xf32>
    %53 = vector.multi_reduction <add>, %52, %cst_23 [0] : vector<16x128xf32> to vector<128xf32>
    %54 = vector.shape_cast %53 : vector<128xf32> to vector<1x128xf32>
    %55 = tpu.concatenate %51, %54 in 0 : vector<1x128xf32>, vector<1x128xf32> -> vector<2x128xf32>
    %c0_24 = arith.constant 0 : index
    %c0_25 = arith.constant 0 : index
    %c0_26 = arith.constant 0 : index
    %56 = vector.load %arg8[%c0_24, %c0_25, %c0_26] : memref<1x2x128xf32, #tpu.memory_space<vmem>>, vector<1x2x128xf32>
    %57 = vector.shape_cast %56 : vector<1x2x128xf32> to vector<2x128xf32>
    %58 = vector.shape_cast %55 : vector<2x128xf32> to vector<1x2x128xf32>
    tpu.vector_store %arg8[%c0_24, %c0_25, %c0_26], %58 {strides = array<i32>} : memref<1x2x128xf32, #tpu.memory_space<vmem>>, vector<1x2x128xf32>,
    return
  }
  func.func @transform_0(%arg0: i32) -> (i32, i32) {
    %c0_i32 = arith.constant 0 : i32
    %c0_i32_0 = arith.constant 0 : i32
    return %arg0, %c0_i32 : i32, i32
  }
  func.func @transform_1(%arg0: i32) -> (i32, i32) {
    %c0_i32 = arith.constant 0 : i32
    %c0_i32_0 = arith.constant 0 : i32
    %c0_i32_1 = arith.constant 0 : i32
    return %c0_i32, %c0_i32_0 : i32, i32
  }
  func.func @transform_2(%arg0: i32) -> (i32, i32) {
    %c0_i32 = arith.constant 0 : i32
    %c0_i32_0 = arith.constant 0 : i32
    %c0_i32_1 = arith.constant 0 : i32
    return %c0_i32, %c0_i32_0 : i32, i32
  }
  func.func @transform_3(%arg0: i32) -> (i32, i32) {
    %c0_i32 = arith.constant 0 : i32
    %c0_i32_0 = arith.constant 0 : i32
    %c0_i32_1 = arith.constant 0 : i32
    return %c0_i32, %c0_i32_0 : i32, i32
  }
  func.func @transform_4(%arg0: i32) -> (i32, i32) {
    %c0_i32 = arith.constant 0 : i32
    %c0_i32_0 = arith.constant 0 : i32
    %c0_i32_1 = arith.constant 0 : i32
    return %c0_i32, %c0_i32_0 : i32, i32
  }
  func.func @transform_5(%arg0: i32) -> (i32, i32) {
    %c0_i32 = arith.constant 0 : i32
    %c0_i32_0 = arith.constant 0 : i32
    %c0_i32_1 = arith.constant 0 : i32
    return %c0_i32, %c0_i32_0 : i32, i32
  }
  func.func @transform_6(%arg0: i32) -> (i32, i32) {
    %c0_i32 = arith.constant 0 : i32
    %c0_i32_0 = arith.constant 0 : i32
    return %arg0, %c0_i32 : i32, i32
  }
  func.func @transform_7(%arg0: i32) -> (i32, i32, i32) {
    %c0_i32 = arith.constant 0 : i32
    %c0_i32_0 = arith.constant 0 : i32
    %c0_i32_1 = arith.constant 0 : i32
    return %arg0, %c0_i32, %c0_i32_0 : i32, i32, i32
  }
}

module attributes {stable_mosaic.version = 11 : i64} {
  func.func @_fused_mid_kernel(%arg0: memref<8x256xf32, #tpu.memory_space<vmem>>, %arg1: memref<1x256xf32, #tpu.memory_space<vmem>>, %arg2: memref<1x256xf32, #tpu.memory_space<vmem>>, %arg3: memref<8x40xf32, #tpu.memory_space<vmem>>, %arg4: memref<256x256xbf16, #tpu.memory_space<vmem>>, %arg5: memref<256x256xbf16, #tpu.memory_space<vmem>>, %arg6: memref<1x256xf32, #tpu.memory_space<vmem>>, %arg7: memref<1x256xf32, #tpu.memory_space<vmem>>, %arg8: memref<1x256xf32, #tpu.memory_space<vmem>>, %arg9: memref<256x40xbf16, #tpu.memory_space<vmem>>, %arg10: memref<1x40xf32, #tpu.memory_space<vmem>>, %arg11: memref<40x256xbf16, #tpu.memory_space<vmem>>, %arg12: memref<40x256xbf16, #tpu.memory_space<vmem>>, %arg13: memref<1x256xf32, #tpu.memory_space<vmem>>, %arg14: memref<256x256xbf16, #tpu.memory_space<vmem>>, %arg15: memref<256x256xbf16, #tpu.memory_space<vmem>>, %arg16: memref<1x256xf32, #tpu.memory_space<vmem>>, %arg17: memref<8x40xf32, #tpu.memory_space<vmem>>, %arg18: memref<8x256xf32, #tpu.memory_space<vmem>>, %arg19: memref<1x2x256xf32, #tpu.memory_space<vmem>>) attributes {dimension_semantics = [], scalar_prefetch = 0 : i64, scratch_operands = 0 : i64, tpu.core_type = #tpu.core_type<tc>} {
    %c0 = arith.constant 0 : index
    %c0_0 = arith.constant 0 : index
    %0 = vector.load %arg0[%c0, %c0_0] : memref<8x256xf32, #tpu.memory_space<vmem>>, vector<8x256xf32>
    %c0_1 = arith.constant 0 : index
    %c0_2 = arith.constant 0 : index
    %1 = vector.load %arg1[%c0_1, %c0_2] : memref<1x256xf32, #tpu.memory_space<vmem>>, vector<1x256xf32>
    %2 = vector.broadcast %1 : vector<1x256xf32> to vector<8x256xf32>
    %3 = arith.mulf %0, %2 : vector<8x256xf32>
    %c0_3 = arith.constant 0 : index
    %c0_4 = arith.constant 0 : index
    %4 = vector.load %arg2[%c0_3, %c0_4] : memref<1x256xf32, #tpu.memory_space<vmem>>, vector<1x256xf32>
    %5 = vector.broadcast %4 : vector<1x256xf32> to vector<8x256xf32>
    %6 = arith.addf %3, %5 : vector<8x256xf32>
    %7 = tpu.iota {dimensions = array<i32: 0>} : vector<8x1xi32>
    %c4_i32 = arith.constant 4 : i32
    %c0_i32 = arith.constant 0 : i32
    %8 = arith.cmpi eq, %c4_i32, %c0_i32 : i32
    %c1_i32 = arith.constant 1 : i32
    %9 = arith.select %8, %c1_i32, %c4_i32 : i32
    %10 = vector.broadcast %9 : i32 to vector<8x1xi32>
    %11 = arith.remsi %7, %10 : vector<8x1xi32>
    %c0_i32_5 = arith.constant 0 : i32
    %12 = vector.broadcast %c0_i32_5 : i32 to vector<8x1xi32>
    %13 = arith.cmpi ne, %11, %12 : vector<8x1xi32>
    %c0_i32_6 = arith.constant 0 : i32
    %14 = vector.broadcast %c0_i32_6 : i32 to vector<8x1xi32>
    %15 = arith.cmpi slt, %11, %14 : vector<8x1xi32>
    %c0_i32_7 = arith.constant 0 : i32
    %16 = arith.cmpi slt, %9, %c0_i32_7 : i32
    %17 = vector.broadcast %16 : i1 to vector<8x1xi1>
    %18 = vector.broadcast %17 : vector<8x1xi1> to vector<8x1xi1>
    %19 = arith.xori %15, %18 : vector<8x1xi1>
    %20 = arith.andi %19, %13 : vector<8x1xi1>
    %21 = vector.broadcast %9 : i32 to vector<8x1xi32>
    %22 = arith.addi %11, %21 : vector<8x1xi32>
    %23 = arith.select %20, %22, %11 : vector<8x1xi1>, vector<8x1xi32>
    %c0_i32_8 = arith.constant 0 : i32
    %24 = vector.broadcast %c0_i32_8 : i32 to vector<8x1xi32>
    %25 = arith.cmpi ne, %23, %24 : vector<8x1xi32>
    %26 = arith.extui %25 : vector<8x1xi1> to vector<8x1xi32>
    %27 = arith.sitofp %26 : vector<8x1xi32> to vector<8x1xf32>
    %c3_i32 = arith.constant 3 : i32
    %28 = vector.broadcast %c3_i32 : i32 to vector<8x1xi32>
    %29 = arith.cmpi ne, %23, %28 : vector<8x1xi32>
    %30 = arith.extui %29 : vector<8x1xi1> to vector<8x1xi32>
    %31 = arith.sitofp %30 : vector<8x1xi32> to vector<8x1xf32>
    %c1_i32_9 = arith.constant 1 : i32
    %32 = tpu.dynamic_rotate %6 by %c1_i32_9 dim 0 : vector<8x256xf32>, i32 -> vector<8x256xf32>
    %33 = vector.broadcast %27 : vector<8x1xf32> to vector<8x256xf32>
    %34 = arith.mulf %32, %33 : vector<8x256xf32>
    %35 = arith.truncf %34 : vector<8x256xf32> to vector<8x256xbf16>
    %c0_10 = arith.constant 0 : index
    %c0_11 = arith.constant 0 : index
    %36 = vector.load %arg4[%c0_10, %c0_11] : memref<256x256xbf16, #tpu.memory_space<vmem>>, vector<256x256xbf16>
    %cst = arith.constant dense<0.000000e+00> : vector<8x256xf32>
    %37 = tpu.matmul %35, %36, %cst {dimension_numbers = #tpu.dot_dimension_numbers<[1], [0], [0], [1], [0, 0, 1, 1], [], []>} : vector<8x256xbf16>, vector<256x256xbf16>, vector<8x256xf32> -> vector<8x256xf32>
    %38 = arith.truncf %6 : vector<8x256xf32> to vector<8x256xbf16>
    %c0_12 = arith.constant 0 : index
    %c0_13 = arith.constant 0 : index
    %39 = vector.load %arg5[%c0_12, %c0_13] : memref<256x256xbf16, #tpu.memory_space<vmem>>, vector<256x256xbf16>
    %cst_14 = arith.constant dense<0.000000e+00> : vector<8x256xf32>
    %40 = tpu.matmul %38, %39, %cst_14 {dimension_numbers = #tpu.dot_dimension_numbers<[1], [0], [0], [1], [0, 0, 1, 1], [], []>} : vector<8x256xbf16>, vector<256x256xbf16>, vector<8x256xf32> -> vector<8x256xf32>
    %41 = arith.addf %37, %40 : vector<8x256xf32>
    %c0_15 = arith.constant 0 : index
    %c0_16 = arith.constant 0 : index
    %42 = vector.load %arg6[%c0_15, %c0_16] : memref<1x256xf32, #tpu.memory_space<vmem>>, vector<1x256xf32>
    %43 = vector.broadcast %42 : vector<1x256xf32> to vector<8x256xf32>
    %44 = arith.addf %41, %43 : vector<8x256xf32>
    %cst_17 = arith.constant 0.000000e+00 : f32
    %45 = vector.broadcast %cst_17 : f32 to vector<8x256xf32>
    %46 = arith.cmpf ogt, %44, %45 : vector<8x256xf32>
    %cst_18 = arith.constant 0.000000e+00 : f32
    %47 = vector.broadcast %cst_18 : f32 to vector<8x256xf32>
    %48 = arith.minimumf %44, %47 : vector<8x256xf32>
    %49 = math.exp %48 : vector<8x256xf32>
    %cst_19 = arith.constant 1.000000e+00 : f32
    %50 = vector.broadcast %cst_19 : f32 to vector<8x256xf32>
    %51 = arith.subf %49, %50 : vector<8x256xf32>
    %52 = arith.select %46, %44, %51 : vector<8x256xi1>, vector<8x256xf32>
    %cst_20 = arith.constant dense<0.000000e+00> : vector<256xf32>
    %53 = vector.multi_reduction <add>, %52, %cst_20 [0] : vector<8x256xf32> to vector<256xf32>
    %54 = vector.shape_cast %53 : vector<256xf32> to vector<1x256xf32>
    %cst_21 = arith.constant 1.250000e-01 : f32
    %55 = vector.broadcast %cst_21 : f32 to vector<1x256xf32>
    %56 = arith.mulf %54, %55 : vector<1x256xf32>
    %57 = arith.mulf %52, %52 : vector<8x256xf32>
    %cst_22 = arith.constant dense<0.000000e+00> : vector<256xf32>
    %58 = vector.multi_reduction <add>, %57, %cst_22 [0] : vector<8x256xf32> to vector<256xf32>
    %59 = vector.shape_cast %58 : vector<256xf32> to vector<1x256xf32>
    %cst_23 = arith.constant 1.250000e-01 : f32
    %60 = vector.broadcast %cst_23 : f32 to vector<1x256xf32>
    %61 = arith.mulf %59, %60 : vector<1x256xf32>
    %62 = arith.mulf %56, %56 : vector<1x256xf32>
    %63 = arith.subf %61, %62 : vector<1x256xf32>
    %cst_24 = arith.constant 0.000000e+00 : f32
    %64 = vector.broadcast %cst_24 : f32 to vector<1x256xf32>
    %65 = arith.maximumf %63, %64 : vector<1x256xf32>
    %66 = vector.broadcast %56 : vector<1x256xf32> to vector<8x256xf32>
    %67 = arith.subf %52, %66 : vector<8x256xf32>
    %cst_25 = arith.constant 9.99999974E-6 : f32
    %68 = vector.broadcast %cst_25 : f32 to vector<1x256xf32>
    %69 = arith.addf %65, %68 : vector<1x256xf32>
    %70 = math.rsqrt %69 : vector<1x256xf32>
    %c0_26 = arith.constant 0 : index
    %c0_27 = arith.constant 0 : index
    %71 = vector.load %arg7[%c0_26, %c0_27] : memref<1x256xf32, #tpu.memory_space<vmem>>, vector<1x256xf32>
    %72 = arith.mulf %70, %71 : vector<1x256xf32>
    %73 = vector.broadcast %72 : vector<1x256xf32> to vector<8x256xf32>
    %74 = arith.mulf %67, %73 : vector<8x256xf32>
    %c0_28 = arith.constant 0 : index
    %c0_29 = arith.constant 0 : index
    %75 = vector.load %arg8[%c0_28, %c0_29] : memref<1x256xf32, #tpu.memory_space<vmem>>, vector<1x256xf32>
    %76 = vector.broadcast %75 : vector<1x256xf32> to vector<8x256xf32>
    %77 = arith.addf %74, %76 : vector<8x256xf32>
    %78 = arith.truncf %77 : vector<8x256xf32> to vector<8x256xbf16>
    %c0_30 = arith.constant 0 : index
    %c0_31 = arith.constant 0 : index
    %79 = vector.load %arg9[%c0_30, %c0_31] : memref<256x40xbf16, #tpu.memory_space<vmem>>, vector<256x40xbf16>
    %cst_32 = arith.constant dense<0.000000e+00> : vector<8x40xf32>
    %80 = tpu.matmul %78, %79, %cst_32 {dimension_numbers = #tpu.dot_dimension_numbers<[1], [0], [0], [1], [0, 0, 1, 1], [], []>} : vector<8x256xbf16>, vector<256x40xbf16>, vector<8x40xf32> -> vector<8x40xf32>
    %c0_33 = arith.constant 0 : index
    %c0_34 = arith.constant 0 : index
    %81 = vector.load %arg10[%c0_33, %c0_34] : memref<1x40xf32, #tpu.memory_space<vmem>>, vector<1x40xf32>
    %82 = vector.broadcast %81 : vector<1x40xf32> to vector<8x40xf32>
    %83 = arith.addf %80, %82 : vector<8x40xf32>
    %c0_35 = arith.constant 0 : index
    %c0_36 = arith.constant 0 : index
    %84 = vector.load %arg17[%c0_35, %c0_36] : memref<8x40xf32, #tpu.memory_space<vmem>>, vector<8x40xf32>
    tpu.vector_store %arg17[%c0_35, %c0_36], %83 {strides = array<i32>} : memref<8x40xf32, #tpu.memory_space<vmem>>, vector<8x40xf32>,
    %c0_37 = arith.constant 0 : index
    %c0_38 = arith.constant 0 : index
    %85 = vector.load %arg3[%c0_37, %c0_38] : memref<8x40xf32, #tpu.memory_space<vmem>>, vector<8x40xf32>
    %cst_39 = arith.constant 8.000000e+01 : f32
    %86 = vector.broadcast %cst_39 : f32 to vector<8x40xf32>
    %87 = arith.minimumf %83, %86 : vector<8x40xf32>
    %cst_40 = arith.constant 5.000000e-01 : f32
    %88 = vector.broadcast %cst_40 : f32 to vector<8x40xf32>
    %89 = arith.mulf %88, %87 : vector<8x40xf32>
    %90 = math.exp %89 : vector<8x40xf32>
    %91 = arith.mulf %85, %90 : vector<8x40xf32>
    %92 = arith.truncf %83 : vector<8x40xf32> to vector<8x40xbf16>
    %c0_41 = arith.constant 0 : index
    %c0_42 = arith.constant 0 : index
    %93 = vector.load %arg11[%c0_41, %c0_42] : memref<40x256xbf16, #tpu.memory_space<vmem>>, vector<40x256xbf16>
    %cst_43 = arith.constant dense<0.000000e+00> : vector<8x256xf32>
    %94 = tpu.matmul %92, %93, %cst_43 {dimension_numbers = #tpu.dot_dimension_numbers<[1], [0], [0], [1], [0, 0, 1, 1], [], []>} : vector<8x40xbf16>, vector<40x256xbf16>, vector<8x256xf32> -> vector<8x256xf32>
    %95 = arith.truncf %91 : vector<8x40xf32> to vector<8x40xbf16>
    %c0_44 = arith.constant 0 : index
    %c0_45 = arith.constant 0 : index
    %96 = vector.load %arg12[%c0_44, %c0_45] : memref<40x256xbf16, #tpu.memory_space<vmem>>, vector<40x256xbf16>
    %cst_46 = arith.constant dense<0.000000e+00> : vector<8x256xf32>
    %97 = tpu.matmul %95, %96, %cst_46 {dimension_numbers = #tpu.dot_dimension_numbers<[1], [0], [0], [1], [0, 0, 1, 1], [], []>} : vector<8x40xbf16>, vector<40x256xbf16>, vector<8x256xf32> -> vector<8x256xf32>
    %98 = arith.addf %94, %97 : vector<8x256xf32>
    %c0_47 = arith.constant 0 : index
    %c0_48 = arith.constant 0 : index
    %99 = vector.load %arg13[%c0_47, %c0_48] : memref<1x256xf32, #tpu.memory_space<vmem>>, vector<1x256xf32>
    %100 = vector.broadcast %99 : vector<1x256xf32> to vector<8x256xf32>
    %101 = arith.addf %98, %100 : vector<8x256xf32>
    %c7_i32 = arith.constant 7 : i32
    %102 = tpu.dynamic_rotate %101 by %c7_i32 dim 0 : vector<8x256xf32>, i32 -> vector<8x256xf32>
    %103 = vector.broadcast %31 : vector<8x1xf32> to vector<8x256xf32>
    %104 = arith.mulf %102, %103 : vector<8x256xf32>
    %105 = arith.truncf %101 : vector<8x256xf32> to vector<8x256xbf16>
    %c0_49 = arith.constant 0 : index
    %c0_50 = arith.constant 0 : index
    %106 = vector.load %arg14[%c0_49, %c0_50] : memref<256x256xbf16, #tpu.memory_space<vmem>>, vector<256x256xbf16>
    %cst_51 = arith.constant dense<0.000000e+00> : vector<8x256xf32>
    %107 = tpu.matmul %105, %106, %cst_51 {dimension_numbers = #tpu.dot_dimension_numbers<[1], [0], [0], [1], [0, 0, 1, 1], [], []>} : vector<8x256xbf16>, vector<256x256xbf16>, vector<8x256xf32> -> vector<8x256xf32>
    %108 = arith.truncf %104 : vector<8x256xf32> to vector<8x256xbf16>
    %c0_52 = arith.constant 0 : index
    %c0_53 = arith.constant 0 : index
    %109 = vector.load %arg15[%c0_52, %c0_53] : memref<256x256xbf16, #tpu.memory_space<vmem>>, vector<256x256xbf16>
    %cst_54 = arith.constant dense<0.000000e+00> : vector<8x256xf32>
    %110 = tpu.matmul %108, %109, %cst_54 {dimension_numbers = #tpu.dot_dimension_numbers<[1], [0], [0], [1], [0, 0, 1, 1], [], []>} : vector<8x256xbf16>, vector<256x256xbf16>, vector<8x256xf32> -> vector<8x256xf32>
    %111 = arith.addf %107, %110 : vector<8x256xf32>
    %c0_55 = arith.constant 0 : index
    %c0_56 = arith.constant 0 : index
    %112 = vector.load %arg16[%c0_55, %c0_56] : memref<1x256xf32, #tpu.memory_space<vmem>>, vector<1x256xf32>
    %113 = vector.broadcast %112 : vector<1x256xf32> to vector<8x256xf32>
    %114 = arith.addf %111, %113 : vector<8x256xf32>
    %cst_57 = arith.constant 0.000000e+00 : f32
    %115 = vector.broadcast %cst_57 : f32 to vector<8x256xf32>
    %116 = arith.cmpf ogt, %114, %115 : vector<8x256xf32>
    %cst_58 = arith.constant 0.000000e+00 : f32
    %117 = vector.broadcast %cst_58 : f32 to vector<8x256xf32>
    %118 = arith.minimumf %114, %117 : vector<8x256xf32>
    %119 = math.exp %118 : vector<8x256xf32>
    %cst_59 = arith.constant 1.000000e+00 : f32
    %120 = vector.broadcast %cst_59 : f32 to vector<8x256xf32>
    %121 = arith.subf %119, %120 : vector<8x256xf32>
    %122 = arith.select %116, %114, %121 : vector<8x256xi1>, vector<8x256xf32>
    %c0_60 = arith.constant 0 : index
    %c0_61 = arith.constant 0 : index
    %123 = vector.load %arg18[%c0_60, %c0_61] : memref<8x256xf32, #tpu.memory_space<vmem>>, vector<8x256xf32>
    tpu.vector_store %arg18[%c0_60, %c0_61], %122 {strides = array<i32>} : memref<8x256xf32, #tpu.memory_space<vmem>>, vector<8x256xf32>,
    %cst_62 = arith.constant dense<0.000000e+00> : vector<256xf32>
    %124 = vector.multi_reduction <add>, %122, %cst_62 [0] : vector<8x256xf32> to vector<256xf32>
    %125 = vector.shape_cast %124 : vector<256xf32> to vector<1x256xf32>
    %126 = arith.mulf %122, %122 : vector<8x256xf32>
    %cst_63 = arith.constant dense<0.000000e+00> : vector<256xf32>
    %127 = vector.multi_reduction <add>, %126, %cst_63 [0] : vector<8x256xf32> to vector<256xf32>
    %128 = vector.shape_cast %127 : vector<256xf32> to vector<1x256xf32>
    %129 = tpu.concatenate %125, %128 in 0 : vector<1x256xf32>, vector<1x256xf32> -> vector<2x256xf32>
    %c0_64 = arith.constant 0 : index
    %c0_65 = arith.constant 0 : index
    %c0_66 = arith.constant 0 : index
    %130 = vector.load %arg19[%c0_64, %c0_65, %c0_66] : memref<1x2x256xf32, #tpu.memory_space<vmem>>, vector<1x2x256xf32>
    %131 = vector.shape_cast %130 : vector<1x2x256xf32> to vector<2x256xf32>
    %132 = vector.shape_cast %129 : vector<2x256xf32> to vector<1x2x256xf32>
    tpu.vector_store %arg19[%c0_64, %c0_65, %c0_66], %132 {strides = array<i32>} : memref<1x2x256xf32, #tpu.memory_space<vmem>>, vector<1x2x256xf32>,
    return
  }
}

module attributes {stable_mosaic.version = 11 : i64} {
  func.func @_dec_convt_kernel(%arg0: i32, %arg1: memref<16x128xf32, #tpu.memory_space<vmem>>, %arg2: memref<1x128xf32, #tpu.memory_space<vmem>>, %arg3: memref<1x128xf32, #tpu.memory_space<vmem>>, %arg4: memref<128x128xbf16, #tpu.memory_space<vmem>>, %arg5: memref<128x128xbf16, #tpu.memory_space<vmem>>, %arg6: memref<1x128xf32, #tpu.memory_space<vmem>>, %arg7: memref<16x128xf32, #tpu.memory_space<vmem>>, %arg8: memref<1x2x128xf32, #tpu.memory_space<vmem>>) attributes {dimension_semantics = [#tpu.dimension_semantics<parallel>], iteration_bounds = array<i64: 1>, scalar_prefetch = 0 : i64, scratch_operands = 0 : i64, tpu.core_type = #tpu.core_type<tc>, window_params = [{transform_indices = @transform_0, window_bounds = array<i64: 16, 128>}, {pipeline_mode = #tpu.pipeline_mode<synchronous>, transform_indices = @transform_1, window_bounds = array<i64: 1, 128>}, {pipeline_mode = #tpu.pipeline_mode<synchronous>, transform_indices = @transform_2, window_bounds = array<i64: 1, 128>}, {pipeline_mode = #tpu.pipeline_mode<synchronous>, transform_indices = @transform_3, window_bounds = array<i64: 128, 128>}, {pipeline_mode = #tpu.pipeline_mode<synchronous>, transform_indices = @transform_4, window_bounds = array<i64: 128, 128>}, {pipeline_mode = #tpu.pipeline_mode<synchronous>, transform_indices = @transform_5, window_bounds = array<i64: 1, 128>}, {transform_indices = @transform_6, window_bounds = array<i64: 16, 128>}, {transform_indices = @transform_7, window_bounds = array<i64: 1, 2, 128>}]} {
    %c0 = arith.constant 0 : index
    %c0_0 = arith.constant 0 : index
    %0 = vector.load %arg1[%c0, %c0_0] : memref<16x128xf32, #tpu.memory_space<vmem>>, vector<16x128xf32>
    %c0_1 = arith.constant 0 : index
    %c0_2 = arith.constant 0 : index
    %1 = vector.load %arg2[%c0_1, %c0_2] : memref<1x128xf32, #tpu.memory_space<vmem>>, vector<1x128xf32>
    %2 = vector.broadcast %1 : vector<1x128xf32> to vector<16x128xf32>
    %3 = arith.mulf %0, %2 : vector<16x128xf32>
    %c0_3 = arith.constant 0 : index
    %c0_4 = arith.constant 0 : index
    %4 = vector.load %arg3[%c0_3, %c0_4] : memref<1x128xf32, #tpu.memory_space<vmem>>, vector<1x128xf32>
    %5 = vector.broadcast %4 : vector<1x128xf32> to vector<16x128xf32>
    %6 = arith.addf %3, %5 : vector<16x128xf32>
    %7 = tpu.iota {dimensions = array<i32: 0>} : vector<16x1xi32>
    %c8_i32 = arith.constant 8 : i32
    %c0_i32 = arith.constant 0 : i32
    %8 = arith.cmpi eq, %c8_i32, %c0_i32 : i32
    %c1_i32 = arith.constant 1 : i32
    %9 = arith.select %8, %c1_i32, %c8_i32 : i32
    %10 = vector.broadcast %9 : i32 to vector<16x1xi32>
    %11 = arith.remsi %7, %10 : vector<16x1xi32>
    %c0_i32_5 = arith.constant 0 : i32
    %12 = vector.broadcast %c0_i32_5 : i32 to vector<16x1xi32>
    %13 = arith.cmpi ne, %11, %12 : vector<16x1xi32>
    %c0_i32_6 = arith.constant 0 : i32
    %14 = vector.broadcast %c0_i32_6 : i32 to vector<16x1xi32>
    %15 = arith.cmpi slt, %11, %14 : vector<16x1xi32>
    %c0_i32_7 = arith.constant 0 : i32
    %16 = arith.cmpi slt, %9, %c0_i32_7 : i32
    %17 = vector.broadcast %16 : i1 to vector<16x1xi1>
    %18 = vector.broadcast %17 : vector<16x1xi1> to vector<16x1xi1>
    %19 = arith.xori %15, %18 : vector<16x1xi1>
    %20 = arith.andi %19, %13 : vector<16x1xi1>
    %21 = vector.broadcast %9 : i32 to vector<16x1xi32>
    %22 = arith.addi %11, %21 : vector<16x1xi32>
    %23 = arith.select %20, %22, %11 : vector<16x1xi1>, vector<16x1xi32>
    %c7_i32 = arith.constant 7 : i32
    %24 = vector.broadcast %c7_i32 : i32 to vector<16x1xi32>
    %25 = arith.cmpi ne, %23, %24 : vector<16x1xi32>
    %26 = arith.extui %25 : vector<16x1xi1> to vector<16x1xi32>
    %27 = arith.sitofp %26 : vector<16x1xi32> to vector<16x1xf32>
    %c15_i32 = arith.constant 15 : i32
    %28 = tpu.dynamic_rotate %6 by %c15_i32 dim 0 : vector<16x128xf32>, i32 -> vector<16x128xf32>
    %29 = vector.broadcast %27 : vector<16x1xf32> to vector<16x128xf32>
    %30 = arith.mulf %28, %29 : vector<16x128xf32>
    %31 = arith.truncf %6 : vector<16x128xf32> to vector<16x128xbf16>
    %c0_8 = arith.constant 0 : index
    %c0_9 = arith.constant 0 : index
    %32 = vector.load %arg4[%c0_8, %c0_9] : memref<128x128xbf16, #tpu.memory_space<vmem>>, vector<128x128xbf16>
    %cst = arith.constant dense<0.000000e+00> : vector<16x128xf32>
    %33 = tpu.matmul %31, %32, %cst {dimension_numbers = #tpu.dot_dimension_numbers<[1], [0], [0], [1], [0, 0, 1, 1], [], []>} : vector<16x128xbf16>, vector<128x128xbf16>, vector<16x128xf32> -> vector<16x128xf32>
    %34 = arith.truncf %30 : vector<16x128xf32> to vector<16x128xbf16>
    %c0_10 = arith.constant 0 : index
    %c0_11 = arith.constant 0 : index
    %35 = vector.load %arg5[%c0_10, %c0_11] : memref<128x128xbf16, #tpu.memory_space<vmem>>, vector<128x128xbf16>
    %cst_12 = arith.constant dense<0.000000e+00> : vector<16x128xf32>
    %36 = tpu.matmul %34, %35, %cst_12 {dimension_numbers = #tpu.dot_dimension_numbers<[1], [0], [0], [1], [0, 0, 1, 1], [], []>} : vector<16x128xbf16>, vector<128x128xbf16>, vector<16x128xf32> -> vector<16x128xf32>
    %37 = arith.addf %33, %36 : vector<16x128xf32>
    %c0_13 = arith.constant 0 : index
    %c0_14 = arith.constant 0 : index
    %38 = vector.load %arg6[%c0_13, %c0_14] : memref<1x128xf32, #tpu.memory_space<vmem>>, vector<1x128xf32>
    %39 = vector.broadcast %38 : vector<1x128xf32> to vector<16x128xf32>
    %40 = arith.addf %37, %39 : vector<16x128xf32>
    %cst_15 = arith.constant 0.000000e+00 : f32
    %41 = vector.broadcast %cst_15 : f32 to vector<16x128xf32>
    %42 = arith.cmpf ogt, %40, %41 : vector<16x128xf32>
    %cst_16 = arith.constant 0.000000e+00 : f32
    %43 = vector.broadcast %cst_16 : f32 to vector<16x128xf32>
    %44 = arith.minimumf %40, %43 : vector<16x128xf32>
    %45 = math.exp %44 : vector<16x128xf32>
    %cst_17 = arith.constant 1.000000e+00 : f32
    %46 = vector.broadcast %cst_17 : f32 to vector<16x128xf32>
    %47 = arith.subf %45, %46 : vector<16x128xf32>
    %48 = arith.select %42, %40, %47 : vector<16x128xi1>, vector<16x128xf32>
    %c0_18 = arith.constant 0 : index
    %c0_19 = arith.constant 0 : index
    %49 = vector.load %arg7[%c0_18, %c0_19] : memref<16x128xf32, #tpu.memory_space<vmem>>, vector<16x128xf32>
    tpu.vector_store %arg7[%c0_18, %c0_19], %48 {strides = array<i32>} : memref<16x128xf32, #tpu.memory_space<vmem>>, vector<16x128xf32>,
    %cst_20 = arith.constant dense<0.000000e+00> : vector<128xf32>
    %50 = vector.multi_reduction <add>, %48, %cst_20 [0] : vector<16x128xf32> to vector<128xf32>
    %51 = vector.shape_cast %50 : vector<128xf32> to vector<1x128xf32>
    %52 = arith.mulf %48, %48 : vector<16x128xf32>
    %cst_21 = arith.constant dense<0.000000e+00> : vector<128xf32>
    %53 = vector.multi_reduction <add>, %52, %cst_21 [0] : vector<16x128xf32> to vector<128xf32>
    %54 = vector.shape_cast %53 : vector<128xf32> to vector<1x128xf32>
    %55 = tpu.concatenate %51, %54 in 0 : vector<1x128xf32>, vector<1x128xf32> -> vector<2x128xf32>
    %c0_22 = arith.constant 0 : index
    %c0_23 = arith.constant 0 : index
    %c0_24 = arith.constant 0 : index
    %56 = vector.load %arg8[%c0_22, %c0_23, %c0_24] : memref<1x2x128xf32, #tpu.memory_space<vmem>>, vector<1x2x128xf32>
    %57 = vector.shape_cast %56 : vector<1x2x128xf32> to vector<2x128xf32>
    %58 = vector.shape_cast %55 : vector<2x128xf32> to vector<1x2x128xf32>
    tpu.vector_store %arg8[%c0_22, %c0_23, %c0_24], %58 {strides = array<i32>} : memref<1x2x128xf32, #tpu.memory_space<vmem>>, vector<1x2x128xf32>,
    return
  }
  func.func @transform_0(%arg0: i32) -> (i32, i32) {
    %c0_i32 = arith.constant 0 : i32
    %c0_i32_0 = arith.constant 0 : i32
    return %arg0, %c0_i32 : i32, i32
  }
  func.func @transform_1(%arg0: i32) -> (i32, i32) {
    %c0_i32 = arith.constant 0 : i32
    %c0_i32_0 = arith.constant 0 : i32
    %c0_i32_1 = arith.constant 0 : i32
    return %c0_i32, %c0_i32_0 : i32, i32
  }
  func.func @transform_2(%arg0: i32) -> (i32, i32) {
    %c0_i32 = arith.constant 0 : i32
    %c0_i32_0 = arith.constant 0 : i32
    %c0_i32_1 = arith.constant 0 : i32
    return %c0_i32, %c0_i32_0 : i32, i32
  }
  func.func @transform_3(%arg0: i32) -> (i32, i32) {
    %c0_i32 = arith.constant 0 : i32
    %c0_i32_0 = arith.constant 0 : i32
    %c0_i32_1 = arith.constant 0 : i32
    return %c0_i32, %c0_i32_0 : i32, i32
  }
  func.func @transform_4(%arg0: i32) -> (i32, i32) {
    %c0_i32 = arith.constant 0 : i32
    %c0_i32_0 = arith.constant 0 : i32
    %c0_i32_1 = arith.constant 0 : i32
    return %c0_i32, %c0_i32_0 : i32, i32
  }
  func.func @transform_5(%arg0: i32) -> (i32, i32) {
    %c0_i32 = arith.constant 0 : i32
    %c0_i32_0 = arith.constant 0 : i32
    %c0_i32_1 = arith.constant 0 : i32
    return %c0_i32, %c0_i32_0 : i32, i32
  }
  func.func @transform_6(%arg0: i32) -> (i32, i32) {
    %c0_i32 = arith.constant 0 : i32
    %c0_i32_0 = arith.constant 0 : i32
    return %arg0, %c0_i32 : i32, i32
  }
  func.func @transform_7(%arg0: i32) -> (i32, i32, i32) {
    %c0_i32 = arith.constant 0 : i32
    %c0_i32_0 = arith.constant 0 : i32
    %c0_i32_1 = arith.constant 0 : i32
    return %arg0, %c0_i32, %c0_i32_0 : i32, i32, i32
  }
}

module attributes {stable_mosaic.version = 11 : i64} {
  func.func @_dec_convt_kernel(%arg0: i32, %arg1: memref<64x32xf32, #tpu.memory_space<vmem>>, %arg2: memref<1x32xf32, #tpu.memory_space<vmem>>, %arg3: memref<1x32xf32, #tpu.memory_space<vmem>>, %arg4: memref<32x32xbf16, #tpu.memory_space<vmem>>, %arg5: memref<32x32xbf16, #tpu.memory_space<vmem>>, %arg6: memref<1x32xf32, #tpu.memory_space<vmem>>, %arg7: memref<64x32xf32, #tpu.memory_space<vmem>>, %arg8: memref<1x2x32xf32, #tpu.memory_space<vmem>>) attributes {dimension_semantics = [#tpu.dimension_semantics<parallel>], iteration_bounds = array<i64: 1>, scalar_prefetch = 0 : i64, scratch_operands = 0 : i64, tpu.core_type = #tpu.core_type<tc>, window_params = [{transform_indices = @transform_0, window_bounds = array<i64: 64, 32>}, {pipeline_mode = #tpu.pipeline_mode<synchronous>, transform_indices = @transform_1, window_bounds = array<i64: 1, 32>}, {pipeline_mode = #tpu.pipeline_mode<synchronous>, transform_indices = @transform_2, window_bounds = array<i64: 1, 32>}, {pipeline_mode = #tpu.pipeline_mode<synchronous>, transform_indices = @transform_3, window_bounds = array<i64: 32, 32>}, {pipeline_mode = #tpu.pipeline_mode<synchronous>, transform_indices = @transform_4, window_bounds = array<i64: 32, 32>}, {pipeline_mode = #tpu.pipeline_mode<synchronous>, transform_indices = @transform_5, window_bounds = array<i64: 1, 32>}, {transform_indices = @transform_6, window_bounds = array<i64: 64, 32>}, {transform_indices = @transform_7, window_bounds = array<i64: 1, 2, 32>}]} {
    %c0 = arith.constant 0 : index
    %c0_0 = arith.constant 0 : index
    %0 = vector.load %arg1[%c0, %c0_0] : memref<64x32xf32, #tpu.memory_space<vmem>>, vector<64x32xf32>
    %c0_1 = arith.constant 0 : index
    %c0_2 = arith.constant 0 : index
    %1 = vector.load %arg2[%c0_1, %c0_2] : memref<1x32xf32, #tpu.memory_space<vmem>>, vector<1x32xf32>
    %2 = vector.broadcast %1 : vector<1x32xf32> to vector<64x32xf32>
    %3 = arith.mulf %0, %2 : vector<64x32xf32>
    %c0_3 = arith.constant 0 : index
    %c0_4 = arith.constant 0 : index
    %4 = vector.load %arg3[%c0_3, %c0_4] : memref<1x32xf32, #tpu.memory_space<vmem>>, vector<1x32xf32>
    %5 = vector.broadcast %4 : vector<1x32xf32> to vector<64x32xf32>
    %6 = arith.addf %3, %5 : vector<64x32xf32>
    %7 = tpu.iota {dimensions = array<i32: 0>} : vector<64x1xi32>
    %c32_i32 = arith.constant 32 : i32
    %c0_i32 = arith.constant 0 : i32
    %8 = arith.cmpi eq, %c32_i32, %c0_i32 : i32
    %c1_i32 = arith.constant 1 : i32
    %9 = arith.select %8, %c1_i32, %c32_i32 : i32
    %10 = vector.broadcast %9 : i32 to vector<64x1xi32>
    %11 = arith.remsi %7, %10 : vector<64x1xi32>
    %c0_i32_5 = arith.constant 0 : i32
    %12 = vector.broadcast %c0_i32_5 : i32 to vector<64x1xi32>
    %13 = arith.cmpi ne, %11, %12 : vector<64x1xi32>
    %c0_i32_6 = arith.constant 0 : i32
    %14 = vector.broadcast %c0_i32_6 : i32 to vector<64x1xi32>
    %15 = arith.cmpi slt, %11, %14 : vector<64x1xi32>
    %c0_i32_7 = arith.constant 0 : i32
    %16 = arith.cmpi slt, %9, %c0_i32_7 : i32
    %17 = vector.broadcast %16 : i1 to vector<64x1xi1>
    %18 = vector.broadcast %17 : vector<64x1xi1> to vector<64x1xi1>
    %19 = arith.xori %15, %18 : vector<64x1xi1>
    %20 = arith.andi %19, %13 : vector<64x1xi1>
    %21 = vector.broadcast %9 : i32 to vector<64x1xi32>
    %22 = arith.addi %11, %21 : vector<64x1xi32>
    %23 = arith.select %20, %22, %11 : vector<64x1xi1>, vector<64x1xi32>
    %c31_i32 = arith.constant 31 : i32
    %24 = vector.broadcast %c31_i32 : i32 to vector<64x1xi32>
    %25 = arith.cmpi ne, %23, %24 : vector<64x1xi32>
    %26 = arith.extui %25 : vector<64x1xi1> to vector<64x1xi32>
    %27 = arith.sitofp %26 : vector<64x1xi32> to vector<64x1xf32>
    %c63_i32 = arith.constant 63 : i32
    %28 = tpu.dynamic_rotate %6 by %c63_i32 dim 0 : vector<64x32xf32>, i32 -> vector<64x32xf32>
    %29 = vector.broadcast %27 : vector<64x1xf32> to vector<64x32xf32>
    %30 = arith.mulf %28, %29 : vector<64x32xf32>
    %31 = arith.truncf %6 : vector<64x32xf32> to vector<64x32xbf16>
    %c0_8 = arith.constant 0 : index
    %c0_9 = arith.constant 0 : index
    %32 = vector.load %arg4[%c0_8, %c0_9] : memref<32x32xbf16, #tpu.memory_space<vmem>>, vector<32x32xbf16>
    %cst = arith.constant dense<0.000000e+00> : vector<64x32xf32>
    %33 = tpu.matmul %31, %32, %cst {dimension_numbers = #tpu.dot_dimension_numbers<[1], [0], [0], [1], [0, 0, 1, 1], [], []>} : vector<64x32xbf16>, vector<32x32xbf16>, vector<64x32xf32> -> vector<64x32xf32>
    %34 = arith.truncf %30 : vector<64x32xf32> to vector<64x32xbf16>
    %c0_10 = arith.constant 0 : index
    %c0_11 = arith.constant 0 : index
    %35 = vector.load %arg5[%c0_10, %c0_11] : memref<32x32xbf16, #tpu.memory_space<vmem>>, vector<32x32xbf16>
    %cst_12 = arith.constant dense<0.000000e+00> : vector<64x32xf32>
    %36 = tpu.matmul %34, %35, %cst_12 {dimension_numbers = #tpu.dot_dimension_numbers<[1], [0], [0], [1], [0, 0, 1, 1], [], []>} : vector<64x32xbf16>, vector<32x32xbf16>, vector<64x32xf32> -> vector<64x32xf32>
    %37 = arith.addf %33, %36 : vector<64x32xf32>
    %c0_13 = arith.constant 0 : index
    %c0_14 = arith.constant 0 : index
    %38 = vector.load %arg6[%c0_13, %c0_14] : memref<1x32xf32, #tpu.memory_space<vmem>>, vector<1x32xf32>
    %39 = vector.broadcast %38 : vector<1x32xf32> to vector<64x32xf32>
    %40 = arith.addf %37, %39 : vector<64x32xf32>
    %cst_15 = arith.constant 0.000000e+00 : f32
    %41 = vector.broadcast %cst_15 : f32 to vector<64x32xf32>
    %42 = arith.cmpf ogt, %40, %41 : vector<64x32xf32>
    %cst_16 = arith.constant 0.000000e+00 : f32
    %43 = vector.broadcast %cst_16 : f32 to vector<64x32xf32>
    %44 = arith.minimumf %40, %43 : vector<64x32xf32>
    %45 = math.exp %44 : vector<64x32xf32>
    %cst_17 = arith.constant 1.000000e+00 : f32
    %46 = vector.broadcast %cst_17 : f32 to vector<64x32xf32>
    %47 = arith.subf %45, %46 : vector<64x32xf32>
    %48 = arith.select %42, %40, %47 : vector<64x32xi1>, vector<64x32xf32>
    %c0_18 = arith.constant 0 : index
    %c0_19 = arith.constant 0 : index
    %49 = vector.load %arg7[%c0_18, %c0_19] : memref<64x32xf32, #tpu.memory_space<vmem>>, vector<64x32xf32>
    tpu.vector_store %arg7[%c0_18, %c0_19], %48 {strides = array<i32>} : memref<64x32xf32, #tpu.memory_space<vmem>>, vector<64x32xf32>,
    %cst_20 = arith.constant dense<0.000000e+00> : vector<32xf32>
    %50 = vector.multi_reduction <add>, %48, %cst_20 [0] : vector<64x32xf32> to vector<32xf32>
    %51 = vector.shape_cast %50 : vector<32xf32> to vector<1x32xf32>
    %52 = arith.mulf %48, %48 : vector<64x32xf32>
    %cst_21 = arith.constant dense<0.000000e+00> : vector<32xf32>
    %53 = vector.multi_reduction <add>, %52, %cst_21 [0] : vector<64x32xf32> to vector<32xf32>
    %54 = vector.shape_cast %53 : vector<32xf32> to vector<1x32xf32>
    %55 = tpu.concatenate %51, %54 in 0 : vector<1x32xf32>, vector<1x32xf32> -> vector<2x32xf32>
    %c0_22 = arith.constant 0 : index
    %c0_23 = arith.constant 0 : index
    %c0_24 = arith.constant 0 : index
    %56 = vector.load %arg8[%c0_22, %c0_23, %c0_24] : memref<1x2x32xf32, #tpu.memory_space<vmem>>, vector<1x2x32xf32>
    %57 = vector.shape_cast %56 : vector<1x2x32xf32> to vector<2x32xf32>
    %58 = vector.shape_cast %55 : vector<2x32xf32> to vector<1x2x32xf32>
    tpu.vector_store %arg8[%c0_22, %c0_23, %c0_24], %58 {strides = array<i32>} : memref<1x2x32xf32, #tpu.memory_space<vmem>>, vector<1x2x32xf32>,
    return
  }
  func.func @transform_0(%arg0: i32) -> (i32, i32) {
    %c0_i32 = arith.constant 0 : i32
    %c0_i32_0 = arith.constant 0 : i32
    return %arg0, %c0_i32 : i32, i32
  }
  func.func @transform_1(%arg0: i32) -> (i32, i32) {
    %c0_i32 = arith.constant 0 : i32
    %c0_i32_0 = arith.constant 0 : i32
    %c0_i32_1 = arith.constant 0 : i32
    return %c0_i32, %c0_i32_0 : i32, i32
  }
  func.func @transform_2(%arg0: i32) -> (i32, i32) {
    %c0_i32 = arith.constant 0 : i32
    %c0_i32_0 = arith.constant 0 : i32
    %c0_i32_1 = arith.constant 0 : i32
    return %c0_i32, %c0_i32_0 : i32, i32
  }
  func.func @transform_3(%arg0: i32) -> (i32, i32) {
    %c0_i32 = arith.constant 0 : i32
    %c0_i32_0 = arith.constant 0 : i32
    %c0_i32_1 = arith.constant 0 : i32
    return %c0_i32, %c0_i32_0 : i32, i32
  }
  func.func @transform_4(%arg0: i32) -> (i32, i32) {
    %c0_i32 = arith.constant 0 : i32
    %c0_i32_0 = arith.constant 0 : i32
    %c0_i32_1 = arith.constant 0 : i32
    return %c0_i32, %c0_i32_0 : i32, i32
  }
  func.func @transform_5(%arg0: i32) -> (i32, i32) {
    %c0_i32 = arith.constant 0 : i32
    %c0_i32_0 = arith.constant 0 : i32
    %c0_i32_1 = arith.constant 0 : i32
    return %c0_i32, %c0_i32_0 : i32, i32
  }
  func.func @transform_6(%arg0: i32) -> (i32, i32) {
    %c0_i32 = arith.constant 0 : i32
    %c0_i32_0 = arith.constant 0 : i32
    return %arg0, %c0_i32 : i32, i32
  }
  func.func @transform_7(%arg0: i32) -> (i32, i32, i32) {
    %c0_i32 = arith.constant 0 : i32
    %c0_i32_0 = arith.constant 0 : i32
    %c0_i32_1 = arith.constant 0 : i32
    return %arg0, %c0_i32, %c0_i32_0 : i32, i32, i32
  }
}

module attributes {stable_mosaic.version = 11 : i64} {
  func.func @_dec_convt_kernel(%arg0: i32, %arg1: memref<32x64xf32, #tpu.memory_space<vmem>>, %arg2: memref<1x64xf32, #tpu.memory_space<vmem>>, %arg3: memref<1x64xf32, #tpu.memory_space<vmem>>, %arg4: memref<64x64xbf16, #tpu.memory_space<vmem>>, %arg5: memref<64x64xbf16, #tpu.memory_space<vmem>>, %arg6: memref<1x64xf32, #tpu.memory_space<vmem>>, %arg7: memref<32x64xf32, #tpu.memory_space<vmem>>, %arg8: memref<1x2x64xf32, #tpu.memory_space<vmem>>) attributes {dimension_semantics = [#tpu.dimension_semantics<parallel>], iteration_bounds = array<i64: 1>, scalar_prefetch = 0 : i64, scratch_operands = 0 : i64, tpu.core_type = #tpu.core_type<tc>, window_params = [{transform_indices = @transform_0, window_bounds = array<i64: 32, 64>}, {pipeline_mode = #tpu.pipeline_mode<synchronous>, transform_indices = @transform_1, window_bounds = array<i64: 1, 64>}, {pipeline_mode = #tpu.pipeline_mode<synchronous>, transform_indices = @transform_2, window_bounds = array<i64: 1, 64>}, {pipeline_mode = #tpu.pipeline_mode<synchronous>, transform_indices = @transform_3, window_bounds = array<i64: 64, 64>}, {pipeline_mode = #tpu.pipeline_mode<synchronous>, transform_indices = @transform_4, window_bounds = array<i64: 64, 64>}, {pipeline_mode = #tpu.pipeline_mode<synchronous>, transform_indices = @transform_5, window_bounds = array<i64: 1, 64>}, {transform_indices = @transform_6, window_bounds = array<i64: 32, 64>}, {transform_indices = @transform_7, window_bounds = array<i64: 1, 2, 64>}]} {
    %c0 = arith.constant 0 : index
    %c0_0 = arith.constant 0 : index
    %0 = vector.load %arg1[%c0, %c0_0] : memref<32x64xf32, #tpu.memory_space<vmem>>, vector<32x64xf32>
    %c0_1 = arith.constant 0 : index
    %c0_2 = arith.constant 0 : index
    %1 = vector.load %arg2[%c0_1, %c0_2] : memref<1x64xf32, #tpu.memory_space<vmem>>, vector<1x64xf32>
    %2 = vector.broadcast %1 : vector<1x64xf32> to vector<32x64xf32>
    %3 = arith.mulf %0, %2 : vector<32x64xf32>
    %c0_3 = arith.constant 0 : index
    %c0_4 = arith.constant 0 : index
    %4 = vector.load %arg3[%c0_3, %c0_4] : memref<1x64xf32, #tpu.memory_space<vmem>>, vector<1x64xf32>
    %5 = vector.broadcast %4 : vector<1x64xf32> to vector<32x64xf32>
    %6 = arith.addf %3, %5 : vector<32x64xf32>
    %7 = tpu.iota {dimensions = array<i32: 0>} : vector<32x1xi32>
    %c16_i32 = arith.constant 16 : i32
    %c0_i32 = arith.constant 0 : i32
    %8 = arith.cmpi eq, %c16_i32, %c0_i32 : i32
    %c1_i32 = arith.constant 1 : i32
    %9 = arith.select %8, %c1_i32, %c16_i32 : i32
    %10 = vector.broadcast %9 : i32 to vector<32x1xi32>
    %11 = arith.remsi %7, %10 : vector<32x1xi32>
    %c0_i32_5 = arith.constant 0 : i32
    %12 = vector.broadcast %c0_i32_5 : i32 to vector<32x1xi32>
    %13 = arith.cmpi ne, %11, %12 : vector<32x1xi32>
    %c0_i32_6 = arith.constant 0 : i32
    %14 = vector.broadcast %c0_i32_6 : i32 to vector<32x1xi32>
    %15 = arith.cmpi slt, %11, %14 : vector<32x1xi32>
    %c0_i32_7 = arith.constant 0 : i32
    %16 = arith.cmpi slt, %9, %c0_i32_7 : i32
    %17 = vector.broadcast %16 : i1 to vector<32x1xi1>
    %18 = vector.broadcast %17 : vector<32x1xi1> to vector<32x1xi1>
    %19 = arith.xori %15, %18 : vector<32x1xi1>
    %20 = arith.andi %19, %13 : vector<32x1xi1>
    %21 = vector.broadcast %9 : i32 to vector<32x1xi32>
    %22 = arith.addi %11, %21 : vector<32x1xi32>
    %23 = arith.select %20, %22, %11 : vector<32x1xi1>, vector<32x1xi32>
    %c15_i32 = arith.constant 15 : i32
    %24 = vector.broadcast %c15_i32 : i32 to vector<32x1xi32>
    %25 = arith.cmpi ne, %23, %24 : vector<32x1xi32>
    %26 = arith.extui %25 : vector<32x1xi1> to vector<32x1xi32>
    %27 = arith.sitofp %26 : vector<32x1xi32> to vector<32x1xf32>
    %c31_i32 = arith.constant 31 : i32
    %28 = tpu.dynamic_rotate %6 by %c31_i32 dim 0 : vector<32x64xf32>, i32 -> vector<32x64xf32>
    %29 = vector.broadcast %27 : vector<32x1xf32> to vector<32x64xf32>
    %30 = arith.mulf %28, %29 : vector<32x64xf32>
    %31 = arith.truncf %6 : vector<32x64xf32> to vector<32x64xbf16>
    %c0_8 = arith.constant 0 : index
    %c0_9 = arith.constant 0 : index
    %32 = vector.load %arg4[%c0_8, %c0_9] : memref<64x64xbf16, #tpu.memory_space<vmem>>, vector<64x64xbf16>
    %cst = arith.constant dense<0.000000e+00> : vector<32x64xf32>
    %33 = tpu.matmul %31, %32, %cst {dimension_numbers = #tpu.dot_dimension_numbers<[1], [0], [0], [1], [0, 0, 1, 1], [], []>} : vector<32x64xbf16>, vector<64x64xbf16>, vector<32x64xf32> -> vector<32x64xf32>
    %34 = arith.truncf %30 : vector<32x64xf32> to vector<32x64xbf16>
    %c0_10 = arith.constant 0 : index
    %c0_11 = arith.constant 0 : index
    %35 = vector.load %arg5[%c0_10, %c0_11] : memref<64x64xbf16, #tpu.memory_space<vmem>>, vector<64x64xbf16>
    %cst_12 = arith.constant dense<0.000000e+00> : vector<32x64xf32>
    %36 = tpu.matmul %34, %35, %cst_12 {dimension_numbers = #tpu.dot_dimension_numbers<[1], [0], [0], [1], [0, 0, 1, 1], [], []>} : vector<32x64xbf16>, vector<64x64xbf16>, vector<32x64xf32> -> vector<32x64xf32>
    %37 = arith.addf %33, %36 : vector<32x64xf32>
    %c0_13 = arith.constant 0 : index
    %c0_14 = arith.constant 0 : index
    %38 = vector.load %arg6[%c0_13, %c0_14] : memref<1x64xf32, #tpu.memory_space<vmem>>, vector<1x64xf32>
    %39 = vector.broadcast %38 : vector<1x64xf32> to vector<32x64xf32>
    %40 = arith.addf %37, %39 : vector<32x64xf32>
    %cst_15 = arith.constant 0.000000e+00 : f32
    %41 = vector.broadcast %cst_15 : f32 to vector<32x64xf32>
    %42 = arith.cmpf ogt, %40, %41 : vector<32x64xf32>
    %cst_16 = arith.constant 0.000000e+00 : f32
    %43 = vector.broadcast %cst_16 : f32 to vector<32x64xf32>
    %44 = arith.minimumf %40, %43 : vector<32x64xf32>
    %45 = math.exp %44 : vector<32x64xf32>
    %cst_17 = arith.constant 1.000000e+00 : f32
    %46 = vector.broadcast %cst_17 : f32 to vector<32x64xf32>
    %47 = arith.subf %45, %46 : vector<32x64xf32>
    %48 = arith.select %42, %40, %47 : vector<32x64xi1>, vector<32x64xf32>
    %c0_18 = arith.constant 0 : index
    %c0_19 = arith.constant 0 : index
    %49 = vector.load %arg7[%c0_18, %c0_19] : memref<32x64xf32, #tpu.memory_space<vmem>>, vector<32x64xf32>
    tpu.vector_store %arg7[%c0_18, %c0_19], %48 {strides = array<i32>} : memref<32x64xf32, #tpu.memory_space<vmem>>, vector<32x64xf32>,
    %cst_20 = arith.constant dense<0.000000e+00> : vector<64xf32>
    %50 = vector.multi_reduction <add>, %48, %cst_20 [0] : vector<32x64xf32> to vector<64xf32>
    %51 = vector.shape_cast %50 : vector<64xf32> to vector<1x64xf32>
    %52 = arith.mulf %48, %48 : vector<32x64xf32>
    %cst_21 = arith.constant dense<0.000000e+00> : vector<64xf32>
    %53 = vector.multi_reduction <add>, %52, %cst_21 [0] : vector<32x64xf32> to vector<64xf32>
    %54 = vector.shape_cast %53 : vector<64xf32> to vector<1x64xf32>
    %55 = tpu.concatenate %51, %54 in 0 : vector<1x64xf32>, vector<1x64xf32> -> vector<2x64xf32>
    %c0_22 = arith.constant 0 : index
    %c0_23 = arith.constant 0 : index
    %c0_24 = arith.constant 0 : index
    %56 = vector.load %arg8[%c0_22, %c0_23, %c0_24] : memref<1x2x64xf32, #tpu.memory_space<vmem>>, vector<1x2x64xf32>
    %57 = vector.shape_cast %56 : vector<1x2x64xf32> to vector<2x64xf32>
    %58 = vector.shape_cast %55 : vector<2x64xf32> to vector<1x2x64xf32>
    tpu.vector_store %arg8[%c0_22, %c0_23, %c0_24], %58 {strides = array<i32>} : memref<1x2x64xf32, #tpu.memory_space<vmem>>, vector<1x2x64xf32>,
    return
  }
  func.func @transform_0(%arg0: i32) -> (i32, i32) {
    %c0_i32 = arith.constant 0 : i32
    %c0_i32_0 = arith.constant 0 : i32
    return %arg0, %c0_i32 : i32, i32
  }
  func.func @transform_1(%arg0: i32) -> (i32, i32) {
    %c0_i32 = arith.constant 0 : i32
    %c0_i32_0 = arith.constant 0 : i32
    %c0_i32_1 = arith.constant 0 : i32
    return %c0_i32, %c0_i32_0 : i32, i32
  }
  func.func @transform_2(%arg0: i32) -> (i32, i32) {
    %c0_i32 = arith.constant 0 : i32
    %c0_i32_0 = arith.constant 0 : i32
    %c0_i32_1 = arith.constant 0 : i32
    return %c0_i32, %c0_i32_0 : i32, i32
  }
  func.func @transform_3(%arg0: i32) -> (i32, i32) {
    %c0_i32 = arith.constant 0 : i32
    %c0_i32_0 = arith.constant 0 : i32
    %c0_i32_1 = arith.constant 0 : i32
    return %c0_i32, %c0_i32_0 : i32, i32
  }
  func.func @transform_4(%arg0: i32) -> (i32, i32) {
    %c0_i32 = arith.constant 0 : i32
    %c0_i32_0 = arith.constant 0 : i32
    %c0_i32_1 = arith.constant 0 : i32
    return %c0_i32, %c0_i32_0 : i32, i32
  }
  func.func @transform_5(%arg0: i32) -> (i32, i32) {
    %c0_i32 = arith.constant 0 : i32
    %c0_i32_0 = arith.constant 0 : i32
    %c0_i32_1 = arith.constant 0 : i32
    return %c0_i32, %c0_i32_0 : i32, i32
  }
  func.func @transform_6(%arg0: i32) -> (i32, i32) {
    %c0_i32 = arith.constant 0 : i32
    %c0_i32_0 = arith.constant 0 : i32
    return %arg0, %c0_i32 : i32, i32
  }
  func.func @transform_7(%arg0: i32) -> (i32, i32, i32) {
    %c0_i32 = arith.constant 0 : i32
    %c0_i32_0 = arith.constant 0 : i32
    %c0_i32_1 = arith.constant 0 : i32
    return %arg0, %c0_i32, %c0_i32_0 : i32, i32, i32
  }
}

module attributes {stable_mosaic.version = 11 : i64} {
  func.func @_dec_final_kernel(%arg0: i32, %arg1: memref<1x64x16xf32, #tpu.memory_space<vmem>>, %arg2: memref<1x16xf32, #tpu.memory_space<vmem>>, %arg3: memref<1x16xf32, #tpu.memory_space<vmem>>, %arg4: memref<2x16xf32, #tpu.memory_space<vmem>>, %arg5: memref<2x16xf32, #tpu.memory_space<vmem>>, %arg6: memref<2x16xf32, #tpu.memory_space<vmem>>, %arg7: memref<2x1xf32, #tpu.memory_space<vmem>>, %arg8: memref<1x2x128xf32, #tpu.memory_space<vmem>>) attributes {dimension_semantics = [#tpu.dimension_semantics<parallel>], iteration_bounds = array<i64: 2>, scalar_prefetch = 0 : i64, scratch_operands = 0 : i64, tpu.core_type = #tpu.core_type<tc>, window_params = [{transform_indices = @transform_0, window_bounds = array<i64: 1, 64, 16>}, {pipeline_mode = #tpu.pipeline_mode<synchronous>, transform_indices = @transform_1, window_bounds = array<i64: 1, 16>}, {pipeline_mode = #tpu.pipeline_mode<synchronous>, transform_indices = @transform_2, window_bounds = array<i64: 1, 16>}, {pipeline_mode = #tpu.pipeline_mode<synchronous>, transform_indices = @transform_3, window_bounds = array<i64: 2, 16>}, {pipeline_mode = #tpu.pipeline_mode<synchronous>, transform_indices = @transform_4, window_bounds = array<i64: 2, 16>}, {pipeline_mode = #tpu.pipeline_mode<synchronous>, transform_indices = @transform_5, window_bounds = array<i64: 2, 16>}, {pipeline_mode = #tpu.pipeline_mode<synchronous>, transform_indices = @transform_6, window_bounds = array<i64: 2, 1>}, {transform_indices = @transform_7, window_bounds = array<i64: 1, 2, 128>}]} {
    %c0 = arith.constant 0 : index
    %c0_0 = arith.constant 0 : index
    %c0_1 = arith.constant 0 : index
    %0 = vector.load %arg1[%c0, %c0_0, %c0_1] : memref<1x64x16xf32, #tpu.memory_space<vmem>>, vector<1x64x16xf32>
    %1 = vector.shape_cast %0 : vector<1x64x16xf32> to vector<64x16xf32>
    %c0_2 = arith.constant 0 : index
    %c0_3 = arith.constant 0 : index
    %2 = vector.load %arg2[%c0_2, %c0_3] : memref<1x16xf32, #tpu.memory_space<vmem>>, vector<1x16xf32>
    %3 = vector.broadcast %2 : vector<1x16xf32> to vector<64x16xf32>
    %4 = arith.mulf %1, %3 : vector<64x16xf32>
    %c0_4 = arith.constant 0 : index
    %c0_5 = arith.constant 0 : index
    %5 = vector.load %arg3[%c0_4, %c0_5] : memref<1x16xf32, #tpu.memory_space<vmem>>, vector<1x16xf32>
    %6 = vector.broadcast %5 : vector<1x16xf32> to vector<64x16xf32>
    %7 = arith.addf %4, %6 : vector<64x16xf32>
    %8 = tpu.iota {dimensions = array<i32: 0>} : vector<64x1xi32>
    %c63_i32 = arith.constant 63 : i32
    %9 = vector.broadcast %c63_i32 : i32 to vector<64x1xi32>
    %10 = arith.cmpi ne, %8, %9 : vector<64x1xi32>
    %11 = arith.extui %10 : vector<64x1xi1> to vector<64x1xi32>
    %12 = arith.sitofp %11 : vector<64x1xi32> to vector<64x1xf32>
    %c63_i32_6 = arith.constant 63 : i32
    %13 = tpu.dynamic_rotate %7 by %c63_i32_6 dim 0 : vector<64x16xf32>, i32 -> vector<64x16xf32>
    %14 = vector.broadcast %12 : vector<64x1xf32> to vector<64x16xf32>
    %15 = arith.mulf %13, %14 : vector<64x16xf32>
    %c0_7 = arith.constant 0 : index
    %c0_8 = arith.constant 0 : index
    %16 = vector.load %arg4[%c0_7, %c0_8] : memref<2x16xf32, #tpu.memory_space<vmem>>, vector<2x16xf32>
    "tpu.trace_start"() <{level = 10 : i32, message = "oc,lc->ol"}> : () -> ()
    %cst = arith.constant dense<0.000000e+00> : vector<2x64xf32>
    %17 = tpu.matmul %16, %7, %cst {dimension_numbers = #tpu.dot_dimension_numbers<[1], [1], [0], [0], [0, 0, 1, 0], [], []>} : vector<2x16xf32>, vector<64x16xf32>, vector<2x64xf32> -> vector<2x64xf32>
    "tpu.trace_stop"() : () -> ()
    %c0_9 = arith.constant 0 : index
    %c0_10 = arith.constant 0 : index
    %18 = vector.load %arg5[%c0_9, %c0_10] : memref<2x16xf32, #tpu.memory_space<vmem>>, vector<2x16xf32>
    "tpu.trace_start"() <{level = 10 : i32, message = "oc,lc->ol"}> : () -> ()
    %cst_11 = arith.constant dense<0.000000e+00> : vector<2x64xf32>
    %19 = tpu.matmul %18, %7, %cst_11 {dimension_numbers = #tpu.dot_dimension_numbers<[1], [1], [0], [0], [0, 0, 1, 0], [], []>} : vector<2x16xf32>, vector<64x16xf32>, vector<2x64xf32> -> vector<2x64xf32>
    "tpu.trace_stop"() : () -> ()
    %c0_12 = arith.constant 0 : index
    %c0_13 = arith.constant 0 : index
    %20 = vector.load %arg6[%c0_12, %c0_13] : memref<2x16xf32, #tpu.memory_space<vmem>>, vector<2x16xf32>
    "tpu.trace_start"() <{level = 10 : i32, message = "oc,lc->ol"}> : () -> ()
    %cst_14 = arith.constant dense<0.000000e+00> : vector<2x64xf32>
    %21 = tpu.matmul %20, %15, %cst_14 {dimension_numbers = #tpu.dot_dimension_numbers<[1], [1], [0], [0], [0, 0, 1, 0], [], []>} : vector<2x16xf32>, vector<64x16xf32>, vector<2x64xf32> -> vector<2x64xf32>
    "tpu.trace_stop"() : () -> ()
    %22 = arith.addf %19, %21 : vector<2x64xf32>
    %23 = tpu.iota {dimensions = array<i32: 1>} : vector<64x128xi32>
    %24 = tpu.iota {dimensions = array<i32: 0>} : vector<64x128xi32>
    %c2_i32 = arith.constant 2 : i32
    %25 = vector.broadcast %c2_i32 : i32 to vector<64x128xi32>
    %26 = arith.muli %25, %24 : vector<64x128xi32>
    %27 = arith.cmpi eq, %23, %26 : vector<64x128xi32>
    %28 = arith.extui %27 : vector<64x128xi1> to vector<64x128xi32>
    %29 = arith.sitofp %28 : vector<64x128xi32> to vector<64x128xf32>
    %c2_i32_15 = arith.constant 2 : i32
    %30 = vector.broadcast %c2_i32_15 : i32 to vector<64x128xi32>
    %31 = arith.muli %30, %24 : vector<64x128xi32>
    %c1_i32 = arith.constant 1 : i32
    %32 = vector.broadcast %c1_i32 : i32 to vector<64x128xi32>
    %33 = arith.addi %31, %32 : vector<64x128xi32>
    %34 = arith.cmpi eq, %23, %33 : vector<64x128xi32>
    %35 = arith.extui %34 : vector<64x128xi1> to vector<64x128xi32>
    %36 = arith.sitofp %35 : vector<64x128xi32> to vector<64x128xf32>
    %cst_16 = arith.constant dense<0.000000e+00> : vector<2x128xf32>
    %37 = tpu.matmul %17, %29, %cst_16 {dimension_numbers = #tpu.dot_dimension_numbers<[1], [0], [0], [1], [0, 0, 1, 1], [], []>} : vector<2x64xf32>, vector<64x128xf32>, vector<2x128xf32> -> vector<2x128xf32>
    %cst_17 = arith.constant dense<0.000000e+00> : vector<2x128xf32>
    %38 = tpu.matmul %22, %36, %cst_17 {dimension_numbers = #tpu.dot_dimension_numbers<[1], [0], [0], [1], [0, 0, 1, 1], [], []>} : vector<2x64xf32>, vector<64x128xf32>, vector<2x128xf32> -> vector<2x128xf32>
    %39 = arith.addf %37, %38 : vector<2x128xf32>
    %c0_18 = arith.constant 0 : index
    %c0_19 = arith.constant 0 : index
    %40 = vector.load %arg7[%c0_18, %c0_19] : memref<2x1xf32, #tpu.memory_space<vmem>>, vector<2x1xf32>
    %41 = vector.broadcast %40 : vector<2x1xf32> to vector<2x128xf32>
    %42 = arith.addf %39, %41 : vector<2x128xf32>
    %c0_20 = arith.constant 0 : index
    %c0_21 = arith.constant 0 : index
    %c0_22 = arith.constant 0 : index
    %43 = vector.load %arg8[%c0_20, %c0_21, %c0_22] : memref<1x2x128xf32, #tpu.memory_space<vmem>>, vector<1x2x128xf32>
    %44 = vector.shape_cast %43 : vector<1x2x128xf32> to vector<2x128xf32>
    %45 = vector.shape_cast %42 : vector<2x128xf32> to vector<1x2x128xf32>
    tpu.vector_store %arg8[%c0_20, %c0_21, %c0_22], %45 {strides = array<i32>} : memref<1x2x128xf32, #tpu.memory_space<vmem>>, vector<1x2x128xf32>,
    return
  }
  func.func @transform_0(%arg0: i32) -> (i32, i32, i32) {
    %c0_i32 = arith.constant 0 : i32
    %c0_i32_0 = arith.constant 0 : i32
    %c0_i32_1 = arith.constant 0 : i32
    return %arg0, %c0_i32, %c0_i32_0 : i32, i32, i32
  }
  func.func @transform_1(%arg0: i32) -> (i32, i32) {
    %c0_i32 = arith.constant 0 : i32
    %c0_i32_0 = arith.constant 0 : i32
    %c0_i32_1 = arith.constant 0 : i32
    return %c0_i32, %c0_i32_0 : i32, i32
  }
  func.func @transform_2(%arg0: i32) -> (i32, i32) {
    %c0_i32 = arith.constant 0 : i32
    %c0_i32_0 = arith.constant 0 : i32
    %c0_i32_1 = arith.constant 0 : i32
    return %c0_i32, %c0_i32_0 : i32, i32
  }
  func.func @transform_3(%arg0: i32) -> (i32, i32) {
    %c0_i32 = arith.constant 0 : i32
    %c0_i32_0 = arith.constant 0 : i32
    %c0_i32_1 = arith.constant 0 : i32
    return %c0_i32, %c0_i32_0 : i32, i32
  }
  func.func @transform_4(%arg0: i32) -> (i32, i32) {
    %c0_i32 = arith.constant 0 : i32
    %c0_i32_0 = arith.constant 0 : i32
    %c0_i32_1 = arith.constant 0 : i32
    return %c0_i32, %c0_i32_0 : i32, i32
  }
  func.func @transform_5(%arg0: i32) -> (i32, i32) {
    %c0_i32 = arith.constant 0 : i32
    %c0_i32_0 = arith.constant 0 : i32
    %c0_i32_1 = arith.constant 0 : i32
    return %c0_i32, %c0_i32_0 : i32, i32
  }
  func.func @transform_6(%arg0: i32) -> (i32, i32) {
    %c0_i32 = arith.constant 0 : i32
    %c0_i32_0 = arith.constant 0 : i32
    %c0_i32_1 = arith.constant 0 : i32
    return %c0_i32, %c0_i32_0 : i32, i32
  }
  func.func @transform_7(%arg0: i32) -> (i32, i32, i32) {
    %c0_i32 = arith.constant 0 : i32
    %c0_i32_0 = arith.constant 0 : i32
    %c0_i32_1 = arith.constant 0 : i32
    return %arg0, %c0_i32, %c0_i32_0 : i32, i32, i32
  }
}

</mosaic_0001>

<llo_original>
// kernel: vae_forward.9
$region0: #{vae_forward.9}
  #allocation0 [shape = 'u32[]', space=smem, size = 0x4, offset = 0x4, fixed_abs, tag = 'smem constant byte address 0x4 - core index']
  #allocation1 [shape = 'u32[144,128]{1,0:T(1,128)}', space=vmem, size = 0x12000, scoped, tag = 'internal scratch']
  %s0 = inlined_call_operand.vmem [shape: f32[128,4], index: 0, kind: input, shape index: {}]
  %s1 = inlined_call_operand.vmem [shape: f32[1,4], index: 1, kind: input, shape index: {}]
  %s2 = inlined_call_operand.vmem [shape: f32[1,4], index: 2, kind: input, shape index: {}]
  %s3 = inlined_call_operand.vmem [shape: bf16[4,16], index: 3, kind: input, shape index: {}]
  %s4 = inlined_call_operand.vmem [shape: bf16[4,16], index: 4, kind: input, shape index: {}]
  %s5 = inlined_call_operand.vmem [shape: f32[1,16], index: 5, kind: input, shape index: {}]
  %s6 = inlined_call_operand.vmem [shape: f32[128,16], index: 6, kind: output, shape index: {0}]
  %s7 = inlined_call_operand.vmem [shape: f32[1,2,16], index: 7, kind: output, shape index: {1}]
  %8 = xla_tuple %s6, %s7
  %s9 = sld [smem:[#allocation0]]
  $region42: #{vae_forward.9} parent=0
    _
  %s11 = ssub.s32 1, %s9
  %s12 = scalar_select 0, %s11, %s9
  // Predicated region
  $region2: #{vae_forward.9} parent=0 // pred_check
    _
  $region3: #{vae_forward.9} parent=0 // pred_check_branch
    %14 = sbr.rel (0) target = $region5
  $region4: #{vae_forward.9} parent=0 // pred_region
    _
  $region5: #{vae_forward.9} parent=0 // pred_fallthru
    _
  // Predicated region
  $region6: #{vae_forward.9} parent=0 // pred_check
    _
  $region7: #{vae_forward.9} parent=0 // pred_check_branch
    %16 = sbr.rel (0) target = $region9
  $region8: #{vae_forward.9} parent=0 // pred_region
    _
  $region9: #{vae_forward.9} parent=0 // pred_fallthru
    _
  // Predicated region
  $region10: #{vae_forward.9} parent=0 // pred_check
    _
  $region11: #{vae_forward.9} parent=0 // pred_check_branch
    %18 = sbr.rel (0) target = $region13
  $region12: #{vae_forward.9} parent=0 // pred_region
    _
  $region13: #{vae_forward.9} parent=0 // pred_fallthru
    _
  // Predicated region
  $region14: #{vae_forward.9} parent=0 // pred_check
    _
  $region15: #{vae_forward.9} parent=0 // pred_check_branch
    %20 = sbr.rel (0) target = $region17
  $region16: #{vae_forward.9} parent=0 // pred_region
    _
  $region17: #{vae_forward.9} parent=0 // pred_fallthru
    _
  // Predicated region
  $region18: #{vae_forward.9} parent=0 // pred_check
    _
  $region19: #{vae_forward.9} parent=0 // pred_check_branch
    %22 = sbr.rel (0) target = $region21
  $region20: #{vae_forward.9} parent=0 // pred_region
    _
  $region21: #{vae_forward.9} parent=0 // pred_fallthru
    _
  // Predicated region
  $region22: #{vae_forward.9} parent=0 // pred_check
    _
  $region23: #{vae_forward.9} parent=0 // pred_check_branch
    %24 = sbr.rel (0) target = $region25
  $region24: #{vae_forward.9} parent=0 // pred_region
    _
  $region25: #{vae_forward.9} parent=0 // pred_fallthru
    _
  %v26 = vld [vmem:[%s0] sm:$0xff]
  %v27 = vld [vmem:[%s0 + $0x8] sm:$0xff]
  %v28 = vld [vmem:[%s0 + $0x10] sm:$0xff]
  %v29 = vld [vmem:[%s0 + $0x18] sm:$0xff]
  %v30 = vld [vmem:[%s0 + $0x20] sm:$0xff]
  %v31 = vld [vmem:[%s0 + $0x28] sm:$0xff]
  %v32 = vld [vmem:[%s0 + $0x30] sm:$0xff]
  %v33 = vld [vmem:[%s0 + $0x38] sm:$0xff]
  %v34 = vld [vmem:[%s0 + $0x40] sm:$0xff]
  %v35 = vld [vmem:[%s0 + $0x48] sm:$0xff]
  %v36 = vld [vmem:[%s0 + $0x50] sm:$0xff]
  %v37 = vld [vmem:[%s0 + $0x58] sm:$0xff]
  %v38 = vld [vmem:[%s0 + $0x60] sm:$0xff]
  %v39 = vld [vmem:[%s0 + $0x68] sm:$0xff]
  %v40 = vld [vmem:[%s0 + $0x70] sm:$0xff]
  %v41 = vld [vmem:[%s0 + $0x78] sm:$0xff]
  %v42 = vld [vmem:[%s1] sm:$0x1]
  %v44 = vlaneseq
  %v45 = vshrl.u32 %v44, 7
  %v46 = vsub.s32 0, %v45
  %v47 = vrot.slane %v42, %v46
  %v49 = vmul.f32 %v26, %v47
  %v50 = vmul.f32 %v27, %v47
  %v51 = vmul.f32 %v28, %v47
  %v52 = vmul.f32 %v29, %v47
  %v53 = vmul.f32 %v30, %v47
  %v54 = vmul.f32 %v31, %v47
  %v55 = vmul.f32 %v32, %v47
  %v56 = vmul.f32 %v33, %v47
  %v57 = vmul.f32 %v34, %v47
  %v58 = vmul.f32 %v35, %v47
  %v59 = vmul.f32 %v36, %v47
  %v60 = vmul.f32 %v37, %v47
  %v61 = vmul.f32 %v38, %v47
  %v62 = vmul.f32 %v39, %v47
  %v63 = vmul.f32 %v40, %v47
  %v64 = vmul.f32 %v41, %v47
  %v65 = vld [vmem:[%s2] sm:$0x1]
  %v67 = vlaneseq
  %v68 = vshrl.u32 %v67, 7
  %v69 = vsub.s32 0, %v68
  %v70 = vrot.slane %v65, %v69
  %v72 = vadd.f32 %v49, %v70
  %v73 = vadd.f32 %v50, %v70
  %v74 = vadd.f32 %v51, %v70
  %v75 = vadd.f32 %v52, %v70
  %v76 = vadd.f32 %v53, %v70
  %v77 = vadd.f32 %v54, %v70
  %v78 = vadd.f32 %v55, %v70
  %v79 = vadd.f32 %v56, %v70
  %v80 = vadd.f32 %v57, %v70
  %v81 = vadd.f32 %v58, %v70
  %v82 = vadd.f32 %v59, %v70
  %v83 = vadd.f32 %v60, %v70
  %v84 = vadd.f32 %v61, %v70
  %v85 = vadd.f32 %v62, %v70
  %v86 = vadd.f32 %v63, %v70
  %v87 = vadd.f32 %v64, %v70
  %v88 = vlaneseq
  %v89 = vshrl.u32 %v88, 7
  %v90 = vadd.s32 %v89, 8
  %v91 = vadd.s32 %v89, 16
  %v92 = vadd.s32 %v89, 24
  %v93 = vadd.s32 %v89, 32
  %v94 = vadd.s32 %v89, 40
  %v95 = vadd.s32 %v89, 48
  %v96 = vadd.s32 %v89, 56
  %v97 = vadd.s32 %v89, 64
  %v98 = vadd.s32 %v89, 72
  %v99 = vadd.s32 %v89, 80
  %v100 = vadd.s32 %v89, 88
  %v101 = vadd.s32 %v89, 96
  %v102 = vadd.s32 %v89, 104
  %v103 = vadd.s32 %v89, 112
  %v104 = vadd.s32 %v89, 120
  %vm105 = vcmp.lt.s32.totalorder %v89, 0
  %v106 = vsub.s32 0, %v89
  %v107 = vsel %vm105, %v106, %v89
  %v108 = vshrl.u32 %v107, 6
  %v109 = vand.u32 %v107, 63
  %v110 = vsub.s32 0, %v109
  %v111 = vsel %vm105, %v110, %v109
  %vm112 = vcmp.lt.s32.totalorder %v90, 0
  %v113 = vsub.s32 0, %v90
  %v114 = vsel %vm112, %v113, %v90
  %v115 = vshrl.u32 %v114, 6
  %v116 = vand.u32 %v114, 63
  %v117 = vsub.s32 0, %v116
  %v118 = vsel %vm112, %v117, %v116
  %vm119 = vcmp.lt.s32.totalorder %v91, 0
  %v120 = vsub.s32 0, %v91
  %v121 = vsel %vm119, %v120, %v91
  %v122 = vshrl.u32 %v121, 6
  %v123 = vand.u32 %v121, 63
  %v124 = vsub.s32 0, %v123
  %v125 = vsel %vm119, %v124, %v123
  %vm126 = vcmp.lt.s32.totalorder %v92, 0
  %v127 = vsub.s32 0, %v92
  %v128 = vsel %vm126, %v127, %v92
  %v129 = vshrl.u32 %v128, 6
  %v130 = vand.u32 %v128, 63
  %v131 = vsub.s32 0, %v130
  %v132 = vsel %vm126, %v131, %v130
  %vm133 = vcmp.lt.s32.totalorder %v93, 0
  %v134 = vsub.s32 0, %v93
  %v135 = vsel %vm133, %v134, %v93
  %v136 = vshrl.u32 %v135, 6
  %v137 = vand.u32 %v135, 63
  %v138 = vsub.s32 0, %v137
  %v139 = vsel %vm133, %v138, %v137
  %vm140 = vcmp.lt.s32.totalorder %v94, 0
  %v141 = vsub.s32 0, %v94
  %v142 = vsel %vm140, %v141, %v94
  %v143 = vshrl.u32 %v142, 6
  %v144 = vand.u32 %v142, 63
  %v145 = vsub.s32 0, %v144
  %v146 = vsel %vm140, %v145, %v144
  %vm147 = vcmp.lt.s32.totalorder %v95, 0
  %v148 = vsub.s32 0, %v95
  %v149 = vsel %vm147, %v148, %v95
  %v150 = vshrl.u32 %v149, 6
  %v151 = vand.u32 %v149, 63
  %v152 = vsub.s32 0, %v151
  %v153 = vsel %vm147, %v152, %v151
  %vm154 = vcmp.lt.s32.totalorder %v96, 0
  %v155 = vsub.s32 0, %v96
  %v156 = vsel %vm154, %v155, %v96
  %v157 = vshrl.u32 %v156, 6
  %v158 = vand.u32 %v156, 63
  %v159 = vsub.s32 0, %v158
  %v160 = vsel %vm154, %v159, %v158
  %vm161 = vcmp.lt.s32.totalorder %v97, 0
  %v162 = vsub.s32 0, %v97
  %v163 = vsel %vm161, %v162, %v97
  %v164 = vshrl.u32 %v163, 6
  %v165 = vand.u32 %v163, 63
  %v166 = vsub.s32 0, %v165
  %v167 = vsel %vm161, %v166, %v165
  %vm168 = vcmp.lt.s32.totalorder %v98, 0
  %v169 = vsub.s32 0, %v98
  %v170 = vsel %vm168, %v169, %v98
  %v171 = vshrl.u32 %v170, 6
  %v172 = vand.u32 %v170, 63
  %v173 = vsub.s32 0, %v172
  %v174 = vsel %vm168, %v173, %v172
  %vm175 = vcmp.lt.s32.totalorder %v99, 0
  %v176 = vsub.s32 0, %v99
  %v177 = vsel %vm175, %v176, %v99
  %v178 = vshrl.u32 %v177, 6
  %v179 = vand.u32 %v177, 63
  %v180 = vsub.s32 0, %v179
  %v181 = vsel %vm175, %v180, %v179
  %vm182 = vcmp.lt.s32.totalorder %v100, 0
  %v183 = vsub.s32 0, %v100
  %v184 = vsel %vm182, %v183, %v100
  %v185 = vshrl.u32 %v184, 6
  %v186 = vand.u32 %v184, 63
  %v187 = vsub.s32 0, %v186
  %v188 = vsel %vm182, %v187, %v186
  %vm189 = vcmp.lt.s32.totalorder %v101, 0
  %v190 = vsub.s32 0, %v101
  %v191 = vsel %vm189, %v190, %v101
  %v192 = vshrl.u32 %v191, 6
  %v193 = vand.u32 %v191, 63
  %v194 = vsub.s32 0, %v193
  %v195 = vsel %vm189, %v194, %v193
  %vm196 = vcmp.lt.s32.totalorder %v102, 0
  %v197 = vsub.s32 0, %v102
  %v198 = vsel %vm196, %v197, %v102
  %v199 = vshrl.u32 %v198, 6
  %v200 = vand.u32 %v198, 63
  %v201 = vsub.s32 0, %v200
  %v202 = vsel %vm196, %v201, %v200
  %vm203 = vcmp.lt.s32.totalorder %v103, 0
  %v204 = vsub.s32 0, %v103
  %v205 = vsel %vm203, %v204, %v103
  %v206 = vshrl.u32 %v205, 6
  %v207 = vand.u32 %v205, 63
  %v208 = vsub.s32 0, %v207
  %v209 = vsel %vm203, %v208, %v207
  %vm210 = vcmp.lt.s32.totalorder %v104, 0
  %v211 = vsub.s32 0, %v104
  %v212 = vsel %vm210, %v211, %v104
  %v213 = vshrl.u32 %v212, 6
  %v214 = vand.u32 %v212, 63
  %v215 = vsub.s32 0, %v214
  %v216 = vsel %vm210, %v215, %v214
  %vm217 = vcmp.ne.s32.totalorder %v111, 0
  %vm218 = vcmp.ne.s32.totalorder %v118, 0
  %vm219 = vcmp.ne.s32.totalorder %v125, 0
  %vm220 = vcmp.ne.s32.totalorder %v132, 0
  %vm221 = vcmp.ne.s32.totalorder %v139, 0
  %vm222 = vcmp.ne.s32.totalorder %v146, 0
  %vm223 = vcmp.ne.s32.totalorder %v153, 0
  %vm224 = vcmp.ne.s32.totalorder %v160, 0
  %vm225 = vcmp.ne.s32.totalorder %v167, 0
  %vm226 = vcmp.ne.s32.totalorder %v174, 0
  %vm227 = vcmp.ne.s32.totalorder %v181, 0
  %vm228 = vcmp.ne.s32.totalorder %v188, 0
  %vm229 = vcmp.ne.s32.totalorder %v195, 0
  %vm230 = vcmp.ne.s32.totalorder %v202, 0
  %vm231 = vcmp.ne.s32.totalorder %v209, 0
  %vm232 = vcmp.ne.s32.totalorder %v216, 0
  %vm233 = vcmp.lt.s32.totalorder %v111, 0
  %vm234 = vcmp.lt.s32.totalorder %v118, 0
  %vm235 = vcmp.lt.s32.totalorder %v125, 0
  %vm236 = vcmp.lt.s32.totalorder %v132, 0
  %vm237 = vcmp.lt.s32.totalorder %v139, 0
  %vm238 = vcmp.lt.s32.totalorder %v146, 0
  %vm239 = vcmp.lt.s32.totalorder %v153, 0
  %vm240 = vcmp.lt.s32.totalorder %v160, 0
  %vm241 = vcmp.lt.s32.totalorder %v167, 0
  %vm242 = vcmp.lt.s32.totalorder %v174, 0
  %vm243 = vcmp.lt.s32.totalorder %v181, 0
  %vm244 = vcmp.lt.s32.totalorder %v188, 0
  %vm245 = vcmp.lt.s32.totalorder %v195, 0
  %vm246 = vcmp.lt.s32.totalorder %v202, 0
  %vm247 = vcmp.lt.s32.totalorder %v209, 0
  %vm248 = vcmp.lt.s32.totalorder %v216, 0
  %vm249 = vmand %vm233, %vm217
  %vm250 = vmand %vm234, %vm218
  %vm251 = vmand %vm235, %vm219
  %vm252 = vmand %vm236, %vm220
  %vm253 = vmand %vm237, %vm221
  %vm254 = vmand %vm238, %vm222
  %vm255 = vmand %vm239, %vm223
  %vm256 = vmand %vm240, %vm224
  %vm257 = vmand %vm241, %vm225
  %vm258 = vmand %vm242, %vm226
  %vm259 = vmand %vm243, %vm227
  %vm260 = vmand %vm244, %vm228
  %vm261 = vmand %vm245, %vm229
  %vm262 = vmand %vm246, %vm230
  %vm263 = vmand %vm247, %vm231
  %vm264 = vmand %vm248, %vm232
  %v265 = vadd.s32 %v111, 64
  %v266 = vadd.s32 %v118, 64
  %v267 = vadd.s32 %v125, 64
  %v268 = vadd.s32 %v132, 64
  %v269 = vadd.s32 %v139, 64
  %v270 = vadd.s32 %v146, 64
  %v271 = vadd.s32 %v153, 64
  %v272 = vadd.s32 %v160, 64
  %v273 = vadd.s32 %v167, 64
  %v274 = vadd.s32 %v174, 64
  %v275 = vadd.s32 %v181, 64
  %v276 = vadd.s32 %v188, 64
  %v277 = vadd.s32 %v195, 64
  %v278 = vadd.s32 %v202, 64
  %v279 = vadd.s32 %v209, 64
  %v280 = vadd.s32 %v216, 64
  %v281 = vsel %vm249, %v265, %v111
  %v282 = vsel %vm250, %v266, %v118
  %v283 = vsel %vm251, %v267, %v125
  %v284 = vsel %vm252, %v268, %v132
  %v285 = vsel %vm253, %v269, %v139
  %v286 = vsel %vm254, %v270, %v146
  %v287 = vsel %vm255, %v271, %v153
  %v288 = vsel %vm256, %v272, %v160
  %v289 = vsel %vm257, %v273, %v167
  %v290 = vsel %vm258, %v274, %v174
  %v291 = vsel %vm259, %v275, %v181
  %v292 = vsel %vm260, %v276, %v188
  %v293 = vsel %vm261, %v277, %v195
  %v294 = vsel %vm262, %v278, %v202
  %v295 = vsel %vm263, %v279, %v209
  %v296 = vsel %vm264, %v280, %v216
  %vm297 = vcmp.ne.s32.totalorder %v281, 0
  %vm298 = vcmp.ne.s32.totalorder %v282, 0
  %vm299 = vcmp.ne.s32.totalorder %v283, 0
  %vm300 = vcmp.ne.s32.totalorder %v284, 0
  %vm301 = vcmp.ne.s32.totalorder %v285, 0
  %vm302 = vcmp.ne.s32.totalorder %v286, 0
  %vm303 = vcmp.ne.s32.totalorder %v287, 0
  %vm304 = vcmp.ne.s32.totalorder %v288, 0
  %vm305 = vcmp.ne.s32.totalorder %v289, 0
  %vm306 = vcmp.ne.s32.totalorder %v290, 0
  %vm307 = vcmp.ne.s32.totalorder %v291, 0
  %vm308 = vcmp.ne.s32.totalorder %v292, 0
  %vm309 = vcmp.ne.s32.totalorder %v293, 0
  %vm310 = vcmp.ne.s32.totalorder %v294, 0
  %vm311 = vcmp.ne.s32.totalorder %v295, 0
  %vm312 = vcmp.ne.s32.totalorder %v296, 0
  %v313 = vsel %vm297, 1, 0
  %v314 = vsel %vm298, 1, 0
  %v315 = vsel %vm299, 1, 0
  %v316 = vsel %vm300, 1, 0
  %v317 = vsel %vm301, 1, 0
  %v318 = vsel %vm302, 1, 0
  %v319 = vsel %vm303, 1, 0
  %v320 = vsel %vm304, 1, 0
  %v321 = vsel %vm305, 1, 0
  %v322 = vsel %vm306, 1, 0
  %v323 = vsel %vm307, 1, 0
  %v324 = vsel %vm308, 1, 0
  %v325 = vsel %vm309, 1, 0
  %v326 = vsel %vm310, 1, 0
  %v327 = vsel %vm311, 1, 0
  %v328 = vsel %vm312, 1, 0
  %v329 = vcvt.s32.f32 %v313
  %v330 = vcvt.s32.f32 %v314
  %v331 = vcvt.s32.f32 %v315
  %v332 = vcvt.s32.f32 %v316
  %v333 = vcvt.s32.f32 %v317
  %v334 = vcvt.s32.f32 %v318
  %v335 = vcvt.s32.f32 %v319
  %v336 = vcvt.s32.f32 %v320
  %v337 = vcvt.s32.f32 %v321
  %v338 = vcvt.s32.f32 %v322
  %v339 = vcvt.s32.f32 %v323
  %v340 = vcvt.s32.f32 %v324
  %v341 = vcvt.s32.f32 %v325
  %v342 = vcvt.s32.f32 %v326
  %v343 = vcvt.s32.f32 %v327
  %v344 = vcvt.s32.f32 %v328
  %v345 = vrot.slane %v72, 7
  %v346 = vrot.slane %v73, 7
  %v347 = vrot.slane %v74, 7
  %v348 = vrot.slane %v75, 7
  %v349 = vrot.slane %v76, 7
  %v350 = vrot.slane %v77, 7
  %v351 = vrot.slane %v78, 7
  %v352 = vrot.slane %v79, 7
  %v353 = vrot.slane %v80, 7
  %v354 = vrot.slane %v81, 7
  %v355 = vrot.slane %v82, 7
  %v356 = vrot.slane %v83, 7
  %v357 = vrot.slane %v84, 7
  %v358 = vrot.slane %v85, 7
  %v359 = vrot.slane %v86, 7
  %v360 = vrot.slane %v87, 7
  %vm361 = vcmp.lt.s32.totalorder %v89, 1
  %v362 = vsel %vm361, %v359, %v360
  %v363 = vsel %vm361, %v358, %v359
  %v364 = vsel %vm361, %v357, %v358
  %v365 = vsel %vm361, %v356, %v357
  %v366 = vsel %vm361, %v355, %v356
  %v367 = vsel %vm361, %v354, %v355
  %v368 = vsel %vm361, %v353, %v354
  %v369 = vsel %vm361, %v352, %v353
  %v370 = vsel %vm361, %v351, %v352
  %v371 = vsel %vm361, %v350, %v351
  %v372 = vsel %vm361, %v349, %v350
  %v373 = vsel %vm361, %v348, %v349
  %v374 = vsel %vm361, %v347, %v348
  %v375 = vsel %vm361, %v346, %v347
  %v376 = vsel %vm361, %v345, %v346
  %v377 = vsel %vm361, %v360, %v345
  %v378 = vmul.f32 %v377, %v329
  %v379 = vmul.f32 %v376, %v330
  %v380 = vmul.f32 %v375, %v331
  %v381 = vmul.f32 %v374, %v332
  %v382 = vmul.f32 %v373, %v333
  %v383 = vmul.f32 %v372, %v334
  %v384 = vmul.f32 %v371, %v335
  %v385 = vmul.f32 %v370, %v336
  %v386 = vmul.f32 %v369, %v337
  %v387 = vmul.f32 %v368, %v338
  %v388 = vmul.f32 %v367, %v339
  %v389 = vmul.f32 %v366, %v340
  %v390 = vmul.f32 %v365, %v341
  %v391 = vmul.f32 %v364, %v342
  %v392 = vmul.f32 %v363, %v343
  %v393 = vmul.f32 %v362, %v344
  %v394 = vpack.c.bf16 %v379, %v378
  %v395 = vpack.c.bf16 %v381, %v380
  %v396 = vpack.c.bf16 %v383, %v382
  %v397 = vpack.c.bf16 %v385, %v384
  %v398 = vpack.c.bf16 %v387, %v386
  %v399 = vpack.c.bf16 %v389, %v388
  %v400 = vpack.c.bf16 %v391, %v390
  %v401 = vpack.c.bf16 %v393, %v392
  %v402 = vld [vmem:[%s3] sm:$0x3]
  %v403 = vpack.c.bf16 %v73, %v72
  %v404 = vpack.c.bf16 %v75, %v74
  %v405 = vpack.c.bf16 %v77, %v76
  %v406 = vpack.c.bf16 %v79, %v78
  %v407 = vpack.c.bf16 %v81, %v80
  %v408 = vpack.c.bf16 %v83, %v82
  %v409 = vpack.c.bf16 %v85, %v84
  %v410 = vpack.c.bf16 %v87, %v86
  %v411 = vld [vmem:[%s4] sm:$0x3]
  %vm412 = vcmask 31744
  %v414 = vsel %vm412, %v403, 0
  %v417 = vsel %vm412, %v404, 0
  %v420 = vsel %vm412, %v405, 0
  %v423 = vsel %vm412, %v406, 0
  %v426 = vsel %vm412, %v407, 0
  %v429 = vsel %vm412, %v408, 0
  %v432 = vsel %vm412, %v409, 0
  %v435 = vsel %vm412, %v410, 0
  %vm437 = vcmask 1041408
  %v439 = vsel %vm437, %v411, 0
  %441 = vmatprep.subr.bf16.mxu0 0
  %442 = vmatpush1.bf16.msra.mxu0 %v439
  %443 = vmatprep.subr.bf16.mxu0 0
  %444 = vmatpush1.bf16.msra.mxu0 0
  %445 = vmatprep.subr.bf16.mxu0 0
  %446 = vmatpush1.bf16.msra.mxu0 0
  %447 = vmatprep.subr.bf16.mxu0 0
  %448 = vmatpush1.bf16.msra.mxu0 0
  %449 = vmatprep.subr.bf16.mxu0 0
  %450 = vmatpush1.bf16.msra.mxu0 0
  %451 = vmatprep.subr.bf16.mxu0 0
  %452 = vmatpush1.bf16.msra.mxu0 0
  %453 = vmatprep.subr.bf16.mxu0 0
  %454 = vmatpush1.bf16.msra.mxu0 0
  %455 = vmatprep.subr.bf16.mxu0 0
  %456 = vmatpush1.bf16.msra.mxu0 0
  %457 = vmatprep.subr.bf16.mxu0 0
  %458 = vmatpush1.bf16.msra.mxu0 0
  %459 = vmatprep.subr.bf16.mxu0 0
  %460 = vmatpush1.bf16.msra.mxu0 0
  %461 = vmatprep.subr.bf16.mxu0 0
  %462 = vmatpush1.bf16.msra.mxu0 0
  %463 = vmatprep.subr.bf16.mxu0 0
  %464 = vmatpush1.bf16.msra.mxu0 0
  %465 = vmatprep.subr.bf16.mxu0 0
  %466 = vmatpush1.bf16.msra.mxu0 0
  %467 = vmatprep.subr.bf16.mxu0 0
  %468 = vmatpush1.bf16.msra.mxu0 0
  %469 = vmatprep.subr.bf16.mxu0 0
  %470 = vmatpush1.bf16.msra.mxu0 0
  %471 = vmatprep.subr.bf16.mxu0 0
  %472 = vmatpush1.bf16.msra.mxu0 0
  %473 = vmatprep.mubr.bf16.mxu0 0
  %474 = vmatmul.mubr.bf16.gmra.mrb[0].mxu0 %v414
  %v475 = vpop.f32.mrb[0].mxu0
  %v476 = vadd.f32 0.0, %v475
  %v477 = vpop.f32.mrb[0].mxu0
  %v478 = vpop.f32.mrb[0].mxu0
  %v479 = vadd.f32 0.0, %v478
  %v480 = vpop.f32.mrb[0].mxu0
  %481 = vmatprep.mubr.bf16.mxu0 0
  %482 = vmatmul.mubr.bf16.gmra.mrb[0].mxu0 %v417
  %v483 = vpop.f32.mrb[0].mxu0
  %v484 = vadd.f32 0.0, %v483
  %v485 = vpop.f32.mrb[0].mxu0
  %v486 = vpop.f32.mrb[0].mxu0
  %v487 = vadd.f32 0.0, %v486
  %v488 = vpop.f32.mrb[0].mxu0
  %489 = vmatprep.mubr.bf16.mxu0 0
  %490 = vmatmul.mubr.bf16.gmra.mrb[0].mxu0 %v420
  %v491 = vpop.f32.mrb[0].mxu0
  %v492 = vadd.f32 0.0, %v491
  %v493 = vpop.f32.mrb[0].mxu0
  %v494 = vpop.f32.mrb[0].mxu0
  %v495 = vadd.f32 0.0, %v494
  %v496 = vpop.f32.mrb[0].mxu0
  %497 = vmatprep.mubr.bf16.mxu0 0
  %498 = vmatmul.mubr.bf16.gmra.mrb[0].mxu0 %v423
  %v499 = vpop.f32.mrb[0].mxu0
  %v500 = vadd.f32 0.0, %v499
  %v501 = vpop.f32.mrb[0].mxu0
  %v502 = vpop.f32.mrb[0].mxu0
  %v503 = vadd.f32 0.0, %v502
  %v504 = vpop.f32.mrb[0].mxu0
  %505 = vmatprep.mubr.bf16.mxu0 0
  %506 = vmatmul.mubr.bf16.gmra.mrb[0].mxu0 %v426
  %v507 = vpop.f32.mrb[0].mxu0
  %v508 = vadd.f32 0.0, %v507
  %v509 = vpop.f32.mrb[0].mxu0
  %v510 = vpop.f32.mrb[0].mxu0
  %v511 = vadd.f32 0.0, %v510
  %v512 = vpop.f32.mrb[0].mxu0
  %513 = vmatprep.mubr.bf16.mxu0 0
  %514 = vmatmul.mubr.bf16.gmra.mrb[0].mxu0 %v429
  %v515 = vpop.f32.mrb[0].mxu0
  %v516 = vadd.f32 0.0, %v515
  %v517 = vpop.f32.mrb[0].mxu0
  %v518 = vpop.f32.mrb[0].mxu0
  %v519 = vadd.f32 0.0, %v518
  %v520 = vpop.f32.mrb[0].mxu0
  %521 = vmatprep.mubr.bf16.mxu0 0
  %522 = vmatmul.mubr.bf16.gmra.mrb[0].mxu0 %v432
  %v523 = vpop.f32.mrb[0].mxu0
  %v524 = vadd.f32 0.0, %v523
  %v525 = vpop.f32.mrb[0].mxu0
  %v526 = vpop.f32.mrb[0].mxu0
  %v527 = vadd.f32 0.0, %v526
  %v528 = vpop.f32.mrb[0].mxu0
  %529 = vmatprep.mubr.bf16.mxu0 0
  %530 = vmatmul.mubr.bf16.gmra.mrb[0].mxu0 %v435
  %v531 = vpop.f32.mrb[0].mxu0
  %v532 = vadd.f32 0.0, %v531
  %v533 = vpop.f32.mrb[0].mxu0
  %v534 = vpop.f32.mrb[0].mxu0
  %v535 = vadd.f32 0.0, %v534
  %v536 = vpop.f32.mrb[0].mxu0
  %537 = vdwg.mxu0
  %v539 = vsel %vm412, %v394, 0
  %v542 = vsel %vm412, %v395, 0
  %v545 = vsel %vm412, %v396, 0
  %v548 = vsel %vm412, %v397, 0
  %v551 = vsel %vm412, %v398, 0
  %v554 = vsel %vm412, %v399, 0
  %v557 = vsel %vm412, %v400, 0
  %v560 = vsel %vm412, %v401, 0
  %v563 = vsel %vm437, %v402, 0
  %565 = vmatprep.subr.bf16.mxu0 0
  %566 = vmatpush1.bf16.msra.mxu0 %v563
  %567 = vmatprep.subr.bf16.mxu0 0
  %568 = vmatpush1.bf16.msra.mxu0 0
  %569 = vmatprep.subr.bf16.mxu0 0
  %570 = vmatpush1.bf16.msra.mxu0 0
  %571 = vmatprep.subr.bf16.mxu0 0
  %572 = vmatpush1.bf16.msra.mxu0 0
  %573 = vmatprep.subr.bf16.mxu0 0
  %574 = vmatpush1.bf16.msra.mxu0 0
  %575 = vmatprep.subr.bf16.mxu0 0
  %576 = vmatpush1.bf16.msra.mxu0 0
  %577 = vmatprep.subr.bf16.mxu0 0
  %578 = vmatpush1.bf16.msra.mxu0 0
  %579 = vmatprep.subr.bf16.mxu0 0
  %580 = vmatpush1.bf16.msra.mxu0 0
  %581 = vmatprep.subr.bf16.mxu0 0
  %582 = vmatpush1.bf16.msra.mxu0 0
  %583 = vmatprep.subr.bf16.mxu0 0
  %584 = vmatpush1.bf16.msra.mxu0 0
  %585 = vmatprep.subr.bf16.mxu0 0
  %586 = vmatpush1.bf16.msra.mxu0 0
  %587 = vmatprep.subr.bf16.mxu0 0
  %588 = vmatpush1.bf16.msra.mxu0 0
  %589 = vmatprep.subr.bf16.mxu0 0
  %590 = vmatpush1.bf16.msra.mxu0 0
  %591 = vmatprep.subr.bf16.mxu0 0
  %592 = vmatpush1.bf16.msra.mxu0 0
  %593 = vmatprep.subr.bf16.mxu0 0
  %594 = vmatpush1.bf16.msra.mxu0 0
  %595 = vmatprep.subr.bf16.mxu0 0
  %596 = vmatpush1.bf16.msra.mxu0 0
  %597 = vmatprep.mubr.bf16.mxu0 0
  %598 = vmatmul.mubr.bf16.gmra.mrb[0].mxu0 %v539
  %v599 = vpop.f32.mrb[0].mxu0
  %v600 = vadd.f32 %v476, %v599
  %v601 = vpop.f32.mrb[0].mxu0
  %v602 = vpop.f32.mrb[0].mxu0
  %v603 = vadd.f32 %v479, %v602
  %v604 = vpop.f32.mrb[0].mxu0
  %605 = vmatprep.mubr.bf16.mxu0 0
  %606 = vmatmul.mubr.bf16.gmra.mrb[0].mxu0 %v542
  %v607 = vpop.f32.mrb[0].mxu0
  %v608 = vadd.f32 %v484, %v607
  %v609 = vpop.f32.mrb[0].mxu0
  %v610 = vpop.f32.mrb[0].mxu0
  %v611 = vadd.f32 %v487, %v610
  %v612 = vpop.f32.mrb[0].mxu0
  %613 = vmatprep.mubr.bf16.mxu0 0
  %614 = vmatmul.mubr.bf16.gmra.mrb[0].mxu0 %v545
  %v615 = vpop.f32.mrb[0].mxu0
  %v616 = vadd.f32 %v492, %v615
  %v617 = vpop.f32.mrb[0].mxu0
  %v618 = vpop.f32.mrb[0].mxu0
  %v619 = vadd.f32 %v495, %v618
  %v620 = vpop.f32.mrb[0].mxu0
  %621 = vmatprep.mubr.bf16.mxu0 0
  %622 = vmatmul.mubr.bf16.gmra.mrb[0].mxu0 %v548
  %v623 = vpop.f32.mrb[0].mxu0
  %v624 = vadd.f32 %v500, %v623
  %v625 = vpop.f32.mrb[0].mxu0
  %v626 = vpop.f32.mrb[0].mxu0
  %v627 = vadd.f32 %v503, %v626
  %v628 = vpop.f32.mrb[0].mxu0
  %629 = vmatprep.mubr.bf16.mxu0 0
  %630 = vmatmul.mubr.bf16.gmra.mrb[0].mxu0 %v551
  %v631 = vpop.f32.mrb[0].mxu0
  %v632 = vadd.f32 %v508, %v631
  %v633 = vpop.f32.mrb[0].mxu0
  %v634 = vpop.f32.mrb[0].mxu0
  %v635 = vadd.f32 %v511, %v634
  %v636 = vpop.f32.mrb[0].mxu0
  %637 = vmatprep.mubr.bf16.mxu0 0
  %638 = vmatmul.mubr.bf16.gmra.mrb[0].mxu0 %v554
  %v639 = vpop.f32.mrb[0].mxu0
  %v640 = vadd.f32 %v516, %v639
  %v641 = vpop.f32.mrb[0].mxu0
  %v642 = vpop.f32.mrb[0].mxu0
  %v643 = vadd.f32 %v519, %v642
  %v644 = vpop.f32.mrb[0].mxu0
  %645 = vmatprep.mubr.bf16.mxu0 0
  %646 = vmatmul.mubr.bf16.gmra.mrb[0].mxu0 %v557
  %v647 = vpop.f32.mrb[0].mxu0
  %v648 = vadd.f32 %v524, %v647
  %v649 = vpop.f32.mrb[0].mxu0
  %v650 = vpop.f32.mrb[0].mxu0
  %v651 = vadd.f32 %v527, %v650
  %v652 = vpop.f32.mrb[0].mxu0
  %653 = vmatprep.mubr.bf16.mxu0 0
  %654 = vmatmul.mubr.bf16.gmra.mrb[0].mxu0 %v560
  %v655 = vpop.f32.mrb[0].mxu0
  %v656 = vadd.f32 %v532, %v655
  %v657 = vpop.f32.mrb[0].mxu0
  %v658 = vpop.f32.mrb[0].mxu0
  %v659 = vadd.f32 %v535, %v658
  %v660 = vpop.f32.mrb[0].mxu0
  %661 = vdwg.mxu0
  %v662 = vld [vmem:[%s5] sm:$0x1]
  %v664 = vlaneseq
  %v665 = vshrl.u32 %v664, 7
  %v666 = vsub.s32 0, %v665
  %v667 = vrot.slane %v662, %v666
  %v669 = vadd.f32 %v600, %v667
  %v670 = vadd.f32 %v603, %v667
  %v671 = vadd.f32 %v608, %v667
  %v672 = vadd.f32 %v611, %v667
  %v673 = vadd.f32 %v616, %v667
  %v674 = vadd.f32 %v619, %v667
  %v675 = vadd.f32 %v624, %v667
  %v676 = vadd.f32 %v627, %v667
  %v677 = vadd.f32 %v632, %v667
  %v678 = vadd.f32 %v635, %v667
  %v679 = vadd.f32 %v640, %v667
  %v680 = vadd.f32 %v643, %v667
  %v681 = vadd.f32 %v648, %v667
  %v682 = vadd.f32 %v651, %v667
  %v683 = vadd.f32 %v656, %v667
  %v684 = vadd.f32 %v659, %v667
  %vm685 = vcmp.gt.f32.partialorder %v669, 0.0
  %vm686 = vcmp.gt.f32.partialorder %v670, 0.0
  %vm687 = vcmp.gt.f32.partialorder %v671, 0.0
  %vm688 = vcmp.gt.f32.partialorder %v672, 0.0
  %vm689 = vcmp.gt.f32.partialorder %v673, 0.0
  %vm690 = vcmp.gt.f32.partialorder %v674, 0.0
  %vm691 = vcmp.gt.f32.partialorder %v675, 0.0
  %vm692 = vcmp.gt.f32.partialorder %v676, 0.0
  %vm693 = vcmp.gt.f32.partialorder %v677, 0.0
  %vm694 = vcmp.gt.f32.partialorder %v678, 0.0
  %vm695 = vcmp.gt.f32.partialorder %v679, 0.0
  %vm696 = vcmp.gt.f32.partialorder %v680, 0.0
  %vm697 = vcmp.gt.f32.partialorder %v681, 0.0
  %vm698 = vcmp.gt.f32.partialorder %v682, 0.0
  %vm699 = vcmp.gt.f32.partialorder %v683, 0.0
  %vm700 = vcmp.gt.f32.partialorder %v684, 0.0
  %v701 = vmin.f32 %v669, 0.0
  %v702 = vmin.f32 %v670, 0.0
  %v703 = vmin.f32 %v671, 0.0
  %v704 = vmin.f32 %v672, 0.0
  %v705 = vmin.f32 %v673, 0.0
  %v706 = vmin.f32 %v674, 0.0
  %v707 = vmin.f32 %v675, 0.0
  %v708 = vmin.f32 %v676, 0.0
  %v709 = vmin.f32 %v677, 0.0
  %v710 = vmin.f32 %v678, 0.0
  %v711 = vmin.f32 %v679, 0.0
  %v712 = vmin.f32 %v680, 0.0
  %v713 = vmin.f32 %v681, 0.0
  %v714 = vmin.f32 %v682, 0.0
  %v715 = vmin.f32 %v683, 0.0
  %v716 = vmin.f32 %v684, 0.0
  %v717 = vmul.f32 %v701, 1.442695
  %v718 = vpow.pop %v717
  %v719 = vmul.f32 %v702, 1.442695
  %v720 = vpow.pop %v719
  %v721 = vmul.f32 %v703, 1.442695
  %v722 = vpow.pop %v721
  %v723 = vmul.f32 %v704, 1.442695
  %v724 = vpow.pop %v723
  %v725 = vmul.f32 %v705, 1.442695
  %v726 = vpow.pop %v725
  %v727 = vmul.f32 %v706, 1.442695
  %v728 = vpow.pop %v727
  %v729 = vmul.f32 %v707, 1.442695
  %v730 = vpow.pop %v729
  %v731 = vmul.f32 %v708, 1.442695
  %v732 = vpow.pop %v731
  %v733 = vmul.f32 %v709, 1.442695
  %v734 = vpow.pop %v733
  %v735 = vmul.f32 %v710, 1.442695
  %v736 = vpow.pop %v735
  %v737 = vmul.f32 %v711, 1.442695
  %v738 = vpow.pop %v737
  %v739 = vmul.f32 %v712, 1.442695
  %v740 = vpow.pop %v739
  %v741 = vmul.f32 %v713, 1.442695
  %v742 = vpow.pop %v741
  %v743 = vmul.f32 %v714, 1.442695
  %v744 = vpow.pop %v743
  %v745 = vmul.f32 %v715, 1.442695
  %v746 = vpow.pop %v745
  %v747 = vmul.f32 %v716, 1.442695
  %v748 = vpow.pop %v747
  %v749 = vsub.f32 %v718, 1.0
  %v750 = vsub.f32 %v720, 1.0
  %v751 = vsub.f32 %v722, 1.0
  %v752 = vsub.f32 %v724, 1.0
  %v753 = vsub.f32 %v726, 1.0
  %v754 = vsub.f32 %v728, 1.0
  %v755 = vsub.f32 %v730, 1.0
  %v756 = vsub.f32 %v732, 1.0
  %v757 = vsub.f32 %v734, 1.0
  %v758 = vsub.f32 %v736, 1.0
  %v759 = vsub.f32 %v738, 1.0
  %v760 = vsub.f32 %v740, 1.0
  %v761 = vsub.f32 %v742, 1.0
  %v762 = vsub.f32 %v744, 1.0
  %v763 = vsub.f32 %v746, 1.0
  %v764 = vsub.f32 %v748, 1.0
  %v765 = vsel %vm685, %v669, %v749
  %v766 = vsel %vm686, %v670, %v750
  %v767 = vsel %vm687, %v671, %v751
  %v768 = vsel %vm688, %v672, %v752
  %v769 = vsel %vm689, %v673, %v753
  %v770 = vsel %vm690, %v674, %v754
  %v771 = vsel %vm691, %v675, %v755
  %v772 = vsel %vm692, %v676, %v756
  %v773 = vsel %vm693, %v677, %v757
  %v774 = vsel %vm694, %v678, %v758
  %v775 = vsel %vm695, %v679, %v759
  %v776 = vsel %vm696, %v680, %v760
  %v777 = vsel %vm697, %v681, %v761
  %v778 = vsel %vm698, %v682, %v762
  %v779 = vsel %vm699, %v683, %v763
  %v780 = vsel %vm700, %v684, %v764
  %vm781 = vcmask 130048
  %782 = vst.msk [vmem:[%s6] sm:$0xff] %vm781, %v765
  %783 = vst.msk [vmem:[%s6 + $0x8] sm:$0xff] %vm781, %v766
  %784 = vst.msk [vmem:[%s6 + $0x10] sm:$0xff] %vm781, %v767
  %785 = vst.msk [vmem:[%s6 + $0x18] sm:$0xff] %vm781, %v768
  %786 = vst.msk [vmem:[%s6 + $0x20] sm:$0xff] %vm781, %v769
  %787 = vst.msk [vmem:[%s6 + $0x28] sm:$0xff] %vm781, %v770
  %788 = vst.msk [vmem:[%s6 + $0x30] sm:$0xff] %vm781, %v771
  %789 = vst.msk [vmem:[%s6 + $0x38] sm:$0xff] %vm781, %v772
  %790 = vst.msk [vmem:[%s6 + $0x40] sm:$0xff] %vm781, %v773
  %791 = vst.msk [vmem:[%s6 + $0x48] sm:$0xff] %vm781, %v774
  %792 = vst.msk [vmem:[%s6 + $0x50] sm:$0xff] %vm781, %v775
  %793 = vst.msk [vmem:[%s6 + $0x58] sm:$0xff] %vm781, %v776
  %794 = vst.msk [vmem:[%s6 + $0x60] sm:$0xff] %vm781, %v777
  %795 = vst.msk [vmem:[%s6 + $0x68] sm:$0xff] %vm781, %v778
  %796 = vst.msk [vmem:[%s6 + $0x70] sm:$0xff] %vm781, %v779
  %797 = vst.msk [vmem:[%s6 + $0x78] sm:$0xff] %vm781, %v780
  %v798 = vsel %vm781, %v765, 0.0
  %v799 = vsel %vm781, %v766, 0.0
  %v800 = vadd.f32 %v798, %v799
  %v801 = vsel %vm781, %v767, 0.0
  %v802 = vadd.f32 %v800, %v801
  %v803 = vsel %vm781, %v768, 0.0
  %v804 = vadd.f32 %v802, %v803
  %v805 = vsel %vm781, %v769, 0.0
  %v806 = vadd.f32 %v804, %v805
  %v807 = vsel %vm781, %v770, 0.0
  %v808 = vadd.f32 %v806, %v807
  %v809 = vsel %vm781, %v771, 0.0
  %v810 = vadd.f32 %v808, %v809
  %v811 = vsel %vm781, %v772, 0.0
  %v812 = vadd.f32 %v810, %v811
  %v813 = vsel %vm781, %v773, 0.0
  %v814 = vadd.f32 %v812, %v813
  %v815 = vsel %vm781, %v774, 0.0
  %v816 = vadd.f32 %v814, %v815
  %v817 = vsel %vm781, %v775, 0.0
  %v818 = vadd.f32 %v816, %v817
  %v819 = vsel %vm781, %v776, 0.0
  %v820 = vadd.f32 %v818, %v819
  %v821 = vsel %vm781, %v777, 0.0
  %v822 = vadd.f32 %v820, %v821
  %v823 = vsel %vm781, %v778, 0.0
  %v824 = vadd.f32 %v822, %v823
  %v825 = vsel %vm781, %v779, 0.0
  %v826 = vadd.f32 %v824, %v825
  %v827 = vsel %vm781, %v780, 0.0
  %v828 = vadd.f32 %v826, %v827
  %v829 = vrot.slane %v828, 4
  %v830 = vadd.f32 %v828, %v829
  %v831 = vrot.slane %v830, 2
  %v832 = vadd.f32 %v830, %v831
  %v833 = vrot.slane %v832, 1
  %v834 = vadd.f32 %v832, %v833
  %v835 = vmul.f32 %v765, %v765
  %v836 = vmul.f32 %v766, %v766
  %v837 = vmul.f32 %v767, %v767
  %v838 = vmul.f32 %v768, %v768
  %v839 = vmul.f32 %v769, %v769
  %v840 = vmul.f32 %v770, %v770
  %v841 = vmul.f32 %v771, %v771
  %v842 = vmul.f32 %v772, %v772
  %v843 = vmul.f32 %v773, %v773
  %v844 = vmul.f32 %v774, %v774
  %v845 = vmul.f32 %v775, %v775
  %v846 = vmul.f32 %v776, %v776
  %v847 = vmul.f32 %v777, %v777
  %v848 = vmul.f32 %v778, %v778
  %v849 = vmul.f32 %v779, %v779
  %v850 = vmul.f32 %v780, %v780
  %v851 = vsel %vm781, %v835, 0.0
  %v852 = vsel %vm781, %v836, 0.0
  %v853 = vadd.f32 %v851, %v852
  %v854 = vsel %vm781, %v837, 0.0
  %v855 = vadd.f32 %v853, %v854
  %v856 = vsel %vm781, %v838, 0.0
  %v857 = vadd.f32 %v855, %v856
  %v858 = vsel %vm781, %v839, 0.0
  %v859 = vadd.f32 %v857, %v858
  %v860 = vsel %vm781, %v840, 0.0
  %v861 = vadd.f32 %v859, %v860
  %v862 = vsel %vm781, %v841, 0.0
  %v863 = vadd.f32 %v861, %v862
  %v864 = vsel %vm781, %v842, 0.0
  %v865 = vadd.f32 %v863, %v864
  %v866 = vsel %vm781, %v843, 0.0
  %v867 = vadd.f32 %v865, %v866
  %v868 = vsel %vm781, %v844, 0.0
  %v869 = vadd.f32 %v867, %v868
  %v870 = vsel %vm781, %v845, 0.0
  %v871 = vadd.f32 %v869, %v870
  %v872 = vsel %vm781, %v846, 0.0
  %v873 = vadd.f32 %v871, %v872
  %v874 = vsel %vm781, %v847, 0.0
  %v875 = vadd.f32 %v873, %v874
  %v876 = vsel %vm781, %v848, 0.0
  %v877 = vadd.f32 %v875, %v876
  %v878 = vsel %vm781, %v849, 0.0
  %v879 = vadd.f32 %v877, %v878
  %v880 = vsel %vm781, %v850, 0.0
  %v881 = vadd.f32 %v879, %v880
  %v882 = vrot.slane %v881, 4
  %v883 = vadd.f32 %v881, %v882
  %v884 = vrot.slane %v883, 2
  %v885 = vadd.f32 %v883, %v884
  %v886 = vrot.slane %v885, 1
  %v887 = vadd.f32 %v885, %v886
  %vm888 = vcmask 1040384
  %v889 = vsel %vm888, %v834, %v887
  %vm890 = vcmask 123904
  %891 = vst.msk [vmem:[%s7] sm:$0x3] %vm890, %v889
  // Predicated region
  $region26: #{vae_forward.9} parent=0 // pred_check
    _
  $region27: #{vae_forward.9} parent=0 // pred_check_branch
    %893 = sbr.rel (0) target = $region29
  $region28: #{vae_forward.9} parent=0 // pred_region
    _
  $region29: #{vae_forward.9} parent=0 // pred_fallthru
    _
  // Predicated region
  $region30: #{vae_forward.9} parent=0 // pred_check
    _
  $region31: #{vae_forward.9} parent=0 // pred_check_branch
    %895 = sbr.rel (0) target = $region33
  $region32: #{vae_forward.9} parent=0 // pred_region
    _
  $region33: #{vae_forward.9} parent=0 // pred_fallthru
    _
  // Predicated region
  $region34: #{vae_forward.9} parent=0 // pred_check
    _
  $region35: #{vae_forward.9} parent=0 // pred_check_branch
    %897 = sbr.rel (0) target = $region37
  $region36: #{vae_forward.9} parent=0 // pred_region
    _
  $region37: #{vae_forward.9} parent=0 // pred_fallthru
    _
  // Predicated region
  $region38: #{vae_forward.9} parent=0 // pred_check
    _
  $region39: #{vae_forward.9} parent=0 // pred_check_branch
    %899 = sbr.rel (0) target = $region41
  $region40: #{vae_forward.9} parent=0 // pred_region
    _
  $region41: #{vae_forward.9} parent=0 // pred_fallthru
    _

// kernel: vae_forward.10
$region0: #{vae_forward.10}
  #allocation0 [shape = 'u32[]', space=smem, size = 0x4, offset = 0x4, fixed_abs, tag = 'smem constant byte address 0x4 - core index']
  #allocation1 [shape = 'u32[144,128]{1,0:T(1,128)}', space=vmem, size = 0x12000, scoped, tag = 'internal scratch']
  %s0 = inlined_call_operand.vmem [shape: f32[64,32], index: 0, kind: input, shape index: {}]
  %s1 = inlined_call_operand.vmem [shape: f32[1,32], index: 1, kind: input, shape index: {}]
  %s2 = inlined_call_operand.vmem [shape: f32[1,32], index: 2, kind: input, shape index: {}]
  %s3 = inlined_call_operand.vmem [shape: bf16[32,32], index: 3, kind: input, shape index: {}]
  %s4 = inlined_call_operand.vmem [shape: bf16[32,32], index: 4, kind: input, shape index: {}]
  %s5 = inlined_call_operand.vmem [shape: f32[1,32], index: 5, kind: input, shape index: {}]
  %s6 = inlined_call_operand.vmem [shape: f32[64,32], index: 6, kind: output, shape index: {0}]
  %s7 = inlined_call_operand.vmem [shape: f32[1,2,32], index: 7, kind: output, shape index: {1}]
  %8 = xla_tuple %s6, %s7
  %s9 = sld [smem:[#allocation0]]
  $region42: #{vae_forward.10} parent=0
    _
  %s11 = ssub.s32 1, %s9
  %s12 = scalar_select 0, %s11, %s9
  // Predicated region
  $region2: #{vae_forward.10} parent=0 // pred_check
    _
  $region3: #{vae_forward.10} parent=0 // pred_check_branch
    %14 = sbr.rel (0) target = $region5
  $region4: #{vae_forward.10} parent=0 // pred_region
    _
  $region5: #{vae_forward.10} parent=0 // pred_fallthru
    _
  // Predicated region
  $region6: #{vae_forward.10} parent=0 // pred_check
    _
  $region7: #{vae_forward.10} parent=0 // pred_check_branch
    %16 = sbr.rel (0) target = $region9
  $region8: #{vae_forward.10} parent=0 // pred_region
    _
  $region9: #{vae_forward.10} parent=0 // pred_fallthru
    _
  // Predicated region
  $region10: #{vae_forward.10} parent=0 // pred_check
    _
  $region11: #{vae_forward.10} parent=0 // pred_check_branch
    %18 = sbr.rel (0) target = $region13
  $region12: #{vae_forward.10} parent=0 // pred_region
    _
  $region13: #{vae_forward.10} parent=0 // pred_fallthru
    _
  // Predicated region
  $region14: #{vae_forward.10} parent=0 // pred_check
    _
  $region15: #{vae_forward.10} parent=0 // pred_check_branch
    %20 = sbr.rel (0) target = $region17
  $region16: #{vae_forward.10} parent=0 // pred_region
    _
  $region17: #{vae_forward.10} parent=0 // pred_fallthru
    _
  // Predicated region
  $region18: #{vae_forward.10} parent=0 // pred_check
    _
  $region19: #{vae_forward.10} parent=0 // pred_check_branch
    %22 = sbr.rel (0) target = $region21
  $region20: #{vae_forward.10} parent=0 // pred_region
    _
  $region21: #{vae_forward.10} parent=0 // pred_fallthru
    _
  // Predicated region
  $region22: #{vae_forward.10} parent=0 // pred_check
    _
  $region23: #{vae_forward.10} parent=0 // pred_check_branch
    %24 = sbr.rel (0) target = $region25
  $region24: #{vae_forward.10} parent=0 // pred_region
    _
  $region25: #{vae_forward.10} parent=0 // pred_fallthru
    _
  %v26 = vld [vmem:[%s0] sm:$0xff]
  %v27 = vld [vmem:[%s0 + $0x8] sm:$0xff]
  %v28 = vld [vmem:[%s0 + $0x10] sm:$0xff]
  %v29 = vld [vmem:[%s0 + $0x18] sm:$0xff]
  %v30 = vld [vmem:[%s0 + $0x20] sm:$0xff]
  %v31 = vld [vmem:[%s0 + $0x28] sm:$0xff]
  %v32 = vld [vmem:[%s0 + $0x30] sm:$0xff]
  %v33 = vld [vmem:[%s0 + $0x38] sm:$0xff]
  %v34 = vld [vmem:[%s1] sm:$0x1]
  %v36 = vlaneseq
  %v37 = vshrl.u32 %v36, 7
  %v38 = vsub.s32 0, %v37
  %v39 = vrot.slane %v34, %v38
  %v41 = vmul.f32 %v26, %v39
  %v42 = vmul.f32 %v27, %v39
  %v43 = vmul.f32 %v28, %v39
  %v44 = vmul.f32 %v29, %v39
  %v45 = vmul.f32 %v30, %v39
  %v46 = vmul.f32 %v31, %v39
  %v47 = vmul.f32 %v32, %v39
  %v48 = vmul.f32 %v33, %v39
  %v49 = vld [vmem:[%s2] sm:$0x1]
  %v51 = vlaneseq
  %v52 = vshrl.u32 %v51, 7
  %v53 = vsub.s32 0, %v52
  %v54 = vrot.slane %v49, %v53
  %v56 = vadd.f32 %v41, %v54
  %v57 = vadd.f32 %v42, %v54
  %v58 = vadd.f32 %v43, %v54
  %v59 = vadd.f32 %v44, %v54
  %v60 = vadd.f32 %v45, %v54
  %v61 = vadd.f32 %v46, %v54
  %v62 = vadd.f32 %v47, %v54
  %v63 = vadd.f32 %v48, %v54
  %v64 = vlaneseq
  %v65 = vshrl.u32 %v64, 7
  %v66 = vadd.s32 %v65, 8
  %v67 = vadd.s32 %v65, 16
  %v68 = vadd.s32 %v65, 24
  %v69 = vadd.s32 %v65, 32
  %v70 = vadd.s32 %v65, 40
  %v71 = vadd.s32 %v65, 48
  %v72 = vadd.s32 %v65, 56
  %vm73 = vcmp.lt.s32.totalorder %v65, 0
  %v74 = vsub.s32 0, %v65
  %v75 = vsel %vm73, %v74, %v65
  %v76 = vshrl.u32 %v75, 5
  %v77 = vand.u32 %v75, 31
  %v78 = vsub.s32 0, %v77
  %v79 = vsel %vm73, %v78, %v77
  %vm80 = vcmp.lt.s32.totalorder %v66, 0
  %v81 = vsub.s32 0, %v66
  %v82 = vsel %vm80, %v81, %v66
  %v83 = vshrl.u32 %v82, 5
  %v84 = vand.u32 %v82, 31
  %v85 = vsub.s32 0, %v84
  %v86 = vsel %vm80, %v85, %v84
  %vm87 = vcmp.lt.s32.totalorder %v67, 0
  %v88 = vsub.s32 0, %v67
  %v89 = vsel %vm87, %v88, %v67
  %v90 = vshrl.u32 %v89, 5
  %v91 = vand.u32 %v89, 31
  %v92 = vsub.s32 0, %v91
  %v93 = vsel %vm87, %v92, %v91
  %vm94 = vcmp.lt.s32.totalorder %v68, 0
  %v95 = vsub.s32 0, %v68
  %v96 = vsel %vm94, %v95, %v68
  %v97 = vshrl.u32 %v96, 5
  %v98 = vand.u32 %v96, 31
  %v99 = vsub.s32 0, %v98
  %v100 = vsel %vm94, %v99, %v98
  %vm101 = vcmp.lt.s32.totalorder %v69, 0
  %v102 = vsub.s32 0, %v69
  %v103 = vsel %vm101, %v102, %v69
  %v104 = vshrl.u32 %v103, 5
  %v105 = vand.u32 %v103, 31
  %v106 = vsub.s32 0, %v105
  %v107 = vsel %vm101, %v106, %v105
  %vm108 = vcmp.lt.s32.totalorder %v70, 0
  %v109 = vsub.s32 0, %v70
  %v110 = vsel %vm108, %v109, %v70
  %v111 = vshrl.u32 %v110, 5
  %v112 = vand.u32 %v110, 31
  %v113 = vsub.s32 0, %v112
  %v114 = vsel %vm108, %v113, %v112
  %vm115 = vcmp.lt.s32.totalorder %v71, 0
  %v116 = vsub.s32 0, %v71
  %v117 = vsel %vm115, %v116, %v71
  %v118 = vshrl.u32 %v117, 5
  %v119 = vand.u32 %v117, 31
  %v120 = vsub.s32 0, %v119
  %v121 = vsel %vm115, %v120, %v119
  %vm122 = vcmp.lt.s32.totalorder %v72, 0
  %v123 = vsub.s32 0, %v72
  %v124 = vsel %vm122, %v123, %v72
  %v125 = vshrl.u32 %v124, 5
  %v126 = vand.u32 %v124, 31
  %v127 = vsub.s32 0, %v126
  %v128 = vsel %vm122, %v127, %v126
  %vm129 = vcmp.ne.s32.totalorder %v79, 0
  %vm130 = vcmp.ne.s32.totalorder %v86, 0
  %vm131 = vcmp.ne.s32.totalorder %v93, 0
  %vm132 = vcmp.ne.s32.totalorder %v100, 0
  %vm133 = vcmp.ne.s32.totalorder %v107, 0
  %vm134 = vcmp.ne.s32.totalorder %v114, 0
  %vm135 = vcmp.ne.s32.totalorder %v121, 0
  %vm136 = vcmp.ne.s32.totalorder %v128, 0
  %vm137 = vcmp.lt.s32.totalorder %v79, 0
  %vm138 = vcmp.lt.s32.totalorder %v86, 0
  %vm139 = vcmp.lt.s32.totalorder %v93, 0
  %vm140 = vcmp.lt.s32.totalorder %v100, 0
  %vm141 = vcmp.lt.s32.totalorder %v107, 0
  %vm142 = vcmp.lt.s32.totalorder %v114, 0
  %vm143 = vcmp.lt.s32.totalorder %v121, 0
  %vm144 = vcmp.lt.s32.totalorder %v128, 0
  %vm145 = vmand %vm137, %vm129
  %vm146 = vmand %vm138, %vm130
  %vm147 = vmand %vm139, %vm131
  %vm148 = vmand %vm140, %vm132
  %vm149 = vmand %vm141, %vm133
  %vm150 = vmand %vm142, %vm134
  %vm151 = vmand %vm143, %vm135
  %vm152 = vmand %vm144, %vm136
  %v153 = vadd.s32 %v79, 32
  %v154 = vadd.s32 %v86, 32
  %v155 = vadd.s32 %v93, 32
  %v156 = vadd.s32 %v100, 32
  %v157 = vadd.s32 %v107, 32
  %v158 = vadd.s32 %v114, 32
  %v159 = vadd.s32 %v121, 32
  %v160 = vadd.s32 %v128, 32
  %v161 = vsel %vm145, %v153, %v79
  %v162 = vsel %vm146, %v154, %v86
  %v163 = vsel %vm147, %v155, %v93
  %v164 = vsel %vm148, %v156, %v100
  %v165 = vsel %vm149, %v157, %v107
  %v166 = vsel %vm150, %v158, %v114
  %v167 = vsel %vm151, %v159, %v121
  %v168 = vsel %vm152, %v160, %v128
  %vm169 = vcmp.ne.s32.totalorder %v161, 0
  %vm170 = vcmp.ne.s32.totalorder %v162, 0
  %vm171 = vcmp.ne.s32.totalorder %v163, 0
  %vm172 = vcmp.ne.s32.totalorder %v164, 0
  %vm173 = vcmp.ne.s32.totalorder %v165, 0
  %vm174 = vcmp.ne.s32.totalorder %v166, 0
  %vm175 = vcmp.ne.s32.totalorder %v167, 0
  %vm176 = vcmp.ne.s32.totalorder %v168, 0
  %v177 = vsel %vm169, 1, 0
  %v178 = vsel %vm170, 1, 0
  %v179 = vsel %vm171, 1, 0
  %v180 = vsel %vm172, 1, 0
  %v181 = vsel %vm173, 1, 0
  %v182 = vsel %vm174, 1, 0
  %v183 = vsel %vm175, 1, 0
  %v184 = vsel %vm176, 1, 0
  %v185 = vcvt.s32.f32 %v177
  %v186 = vcvt.s32.f32 %v178
  %v187 = vcvt.s32.f32 %v179
  %v188 = vcvt.s32.f32 %v180
  %v189 = vcvt.s32.f32 %v181
  %v190 = vcvt.s32.f32 %v182
  %v191 = vcvt.s32.f32 %v183
  %v192 = vcvt.s32.f32 %v184
  %v193 = vrot.slane %v56, 7
  %v194 = vrot.slane %v57, 7
  %v195 = vrot.slane %v58, 7
  %v196 = vrot.slane %v59, 7
  %v197 = vrot.slane %v60, 7
  %v198 = vrot.slane %v61, 7
  %v199 = vrot.slane %v62, 7
  %v200 = vrot.slane %v63, 7
  %vm201 = vcmp.lt.s32.totalorder %v65, 1
  %v202 = vsel %vm201, %v199, %v200
  %v203 = vsel %vm201, %v198, %v199
  %v204 = vsel %vm201, %v197, %v198
  %v205 = vsel %vm201, %v196, %v197
  %v206 = vsel %vm201, %v195, %v196
  %v207 = vsel %vm201, %v194, %v195
  %v208 = vsel %vm201, %v193, %v194
  %v209 = vsel %vm201, %v200, %v193
  %v210 = vmul.f32 %v209, %v185
  %v211 = vmul.f32 %v208, %v186
  %v212 = vmul.f32 %v207, %v187
  %v213 = vmul.f32 %v206, %v188
  %v214 = vmul.f32 %v205, %v189
  %v215 = vmul.f32 %v204, %v190
  %v216 = vmul.f32 %v203, %v191
  %v217 = vmul.f32 %v202, %v192
  %v218 = vpack.c.bf16 %v211, %v210
  %v219 = vpack.c.bf16 %v213, %v212
  %v220 = vpack.c.bf16 %v215, %v214
  %v221 = vpack.c.bf16 %v217, %v216
  %v222 = vld [vmem:[%s3] sm:$0xf]
  %v223 = vld [vmem:[%s3 + $0x4] sm:$0xf]
  %v224 = vld [vmem:[%s3 + $0x8] sm:$0xf]
  %v225 = vld [vmem:[%s3 + $0xc] sm:$0xf]
  %v226 = vpack.c.bf16 %v57, %v56
  %v227 = vpack.c.bf16 %v59, %v58
  %v228 = vpack.c.bf16 %v61, %v60
  %v229 = vpack.c.bf16 %v63, %v62
  %v230 = vld [vmem:[%s4] sm:$0xf]
  %v231 = vld [vmem:[%s4 + $0x4] sm:$0xf]
  %v232 = vld [vmem:[%s4 + $0x8] sm:$0xf]
  %v233 = vld [vmem:[%s4 + $0xc] sm:$0xf]
  %v238 = vunpack.c.l.b16 %v230
  %v239 = vunpack.c.l.b16 %v231
  %v240 = vunpack.c.l.b16 %v232
  %v241 = vunpack.c.l.b16 %v233
  %v242 = vpack.c.b16 %v239, %v238
  %v243 = vpack.c.b16 %v241, %v240
  %vm246 = vcmask 261120
  %v248 = vsel %vm246, %v226, 0
  %v251 = vsel %vm246, %v227, 0
  %v254 = vsel %vm246, %v228, 0
  %v257 = vsel %vm246, %v229, 0
  %259 = vmatprep.subr.bf16.mxu0 0
  %260 = vmatpush1.bf16.msra.mxu0 %v242
  %261 = vmatprep.subr.bf16.mxu0 0
  %262 = vmatpush1.bf16.msra.mxu0 %v243
  %263 = vmatprep.subr.bf16.mxu0 0
  %264 = vmatpush1.bf16.msra.mxu0 0
  %265 = vmatprep.subr.bf16.mxu0 0
  %266 = vmatpush1.bf16.msra.mxu0 0
  %267 = vmatprep.subr.bf16.mxu0 0
  %268 = vmatpush1.bf16.msra.mxu0 0
  %269 = vmatprep.subr.bf16.mxu0 0
  %270 = vmatpush1.bf16.msra.mxu0 0
  %271 = vmatprep.subr.bf16.mxu0 0
  %272 = vmatpush1.bf16.msra.mxu0 0
  %273 = vmatprep.subr.bf16.mxu0 0
  %274 = vmatpush1.bf16.msra.mxu0 0
  %275 = vmatprep.subr.bf16.mxu0 0
  %276 = vmatpush1.bf16.msra.mxu0 0
  %277 = vmatprep.subr.bf16.mxu0 0
  %278 = vmatpush1.bf16.msra.mxu0 0
  %279 = vmatprep.subr.bf16.mxu0 0
  %280 = vmatpush1.bf16.msra.mxu0 0
  %281 = vmatprep.subr.bf16.mxu0 0
  %282 = vmatpush1.bf16.msra.mxu0 0
  %283 = vmatprep.subr.bf16.mxu0 0
  %284 = vmatpush1.bf16.msra.mxu0 0
  %285 = vmatprep.subr.bf16.mxu0 0
  %286 = vmatpush1.bf16.msra.mxu0 0
  %287 = vmatprep.subr.bf16.mxu0 0
  %288 = vmatpush1.bf16.msra.mxu0 0
  %289 = vmatprep.subr.bf16.mxu0 0
  %290 = vmatpush1.bf16.msra.mxu0 0
  %291 = vmatprep.mubr.bf16.mxu0 0
  %292 = vmatmul.mubr.bf16.gmra.mrb[0].mxu0 %v248
  %v293 = vpop.f32.mrb[0].mxu0
  %v294 = vadd.f32 0.0, %v293
  %v295 = vpop.f32.mrb[0].mxu0
  %v296 = vpop.f32.mrb[0].mxu0
  %v297 = vadd.f32 0.0, %v296
  %v298 = vpop.f32.mrb[0].mxu0
  %299 = vmatprep.mubr.bf16.mxu0 0
  %300 = vmatmul.mubr.bf16.gmra.mrb[0].mxu0 %v251
  %v301 = vpop.f32.mrb[0].mxu0
  %v302 = vadd.f32 0.0, %v301
  %v303 = vpop.f32.mrb[0].mxu0
  %v304 = vpop.f32.mrb[0].mxu0
  %v305 = vadd.f32 0.0, %v304
  %v306 = vpop.f32.mrb[0].mxu0
  %307 = vmatprep.mubr.bf16.mxu0 0
  %308 = vmatmul.mubr.bf16.gmra.mrb[0].mxu0 %v254
  %v309 = vpop.f32.mrb[0].mxu0
  %v310 = vadd.f32 0.0, %v309
  %v311 = vpop.f32.mrb[0].mxu0
  %v312 = vpop.f32.mrb[0].mxu0
  %v313 = vadd.f32 0.0, %v312
  %v314 = vpop.f32.mrb[0].mxu0
  %315 = vmatprep.mubr.bf16.mxu0 0
  %316 = vmatmul.mubr.bf16.gmra.mrb[0].mxu0 %v257
  %v317 = vpop.f32.mrb[0].mxu0
  %v318 = vadd.f32 0.0, %v317
  %v319 = vpop.f32.mrb[0].mxu0
  %v320 = vpop.f32.mrb[0].mxu0
  %v321 = vadd.f32 0.0, %v320
  %v322 = vpop.f32.mrb[0].mxu0
  %323 = vdwg.mxu0
  %v328 = vunpack.c.l.b16 %v222
  %v329 = vunpack.c.l.b16 %v223
  %v330 = vunpack.c.l.b16 %v224
  %v331 = vunpack.c.l.b16 %v225
  %v332 = vpack.c.b16 %v329, %v328
  %v333 = vpack.c.b16 %v331, %v330
  %v337 = vsel %vm246, %v218, 0
  %v340 = vsel %vm246, %v219, 0
  %v343 = vsel %vm246, %v220, 0
  %v346 = vsel %vm246, %v221, 0
  %348 = vmatprep.subr.bf16.mxu0 0
  %349 = vmatpush1.bf16.msra.mxu0 %v332
  %350 = vmatprep.subr.bf16.mxu0 0
  %351 = vmatpush1.bf16.msra.mxu0 %v333
  %352 = vmatprep.subr.bf16.mxu0 0
  %353 = vmatpush1.bf16.msra.mxu0 0
  %354 = vmatprep.subr.bf16.mxu0 0
  %355 = vmatpush1.bf16.msra.mxu0 0
  %356 = vmatprep.subr.bf16.mxu0 0
  %357 = vmatpush1.bf16.msra.mxu0 0
  %358 = vmatprep.subr.bf16.mxu0 0
  %359 = vmatpush1.bf16.msra.mxu0 0
  %360 = vmatprep.subr.bf16.mxu0 0
  %361 = vmatpush1.bf16.msra.mxu0 0
  %362 = vmatprep.subr.bf16.mxu0 0
  %363 = vmatpush1.bf16.msra.mxu0 0
  %364 = vmatprep.subr.bf16.mxu0 0
  %365 = vmatpush1.bf16.msra.mxu0 0
  %366 = vmatprep.subr.bf16.mxu0 0
  %367 = vmatpush1.bf16.msra.mxu0 0
  %368 = vmatprep.subr.bf16.mxu0 0
  %369 = vmatpush1.bf16.msra.mxu0 0
  %370 = vmatprep.subr.bf16.mxu0 0
  %371 = vmatpush1.bf16.msra.mxu0 0
  %372 = vmatprep.subr.bf16.mxu0 0
  %373 = vmatpush1.bf16.msra.mxu0 0
  %374 = vmatprep.subr.bf16.mxu0 0
  %375 = vmatpush1.bf16.msra.mxu0 0
  %376 = vmatprep.subr.bf16.mxu0 0
  %377 = vmatpush1.bf16.msra.mxu0 0
  %378 = vmatprep.subr.bf16.mxu0 0
  %379 = vmatpush1.bf16.msra.mxu0 0
  %380 = vmatprep.mubr.bf16.mxu0 0
  %381 = vmatmul.mubr.bf16.gmra.mrb[0].mxu0 %v337
  %v382 = vpop.f32.mrb[0].mxu0
  %v383 = vadd.f32 %v294, %v382
  %v384 = vpop.f32.mrb[0].mxu0
  %v385 = vpop.f32.mrb[0].mxu0
  %v386 = vadd.f32 %v297, %v385
  %v387 = vpop.f32.mrb[0].mxu0
  %388 = vmatprep.mubr.bf16.mxu0 0
  %389 = vmatmul.mubr.bf16.gmra.mrb[0].mxu0 %v340
  %v390 = vpop.f32.mrb[0].mxu0
  %v391 = vadd.f32 %v302, %v390
  %v392 = vpop.f32.mrb[0].mxu0
  %v393 = vpop.f32.mrb[0].mxu0
  %v394 = vadd.f32 %v305, %v393
  %v395 = vpop.f32.mrb[0].mxu0
  %396 = vmatprep.mubr.bf16.mxu0 0
  %397 = vmatmul.mubr.bf16.gmra.mrb[0].mxu0 %v343
  %v398 = vpop.f32.mrb[0].mxu0
  %v399 = vadd.f32 %v310, %v398
  %v400 = vpop.f32.mrb[0].mxu0
  %v401 = vpop.f32.mrb[0].mxu0
  %v402 = vadd.f32 %v313, %v401
  %v403 = vpop.f32.mrb[0].mxu0
  %404 = vmatprep.mubr.bf16.mxu0 0
  %405 = vmatmul.mubr.bf16.gmra.mrb[0].mxu0 %v346
  %v406 = vpop.f32.mrb[0].mxu0
  %v407 = vadd.f32 %v318, %v406
  %v408 = vpop.f32.mrb[0].mxu0
  %v409 = vpop.f32.mrb[0].mxu0
  %v410 = vadd.f32 %v321, %v409
  %v411 = vpop.f32.mrb[0].mxu0
  %412 = vdwg.mxu0
  %v413 = vld [vmem:[%s5] sm:$0x1]
  %v415 = vlaneseq
  %v416 = vshrl.u32 %v415, 7
  %v417 = vsub.s32 0, %v416
  %v418 = vrot.slane %v413, %v417
  %v420 = vadd.f32 %v383, %v418
  %v421 = vadd.f32 %v386, %v418
  %v422 = vadd.f32 %v391, %v418
  %v423 = vadd.f32 %v394, %v418
  %v424 = vadd.f32 %v399, %v418
  %v425 = vadd.f32 %v402, %v418
  %v426 = vadd.f32 %v407, %v418
  %v427 = vadd.f32 %v410, %v418
  %vm428 = vcmp.gt.f32.partialorder %v420, 0.0
  %vm429 = vcmp.gt.f32.partialorder %v421, 0.0
  %vm430 = vcmp.gt.f32.partialorder %v422, 0.0
  %vm431 = vcmp.gt.f32.partialorder %v423, 0.0
  %vm432 = vcmp.gt.f32.partialorder %v424, 0.0
  %vm433 = vcmp.gt.f32.partialorder %v425, 0.0
  %vm434 = vcmp.gt.f32.partialorder %v426, 0.0
  %vm435 = vcmp.gt.f32.partialorder %v427, 0.0
  %v436 = vmin.f32 %v420, 0.0
  %v437 = vmin.f32 %v421, 0.0
  %v438 = vmin.f32 %v422, 0.0
  %v439 = vmin.f32 %v423, 0.0
  %v440 = vmin.f32 %v424, 0.0
  %v441 = vmin.f32 %v425, 0.0
  %v442 = vmin.f32 %v426, 0.0
  %v443 = vmin.f32 %v427, 0.0
  %v444 = vmul.f32 %v436, 1.442695
  %v445 = vpow.pop %v444
  %v446 = vmul.f32 %v437, 1.442695
  %v447 = vpow.pop %v446
  %v448 = vmul.f32 %v438, 1.442695
  %v449 = vpow.pop %v448
  %v450 = vmul.f32 %v439, 1.442695
  %v451 = vpow.pop %v450
  %v452 = vmul.f32 %v440, 1.442695
  %v453 = vpow.pop %v452
  %v454 = vmul.f32 %v441, 1.442695
  %v455 = vpow.pop %v454
  %v456 = vmul.f32 %v442, 1.442695
  %v457 = vpow.pop %v456
  %v458 = vmul.f32 %v443, 1.442695
  %v459 = vpow.pop %v458
  %v460 = vsub.f32 %v445, 1.0
  %v461 = vsub.f32 %v447, 1.0
  %v462 = vsub.f32 %v449, 1.0
  %v463 = vsub.f32 %v451, 1.0
  %v464 = vsub.f32 %v453, 1.0
  %v465 = vsub.f32 %v455, 1.0
  %v466 = vsub.f32 %v457, 1.0
  %v467 = vsub.f32 %v459, 1.0
  %v468 = vsel %vm428, %v420, %v460
  %v469 = vsel %vm429, %v421, %v461
  %v470 = vsel %vm430, %v422, %v462
  %v471 = vsel %vm431, %v423, %v463
  %v472 = vsel %vm432, %v424, %v464
  %v473 = vsel %vm433, %v425, %v465
  %v474 = vsel %vm434, %v426, %v466
  %v475 = vsel %vm435, %v427, %v467
  %476 = vst.msk [vmem:[%s6] sm:$0xff] %vm246, %v468
  %477 = vst.msk [vmem:[%s6 + $0x8] sm:$0xff] %vm246, %v469
  %478 = vst.msk [vmem:[%s6 + $0x10] sm:$0xff] %vm246, %v470
  %479 = vst.msk [vmem:[%s6 + $0x18] sm:$0xff] %vm246, %v471
  %480 = vst.msk [vmem:[%s6 + $0x20] sm:$0xff] %vm246, %v472
  %481 = vst.msk [vmem:[%s6 + $0x28] sm:$0xff] %vm246, %v473
  %482 = vst.msk [vmem:[%s6 + $0x30] sm:$0xff] %vm246, %v474
  %483 = vst.msk [vmem:[%s6 + $0x38] sm:$0xff] %vm246, %v475
  %v484 = vsel %vm246, %v468, 0.0
  %v485 = vsel %vm246, %v469, 0.0
  %v486 = vadd.f32 %v484, %v485
  %v487 = vsel %vm246, %v470, 0.0
  %v488 = vadd.f32 %v486, %v487
  %v489 = vsel %vm246, %v471, 0.0
  %v490 = vadd.f32 %v488, %v489
  %v491 = vsel %vm246, %v472, 0.0
  %v492 = vadd.f32 %v490, %v491
  %v493 = vsel %vm246, %v473, 0.0
  %v494 = vadd.f32 %v492, %v493
  %v495 = vsel %vm246, %v474, 0.0
  %v496 = vadd.f32 %v494, %v495
  %v497 = vsel %vm246, %v475, 0.0
  %v498 = vadd.f32 %v496, %v497
  %v499 = vrot.slane %v498, 4
  %v500 = vadd.f32 %v498, %v499
  %v501 = vrot.slane %v500, 2
  %v502 = vadd.f32 %v500, %v501
  %v503 = vrot.slane %v502, 1
  %v504 = vadd.f32 %v502, %v503
  %v505 = vmul.f32 %v468, %v468
  %v506 = vmul.f32 %v469, %v469
  %v507 = vmul.f32 %v470, %v470
  %v508 = vmul.f32 %v471, %v471
  %v509 = vmul.f32 %v472, %v472
  %v510 = vmul.f32 %v473, %v473
  %v511 = vmul.f32 %v474, %v474
  %v512 = vmul.f32 %v475, %v475
  %v513 = vsel %vm246, %v505, 0.0
  %v514 = vsel %vm246, %v506, 0.0
  %v515 = vadd.f32 %v513, %v514
  %v516 = vsel %vm246, %v507, 0.0
  %v517 = vadd.f32 %v515, %v516
  %v518 = vsel %vm246, %v508, 0.0
  %v519 = vadd.f32 %v517, %v518
  %v520 = vsel %vm246, %v509, 0.0
  %v521 = vadd.f32 %v519, %v520
  %v522 = vsel %vm246, %v510, 0.0
  %v523 = vadd.f32 %v521, %v522
  %v524 = vsel %vm246, %v511, 0.0
  %v525 = vadd.f32 %v523, %v524
  %v526 = vsel %vm246, %v512, 0.0
  %v527 = vadd.f32 %v525, %v526
  %v528 = vrot.slane %v527, 4
  %v529 = vadd.f32 %v527, %v528
  %v530 = vrot.slane %v529, 2
  %v531 = vadd.f32 %v529, %v530
  %v532 = vrot.slane %v531, 1
  %v533 = vadd.f32 %v531, %v532
  %vm534 = vcmask 1040384
  %v535 = vsel %vm534, %v504, %v533
  %vm536 = vcmask 254976
  %537 = vst.msk [vmem:[%s7] sm:$0x3] %vm536, %v535
  // Predicated region
  $region26: #{vae_forward.10} parent=0 // pred_check
    _
  $region27: #{vae_forward.10} parent=0 // pred_check_branch
    %539 = sbr.rel (0) target = $region29
  $region28: #{vae_forward.10} parent=0 // pred_region
    _
  $region29: #{vae_forward.10} parent=0 // pred_fallthru
    _
  // Predicated region
  $region30: #{vae_forward.10} parent=0 // pred_check
    _
  $region31: #{vae_forward.10} parent=0 // pred_check_branch
    %541 = sbr.rel (0) target = $region33
  $region32: #{vae_forward.10} parent=0 // pred_region
    _
  $region33: #{vae_forward.10} parent=0 // pred_fallthru
    _
  // Predicated region
  $region34: #{vae_forward.10} parent=0 // pred_check
    _
  $region35: #{vae_forward.10} parent=0 // pred_check_branch
    %543 = sbr.rel (0) target = $region37
  $region36: #{vae_forward.10} parent=0 // pred_region
    _
  $region37: #{vae_forward.10} parent=0 // pred_fallthru
    _
  // Predicated region
  $region38: #{vae_forward.10} parent=0 // pred_check
    _
  $region39: #{vae_forward.10} parent=0 // pred_check_branch
    %545 = sbr.rel (0) target = $region41
  $region40: #{vae_forward.10} parent=0 // pred_region
    _
  $region41: #{vae_forward.10} parent=0 // pred_fallthru
    _

// kernel: vae_forward.12
$region0: #{vae_forward.12}
  #allocation0 [shape = 'u32[]', space=smem, size = 0x4, offset = 0x4, fixed_abs, tag = 'smem constant byte address 0x4 - core index']
  #allocation1 [shape = 'u32[144,128]{1,0:T(1,128)}', space=vmem, size = 0x12000, scoped, tag = 'internal scratch']
  %s0 = inlined_call_operand.vmem [shape: f32[16,128], index: 0, kind: input, shape index: {}]
  %s1 = inlined_call_operand.vmem [shape: f32[1,128], index: 1, kind: input, shape index: {}]
  %s2 = inlined_call_operand.vmem [shape: f32[1,128], index: 2, kind: input, shape index: {}]
  %s3 = inlined_call_operand.vmem [shape: bf16[128,128], index: 3, kind: input, shape index: {}]
  %s4 = inlined_call_operand.vmem [shape: bf16[128,128], index: 4, kind: input, shape index: {}]
  %s5 = inlined_call_operand.vmem [shape: f32[1,128], index: 5, kind: input, shape index: {}]
  %s6 = inlined_call_operand.vmem [shape: f32[16,128], index: 6, kind: output, shape index: {0}]
  %s7 = inlined_call_operand.vmem [shape: f32[1,2,128], index: 7, kind: output, shape index: {1}]
  %8 = xla_tuple %s6, %s7
  %s9 = sld [smem:[#allocation0]]
  $region42: #{vae_forward.12} parent=0
    _
  %s11 = ssub.s32 1, %s9
  %s12 = scalar_select 0, %s11, %s9
  // Predicated region
  $region2: #{vae_forward.12} parent=0 // pred_check
    _
  $region3: #{vae_forward.12} parent=0 // pred_check_branch
    %14 = sbr.rel (0) target = $region5
  $region4: #{vae_forward.12} parent=0 // pred_region
    _
  $region5: #{vae_forward.12} parent=0 // pred_fallthru
    _
  // Predicated region
  $region6: #{vae_forward.12} parent=0 // pred_check
    _
  $region7: #{vae_forward.12} parent=0 // pred_check_branch
    %16 = sbr.rel (0) target = $region9
  $region8: #{vae_forward.12} parent=0 // pred_region
    _
  $region9: #{vae_forward.12} parent=0 // pred_fallthru
    _
  // Predicated region
  $region10: #{vae_forward.12} parent=0 // pred_check
    _
  $region11: #{vae_forward.12} parent=0 // pred_check_branch
    %18 = sbr.rel (0) target = $region13
  $region12: #{vae_forward.12} parent=0 // pred_region
    _
  $region13: #{vae_forward.12} parent=0 // pred_fallthru
    _
  // Predicated region
  $region14: #{vae_forward.12} parent=0 // pred_check
    _
  $region15: #{vae_forward.12} parent=0 // pred_check_branch
    %20 = sbr.rel (0) target = $region17
  $region16: #{vae_forward.12} parent=0 // pred_region
    _
  $region17: #{vae_forward.12} parent=0 // pred_fallthru
    _
  // Predicated region
  $region18: #{vae_forward.12} parent=0 // pred_check
    _
  $region19: #{vae_forward.12} parent=0 // pred_check_branch
    %22 = sbr.rel (0) target = $region21
  $region20: #{vae_forward.12} parent=0 // pred_region
    _
  $region21: #{vae_forward.12} parent=0 // pred_fallthru
    _
  // Predicated region
  $region22: #{vae_forward.12} parent=0 // pred_check
    _
  $region23: #{vae_forward.12} parent=0 // pred_check_branch
    %24 = sbr.rel (0) target = $region25
  $region24: #{vae_forward.12} parent=0 // pred_region
    _
  $region25: #{vae_forward.12} parent=0 // pred_fallthru
    _
  %v26 = vld [vmem:[%s0] sm:$0xff]
  %v27 = vld [vmem:[%s0 + $0x8] sm:$0xff]
  %v28 = vld [vmem:[%s1] sm:$0x1]
  %v30 = vlaneseq
  %v31 = vshrl.u32 %v30, 7
  %v32 = vsub.s32 0, %v31
  %v33 = vrot.slane %v28, %v32
  %v35 = vmul.f32 %v26, %v33
  %v36 = vmul.f32 %v27, %v33
  %v37 = vld [vmem:[%s2] sm:$0x1]
  %v39 = vlaneseq
  %v40 = vshrl.u32 %v39, 7
  %v41 = vsub.s32 0, %v40
  %v42 = vrot.slane %v37, %v41
  %v44 = vadd.f32 %v35, %v42
  %v45 = vadd.f32 %v36, %v42
  %v46 = vlaneseq
  %v47 = vshrl.u32 %v46, 7
  %v48 = vadd.s32 %v47, 8
  %vm49 = vcmp.lt.s32.totalorder %v47, 0
  %v50 = vsub.s32 0, %v47
  %v51 = vsel %vm49, %v50, %v47
  %v52 = vshrl.u32 %v51, 3
  %v53 = vand.u32 %v51, 7
  %v54 = vsub.s32 0, %v53
  %v55 = vsel %vm49, %v54, %v53
  %vm56 = vcmp.lt.s32.totalorder %v48, 0
  %v57 = vsub.s32 0, %v48
  %v58 = vsel %vm56, %v57, %v48
  %v59 = vshrl.u32 %v58, 3
  %v60 = vand.u32 %v58, 7
  %v61 = vsub.s32 0, %v60
  %v62 = vsel %vm56, %v61, %v60
  %vm63 = vcmp.ne.s32.totalorder %v55, 0
  %vm64 = vcmp.ne.s32.totalorder %v62, 0
  %vm65 = vcmp.lt.s32.totalorder %v55, 0
  %vm66 = vcmp.lt.s32.totalorder %v62, 0
  %vm67 = vmand %vm65, %vm63
  %vm68 = vmand %vm66, %vm64
  %v69 = vadd.s32 %v55, 8
  %v70 = vadd.s32 %v62, 8
  %v71 = vsel %vm67, %v69, %v55
  %v72 = vsel %vm68, %v70, %v62
  %vm73 = vcmp.ne.s32.totalorder %v71, 0
  %vm74 = vcmp.ne.s32.totalorder %v72, 0
  %v75 = vsel %vm73, 1, 0
  %v76 = vsel %vm74, 1, 0
  %v77 = vcvt.s32.f32 %v75
  %v78 = vcvt.s32.f32 %v76
  %v79 = vrot.slane %v44, 7
  %v80 = vrot.slane %v45, 7
  %vm81 = vcmp.lt.s32.totalorder %v47, 1
  %v82 = vsel %vm81, %v79, %v80
  %v83 = vsel %vm81, %v80, %v79
  %v84 = vmul.f32 %v83, %v77
  %v85 = vmul.f32 %v82, %v78
  %v86 = vpack.c.bf16 %v85, %v84
  %v87 = vld [vmem:[%s3] sm:$0xf]
  %v88 = vld [vmem:[%s3 + $0x4] sm:$0xf]
  %v89 = vld [vmem:[%s3 + $0x8] sm:$0xf]
  %v90 = vld [vmem:[%s3 + $0xc] sm:$0xf]
  %v91 = vld [vmem:[%s3 + $0x10] sm:$0xf]
  %v92 = vld [vmem:[%s3 + $0x14] sm:$0xf]
  %v93 = vld [vmem:[%s3 + $0x18] sm:$0xf]
  %v94 = vld [vmem:[%s3 + $0x1c] sm:$0xf]
  %v95 = vld [vmem:[%s3 + $0x20] sm:$0xf]
  %v96 = vld [vmem:[%s3 + $0x24] sm:$0xf]
  %v97 = vld [vmem:[%s3 + $0x28] sm:$0xf]
  %v98 = vld [vmem:[%s3 + $0x2c] sm:$0xf]
  %v99 = vld [vmem:[%s3 + $0x30] sm:$0xf]
  %v100 = vld [vmem:[%s3 + $0x34] sm:$0xf]
  %v101 = vld [vmem:[%s3 + $0x38] sm:$0xf]
  %v102 = vld [vmem:[%s3 + $0x3c] sm:$0xf]
  %v103 = vpack.c.bf16 %v45, %v44
  %v104 = vld [vmem:[%s4] sm:$0xf]
  %v105 = vld [vmem:[%s4 + $0x4] sm:$0xf]
  %v106 = vld [vmem:[%s4 + $0x8] sm:$0xf]
  %v107 = vld [vmem:[%s4 + $0xc] sm:$0xf]
  %v108 = vld [vmem:[%s4 + $0x10] sm:$0xf]
  %v109 = vld [vmem:[%s4 + $0x14] sm:$0xf]
  %v110 = vld [vmem:[%s4 + $0x18] sm:$0xf]
  %v111 = vld [vmem:[%s4 + $0x1c] sm:$0xf]
  %v112 = vld [vmem:[%s4 + $0x20] sm:$0xf]
  %v113 = vld [vmem:[%s4 + $0x24] sm:$0xf]
  %v114 = vld [vmem:[%s4 + $0x28] sm:$0xf]
  %v115 = vld [vmem:[%s4 + $0x2c] sm:$0xf]
  %v116 = vld [vmem:[%s4 + $0x30] sm:$0xf]
  %v117 = vld [vmem:[%s4 + $0x34] sm:$0xf]
  %v118 = vld [vmem:[%s4 + $0x38] sm:$0xf]
  %v119 = vld [vmem:[%s4 + $0x3c] sm:$0xf]
  %v136 = vunpack.c.l.b16 %v104
  %v137 = vunpack.c.l.b16 %v105
  %v138 = vunpack.c.l.b16 %v106
  %v139 = vunpack.c.l.b16 %v107
  %v140 = vunpack.c.l.b16 %v108
  %v141 = vunpack.c.l.b16 %v109
  %v142 = vunpack.c.l.b16 %v110
  %v143 = vunpack.c.l.b16 %v111
  %v144 = vunpack.c.l.b16 %v112
  %v145 = vunpack.c.l.b16 %v113
  %v146 = vunpack.c.l.b16 %v114
  %v147 = vunpack.c.l.b16 %v115
  %v148 = vunpack.c.l.b16 %v116
  %v149 = vunpack.c.l.b16 %v117
  %v150 = vunpack.c.l.b16 %v118
  %v151 = vunpack.c.l.b16 %v119
  %v152 = vpack.c.b16 %v137, %v136
  %v153 = vpack.c.b16 %v139, %v138
  %v154 = vpack.c.b16 %v141, %v140
  %v155 = vpack.c.b16 %v143, %v142
  %v156 = vpack.c.b16 %v145, %v144
  %v157 = vpack.c.b16 %v147, %v146
  %v158 = vpack.c.b16 %v149, %v148
  %v159 = vpack.c.b16 %v151, %v150
  %168 = vmatprep.subr.bf16.mxu0 0
  %169 = vmatpush1.bf16.msra.mxu0 %v152
  %170 = vmatprep.subr.bf16.mxu0 0
  %171 = vmatpush1.bf16.msra.mxu0 %v153
  %172 = vmatprep.subr.bf16.mxu0 0
  %173 = vmatpush1.bf16.msra.mxu0 %v154
  %174 = vmatprep.subr.bf16.mxu0 0
  %175 = vmatpush1.bf16.msra.mxu0 %v155
  %176 = vmatprep.subr.bf16.mxu0 0
  %177 = vmatpush1.bf16.msra.mxu0 %v156
  %178 = vmatprep.subr.bf16.mxu0 0
  %179 = vmatpush1.bf16.msra.mxu0 %v157
  %180 = vmatprep.subr.bf16.mxu0 0
  %181 = vmatpush1.bf16.msra.mxu0 %v158
  %182 = vmatprep.subr.bf16.mxu0 0
  %183 = vmatpush1.bf16.msra.mxu0 %v159
  %184 = vmatprep.subr.bf16.mxu0 0
  %185 = vmatpush1.bf16.msra.mxu0 0
  %186 = vmatprep.subr.bf16.mxu0 0
  %187 = vmatpush1.bf16.msra.mxu0 0
  %188 = vmatprep.subr.bf16.mxu0 0
  %189 = vmatpush1.bf16.msra.mxu0 0
  %190 = vmatprep.subr.bf16.mxu0 0
  %191 = vmatpush1.bf16.msra.mxu0 0
  %192 = vmatprep.subr.bf16.mxu0 0
  %193 = vmatpush1.bf16.msra.mxu0 0
  %194 = vmatprep.subr.bf16.mxu0 0
  %195 = vmatpush1.bf16.msra.mxu0 0
  %196 = vmatprep.subr.bf16.mxu0 0
  %197 = vmatpush1.bf16.msra.mxu0 0
  %198 = vmatprep.subr.bf16.mxu0 0
  %199 = vmatpush1.bf16.msra.mxu0 0
  %200 = vmatprep.mubr.bf16.mxu0 0
  %201 = vmatmul.mubr.bf16.gmra.mrb[0].mxu0 %v103
  %v202 = vpop.f32.mrb[0].mxu0
  %v203 = vadd.f32 0.0, %v202
  %v204 = vpop.f32.mrb[0].mxu0
  %v205 = vpop.f32.mrb[0].mxu0
  %v206 = vadd.f32 0.0, %v205
  %v207 = vpop.f32.mrb[0].mxu0
  %208 = vdwg.mxu0
  %v225 = vunpack.c.l.b16 %v87
  %v226 = vunpack.c.l.b16 %v88
  %v227 = vunpack.c.l.b16 %v89
  %v228 = vunpack.c.l.b16 %v90
  %v229 = vunpack.c.l.b16 %v91
  %v230 = vunpack.c.l.b16 %v92
  %v231 = vunpack.c.l.b16 %v93
  %v232 = vunpack.c.l.b16 %v94
  %v233 = vunpack.c.l.b16 %v95
  %v234 = vunpack.c.l.b16 %v96
  %v235 = vunpack.c.l.b16 %v97
  %v236 = vunpack.c.l.b16 %v98
  %v237 = vunpack.c.l.b16 %v99
  %v238 = vunpack.c.l.b16 %v100
  %v239 = vunpack.c.l.b16 %v101
  %v240 = vunpack.c.l.b16 %v102
  %v241 = vpack.c.b16 %v226, %v225
  %v242 = vpack.c.b16 %v228, %v227
  %v243 = vpack.c.b16 %v230, %v229
  %v244 = vpack.c.b16 %v232, %v231
  %v245 = vpack.c.b16 %v234, %v233
  %v246 = vpack.c.b16 %v236, %v235
  %v247 = vpack.c.b16 %v238, %v237
  %v248 = vpack.c.b16 %v240, %v239
  %257 = vmatprep.subr.bf16.mxu0 0
  %258 = vmatpush1.bf16.msra.mxu0 %v241
  %259 = vmatprep.subr.bf16.mxu0 0
  %260 = vmatpush1.bf16.msra.mxu0 %v242
  %261 = vmatprep.subr.bf16.mxu0 0
  %262 = vmatpush1.bf16.msra.mxu0 %v243
  %263 = vmatprep.subr.bf16.mxu0 0
  %264 = vmatpush1.bf16.msra.mxu0 %v244
  %265 = vmatprep.subr.bf16.mxu0 0
  %266 = vmatpush1.bf16.msra.mxu0 %v245
  %267 = vmatprep.subr.bf16.mxu0 0
  %268 = vmatpush1.bf16.msra.mxu0 %v246
  %269 = vmatprep.subr.bf16.mxu0 0
  %270 = vmatpush1.bf16.msra.mxu0 %v247
  %271 = vmatprep.subr.bf16.mxu0 0
  %272 = vmatpush1.bf16.msra.mxu0 %v248
  %273 = vmatprep.subr.bf16.mxu0 0
  %274 = vmatpush1.bf16.msra.mxu0 0
  %275 = vmatprep.subr.bf16.mxu0 0
  %276 = vmatpush1.bf16.msra.mxu0 0
  %277 = vmatprep.subr.bf16.mxu0 0
  %278 = vmatpush1.bf16.msra.mxu0 0
  %279 = vmatprep.subr.bf16.mxu0 0
  %280 = vmatpush1.bf16.msra.mxu0 0
  %281 = vmatprep.subr.bf16.mxu0 0
  %282 = vmatpush1.bf16.msra.mxu0 0
  %283 = vmatprep.subr.bf16.mxu0 0
  %284 = vmatpush1.bf16.msra.mxu0 0
  %285 = vmatprep.subr.bf16.mxu0 0
  %286 = vmatpush1.bf16.msra.mxu0 0
  %287 = vmatprep.subr.bf16.mxu0 0
  %288 = vmatpush1.bf16.msra.mxu0 0
  %289 = vmatprep.mubr.bf16.mxu0 0
  %290 = vmatmul.mubr.bf16.gmra.mrb[0].mxu0 %v86
  %v291 = vpop.f32.mrb[0].mxu0
  %v292 = vadd.f32 %v203, %v291
  %v293 = vpop.f32.mrb[0].mxu0
  %v294 = vpop.f32.mrb[0].mxu0
  %v295 = vadd.f32 %v206, %v294
  %v296 = vpop.f32.mrb[0].mxu0
  %297 = vdwg.mxu0
  %v298 = vld [vmem:[%s5] sm:$0x1]
  %v300 = vlaneseq
  %v301 = vshrl.u32 %v300, 7
  %v302 = vsub.s32 0, %v301
  %v303 = vrot.slane %v298, %v302
  %v305 = vadd.f32 %v292, %v303
  %v306 = vadd.f32 %v295, %v303
  %vm307 = vcmp.gt.f32.partialorder %v305, 0.0
  %vm308 = vcmp.gt.f32.partialorder %v306, 0.0
  %v309 = vmin.f32 %v305, 0.0
  %v310 = vmin.f32 %v306, 0.0
  %v311 = vmul.f32 %v309, 1.442695
  %v312 = vpow.pop %v311
  %v313 = vmul.f32 %v310, 1.442695
  %v314 = vpow.pop %v313
  %v315 = vsub.f32 %v312, 1.0
  %v316 = vsub.f32 %v314, 1.0
  %v317 = vsel %vm307, %v305, %v315
  %v318 = vsel %vm308, %v306, %v316
  %319 = vst [vmem:[%s6] sm:$0xff] %v317
  %320 = vst [vmem:[%s6 + $0x8] sm:$0xff] %v318
  %v321 = vadd.f32 %v317, %v318
  %v322 = vrot.slane %v321, 4
  %v323 = vadd.f32 %v321, %v322
  %v324 = vrot.slane %v323, 2
  %v325 = vadd.f32 %v323, %v324
  %v326 = vrot.slane %v325, 1
  %v327 = vadd.f32 %v325, %v326
  %v328 = vmul.f32 %v317, %v317
  %v329 = vmul.f32 %v318, %v318
  %v330 = vadd.f32 %v328, %v329
  %v331 = vrot.slane %v330, 4
  %v332 = vadd.f32 %v330, %v331
  %v333 = vrot.slane %v332, 2
  %v334 = vadd.f32 %v332, %v333
  %v335 = vrot.slane %v334, 1
  %v336 = vadd.f32 %v334, %v335
  %vm337 = vcmask 1040384
  %v338 = vsel %vm337, %v327, %v336
  %339 = vst [vmem:[%s7] sm:$0x3] %v338
  // Predicated region
  $region26: #{vae_forward.12} parent=0 // pred_check
    _
  $region27: #{vae_forward.12} parent=0 // pred_check_branch
    %341 = sbr.rel (0) target = $region29
  $region28: #{vae_forward.12} parent=0 // pred_region
    _
  $region29: #{vae_forward.12} parent=0 // pred_fallthru
    _
  // Predicated region
  $region30: #{vae_forward.12} parent=0 // pred_check
    _
  $region31: #{vae_forward.12} parent=0 // pred_check_branch
    %343 = sbr.rel (0) target = $region33
  $region32: #{vae_forward.12} parent=0 // pred_region
    _
  $region33: #{vae_forward.12} parent=0 // pred_fallthru
    _
  // Predicated region
  $region34: #{vae_forward.12} parent=0 // pred_check
    _
  $region35: #{vae_forward.12} parent=0 // pred_check_branch
    %345 = sbr.rel (0) target = $region37
  $region36: #{vae_forward.12} parent=0 // pred_region
    _
  $region37: #{vae_forward.12} parent=0 // pred_fallthru
    _
  // Predicated region
  $region38: #{vae_forward.12} parent=0 // pred_check
    _
  $region39: #{vae_forward.12} parent=0 // pred_check_branch
    %347 = sbr.rel (0) target = $region41
  $region40: #{vae_forward.12} parent=0 // pred_region
    _
  $region41: #{vae_forward.12} parent=0 // pred_fallthru
    _

// kernel: vae_forward.11
$region0: #{vae_forward.11}
  #allocation0 [shape = 'u32[]', space=smem, size = 0x4, offset = 0x4, fixed_abs, tag = 'smem constant byte address 0x4 - core index']
  #allocation1 [shape = 'u32[144,128]{1,0:T(1,128)}', space=vmem, size = 0x12000, scoped, tag = 'internal scratch']
  %s0 = inlined_call_operand.vmem [shape: f32[32,64], index: 0, kind: input, shape index: {}]
  %s1 = inlined_call_operand.vmem [shape: f32[1,64], index: 1, kind: input, shape index: {}]
  %s2 = inlined_call_operand.vmem [shape: f32[1,64], index: 2, kind: input, shape index: {}]
  %s3 = inlined_call_operand.vmem [shape: bf16[64,64], index: 3, kind: input, shape index: {}]
  %s4 = inlined_call_operand.vmem [shape: bf16[64,64], index: 4, kind: input, shape index: {}]
  %s5 = inlined_call_operand.vmem [shape: f32[1,64], index: 5, kind: input, shape index: {}]
  %s6 = inlined_call_operand.vmem [shape: f32[32,64], index: 6, kind: output, shape index: {0}]
  %s7 = inlined_call_operand.vmem [shape: f32[1,2,64], index: 7, kind: output, shape index: {1}]
  %8 = xla_tuple %s6, %s7
  %s9 = sld [smem:[#allocation0]]
  $region42: #{vae_forward.11} parent=0
    _
  %s11 = ssub.s32 1, %s9
  %s12 = scalar_select 0, %s11, %s9
  // Predicated region
  $region2: #{vae_forward.11} parent=0 // pred_check
    _
  $region3: #{vae_forward.11} parent=0 // pred_check_branch
    %14 = sbr.rel (0) target = $region5
  $region4: #{vae_forward.11} parent=0 // pred_region
    _
  $region5: #{vae_forward.11} parent=0 // pred_fallthru
    _
  // Predicated region
  $region6: #{vae_forward.11} parent=0 // pred_check
    _
  $region7: #{vae_forward.11} parent=0 // pred_check_branch
    %16 = sbr.rel (0) target = $region9
  $region8: #{vae_forward.11} parent=0 // pred_region
    _
  $region9: #{vae_forward.11} parent=0 // pred_fallthru
    _
  // Predicated region
  $region10: #{vae_forward.11} parent=0 // pred_check
    _
  $region11: #{vae_forward.11} parent=0 // pred_check_branch
    %18 = sbr.rel (0) target = $region13
  $region12: #{vae_forward.11} parent=0 // pred_region
    _
  $region13: #{vae_forward.11} parent=0 // pred_fallthru
    _
  // Predicated region
  $region14: #{vae_forward.11} parent=0 // pred_check
    _
  $region15: #{vae_forward.11} parent=0 // pred_check_branch
    %20 = sbr.rel (0) target = $region17
  $region16: #{vae_forward.11} parent=0 // pred_region
    _
  $region17: #{vae_forward.11} parent=0 // pred_fallthru
    _
  // Predicated region
  $region18: #{vae_forward.11} parent=0 // pred_check
    _
  $region19: #{vae_forward.11} parent=0 // pred_check_branch
    %22 = sbr.rel (0) target = $region21
  $region20: #{vae_forward.11} parent=0 // pred_region
    _
  $region21: #{vae_forward.11} parent=0 // pred_fallthru
    _
  // Predicated region
  $region22: #{vae_forward.11} parent=0 // pred_check
    _
  $region23: #{vae_forward.11} parent=0 // pred_check_branch
    %24 = sbr.rel (0) target = $region25
  $region24: #{vae_forward.11} parent=0 // pred_region
    _
  $region25: #{vae_forward.11} parent=0 // pred_fallthru
    _
  %v26 = vld [vmem:[%s0] sm:$0xff]
  %v27 = vld [vmem:[%s0 + $0x8] sm:$0xff]
  %v28 = vld [vmem:[%s0 + $0x10] sm:$0xff]
  %v29 = vld [vmem:[%s0 + $0x18] sm:$0xff]
  %v30 = vld [vmem:[%s1] sm:$0x1]
  %v32 = vlaneseq
  %v33 = vshrl.u32 %v32, 7
  %v34 = vsub.s32 0, %v33
  %v35 = vrot.slane %v30, %v34
  %v37 = vmul.f32 %v26, %v35
  %v38 = vmul.f32 %v27, %v35
  %v39 = vmul.f32 %v28, %v35
  %v40 = vmul.f32 %v29, %v35
  %v41 = vld [vmem:[%s2] sm:$0x1]
  %v43 = vlaneseq
  %v44 = vshrl.u32 %v43, 7
  %v45 = vsub.s32 0, %v44
  %v46 = vrot.slane %v41, %v45
  %v48 = vadd.f32 %v37, %v46
  %v49 = vadd.f32 %v38, %v46
  %v50 = vadd.f32 %v39, %v46
  %v51 = vadd.f32 %v40, %v46
  %v52 = vlaneseq
  %v53 = vshrl.u32 %v52, 7
  %v54 = vadd.s32 %v53, 8
  %v55 = vadd.s32 %v53, 16
  %v56 = vadd.s32 %v53, 24
  %vm57 = vcmp.lt.s32.totalorder %v53, 0
  %v58 = vsub.s32 0, %v53
  %v59 = vsel %vm57, %v58, %v53
  %v60 = vshrl.u32 %v59, 4
  %v61 = vand.u32 %v59, 15
  %v62 = vsub.s32 0, %v61
  %v63 = vsel %vm57, %v62, %v61
  %vm64 = vcmp.lt.s32.totalorder %v54, 0
  %v65 = vsub.s32 0, %v54
  %v66 = vsel %vm64, %v65, %v54
  %v67 = vshrl.u32 %v66, 4
  %v68 = vand.u32 %v66, 15
  %v69 = vsub.s32 0, %v68
  %v70 = vsel %vm64, %v69, %v68
  %vm71 = vcmp.lt.s32.totalorder %v55, 0
  %v72 = vsub.s32 0, %v55
  %v73 = vsel %vm71, %v72, %v55
  %v74 = vshrl.u32 %v73, 4
  %v75 = vand.u32 %v73, 15
  %v76 = vsub.s32 0, %v75
  %v77 = vsel %vm71, %v76, %v75
  %vm78 = vcmp.lt.s32.totalorder %v56, 0
  %v79 = vsub.s32 0, %v56
  %v80 = vsel %vm78, %v79, %v56
  %v81 = vshrl.u32 %v80, 4
  %v82 = vand.u32 %v80, 15
  %v83 = vsub.s32 0, %v82
  %v84 = vsel %vm78, %v83, %v82
  %vm85 = vcmp.ne.s32.totalorder %v63, 0
  %vm86 = vcmp.ne.s32.totalorder %v70, 0
  %vm87 = vcmp.ne.s32.totalorder %v77, 0
  %vm88 = vcmp.ne.s32.totalorder %v84, 0
  %vm89 = vcmp.lt.s32.totalorder %v63, 0
  %vm90 = vcmp.lt.s32.totalorder %v70, 0
  %vm91 = vcmp.lt.s32.totalorder %v77, 0
  %vm92 = vcmp.lt.s32.totalorder %v84, 0
  %vm93 = vmand %vm89, %vm85
  %vm94 = vmand %vm90, %vm86
  %vm95 = vmand %vm91, %vm87
  %vm96 = vmand %vm92, %vm88
  %v97 = vadd.s32 %v63, 16
  %v98 = vadd.s32 %v70, 16
  %v99 = vadd.s32 %v77, 16
  %v100 = vadd.s32 %v84, 16
  %v101 = vsel %vm93, %v97, %v63
  %v102 = vsel %vm94, %v98, %v70
  %v103 = vsel %vm95, %v99, %v77
  %v104 = vsel %vm96, %v100, %v84
  %vm105 = vcmp.ne.s32.totalorder %v101, 0
  %vm106 = vcmp.ne.s32.totalorder %v102, 0
  %vm107 = vcmp.ne.s32.totalorder %v103, 0
  %vm108 = vcmp.ne.s32.totalorder %v104, 0
  %v109 = vsel %vm105, 1, 0
  %v110 = vsel %vm106, 1, 0
  %v111 = vsel %vm107, 1, 0
  %v112 = vsel %vm108, 1, 0
  %v113 = vcvt.s32.f32 %v109
  %v114 = vcvt.s32.f32 %v110
  %v115 = vcvt.s32.f32 %v111
  %v116 = vcvt.s32.f32 %v112
  %v117 = vrot.slane %v48, 7
  %v118 = vrot.slane %v49, 7
  %v119 = vrot.slane %v50, 7
  %v120 = vrot.slane %v51, 7
  %vm121 = vcmp.lt.s32.totalorder %v53, 1
  %v122 = vsel %vm121, %v119, %v120
  %v123 = vsel %vm121, %v118, %v119
  %v124 = vsel %vm121, %v117, %v118
  %v125 = vsel %vm121, %v120, %v117
  %v126 = vmul.f32 %v125, %v113
  %v127 = vmul.f32 %v124, %v114
  %v128 = vmul.f32 %v123, %v115
  %v129 = vmul.f32 %v122, %v116
  %v130 = vpack.c.bf16 %v127, %v126
  %v131 = vpack.c.bf16 %v129, %v128
  %v132 = vld [vmem:[%s3] sm:$0xf]
  %v133 = vld [vmem:[%s3 + $0x4] sm:$0xf]
  %v134 = vld [vmem:[%s3 + $0x8] sm:$0xf]
  %v135 = vld [vmem:[%s3 + $0xc] sm:$0xf]
  %v136 = vld [vmem:[%s3 + $0x10] sm:$0xf]
  %v137 = vld [vmem:[%s3 + $0x14] sm:$0xf]
  %v138 = vld [vmem:[%s3 + $0x18] sm:$0xf]
  %v139 = vld [vmem:[%s3 + $0x1c] sm:$0xf]
  %v140 = vpack.c.bf16 %v49, %v48
  %v141 = vpack.c.bf16 %v51, %v50
  %v142 = vld [vmem:[%s4] sm:$0xf]
  %v143 = vld [vmem:[%s4 + $0x4] sm:$0xf]
  %v144 = vld [vmem:[%s4 + $0x8] sm:$0xf]
  %v145 = vld [vmem:[%s4 + $0xc] sm:$0xf]
  %v146 = vld [vmem:[%s4 + $0x10] sm:$0xf]
  %v147 = vld [vmem:[%s4 + $0x14] sm:$0xf]
  %v148 = vld [vmem:[%s4 + $0x18] sm:$0xf]
  %v149 = vld [vmem:[%s4 + $0x1c] sm:$0xf]
  %v158 = vunpack.c.l.b16 %v142
  %v159 = vunpack.c.l.b16 %v143
  %v160 = vunpack.c.l.b16 %v144
  %v161 = vunpack.c.l.b16 %v145
  %v162 = vunpack.c.l.b16 %v146
  %v163 = vunpack.c.l.b16 %v147
  %v164 = vunpack.c.l.b16 %v148
  %v165 = vunpack.c.l.b16 %v149
  %v166 = vpack.c.b16 %v159, %v158
  %v167 = vpack.c.b16 %v161, %v160
  %v168 = vpack.c.b16 %v163, %v162
  %v169 = vpack.c.b16 %v165, %v164
  %vm174 = vcmask 523264
  %v176 = vsel %vm174, %v140, 0
  %v179 = vsel %vm174, %v141, 0
  %181 = vmatprep.subr.bf16.mxu0 0
  %182 = vmatpush1.bf16.msra.mxu0 %v166
  %183 = vmatprep.subr.bf16.mxu0 0
  %184 = vmatpush1.bf16.msra.mxu0 %v167
  %185 = vmatprep.subr.bf16.mxu0 0
  %186 = vmatpush1.bf16.msra.mxu0 %v168
  %187 = vmatprep.subr.bf16.mxu0 0
  %188 = vmatpush1.bf16.msra.mxu0 %v169
  %189 = vmatprep.subr.bf16.mxu0 0
  %190 = vmatpush1.bf16.msra.mxu0 0
  %191 = vmatprep.subr.bf16.mxu0 0
  %192 = vmatpush1.bf16.msra.mxu0 0
  %193 = vmatprep.subr.bf16.mxu0 0
  %194 = vmatpush1.bf16.msra.mxu0 0
  %195 = vmatprep.subr.bf16.mxu0 0
  %196 = vmatpush1.bf16.msra.mxu0 0
  %197 = vmatprep.subr.bf16.mxu0 0
  %198 = vmatpush1.bf16.msra.mxu0 0
  %199 = vmatprep.subr.bf16.mxu0 0
  %200 = vmatpush1.bf16.msra.mxu0 0
  %201 = vmatprep.subr.bf16.mxu0 0
  %202 = vmatpush1.bf16.msra.mxu0 0
  %203 = vmatprep.subr.bf16.mxu0 0
  %204 = vmatpush1.bf16.msra.mxu0 0
  %205 = vmatprep.subr.bf16.mxu0 0
  %206 = vmatpush1.bf16.msra.mxu0 0
  %207 = vmatprep.subr.bf16.mxu0 0
  %208 = vmatpush1.bf16.msra.mxu0 0
  %209 = vmatprep.subr.bf16.mxu0 0
  %210 = vmatpush1.bf16.msra.mxu0 0
  %211 = vmatprep.subr.bf16.mxu0 0
  %212 = vmatpush1.bf16.msra.mxu0 0
  %213 = vmatprep.mubr.bf16.mxu0 0
  %214 = vmatmul.mubr.bf16.gmra.mrb[0].mxu0 %v176
  %v215 = vpop.f32.mrb[0].mxu0
  %v216 = vadd.f32 0.0, %v215
  %v217 = vpop.f32.mrb[0].mxu0
  %v218 = vpop.f32.mrb[0].mxu0
  %v219 = vadd.f32 0.0, %v218
  %v220 = vpop.f32.mrb[0].mxu0
  %221 = vmatprep.mubr.bf16.mxu0 0
  %222 = vmatmul.mubr.bf16.gmra.mrb[0].mxu0 %v179
  %v223 = vpop.f32.mrb[0].mxu0
  %v224 = vadd.f32 0.0, %v223
  %v225 = vpop.f32.mrb[0].mxu0
  %v226 = vpop.f32.mrb[0].mxu0
  %v227 = vadd.f32 0.0, %v226
  %v228 = vpop.f32.mrb[0].mxu0
  %229 = vdwg.mxu0
  %v238 = vunpack.c.l.b16 %v132
  %v239 = vunpack.c.l.b16 %v133
  %v240 = vunpack.c.l.b16 %v134
  %v241 = vunpack.c.l.b16 %v135
  %v242 = vunpack.c.l.b16 %v136
  %v243 = vunpack.c.l.b16 %v137
  %v244 = vunpack.c.l.b16 %v138
  %v245 = vunpack.c.l.b16 %v139
  %v246 = vpack.c.b16 %v239, %v238
  %v247 = vpack.c.b16 %v241, %v240
  %v248 = vpack.c.b16 %v243, %v242
  %v249 = vpack.c.b16 %v245, %v244
  %v255 = vsel %vm174, %v130, 0
  %v258 = vsel %vm174, %v131, 0
  %260 = vmatprep.subr.bf16.mxu0 0
  %261 = vmatpush1.bf16.msra.mxu0 %v246
  %262 = vmatprep.subr.bf16.mxu0 0
  %263 = vmatpush1.bf16.msra.mxu0 %v247
  %264 = vmatprep.subr.bf16.mxu0 0
  %265 = vmatpush1.bf16.msra.mxu0 %v248
  %266 = vmatprep.subr.bf16.mxu0 0
  %267 = vmatpush1.bf16.msra.mxu0 %v249
  %268 = vmatprep.subr.bf16.mxu0 0
  %269 = vmatpush1.bf16.msra.mxu0 0
  %270 = vmatprep.subr.bf16.mxu0 0
  %271 = vmatpush1.bf16.msra.mxu0 0
  %272 = vmatprep.subr.bf16.mxu0 0
  %273 = vmatpush1.bf16.msra.mxu0 0
  %274 = vmatprep.subr.bf16.mxu0 0
  %275 = vmatpush1.bf16.msra.mxu0 0
  %276 = vmatprep.subr.bf16.mxu0 0
  %277 = vmatpush1.bf16.msra.mxu0 0
  %278 = vmatprep.subr.bf16.mxu0 0
  %279 = vmatpush1.bf16.msra.mxu0 0
  %280 = vmatprep.subr.bf16.mxu0 0
  %281 = vmatpush1.bf16.msra.mxu0 0
  %282 = vmatprep.subr.bf16.mxu0 0
  %283 = vmatpush1.bf16.msra.mxu0 0
  %284 = vmatprep.subr.bf16.mxu0 0
  %285 = vmatpush1.bf16.msra.mxu0 0
  %286 = vmatprep.subr.bf16.mxu0 0
  %287 = vmatpush1.bf16.msra.mxu0 0
  %288 = vmatprep.subr.bf16.mxu0 0
  %289 = vmatpush1.bf16.msra.mxu0 0
  %290 = vmatprep.subr.bf16.mxu0 0
  %291 = vmatpush1.bf16.msra.mxu0 0
  %292 = vmatprep.mubr.bf16.mxu0 0
  %293 = vmatmul.mubr.bf16.gmra.mrb[0].mxu0 %v255
  %v294 = vpop.f32.mrb[0].mxu0
  %v295 = vadd.f32 %v216, %v294
  %v296 = vpop.f32.mrb[0].mxu0
  %v297 = vpop.f32.mrb[0].mxu0
  %v298 = vadd.f32 %v219, %v297
  %v299 = vpop.f32.mrb[0].mxu0
  %300 = vmatprep.mubr.bf16.mxu0 0
  %301 = vmatmul.mubr.bf16.gmra.mrb[0].mxu0 %v258
  %v302 = vpop.f32.mrb[0].mxu0
  %v303 = vadd.f32 %v224, %v302
  %v304 = vpop.f32.mrb[0].mxu0
  %v305 = vpop.f32.mrb[0].mxu0
  %v306 = vadd.f32 %v227, %v305
  %v307 = vpop.f32.mrb[0].mxu0
  %308 = vdwg.mxu0
  %v309 = vld [vmem:[%s5] sm:$0x1]
  %v311 = vlaneseq
  %v312 = vshrl.u32 %v311, 7
  %v313 = vsub.s32 0, %v312
  %v314 = vrot.slane %v309, %v313
  %v316 = vadd.f32 %v295, %v314
  %v317 = vadd.f32 %v298, %v314
  %v318 = vadd.f32 %v303, %v314
  %v319 = vadd.f32 %v306, %v314
  %vm320 = vcmp.gt.f32.partialorder %v316, 0.0
  %vm321 = vcmp.gt.f32.partialorder %v317, 0.0
  %vm322 = vcmp.gt.f32.partialorder %v318, 0.0
  %vm323 = vcmp.gt.f32.partialorder %v319, 0.0
  %v324 = vmin.f32 %v316, 0.0
  %v325 = vmin.f32 %v317, 0.0
  %v326 = vmin.f32 %v318, 0.0
  %v327 = vmin.f32 %v319, 0.0
  %v328 = vmul.f32 %v324, 1.442695
  %v329 = vpow.pop %v328
  %v330 = vmul.f32 %v325, 1.442695
  %v331 = vpow.pop %v330
  %v332 = vmul.f32 %v326, 1.442695
  %v333 = vpow.pop %v332
  %v334 = vmul.f32 %v327, 1.442695
  %v335 = vpow.pop %v334
  %v336 = vsub.f32 %v329, 1.0
  %v337 = vsub.f32 %v331, 1.0
  %v338 = vsub.f32 %v333, 1.0
  %v339 = vsub.f32 %v335, 1.0
  %v340 = vsel %vm320, %v316, %v336
  %v341 = vsel %vm321, %v317, %v337
  %v342 = vsel %vm322, %v318, %v338
  %v343 = vsel %vm323, %v319, %v339
  %344 = vst.msk [vmem:[%s6] sm:$0xff] %vm174, %v340
  %345 = vst.msk [vmem:[%s6 + $0x8] sm:$0xff] %vm174, %v341
  %346 = vst.msk [vmem:[%s6 + $0x10] sm:$0xff] %vm174, %v342
  %347 = vst.msk [vmem:[%s6 + $0x18] sm:$0xff] %vm174, %v343
  %v348 = vsel %vm174, %v340, 0.0
  %v349 = vsel %vm174, %v341, 0.0
  %v350 = vadd.f32 %v348, %v349
  %v351 = vsel %vm174, %v342, 0.0
  %v352 = vadd.f32 %v350, %v351
  %v353 = vsel %vm174, %v343, 0.0
  %v354 = vadd.f32 %v352, %v353
  %v355 = vrot.slane %v354, 4
  %v356 = vadd.f32 %v354, %v355
  %v357 = vrot.slane %v356, 2
  %v358 = vadd.f32 %v356, %v357
  %v359 = vrot.slane %v358, 1
  %v360 = vadd.f32 %v358, %v359
  %v361 = vmul.f32 %v340, %v340
  %v362 = vmul.f32 %v341, %v341
  %v363 = vmul.f32 %v342, %v342
  %v364 = vmul.f32 %v343, %v343
  %v365 = vsel %vm174, %v361, 0.0
  %v366 = vsel %vm174, %v362, 0.0
  %v367 = vadd.f32 %v365, %v366
  %v368 = vsel %vm174, %v363, 0.0
  %v369 = vadd.f32 %v367, %v368
  %v370 = vsel %vm174, %v364, 0.0
  %v371 = vadd.f32 %v369, %v370
  %v372 = vrot.slane %v371, 4
  %v373 = vadd.f32 %v371, %v372
  %v374 = vrot.slane %v373, 2
  %v375 = vadd.f32 %v373, %v374
  %v376 = vrot.slane %v375, 1
  %v377 = vadd.f32 %v375, %v376
  %vm378 = vcmask 1040384
  %v379 = vsel %vm378, %v360, %v377
  %vm380 = vcmask 517120
  %381 = vst.msk [vmem:[%s7] sm:$0x3] %vm380, %v379
  // Predicated region
  $region26: #{vae_forward.11} parent=0 // pred_check
    _
  $region27: #{vae_forward.11} parent=0 // pred_check_branch
    %383 = sbr.rel (0) target = $region29
  $region28: #{vae_forward.11} parent=0 // pred_region
    _
  $region29: #{vae_forward.11} parent=0 // pred_fallthru
    _
  // Predicated region
  $region30: #{vae_forward.11} parent=0 // pred_check
    _
  $region31: #{vae_forward.11} parent=0 // pred_check_branch
    %385 = sbr.rel (0) target = $region33
  $region32: #{vae_forward.11} parent=0 // pred_region
    _
  $region33: #{vae_forward.11} parent=0 // pred_fallthru
    _
  // Predicated region
  $region34: #{vae_forward.11} parent=0 // pred_check
    _
  $region35: #{vae_forward.11} parent=0 // pred_check_branch
    %387 = sbr.rel (0) target = $region37
  $region36: #{vae_forward.11} parent=0 // pred_region
    _
  $region37: #{vae_forward.11} parent=0 // pred_fallthru
    _
  // Predicated region
  $region38: #{vae_forward.11} parent=0 // pred_check
    _
  $region39: #{vae_forward.11} parent=0 // pred_check_branch
    %389 = sbr.rel (0) target = $region41
  $region40: #{vae_forward.11} parent=0 // pred_region
    _
  $region41: #{vae_forward.11} parent=0 // pred_fallthru
    _

// kernel: vae_forward.14
$region0: #{vae_forward.14}
  #allocation0 [shape = 'u32[]', space=smem, size = 0x4, offset = 0x4, fixed_abs, tag = 'smem constant byte address 0x4 - core index']
  #allocation1 [shape = 'u32[144,128]{1,0:T(1,128)}', space=vmem, size = 0x12000, scoped, tag = 'internal scratch']
  %s0 = inlined_call_operand.vmem [shape: f32[16,128], index: 0, kind: input, shape index: {}]
  %s1 = inlined_call_operand.vmem [shape: f32[1,128], index: 1, kind: input, shape index: {}]
  %s2 = inlined_call_operand.vmem [shape: f32[1,128], index: 2, kind: input, shape index: {}]
  %s3 = inlined_call_operand.vmem [shape: bf16[128,128], index: 3, kind: input, shape index: {}]
  %s4 = inlined_call_operand.vmem [shape: bf16[128,128], index: 4, kind: input, shape index: {}]
  %s5 = inlined_call_operand.vmem [shape: f32[1,128], index: 5, kind: input, shape index: {}]
  %s6 = inlined_call_operand.vmem [shape: f32[16,128], index: 6, kind: output, shape index: {0}]
  %s7 = inlined_call_operand.vmem [shape: f32[1,2,128], index: 7, kind: output, shape index: {1}]
  %8 = xla_tuple %s6, %s7
  %s9 = sld [smem:[#allocation0]]
  $region42: #{vae_forward.14} parent=0
    _
  %s11 = ssub.s32 1, %s9
  %s12 = scalar_select 0, %s11, %s9
  // Predicated region
  $region2: #{vae_forward.14} parent=0 // pred_check
    _
  $region3: #{vae_forward.14} parent=0 // pred_check_branch
    %14 = sbr.rel (0) target = $region5
  $region4: #{vae_forward.14} parent=0 // pred_region
    _
  $region5: #{vae_forward.14} parent=0 // pred_fallthru
    _
  // Predicated region
  $region6: #{vae_forward.14} parent=0 // pred_check
    _
  $region7: #{vae_forward.14} parent=0 // pred_check_branch
    %16 = sbr.rel (0) target = $region9
  $region8: #{vae_forward.14} parent=0 // pred_region
    _
  $region9: #{vae_forward.14} parent=0 // pred_fallthru
    _
  // Predicated region
  $region10: #{vae_forward.14} parent=0 // pred_check
    _
  $region11: #{vae_forward.14} parent=0 // pred_check_branch
    %18 = sbr.rel (0) target = $region13
  $region12: #{vae_forward.14} parent=0 // pred_region
    _
  $region13: #{vae_forward.14} parent=0 // pred_fallthru
    _
  // Predicated region
  $region14: #{vae_forward.14} parent=0 // pred_check
    _
  $region15: #{vae_forward.14} parent=0 // pred_check_branch
    %20 = sbr.rel (0) target = $region17
  $region16: #{vae_forward.14} parent=0 // pred_region
    _
  $region17: #{vae_forward.14} parent=0 // pred_fallthru
    _
  // Predicated region
  $region18: #{vae_forward.14} parent=0 // pred_check
    _
  $region19: #{vae_forward.14} parent=0 // pred_check_branch
    %22 = sbr.rel (0) target = $region21
  $region20: #{vae_forward.14} parent=0 // pred_region
    _
  $region21: #{vae_forward.14} parent=0 // pred_fallthru
    _
  // Predicated region
  $region22: #{vae_forward.14} parent=0 // pred_check
    _
  $region23: #{vae_forward.14} parent=0 // pred_check_branch
    %24 = sbr.rel (0) target = $region25
  $region24: #{vae_forward.14} parent=0 // pred_region
    _
  $region25: #{vae_forward.14} parent=0 // pred_fallthru
    _
  %v26 = vld [vmem:[%s0] sm:$0xff]
  %v27 = vld [vmem:[%s0 + $0x8] sm:$0xff]
  %v28 = vld [vmem:[%s1] sm:$0x1]
  %v30 = vlaneseq
  %v31 = vshrl.u32 %v30, 7
  %v32 = vsub.s32 0, %v31
  %v33 = vrot.slane %v28, %v32
  %v35 = vmul.f32 %v26, %v33
  %v36 = vmul.f32 %v27, %v33
  %v37 = vld [vmem:[%s2] sm:$0x1]
  %v39 = vlaneseq
  %v40 = vshrl.u32 %v39, 7
  %v41 = vsub.s32 0, %v40
  %v42 = vrot.slane %v37, %v41
  %v44 = vadd.f32 %v35, %v42
  %v45 = vadd.f32 %v36, %v42
  %v46 = vlaneseq
  %v47 = vshrl.u32 %v46, 7
  %v48 = vadd.s32 %v47, 8
  %vm49 = vcmp.lt.s32.totalorder %v47, 0
  %v50 = vsub.s32 0, %v47
  %v51 = vsel %vm49, %v50, %v47
  %v52 = vshrl.u32 %v51, 3
  %v53 = vand.u32 %v51, 7
  %v54 = vsub.s32 0, %v53
  %v55 = vsel %vm49, %v54, %v53
  %vm56 = vcmp.lt.s32.totalorder %v48, 0
  %v57 = vsub.s32 0, %v48
  %v58 = vsel %vm56, %v57, %v48
  %v59 = vshrl.u32 %v58, 3
  %v60 = vand.u32 %v58, 7
  %v61 = vsub.s32 0, %v60
  %v62 = vsel %vm56, %v61, %v60
  %vm63 = vcmp.ne.s32.totalorder %v55, 0
  %vm64 = vcmp.ne.s32.totalorder %v62, 0
  %vm65 = vcmp.lt.s32.totalorder %v55, 0
  %vm66 = vcmp.lt.s32.totalorder %v62, 0
  %vm67 = vmand %vm65, %vm63
  %vm68 = vmand %vm66, %vm64
  %v69 = vadd.s32 %v55, 8
  %v70 = vadd.s32 %v62, 8
  %v71 = vsel %vm67, %v69, %v55
  %v72 = vsel %vm68, %v70, %v62
  %vm73 = vcmp.ne.s32.totalorder %v71, 7
  %vm74 = vcmp.ne.s32.totalorder %v72, 7
  %v75 = vsel %vm73, 1, 0
  %v76 = vsel %vm74, 1, 0
  %v77 = vcvt.s32.f32 %v75
  %v78 = vcvt.s32.f32 %v76
  %v79 = vrot.slane %v44, 1
  %v80 = vrot.slane %v45, 1
  %vm81 = vcmp.lt.s32.totalorder %v47, 7
  %v82 = vsel %vm81, %v79, %v80
  %v83 = vsel %vm81, %v80, %v79
  %v84 = vmul.f32 %v82, %v77
  %v85 = vmul.f32 %v83, %v78
  %v86 = vpack.c.bf16 %v45, %v44
  %v87 = vld [vmem:[%s3] sm:$0xf]
  %v88 = vld [vmem:[%s3 + $0x4] sm:$0xf]
  %v89 = vld [vmem:[%s3 + $0x8] sm:$0xf]
  %v90 = vld [vmem:[%s3 + $0xc] sm:$0xf]
  %v91 = vld [vmem:[%s3 + $0x10] sm:$0xf]
  %v92 = vld [vmem:[%s3 + $0x14] sm:$0xf]
  %v93 = vld [vmem:[%s3 + $0x18] sm:$0xf]
  %v94 = vld [vmem:[%s3 + $0x1c] sm:$0xf]
  %v95 = vld [vmem:[%s3 + $0x20] sm:$0xf]
  %v96 = vld [vmem:[%s3 + $0x24] sm:$0xf]
  %v97 = vld [vmem:[%s3 + $0x28] sm:$0xf]
  %v98 = vld [vmem:[%s3 + $0x2c] sm:$0xf]
  %v99 = vld [vmem:[%s3 + $0x30] sm:$0xf]
  %v100 = vld [vmem:[%s3 + $0x34] sm:$0xf]
  %v101 = vld [vmem:[%s3 + $0x38] sm:$0xf]
  %v102 = vld [vmem:[%s3 + $0x3c] sm:$0xf]
  %v103 = vpack.c.bf16 %v85, %v84
  %v104 = vld [vmem:[%s4] sm:$0xf]
  %v105 = vld [vmem:[%s4 + $0x4] sm:$0xf]
  %v106 = vld [vmem:[%s4 + $0x8] sm:$0xf]
  %v107 = vld [vmem:[%s4 + $0xc] sm:$0xf]
  %v108 = vld [vmem:[%s4 + $0x10] sm:$0xf]
  %v109 = vld [vmem:[%s4 + $0x14] sm:$0xf]
  %v110 = vld [vmem:[%s4 + $0x18] sm:$0xf]
  %v111 = vld [vmem:[%s4 + $0x1c] sm:$0xf]
  %v112 = vld [vmem:[%s4 + $0x20] sm:$0xf]
  %v113 = vld [vmem:[%s4 + $0x24] sm:$0xf]
  %v114 = vld [vmem:[%s4 + $0x28] sm:$0xf]
  %v115 = vld [vmem:[%s4 + $0x2c] sm:$0xf]
  %v116 = vld [vmem:[%s4 + $0x30] sm:$0xf]
  %v117 = vld [vmem:[%s4 + $0x34] sm:$0xf]
  %v118 = vld [vmem:[%s4 + $0x38] sm:$0xf]
  %v119 = vld [vmem:[%s4 + $0x3c] sm:$0xf]
  %v136 = vunpack.c.l.b16 %v104
  %v137 = vunpack.c.l.b16 %v105
  %v138 = vunpack.c.l.b16 %v106
  %v139 = vunpack.c.l.b16 %v107
  %v140 = vunpack.c.l.b16 %v108
  %v141 = vunpack.c.l.b16 %v109
  %v142 = vunpack.c.l.b16 %v110
  %v143 = vunpack.c.l.b16 %v111
  %v144 = vunpack.c.l.b16 %v112
  %v145 = vunpack.c.l.b16 %v113
  %v146 = vunpack.c.l.b16 %v114
  %v147 = vunpack.c.l.b16 %v115
  %v148 = vunpack.c.l.b16 %v116
  %v149 = vunpack.c.l.b16 %v117
  %v150 = vunpack.c.l.b16 %v118
  %v151 = vunpack.c.l.b16 %v119
  %v152 = vpack.c.b16 %v137, %v136
  %v153 = vpack.c.b16 %v139, %v138
  %v154 = vpack.c.b16 %v141, %v140
  %v155 = vpack.c.b16 %v143, %v142
  %v156 = vpack.c.b16 %v145, %v144
  %v157 = vpack.c.b16 %v147, %v146
  %v158 = vpack.c.b16 %v149, %v148
  %v159 = vpack.c.b16 %v151, %v150
  %168 = vmatprep.subr.bf16.mxu0 0
  %169 = vmatpush1.bf16.msra.mxu0 %v152
  %170 = vmatprep.subr.bf16.mxu0 0
  %171 = vmatpush1.bf16.msra.mxu0 %v153
  %172 = vmatprep.subr.bf16.mxu0 0
  %173 = vmatpush1.bf16.msra.mxu0 %v154
  %174 = vmatprep.subr.bf16.mxu0 0
  %175 = vmatpush1.bf16.msra.mxu0 %v155
  %176 = vmatprep.subr.bf16.mxu0 0
  %177 = vmatpush1.bf16.msra.mxu0 %v156
  %178 = vmatprep.subr.bf16.mxu0 0
  %179 = vmatpush1.bf16.msra.mxu0 %v157
  %180 = vmatprep.subr.bf16.mxu0 0
  %181 = vmatpush1.bf16.msra.mxu0 %v158
  %182 = vmatprep.subr.bf16.mxu0 0
  %183 = vmatpush1.bf16.msra.mxu0 %v159
  %184 = vmatprep.subr.bf16.mxu0 0
  %185 = vmatpush1.bf16.msra.mxu0 0
  %186 = vmatprep.subr.bf16.mxu0 0
  %187 = vmatpush1.bf16.msra.mxu0 0
  %188 = vmatprep.subr.bf16.mxu0 0
  %189 = vmatpush1.bf16.msra.mxu0 0
  %190 = vmatprep.subr.bf16.mxu0 0
  %191 = vmatpush1.bf16.msra.mxu0 0
  %192 = vmatprep.subr.bf16.mxu0 0
  %193 = vmatpush1.bf16.msra.mxu0 0
  %194 = vmatprep.subr.bf16.mxu0 0
  %195 = vmatpush1.bf16.msra.mxu0 0
  %196 = vmatprep.subr.bf16.mxu0 0
  %197 = vmatpush1.bf16.msra.mxu0 0
  %198 = vmatprep.subr.bf16.mxu0 0
  %199 = vmatpush1.bf16.msra.mxu0 0
  %200 = vmatprep.mubr.bf16.mxu0 0
  %201 = vmatmul.mubr.bf16.gmra.mrb[0].mxu0 %v103
  %v202 = vpop.f32.mrb[0].mxu0
  %v203 = vadd.f32 0.0, %v202
  %v204 = vpop.f32.mrb[0].mxu0
  %v205 = vpop.f32.mrb[0].mxu0
  %v206 = vadd.f32 0.0, %v205
  %v207 = vpop.f32.mrb[0].mxu0
  %208 = vdwg.mxu0
  %v225 = vunpack.c.l.b16 %v87
  %v226 = vunpack.c.l.b16 %v88
  %v227 = vunpack.c.l.b16 %v89
  %v228 = vunpack.c.l.b16 %v90
  %v229 = vunpack.c.l.b16 %v91
  %v230 = vunpack.c.l.b16 %v92
  %v231 = vunpack.c.l.b16 %v93
  %v232 = vunpack.c.l.b16 %v94
  %v233 = vunpack.c.l.b16 %v95
  %v234 = vunpack.c.l.b16 %v96
  %v235 = vunpack.c.l.b16 %v97
  %v236 = vunpack.c.l.b16 %v98
  %v237 = vunpack.c.l.b16 %v99
  %v238 = vunpack.c.l.b16 %v100
  %v239 = vunpack.c.l.b16 %v101
  %v240 = vunpack.c.l.b16 %v102
  %v241 = vpack.c.b16 %v226, %v225
  %v242 = vpack.c.b16 %v228, %v227
  %v243 = vpack.c.b16 %v230, %v229
  %v244 = vpack.c.b16 %v232, %v231
  %v245 = vpack.c.b16 %v234, %v233
  %v246 = vpack.c.b16 %v236, %v235
  %v247 = vpack.c.b16 %v238, %v237
  %v248 = vpack.c.b16 %v240, %v239
  %257 = vmatprep.subr.bf16.mxu0 0
  %258 = vmatpush1.bf16.msra.mxu0 %v241
  %259 = vmatprep.subr.bf16.mxu0 0
  %260 = vmatpush1.bf16.msra.mxu0 %v242
  %261 = vmatprep.subr.bf16.mxu0 0
  %262 = vmatpush1.bf16.msra.mxu0 %v243
  %263 = vmatprep.subr.bf16.mxu0 0
  %264 = vmatpush1.bf16.msra.mxu0 %v244
  %265 = vmatprep.subr.bf16.mxu0 0
  %266 = vmatpush1.bf16.msra.mxu0 %v245
  %267 = vmatprep.subr.bf16.mxu0 0
  %268 = vmatpush1.bf16.msra.mxu0 %v246
  %269 = vmatprep.subr.bf16.mxu0 0
  %270 = vmatpush1.bf16.msra.mxu0 %v247
  %271 = vmatprep.subr.bf16.mxu0 0
  %272 = vmatpush1.bf16.msra.mxu0 %v248
  %273 = vmatprep.subr.bf16.mxu0 0
  %274 = vmatpush1.bf16.msra.mxu0 0
  %275 = vmatprep.subr.bf16.mxu0 0
  %276 = vmatpush1.bf16.msra.mxu0 0
  %277 = vmatprep.subr.bf16.mxu0 0
  %278 = vmatpush1.bf16.msra.mxu0 0
  %279 = vmatprep.subr.bf16.mxu0 0
  %280 = vmatpush1.bf16.msra.mxu0 0
  %281 = vmatprep.subr.bf16.mxu0 0
  %282 = vmatpush1.bf16.msra.mxu0 0
  %283 = vmatprep.subr.bf16.mxu0 0
  %284 = vmatpush1.bf16.msra.mxu0 0
  %285 = vmatprep.subr.bf16.mxu0 0
  %286 = vmatpush1.bf16.msra.mxu0 0
  %287 = vmatprep.subr.bf16.mxu0 0
  %288 = vmatpush1.bf16.msra.mxu0 0
  %289 = vmatprep.mubr.bf16.mxu0 0
  %290 = vmatmul.mubr.bf16.gmra.mrb[0].mxu0 %v86
  %v291 = vpop.f32.mrb[0].mxu0
  %v292 = vadd.f32 %v203, %v291
  %v293 = vpop.f32.mrb[0].mxu0
  %v294 = vpop.f32.mrb[0].mxu0
  %v295 = vadd.f32 %v206, %v294
  %v296 = vpop.f32.mrb[0].mxu0
  %297 = vdwg.mxu0
  %v298 = vld [vmem:[%s5] sm:$0x1]
  %v300 = vlaneseq
  %v301 = vshrl.u32 %v300, 7
  %v302 = vsub.s32 0, %v301
  %v303 = vrot.slane %v298, %v302
  %v305 = vadd.f32 %v292, %v303
  %v306 = vadd.f32 %v295, %v303
  %vm307 = vcmp.gt.f32.partialorder %v305, 0.0
  %vm308 = vcmp.gt.f32.partialorder %v306, 0.0
  %v309 = vmin.f32 %v305, 0.0
  %v310 = vmin.f32 %v306, 0.0
  %v311 = vmul.f32 %v309, 1.442695
  %v312 = vpow.pop %v311
  %v313 = vmul.f32 %v310, 1.442695
  %v314 = vpow.pop %v313
  %v315 = vsub.f32 %v312, 1.0
  %v316 = vsub.f32 %v314, 1.0
  %v317 = vsel %vm307, %v305, %v315
  %v318 = vsel %vm308, %v306, %v316
  %319 = vst [vmem:[%s6] sm:$0xff] %v317
  %320 = vst [vmem:[%s6 + $0x8] sm:$0xff] %v318
  %v321 = vadd.f32 %v317, %v318
  %v322 = vrot.slane %v321, 4
  %v323 = vadd.f32 %v321, %v322
  %v324 = vrot.slane %v323, 2
  %v325 = vadd.f32 %v323, %v324
  %v326 = vrot.slane %v325, 1
  %v327 = vadd.f32 %v325, %v326
  %v328 = vmul.f32 %v317, %v317
  %v329 = vmul.f32 %v318, %v318
  %v330 = vadd.f32 %v328, %v329
  %v331 = vrot.slane %v330, 4
  %v332 = vadd.f32 %v330, %v331
  %v333 = vrot.slane %v332, 2
  %v334 = vadd.f32 %v332, %v333
  %v335 = vrot.slane %v334, 1
  %v336 = vadd.f32 %v334, %v335
  %vm337 = vcmask 1040384
  %v338 = vsel %vm337, %v327, %v336
  %339 = vst [vmem:[%s7] sm:$0x3] %v338
  // Predicated region
  $region26: #{vae_forward.14} parent=0 // pred_check
    _
  $region27: #{vae_forward.14} parent=0 // pred_check_branch
    %341 = sbr.rel (0) target = $region29
  $region28: #{vae_forward.14} parent=0 // pred_region
    _
  $region29: #{vae_forward.14} parent=0 // pred_fallthru
    _
  // Predicated region
  $region30: #{vae_forward.14} parent=0 // pred_check
    _
  $region31: #{vae_forward.14} parent=0 // pred_check_branch
    %343 = sbr.rel (0) target = $region33
  $region32: #{vae_forward.14} parent=0 // pred_region
    _
  $region33: #{vae_forward.14} parent=0 // pred_fallthru
    _
  // Predicated region
  $region34: #{vae_forward.14} parent=0 // pred_check
    _
  $region35: #{vae_forward.14} parent=0 // pred_check_branch
    %345 = sbr.rel (0) target = $region37
  $region36: #{vae_forward.14} parent=0 // pred_region
    _
  $region37: #{vae_forward.14} parent=0 // pred_fallthru
    _
  // Predicated region
  $region38: #{vae_forward.14} parent=0 // pred_check
    _
  $region39: #{vae_forward.14} parent=0 // pred_check_branch
    %347 = sbr.rel (0) target = $region41
  $region40: #{vae_forward.14} parent=0 // pred_region
    _
  $region41: #{vae_forward.14} parent=0 // pred_fallthru
    _

// kernel: vae_forward.16
$region0: #{vae_forward.16}
  #allocation0 [shape = 'u32[]', space=smem, size = 0x4, offset = 0x4, fixed_abs, tag = 'smem constant byte address 0x4 - core index']
  #allocation1 [shape = 'u32[144,128]{1,0:T(1,128)}', space=vmem, size = 0x12000, scoped, tag = 'internal scratch']
  %s0 = inlined_call_operand.vmem [shape: f32[64,32], index: 0, kind: input, shape index: {}]
  %s1 = inlined_call_operand.vmem [shape: f32[1,32], index: 1, kind: input, shape index: {}]
  %s2 = inlined_call_operand.vmem [shape: f32[1,32], index: 2, kind: input, shape index: {}]
  %s3 = inlined_call_operand.vmem [shape: bf16[32,32], index: 3, kind: input, shape index: {}]
  %s4 = inlined_call_operand.vmem [shape: bf16[32,32], index: 4, kind: input, shape index: {}]
  %s5 = inlined_call_operand.vmem [shape: f32[1,32], index: 5, kind: input, shape index: {}]
  %s6 = inlined_call_operand.vmem [shape: f32[64,32], index: 6, kind: output, shape index: {0}]
  %s7 = inlined_call_operand.vmem [shape: f32[1,2,32], index: 7, kind: output, shape index: {1}]
  %8 = xla_tuple %s6, %s7
  %s9 = sld [smem:[#allocation0]]
  $region42: #{vae_forward.16} parent=0
    _
  %s11 = ssub.s32 1, %s9
  %s12 = scalar_select 0, %s11, %s9
  // Predicated region
  $region2: #{vae_forward.16} parent=0 // pred_check
    _
  $region3: #{vae_forward.16} parent=0 // pred_check_branch
    %14 = sbr.rel (0) target = $region5
  $region4: #{vae_forward.16} parent=0 // pred_region
    _
  $region5: #{vae_forward.16} parent=0 // pred_fallthru
    _
  // Predicated region
  $region6: #{vae_forward.16} parent=0 // pred_check
    _
  $region7: #{vae_forward.16} parent=0 // pred_check_branch
    %16 = sbr.rel (0) target = $region9
  $region8: #{vae_forward.16} parent=0 // pred_region
    _
  $region9: #{vae_forward.16} parent=0 // pred_fallthru
    _
  // Predicated region
  $region10: #{vae_forward.16} parent=0 // pred_check
    _
  $region11: #{vae_forward.16} parent=0 // pred_check_branch
    %18 = sbr.rel (0) target = $region13
  $region12: #{vae_forward.16} parent=0 // pred_region
    _
  $region13: #{vae_forward.16} parent=0 // pred_fallthru
    _
  // Predicated region
  $region14: #{vae_forward.16} parent=0 // pred_check
    _
  $region15: #{vae_forward.16} parent=0 // pred_check_branch
    %20 = sbr.rel (0) target = $region17
  $region16: #{vae_forward.16} parent=0 // pred_region
    _
  $region17: #{vae_forward.16} parent=0 // pred_fallthru
    _
  // Predicated region
  $region18: #{vae_forward.16} parent=0 // pred_check
    _
  $region19: #{vae_forward.16} parent=0 // pred_check_branch
    %22 = sbr.rel (0) target = $region21
  $region20: #{vae_forward.16} parent=0 // pred_region
    _
  $region21: #{vae_forward.16} parent=0 // pred_fallthru
    _
  // Predicated region
  $region22: #{vae_forward.16} parent=0 // pred_check
    _
  $region23: #{vae_forward.16} parent=0 // pred_check_branch
    %24 = sbr.rel (0) target = $region25
  $region24: #{vae_forward.16} parent=0 // pred_region
    _
  $region25: #{vae_forward.16} parent=0 // pred_fallthru
    _
  %v26 = vld [vmem:[%s0] sm:$0xff]
  %v27 = vld [vmem:[%s0 + $0x8] sm:$0xff]
  %v28 = vld [vmem:[%s0 + $0x10] sm:$0xff]
  %v29 = vld [vmem:[%s0 + $0x18] sm:$0xff]
  %v30 = vld [vmem:[%s0 + $0x20] sm:$0xff]
  %v31 = vld [vmem:[%s0 + $0x28] sm:$0xff]
  %v32 = vld [vmem:[%s0 + $0x30] sm:$0xff]
  %v33 = vld [vmem:[%s0 + $0x38] sm:$0xff]
  %v34 = vld [vmem:[%s1] sm:$0x1]
  %v36 = vlaneseq
  %v37 = vshrl.u32 %v36, 7
  %v38 = vsub.s32 0, %v37
  %v39 = vrot.slane %v34, %v38
  %v41 = vmul.f32 %v26, %v39
  %v42 = vmul.f32 %v27, %v39
  %v43 = vmul.f32 %v28, %v39
  %v44 = vmul.f32 %v29, %v39
  %v45 = vmul.f32 %v30, %v39
  %v46 = vmul.f32 %v31, %v39
  %v47 = vmul.f32 %v32, %v39
  %v48 = vmul.f32 %v33, %v39
  %v49 = vld [vmem:[%s2] sm:$0x1]
  %v51 = vlaneseq
  %v52 = vshrl.u32 %v51, 7
  %v53 = vsub.s32 0, %v52
  %v54 = vrot.slane %v49, %v53
  %v56 = vadd.f32 %v41, %v54
  %v57 = vadd.f32 %v42, %v54
  %v58 = vadd.f32 %v43, %v54
  %v59 = vadd.f32 %v44, %v54
  %v60 = vadd.f32 %v45, %v54
  %v61 = vadd.f32 %v46, %v54
  %v62 = vadd.f32 %v47, %v54
  %v63 = vadd.f32 %v48, %v54
  %v64 = vlaneseq
  %v65 = vshrl.u32 %v64, 7
  %v66 = vadd.s32 %v65, 8
  %v67 = vadd.s32 %v65, 16
  %v68 = vadd.s32 %v65, 24
  %v69 = vadd.s32 %v65, 32
  %v70 = vadd.s32 %v65, 40
  %v71 = vadd.s32 %v65, 48
  %v72 = vadd.s32 %v65, 56
  %vm73 = vcmp.lt.s32.totalorder %v65, 0
  %v74 = vsub.s32 0, %v65
  %v75 = vsel %vm73, %v74, %v65
  %v76 = vshrl.u32 %v75, 5
  %v77 = vand.u32 %v75, 31
  %v78 = vsub.s32 0, %v77
  %v79 = vsel %vm73, %v78, %v77
  %vm80 = vcmp.lt.s32.totalorder %v66, 0
  %v81 = vsub.s32 0, %v66
  %v82 = vsel %vm80, %v81, %v66
  %v83 = vshrl.u32 %v82, 5
  %v84 = vand.u32 %v82, 31
  %v85 = vsub.s32 0, %v84
  %v86 = vsel %vm80, %v85, %v84
  %vm87 = vcmp.lt.s32.totalorder %v67, 0
  %v88 = vsub.s32 0, %v67
  %v89 = vsel %vm87, %v88, %v67
  %v90 = vshrl.u32 %v89, 5
  %v91 = vand.u32 %v89, 31
  %v92 = vsub.s32 0, %v91
  %v93 = vsel %vm87, %v92, %v91
  %vm94 = vcmp.lt.s32.totalorder %v68, 0
  %v95 = vsub.s32 0, %v68
  %v96 = vsel %vm94, %v95, %v68
  %v97 = vshrl.u32 %v96, 5
  %v98 = vand.u32 %v96, 31
  %v99 = vsub.s32 0, %v98
  %v100 = vsel %vm94, %v99, %v98
  %vm101 = vcmp.lt.s32.totalorder %v69, 0
  %v102 = vsub.s32 0, %v69
  %v103 = vsel %vm101, %v102, %v69
  %v104 = vshrl.u32 %v103, 5
  %v105 = vand.u32 %v103, 31
  %v106 = vsub.s32 0, %v105
  %v107 = vsel %vm101, %v106, %v105
  %vm108 = vcmp.lt.s32.totalorder %v70, 0
  %v109 = vsub.s32 0, %v70
  %v110 = vsel %vm108, %v109, %v70
  %v111 = vshrl.u32 %v110, 5
  %v112 = vand.u32 %v110, 31
  %v113 = vsub.s32 0, %v112
  %v114 = vsel %vm108, %v113, %v112
  %vm115 = vcmp.lt.s32.totalorder %v71, 0
  %v116 = vsub.s32 0, %v71
  %v117 = vsel %vm115, %v116, %v71
  %v118 = vshrl.u32 %v117, 5
  %v119 = vand.u32 %v117, 31
  %v120 = vsub.s32 0, %v119
  %v121 = vsel %vm115, %v120, %v119
  %vm122 = vcmp.lt.s32.totalorder %v72, 0
  %v123 = vsub.s32 0, %v72
  %v124 = vsel %vm122, %v123, %v72
  %v125 = vshrl.u32 %v124, 5
  %v126 = vand.u32 %v124, 31
  %v127 = vsub.s32 0, %v126
  %v128 = vsel %vm122, %v127, %v126
  %vm129 = vcmp.ne.s32.totalorder %v79, 0
  %vm130 = vcmp.ne.s32.totalorder %v86, 0
  %vm131 = vcmp.ne.s32.totalorder %v93, 0
  %vm132 = vcmp.ne.s32.totalorder %v100, 0
  %vm133 = vcmp.ne.s32.totalorder %v107, 0
  %vm134 = vcmp.ne.s32.totalorder %v114, 0
  %vm135 = vcmp.ne.s32.totalorder %v121, 0
  %vm136 = vcmp.ne.s32.totalorder %v128, 0
  %vm137 = vcmp.lt.s32.totalorder %v79, 0
  %vm138 = vcmp.lt.s32.totalorder %v86, 0
  %vm139 = vcmp.lt.s32.totalorder %v93, 0
  %vm140 = vcmp.lt.s32.totalorder %v100, 0
  %vm141 = vcmp.lt.s32.totalorder %v107, 0
  %vm142 = vcmp.lt.s32.totalorder %v114, 0
  %vm143 = vcmp.lt.s32.totalorder %v121, 0
  %vm144 = vcmp.lt.s32.totalorder %v128, 0
  %vm145 = vmand %vm137, %vm129
  %vm146 = vmand %vm138, %vm130
  %vm147 = vmand %vm139, %vm131
  %vm148 = vmand %vm140, %vm132
  %vm149 = vmand %vm141, %vm133
  %vm150 = vmand %vm142, %vm134
  %vm151 = vmand %vm143, %vm135
  %vm152 = vmand %vm144, %vm136
  %v153 = vadd.s32 %v79, 32
  %v154 = vadd.s32 %v86, 32
  %v155 = vadd.s32 %v93, 32
  %v156 = vadd.s32 %v100, 32
  %v157 = vadd.s32 %v107, 32
  %v158 = vadd.s32 %v114, 32
  %v159 = vadd.s32 %v121, 32
  %v160 = vadd.s32 %v128, 32
  %v161 = vsel %vm145, %v153, %v79
  %v162 = vsel %vm146, %v154, %v86
  %v163 = vsel %vm147, %v155, %v93
  %v164 = vsel %vm148, %v156, %v100
  %v165 = vsel %vm149, %v157, %v107
  %v166 = vsel %vm150, %v158, %v114
  %v167 = vsel %vm151, %v159, %v121
  %v168 = vsel %vm152, %v160, %v128
  %vm169 = vcmp.ne.s32.totalorder %v161, 31
  %vm170 = vcmp.ne.s32.totalorder %v162, 31
  %vm171 = vcmp.ne.s32.totalorder %v163, 31
  %vm172 = vcmp.ne.s32.totalorder %v164, 31
  %vm173 = vcmp.ne.s32.totalorder %v165, 31
  %vm174 = vcmp.ne.s32.totalorder %v166, 31
  %vm175 = vcmp.ne.s32.totalorder %v167, 31
  %vm176 = vcmp.ne.s32.totalorder %v168, 31
  %v177 = vsel %vm169, 1, 0
  %v178 = vsel %vm170, 1, 0
  %v179 = vsel %vm171, 1, 0
  %v180 = vsel %vm172, 1, 0
  %v181 = vsel %vm173, 1, 0
  %v182 = vsel %vm174, 1, 0
  %v183 = vsel %vm175, 1, 0
  %v184 = vsel %vm176, 1, 0
  %v185 = vcvt.s32.f32 %v177
  %v186 = vcvt.s32.f32 %v178
  %v187 = vcvt.s32.f32 %v179
  %v188 = vcvt.s32.f32 %v180
  %v189 = vcvt.s32.f32 %v181
  %v190 = vcvt.s32.f32 %v182
  %v191 = vcvt.s32.f32 %v183
  %v192 = vcvt.s32.f32 %v184
  %v193 = vrot.slane %v56, 1
  %v194 = vrot.slane %v57, 1
  %v195 = vrot.slane %v58, 1
  %v196 = vrot.slane %v59, 1
  %v197 = vrot.slane %v60, 1
  %v198 = vrot.slane %v61, 1
  %v199 = vrot.slane %v62, 1
  %v200 = vrot.slane %v63, 1
  %vm201 = vcmp.lt.s32.totalorder %v65, 7
  %v202 = vsel %vm201, %v199, %v200
  %v203 = vsel %vm201, %v198, %v199
  %v204 = vsel %vm201, %v197, %v198
  %v205 = vsel %vm201, %v196, %v197
  %v206 = vsel %vm201, %v195, %v196
  %v207 = vsel %vm201, %v194, %v195
  %v208 = vsel %vm201, %v193, %v194
  %v209 = vsel %vm201, %v200, %v193
  %v210 = vmul.f32 %v208, %v185
  %v211 = vmul.f32 %v207, %v186
  %v212 = vmul.f32 %v206, %v187
  %v213 = vmul.f32 %v205, %v188
  %v214 = vmul.f32 %v204, %v189
  %v215 = vmul.f32 %v203, %v190
  %v216 = vmul.f32 %v202, %v191
  %v217 = vmul.f32 %v209, %v192
  %v218 = vpack.c.bf16 %v57, %v56
  %v219 = vpack.c.bf16 %v59, %v58
  %v220 = vpack.c.bf16 %v61, %v60
  %v221 = vpack.c.bf16 %v63, %v62
  %v222 = vld [vmem:[%s3] sm:$0xf]
  %v223 = vld [vmem:[%s3 + $0x4] sm:$0xf]
  %v224 = vld [vmem:[%s3 + $0x8] sm:$0xf]
  %v225 = vld [vmem:[%s3 + $0xc] sm:$0xf]
  %v226 = vpack.c.bf16 %v211, %v210
  %v227 = vpack.c.bf16 %v213, %v212
  %v228 = vpack.c.bf16 %v215, %v214
  %v229 = vpack.c.bf16 %v217, %v216
  %v230 = vld [vmem:[%s4] sm:$0xf]
  %v231 = vld [vmem:[%s4 + $0x4] sm:$0xf]
  %v232 = vld [vmem:[%s4 + $0x8] sm:$0xf]
  %v233 = vld [vmem:[%s4 + $0xc] sm:$0xf]
  %v238 = vunpack.c.l.b16 %v230
  %v239 = vunpack.c.l.b16 %v231
  %v240 = vunpack.c.l.b16 %v232
  %v241 = vunpack.c.l.b16 %v233
  %v242 = vpack.c.b16 %v239, %v238
  %v243 = vpack.c.b16 %v241, %v240
  %vm246 = vcmask 261120
  %v248 = vsel %vm246, %v226, 0
  %v251 = vsel %vm246, %v227, 0
  %v254 = vsel %vm246, %v228, 0
  %v257 = vsel %vm246, %v229, 0
  %259 = vmatprep.subr.bf16.mxu0 0
  %260 = vmatpush1.bf16.msra.mxu0 %v242
  %261 = vmatprep.subr.bf16.mxu0 0
  %262 = vmatpush1.bf16.msra.mxu0 %v243
  %263 = vmatprep.subr.bf16.mxu0 0
  %264 = vmatpush1.bf16.msra.mxu0 0
  %265 = vmatprep.subr.bf16.mxu0 0
  %266 = vmatpush1.bf16.msra.mxu0 0
  %267 = vmatprep.subr.bf16.mxu0 0
  %268 = vmatpush1.bf16.msra.mxu0 0
  %269 = vmatprep.subr.bf16.mxu0 0
  %270 = vmatpush1.bf16.msra.mxu0 0
  %271 = vmatprep.subr.bf16.mxu0 0
  %272 = vmatpush1.bf16.msra.mxu0 0
  %273 = vmatprep.subr.bf16.mxu0 0
  %274 = vmatpush1.bf16.msra.mxu0 0
  %275 = vmatprep.subr.bf16.mxu0 0
  %276 = vmatpush1.bf16.msra.mxu0 0
  %277 = vmatprep.subr.bf16.mxu0 0
  %278 = vmatpush1.bf16.msra.mxu0 0
  %279 = vmatprep.subr.bf16.mxu0 0
  %280 = vmatpush1.bf16.msra.mxu0 0
  %281 = vmatprep.subr.bf16.mxu0 0
  %282 = vmatpush1.bf16.msra.mxu0 0
  %283 = vmatprep.subr.bf16.mxu0 0
  %284 = vmatpush1.bf16.msra.mxu0 0
  %285 = vmatprep.subr.bf16.mxu0 0
  %286 = vmatpush1.bf16.msra.mxu0 0
  %287 = vmatprep.subr.bf16.mxu0 0
  %288 = vmatpush1.bf16.msra.mxu0 0
  %289 = vmatprep.subr.bf16.mxu0 0
  %290 = vmatpush1.bf16.msra.mxu0 0
  %291 = vmatprep.mubr.bf16.mxu0 0
  %292 = vmatmul.mubr.bf16.gmra.mrb[0].mxu0 %v248
  %v293 = vpop.f32.mrb[0].mxu0
  %v294 = vadd.f32 0.0, %v293
  %v295 = vpop.f32.mrb[0].mxu0
  %v296 = vpop.f32.mrb[0].mxu0
  %v297 = vadd.f32 0.0, %v296
  %v298 = vpop.f32.mrb[0].mxu0
  %299 = vmatprep.mubr.bf16.mxu0 0
  %300 = vmatmul.mubr.bf16.gmra.mrb[0].mxu0 %v251
  %v301 = vpop.f32.mrb[0].mxu0
  %v302 = vadd.f32 0.0, %v301
  %v303 = vpop.f32.mrb[0].mxu0
  %v304 = vpop.f32.mrb[0].mxu0
  %v305 = vadd.f32 0.0, %v304
  %v306 = vpop.f32.mrb[0].mxu0
  %307 = vmatprep.mubr.bf16.mxu0 0
  %308 = vmatmul.mubr.bf16.gmra.mrb[0].mxu0 %v254
  %v309 = vpop.f32.mrb[0].mxu0
  %v310 = vadd.f32 0.0, %v309
  %v311 = vpop.f32.mrb[0].mxu0
  %v312 = vpop.f32.mrb[0].mxu0
  %v313 = vadd.f32 0.0, %v312
  %v314 = vpop.f32.mrb[0].mxu0
  %315 = vmatprep.mubr.bf16.mxu0 0
  %316 = vmatmul.mubr.bf16.gmra.mrb[0].mxu0 %v257
  %v317 = vpop.f32.mrb[0].mxu0
  %v318 = vadd.f32 0.0, %v317
  %v319 = vpop.f32.mrb[0].mxu0
  %v320 = vpop.f32.mrb[0].mxu0
  %v321 = vadd.f32 0.0, %v320
  %v322 = vpop.f32.mrb[0].mxu0
  %323 = vdwg.mxu0
  %v328 = vunpack.c.l.b16 %v222
  %v329 = vunpack.c.l.b16 %v223
  %v330 = vunpack.c.l.b16 %v224
  %v331 = vunpack.c.l.b16 %v225
  %v332 = vpack.c.b16 %v329, %v328
  %v333 = vpack.c.b16 %v331, %v330
  %v337 = vsel %vm246, %v218, 0
  %v340 = vsel %vm246, %v219, 0
  %v343 = vsel %vm246, %v220, 0
  %v346 = vsel %vm246, %v221, 0
  %348 = vmatprep.subr.bf16.mxu0 0
  %349 = vmatpush1.bf16.msra.mxu0 %v332
  %350 = vmatprep.subr.bf16.mxu0 0
  %351 = vmatpush1.bf16.msra.mxu0 %v333
  %352 = vmatprep.subr.bf16.mxu0 0
  %353 = vmatpush1.bf16.msra.mxu0 0
  %354 = vmatprep.subr.bf16.mxu0 0
  %355 = vmatpush1.bf16.msra.mxu0 0
  %356 = vmatprep.subr.bf16.mxu0 0
  %357 = vmatpush1.bf16.msra.mxu0 0
  %358 = vmatprep.subr.bf16.mxu0 0
  %359 = vmatpush1.bf16.msra.mxu0 0
  %360 = vmatprep.subr.bf16.mxu0 0
  %361 = vmatpush1.bf16.msra.mxu0 0
  %362 = vmatprep.subr.bf16.mxu0 0
  %363 = vmatpush1.bf16.msra.mxu0 0
  %364 = vmatprep.subr.bf16.mxu0 0
  %365 = vmatpush1.bf16.msra.mxu0 0
  %366 = vmatprep.subr.bf16.mxu0 0
  %367 = vmatpush1.bf16.msra.mxu0 0
  %368 = vmatprep.subr.bf16.mxu0 0
  %369 = vmatpush1.bf16.msra.mxu0 0
  %370 = vmatprep.subr.bf16.mxu0 0
  %371 = vmatpush1.bf16.msra.mxu0 0
  %372 = vmatprep.subr.bf16.mxu0 0
  %373 = vmatpush1.bf16.msra.mxu0 0
  %374 = vmatprep.subr.bf16.mxu0 0
  %375 = vmatpush1.bf16.msra.mxu0 0
  %376 = vmatprep.subr.bf16.mxu0 0
  %377 = vmatpush1.bf16.msra.mxu0 0
  %378 = vmatprep.subr.bf16.mxu0 0
  %379 = vmatpush1.bf16.msra.mxu0 0
  %380 = vmatprep.mubr.bf16.mxu0 0
  %381 = vmatmul.mubr.bf16.gmra.mrb[0].mxu0 %v337
  %v382 = vpop.f32.mrb[0].mxu0
  %v383 = vadd.f32 %v294, %v382
  %v384 = vpop.f32.mrb[0].mxu0
  %v385 = vpop.f32.mrb[0].mxu0
  %v386 = vadd.f32 %v297, %v385
  %v387 = vpop.f32.mrb[0].mxu0
  %388 = vmatprep.mubr.bf16.mxu0 0
  %389 = vmatmul.mubr.bf16.gmra.mrb[0].mxu0 %v340
  %v390 = vpop.f32.mrb[0].mxu0
  %v391 = vadd.f32 %v302, %v390
  %v392 = vpop.f32.mrb[0].mxu0
  %v393 = vpop.f32.mrb[0].mxu0
  %v394 = vadd.f32 %v305, %v393
  %v395 = vpop.f32.mrb[0].mxu0
  %396 = vmatprep.mubr.bf16.mxu0 0
  %397 = vmatmul.mubr.bf16.gmra.mrb[0].mxu0 %v343
  %v398 = vpop.f32.mrb[0].mxu0
  %v399 = vadd.f32 %v310, %v398
  %v400 = vpop.f32.mrb[0].mxu0
  %v401 = vpop.f32.mrb[0].mxu0
  %v402 = vadd.f32 %v313, %v401
  %v403 = vpop.f32.mrb[0].mxu0
  %404 = vmatprep.mubr.bf16.mxu0 0
  %405 = vmatmul.mubr.bf16.gmra.mrb[0].mxu0 %v346
  %v406 = vpop.f32.mrb[0].mxu0
  %v407 = vadd.f32 %v318, %v406
  %v408 = vpop.f32.mrb[0].mxu0
  %v409 = vpop.f32.mrb[0].mxu0
  %v410 = vadd.f32 %v321, %v409
  %v411 = vpop.f32.mrb[0].mxu0
  %412 = vdwg.mxu0
  %v413 = vld [vmem:[%s5] sm:$0x1]
  %v415 = vlaneseq
  %v416 = vshrl.u32 %v415, 7
  %v417 = vsub.s32 0, %v416
  %v418 = vrot.slane %v413, %v417
  %v420 = vadd.f32 %v383, %v418
  %v421 = vadd.f32 %v386, %v418
  %v422 = vadd.f32 %v391, %v418
  %v423 = vadd.f32 %v394, %v418
  %v424 = vadd.f32 %v399, %v418
  %v425 = vadd.f32 %v402, %v418
  %v426 = vadd.f32 %v407, %v418
  %v427 = vadd.f32 %v410, %v418
  %vm428 = vcmp.gt.f32.partialorder %v420, 0.0
  %vm429 = vcmp.gt.f32.partialorder %v421, 0.0
  %vm430 = vcmp.gt.f32.partialorder %v422, 0.0
  %vm431 = vcmp.gt.f32.partialorder %v423, 0.0
  %vm432 = vcmp.gt.f32.partialorder %v424, 0.0
  %vm433 = vcmp.gt.f32.partialorder %v425, 0.0
  %vm434 = vcmp.gt.f32.partialorder %v426, 0.0
  %vm435 = vcmp.gt.f32.partialorder %v427, 0.0
  %v436 = vmin.f32 %v420, 0.0
  %v437 = vmin.f32 %v421, 0.0
  %v438 = vmin.f32 %v422, 0.0
  %v439 = vmin.f32 %v423, 0.0
  %v440 = vmin.f32 %v424, 0.0
  %v441 = vmin.f32 %v425, 0.0
  %v442 = vmin.f32 %v426, 0.0
  %v443 = vmin.f32 %v427, 0.0
  %v444 = vmul.f32 %v436, 1.442695
  %v445 = vpow.pop %v444
  %v446 = vmul.f32 %v437, 1.442695
  %v447 = vpow.pop %v446
  %v448 = vmul.f32 %v438, 1.442695
  %v449 = vpow.pop %v448
  %v450 = vmul.f32 %v439, 1.442695
  %v451 = vpow.pop %v450
  %v452 = vmul.f32 %v440, 1.442695
  %v453 = vpow.pop %v452
  %v454 = vmul.f32 %v441, 1.442695
  %v455 = vpow.pop %v454
  %v456 = vmul.f32 %v442, 1.442695
  %v457 = vpow.pop %v456
  %v458 = vmul.f32 %v443, 1.442695
  %v459 = vpow.pop %v458
  %v460 = vsub.f32 %v445, 1.0
  %v461 = vsub.f32 %v447, 1.0
  %v462 = vsub.f32 %v449, 1.0
  %v463 = vsub.f32 %v451, 1.0
  %v464 = vsub.f32 %v453, 1.0
  %v465 = vsub.f32 %v455, 1.0
  %v466 = vsub.f32 %v457, 1.0
  %v467 = vsub.f32 %v459, 1.0
  %v468 = vsel %vm428, %v420, %v460
  %v469 = vsel %vm429, %v421, %v461
  %v470 = vsel %vm430, %v422, %v462
  %v471 = vsel %vm431, %v423, %v463
  %v472 = vsel %vm432, %v424, %v464
  %v473 = vsel %vm433, %v425, %v465
  %v474 = vsel %vm434, %v426, %v466
  %v475 = vsel %vm435, %v427, %v467
  %476 = vst.msk [vmem:[%s6] sm:$0xff] %vm246, %v468
  %477 = vst.msk [vmem:[%s6 + $0x8] sm:$0xff] %vm246, %v469
  %478 = vst.msk [vmem:[%s6 + $0x10] sm:$0xff] %vm246, %v470
  %479 = vst.msk [vmem:[%s6 + $0x18] sm:$0xff] %vm246, %v471
  %480 = vst.msk [vmem:[%s6 + $0x20] sm:$0xff] %vm246, %v472
  %481 = vst.msk [vmem:[%s6 + $0x28] sm:$0xff] %vm246, %v473
  %482 = vst.msk [vmem:[%s6 + $0x30] sm:$0xff] %vm246, %v474
  %483 = vst.msk [vmem:[%s6 + $0x38] sm:$0xff] %vm246, %v475
  %v484 = vsel %vm246, %v468, 0.0
  %v485 = vsel %vm246, %v469, 0.0
  %v486 = vadd.f32 %v484, %v485
  %v487 = vsel %vm246, %v470, 0.0
  %v488 = vadd.f32 %v486, %v487
  %v489 = vsel %vm246, %v471, 0.0
  %v490 = vadd.f32 %v488, %v489
  %v491 = vsel %vm246, %v472, 0.0
  %v492 = vadd.f32 %v490, %v491
  %v493 = vsel %vm246, %v473, 0.0
  %v494 = vadd.f32 %v492, %v493
  %v495 = vsel %vm246, %v474, 0.0
  %v496 = vadd.f32 %v494, %v495
  %v497 = vsel %vm246, %v475, 0.0
  %v498 = vadd.f32 %v496, %v497
  %v499 = vrot.slane %v498, 4
  %v500 = vadd.f32 %v498, %v499
  %v501 = vrot.slane %v500, 2
  %v502 = vadd.f32 %v500, %v501
  %v503 = vrot.slane %v502, 1
  %v504 = vadd.f32 %v502, %v503
  %v505 = vmul.f32 %v468, %v468
  %v506 = vmul.f32 %v469, %v469
  %v507 = vmul.f32 %v470, %v470
  %v508 = vmul.f32 %v471, %v471
  %v509 = vmul.f32 %v472, %v472
  %v510 = vmul.f32 %v473, %v473
  %v511 = vmul.f32 %v474, %v474
  %v512 = vmul.f32 %v475, %v475
  %v513 = vsel %vm246, %v505, 0.0
  %v514 = vsel %vm246, %v506, 0.0
  %v515 = vadd.f32 %v513, %v514
  %v516 = vsel %vm246, %v507, 0.0
  %v517 = vadd.f32 %v515, %v516
  %v518 = vsel %vm246, %v508, 0.0
  %v519 = vadd.f32 %v517, %v518
  %v520 = vsel %vm246, %v509, 0.0
  %v521 = vadd.f32 %v519, %v520
  %v522 = vsel %vm246, %v510, 0.0
  %v523 = vadd.f32 %v521, %v522
  %v524 = vsel %vm246, %v511, 0.0
  %v525 = vadd.f32 %v523, %v524
  %v526 = vsel %vm246, %v512, 0.0
  %v527 = vadd.f32 %v525, %v526
  %v528 = vrot.slane %v527, 4
  %v529 = vadd.f32 %v527, %v528
  %v530 = vrot.slane %v529, 2
  %v531 = vadd.f32 %v529, %v530
  %v532 = vrot.slane %v531, 1
  %v533 = vadd.f32 %v531, %v532
  %vm534 = vcmask 1040384
  %v535 = vsel %vm534, %v504, %v533
  %vm536 = vcmask 254976
  %537 = vst.msk [vmem:[%s7] sm:$0x3] %vm536, %v535
  // Predicated region
  $region26: #{vae_forward.16} parent=0 // pred_check
    _
  $region27: #{vae_forward.16} parent=0 // pred_check_branch
    %539 = sbr.rel (0) target = $region29
  $region28: #{vae_forward.16} parent=0 // pred_region
    _
  $region29: #{vae_forward.16} parent=0 // pred_fallthru
    _
  // Predicated region
  $region30: #{vae_forward.16} parent=0 // pred_check
    _
  $region31: #{vae_forward.16} parent=0 // pred_check_branch
    %541 = sbr.rel (0) target = $region33
  $region32: #{vae_forward.16} parent=0 // pred_region
    _
  $region33: #{vae_forward.16} parent=0 // pred_fallthru
    _
  // Predicated region
  $region34: #{vae_forward.16} parent=0 // pred_check
    _
  $region35: #{vae_forward.16} parent=0 // pred_check_branch
    %543 = sbr.rel (0) target = $region37
  $region36: #{vae_forward.16} parent=0 // pred_region
    _
  $region37: #{vae_forward.16} parent=0 // pred_fallthru
    _
  // Predicated region
  $region38: #{vae_forward.16} parent=0 // pred_check
    _
  $region39: #{vae_forward.16} parent=0 // pred_check_branch
    %545 = sbr.rel (0) target = $region41
  $region40: #{vae_forward.16} parent=0 // pred_region
    _
  $region41: #{vae_forward.16} parent=0 // pred_fallthru
    _

// kernel: vae_forward.15
$region0: #{vae_forward.15}
  #allocation0 [shape = 'u32[]', space=smem, size = 0x4, offset = 0x4, fixed_abs, tag = 'smem constant byte address 0x4 - core index']
  #allocation1 [shape = 'u32[144,128]{1,0:T(1,128)}', space=vmem, size = 0x12000, scoped, tag = 'internal scratch']
  %s0 = inlined_call_operand.vmem [shape: f32[32,64], index: 0, kind: input, shape index: {}]
  %s1 = inlined_call_operand.vmem [shape: f32[1,64], index: 1, kind: input, shape index: {}]
  %s2 = inlined_call_operand.vmem [shape: f32[1,64], index: 2, kind: input, shape index: {}]
  %s3 = inlined_call_operand.vmem [shape: bf16[64,64], index: 3, kind: input, shape index: {}]
  %s4 = inlined_call_operand.vmem [shape: bf16[64,64], index: 4, kind: input, shape index: {}]
  %s5 = inlined_call_operand.vmem [shape: f32[1,64], index: 5, kind: input, shape index: {}]
  %s6 = inlined_call_operand.vmem [shape: f32[32,64], index: 6, kind: output, shape index: {0}]
  %s7 = inlined_call_operand.vmem [shape: f32[1,2,64], index: 7, kind: output, shape index: {1}]
  %8 = xla_tuple %s6, %s7
  %s9 = sld [smem:[#allocation0]]
  $region42: #{vae_forward.15} parent=0
    _
  %s11 = ssub.s32 1, %s9
  %s12 = scalar_select 0, %s11, %s9
  // Predicated region
  $region2: #{vae_forward.15} parent=0 // pred_check
    _
  $region3: #{vae_forward.15} parent=0 // pred_check_branch
    %14 = sbr.rel (0) target = $region5
  $region4: #{vae_forward.15} parent=0 // pred_region
    _
  $region5: #{vae_forward.15} parent=0 // pred_fallthru
    _
  // Predicated region
  $region6: #{vae_forward.15} parent=0 // pred_check
    _
  $region7: #{vae_forward.15} parent=0 // pred_check_branch
    %16 = sbr.rel (0) target = $region9
  $region8: #{vae_forward.15} parent=0 // pred_region
    _
  $region9: #{vae_forward.15} parent=0 // pred_fallthru
    _
  // Predicated region
  $region10: #{vae_forward.15} parent=0 // pred_check
    _
  $region11: #{vae_forward.15} parent=0 // pred_check_branch
    %18 = sbr.rel (0) target = $region13
  $region12: #{vae_forward.15} parent=0 // pred_region
    _
  $region13: #{vae_forward.15} parent=0 // pred_fallthru
    _
  // Predicated region
  $region14: #{vae_forward.15} parent=0 // pred_check
    _
  $region15: #{vae_forward.15} parent=0 // pred_check_branch
    %20 = sbr.rel (0) target = $region17
  $region16: #{vae_forward.15} parent=0 // pred_region
    _
  $region17: #{vae_forward.15} parent=0 // pred_fallthru
    _
  // Predicated region
  $region18: #{vae_forward.15} parent=0 // pred_check
    _
  $region19: #{vae_forward.15} parent=0 // pred_check_branch
    %22 = sbr.rel (0) target = $region21
  $region20: #{vae_forward.15} parent=0 // pred_region
    _
  $region21: #{vae_forward.15} parent=0 // pred_fallthru
    _
  // Predicated region
  $region22: #{vae_forward.15} parent=0 // pred_check
    _
  $region23: #{vae_forward.15} parent=0 // pred_check_branch
    %24 = sbr.rel (0) target = $region25
  $region24: #{vae_forward.15} parent=0 // pred_region
    _
  $region25: #{vae_forward.15} parent=0 // pred_fallthru
    _
  %v26 = vld [vmem:[%s0] sm:$0xff]
  %v27 = vld [vmem:[%s0 + $0x8] sm:$0xff]
  %v28 = vld [vmem:[%s0 + $0x10] sm:$0xff]
  %v29 = vld [vmem:[%s0 + $0x18] sm:$0xff]
  %v30 = vld [vmem:[%s1] sm:$0x1]
  %v32 = vlaneseq
  %v33 = vshrl.u32 %v32, 7
  %v34 = vsub.s32 0, %v33
  %v35 = vrot.slane %v30, %v34
  %v37 = vmul.f32 %v26, %v35
  %v38 = vmul.f32 %v27, %v35
  %v39 = vmul.f32 %v28, %v35
  %v40 = vmul.f32 %v29, %v35
  %v41 = vld [vmem:[%s2] sm:$0x1]
  %v43 = vlaneseq
  %v44 = vshrl.u32 %v43, 7
  %v45 = vsub.s32 0, %v44
  %v46 = vrot.slane %v41, %v45
  %v48 = vadd.f32 %v37, %v46
  %v49 = vadd.f32 %v38, %v46
  %v50 = vadd.f32 %v39, %v46
  %v51 = vadd.f32 %v40, %v46
  %v52 = vlaneseq
  %v53 = vshrl.u32 %v52, 7
  %v54 = vadd.s32 %v53, 8
  %v55 = vadd.s32 %v53, 16
  %v56 = vadd.s32 %v53, 24
  %vm57 = vcmp.lt.s32.totalorder %v53, 0
  %v58 = vsub.s32 0, %v53
  %v59 = vsel %vm57, %v58, %v53
  %v60 = vshrl.u32 %v59, 4
  %v61 = vand.u32 %v59, 15
  %v62 = vsub.s32 0, %v61
  %v63 = vsel %vm57, %v62, %v61
  %vm64 = vcmp.lt.s32.totalorder %v54, 0
  %v65 = vsub.s32 0, %v54
  %v66 = vsel %vm64, %v65, %v54
  %v67 = vshrl.u32 %v66, 4
  %v68 = vand.u32 %v66, 15
  %v69 = vsub.s32 0, %v68
  %v70 = vsel %vm64, %v69, %v68
  %vm71 = vcmp.lt.s32.totalorder %v55, 0
  %v72 = vsub.s32 0, %v55
  %v73 = vsel %vm71, %v72, %v55
  %v74 = vshrl.u32 %v73, 4
  %v75 = vand.u32 %v73, 15
  %v76 = vsub.s32 0, %v75
  %v77 = vsel %vm71, %v76, %v75
  %vm78 = vcmp.lt.s32.totalorder %v56, 0
  %v79 = vsub.s32 0, %v56
  %v80 = vsel %vm78, %v79, %v56
  %v81 = vshrl.u32 %v80, 4
  %v82 = vand.u32 %v80, 15
  %v83 = vsub.s32 0, %v82
  %v84 = vsel %vm78, %v83, %v82
  %vm85 = vcmp.ne.s32.totalorder %v63, 0
  %vm86 = vcmp.ne.s32.totalorder %v70, 0
  %vm87 = vcmp.ne.s32.totalorder %v77, 0
  %vm88 = vcmp.ne.s32.totalorder %v84, 0
  %vm89 = vcmp.lt.s32.totalorder %v63, 0
  %vm90 = vcmp.lt.s32.totalorder %v70, 0
  %vm91 = vcmp.lt.s32.totalorder %v77, 0
  %vm92 = vcmp.lt.s32.totalorder %v84, 0
  %vm93 = vmand %vm89, %vm85
  %vm94 = vmand %vm90, %vm86
  %vm95 = vmand %vm91, %vm87
  %vm96 = vmand %vm92, %vm88
  %v97 = vadd.s32 %v63, 16
  %v98 = vadd.s32 %v70, 16
  %v99 = vadd.s32 %v77, 16
  %v100 = vadd.s32 %v84, 16
  %v101 = vsel %vm93, %v97, %v63
  %v102 = vsel %vm94, %v98, %v70
  %v103 = vsel %vm95, %v99, %v77
  %v104 = vsel %vm96, %v100, %v84
  %vm105 = vcmp.ne.s32.totalorder %v101, 15
  %vm106 = vcmp.ne.s32.totalorder %v102, 15
  %vm107 = vcmp.ne.s32.totalorder %v103, 15
  %vm108 = vcmp.ne.s32.totalorder %v104, 15
  %v109 = vsel %vm105, 1, 0
  %v110 = vsel %vm106, 1, 0
  %v111 = vsel %vm107, 1, 0
  %v112 = vsel %vm108, 1, 0
  %v113 = vcvt.s32.f32 %v109
  %v114 = vcvt.s32.f32 %v110
  %v115 = vcvt.s32.f32 %v111
  %v116 = vcvt.s32.f32 %v112
  %v117 = vrot.slane %v48, 1
  %v118 = vrot.slane %v49, 1
  %v119 = vrot.slane %v50, 1
  %v120 = vrot.slane %v51, 1
  %vm121 = vcmp.lt.s32.totalorder %v53, 7
  %v122 = vsel %vm121, %v119, %v120
  %v123 = vsel %vm121, %v118, %v119
  %v124 = vsel %vm121, %v117, %v118
  %v125 = vsel %vm121, %v120, %v117
  %v126 = vmul.f32 %v124, %v113
  %v127 = vmul.f32 %v123, %v114
  %v128 = vmul.f32 %v122, %v115
  %v129 = vmul.f32 %v125, %v116
  %v130 = vpack.c.bf16 %v49, %v48
  %v131 = vpack.c.bf16 %v51, %v50
  %v132 = vld [vmem:[%s3] sm:$0xf]
  %v133 = vld [vmem:[%s3 + $0x4] sm:$0xf]
  %v134 = vld [vmem:[%s3 + $0x8] sm:$0xf]
  %v135 = vld [vmem:[%s3 + $0xc] sm:$0xf]
  %v136 = vld [vmem:[%s3 + $0x10] sm:$0xf]
  %v137 = vld [vmem:[%s3 + $0x14] sm:$0xf]
  %v138 = vld [vmem:[%s3 + $0x18] sm:$0xf]
  %v139 = vld [vmem:[%s3 + $0x1c] sm:$0xf]
  %v140 = vpack.c.bf16 %v127, %v126
  %v141 = vpack.c.bf16 %v129, %v128
  %v142 = vld [vmem:[%s4] sm:$0xf]
  %v143 = vld [vmem:[%s4 + $0x4] sm:$0xf]
  %v144 = vld [vmem:[%s4 + $0x8] sm:$0xf]
  %v145 = vld [vmem:[%s4 + $0xc] sm:$0xf]
  %v146 = vld [vmem:[%s4 + $0x10] sm:$0xf]
  %v147 = vld [vmem:[%s4 + $0x14] sm:$0xf]
  %v148 = vld [vmem:[%s4 + $0x18] sm:$0xf]
  %v149 = vld [vmem:[%s4 + $0x1c] sm:$0xf]
  %v158 = vunpack.c.l.b16 %v142
  %v159 = vunpack.c.l.b16 %v143
  %v160 = vunpack.c.l.b16 %v144
  %v161 = vunpack.c.l.b16 %v145
  %v162 = vunpack.c.l.b16 %v146
  %v163 = vunpack.c.l.b16 %v147
  %v164 = vunpack.c.l.b16 %v148
  %v165 = vunpack.c.l.b16 %v149
  %v166 = vpack.c.b16 %v159, %v158
  %v167 = vpack.c.b16 %v161, %v160
  %v168 = vpack.c.b16 %v163, %v162
  %v169 = vpack.c.b16 %v165, %v164
  %vm174 = vcmask 523264
  %v176 = vsel %vm174, %v140, 0
  %v179 = vsel %vm174, %v141, 0
  %181 = vmatprep.subr.bf16.mxu0 0
  %182 = vmatpush1.bf16.msra.mxu0 %v166
  %183 = vmatprep.subr.bf16.mxu0 0
  %184 = vmatpush1.bf16.msra.mxu0 %v167
  %185 = vmatprep.subr.bf16.mxu0 0
  %186 = vmatpush1.bf16.msra.mxu0 %v168
  %187 = vmatprep.subr.bf16.mxu0 0
  %188 = vmatpush1.bf16.msra.mxu0 %v169
  %189 = vmatprep.subr.bf16.mxu0 0
  %190 = vmatpush1.bf16.msra.mxu0 0
  %191 = vmatprep.subr.bf16.mxu0 0
  %192 = vmatpush1.bf16.msra.mxu0 0
  %193 = vmatprep.subr.bf16.mxu0 0
  %194 = vmatpush1.bf16.msra.mxu0 0
  %195 = vmatprep.subr.bf16.mxu0 0
  %196 = vmatpush1.bf16.msra.mxu0 0
  %197 = vmatprep.subr.bf16.mxu0 0
  %198 = vmatpush1.bf16.msra.mxu0 0
  %199 = vmatprep.subr.bf16.mxu0 0
  %200 = vmatpush1.bf16.msra.mxu0 0
  %201 = vmatprep.subr.bf16.mxu0 0
  %202 = vmatpush1.bf16.msra.mxu0 0
  %203 = vmatprep.subr.bf16.mxu0 0
  %204 = vmatpush1.bf16.msra.mxu0 0
  %205 = vmatprep.subr.bf16.mxu0 0
  %206 = vmatpush1.bf16.msra.mxu0 0
  %207 = vmatprep.subr.bf16.mxu0 0
  %208 = vmatpush1.bf16.msra.mxu0 0
  %209 = vmatprep.subr.bf16.mxu0 0
  %210 = vmatpush1.bf16.msra.mxu0 0
  %211 = vmatprep.subr.bf16.mxu0 0
  %212 = vmatpush1.bf16.msra.mxu0 0
  %213 = vmatprep.mubr.bf16.mxu0 0
  %214 = vmatmul.mubr.bf16.gmra.mrb[0].mxu0 %v176
  %v215 = vpop.f32.mrb[0].mxu0
  %v216 = vadd.f32 0.0, %v215
  %v217 = vpop.f32.mrb[0].mxu0
  %v218 = vpop.f32.mrb[0].mxu0
  %v219 = vadd.f32 0.0, %v218
  %v220 = vpop.f32.mrb[0].mxu0
  %221 = vmatprep.mubr.bf16.mxu0 0
  %222 = vmatmul.mubr.bf16.gmra.mrb[0].mxu0 %v179
  %v223 = vpop.f32.mrb[0].mxu0
  %v224 = vadd.f32 0.0, %v223
  %v225 = vpop.f32.mrb[0].mxu0
  %v226 = vpop.f32.mrb[0].mxu0
  %v227 = vadd.f32 0.0, %v226
  %v228 = vpop.f32.mrb[0].mxu0
  %229 = vdwg.mxu0
  %v238 = vunpack.c.l.b16 %v132
  %v239 = vunpack.c.l.b16 %v133
  %v240 = vunpack.c.l.b16 %v134
  %v241 = vunpack.c.l.b16 %v135
  %v242 = vunpack.c.l.b16 %v136
  %v243 = vunpack.c.l.b16 %v137
  %v244 = vunpack.c.l.b16 %v138
  %v245 = vunpack.c.l.b16 %v139
  %v246 = vpack.c.b16 %v239, %v238
  %v247 = vpack.c.b16 %v241, %v240
  %v248 = vpack.c.b16 %v243, %v242
  %v249 = vpack.c.b16 %v245, %v244
  %v255 = vsel %vm174, %v130, 0
  %v258 = vsel %vm174, %v131, 0
  %260 = vmatprep.subr.bf16.mxu0 0
  %261 = vmatpush1.bf16.msra.mxu0 %v246
  %262 = vmatprep.subr.bf16.mxu0 0
  %263 = vmatpush1.bf16.msra.mxu0 %v247
  %264 = vmatprep.subr.bf16.mxu0 0
  %265 = vmatpush1.bf16.msra.mxu0 %v248
  %266 = vmatprep.subr.bf16.mxu0 0
  %267 = vmatpush1.bf16.msra.mxu0 %v249
  %268 = vmatprep.subr.bf16.mxu0 0
  %269 = vmatpush1.bf16.msra.mxu0 0
  %270 = vmatprep.subr.bf16.mxu0 0
  %271 = vmatpush1.bf16.msra.mxu0 0
  %272 = vmatprep.subr.bf16.mxu0 0
  %273 = vmatpush1.bf16.msra.mxu0 0
  %274 = vmatprep.subr.bf16.mxu0 0
  %275 = vmatpush1.bf16.msra.mxu0 0
  %276 = vmatprep.subr.bf16.mxu0 0
  %277 = vmatpush1.bf16.msra.mxu0 0
  %278 = vmatprep.subr.bf16.mxu0 0
  %279 = vmatpush1.bf16.msra.mxu0 0
  %280 = vmatprep.subr.bf16.mxu0 0
  %281 = vmatpush1.bf16.msra.mxu0 0
  %282 = vmatprep.subr.bf16.mxu0 0
  %283 = vmatpush1.bf16.msra.mxu0 0
  %284 = vmatprep.subr.bf16.mxu0 0
  %285 = vmatpush1.bf16.msra.mxu0 0
  %286 = vmatprep.subr.bf16.mxu0 0
  %287 = vmatpush1.bf16.msra.mxu0 0
  %288 = vmatprep.subr.bf16.mxu0 0
  %289 = vmatpush1.bf16.msra.mxu0 0
  %290 = vmatprep.subr.bf16.mxu0 0
  %291 = vmatpush1.bf16.msra.mxu0 0
  %292 = vmatprep.mubr.bf16.mxu0 0
  %293 = vmatmul.mubr.bf16.gmra.mrb[0].mxu0 %v255
  %v294 = vpop.f32.mrb[0].mxu0
  %v295 = vadd.f32 %v216, %v294
  %v296 = vpop.f32.mrb[0].mxu0
  %v297 = vpop.f32.mrb[0].mxu0
  %v298 = vadd.f32 %v219, %v297
  %v299 = vpop.f32.mrb[0].mxu0
  %300 = vmatprep.mubr.bf16.mxu0 0
  %301 = vmatmul.mubr.bf16.gmra.mrb[0].mxu0 %v258
  %v302 = vpop.f32.mrb[0].mxu0
  %v303 = vadd.f32 %v224, %v302
  %v304 = vpop.f32.mrb[0].mxu0
  %v305 = vpop.f32.mrb[0].mxu0
  %v306 = vadd.f32 %v227, %v305
  %v307 = vpop.f32.mrb[0].mxu0
  %308 = vdwg.mxu0
  %v309 = vld [vmem:[%s5] sm:$0x1]
  %v311 = vlaneseq
  %v312 = vshrl.u32 %v311, 7
  %v313 = vsub.s32 0, %v312
  %v314 = vrot.slane %v309, %v313
  %v316 = vadd.f32 %v295, %v314
  %v317 = vadd.f32 %v298, %v314
  %v318 = vadd.f32 %v303, %v314
  %v319 = vadd.f32 %v306, %v314
  %vm320 = vcmp.gt.f32.partialorder %v316, 0.0
  %vm321 = vcmp.gt.f32.partialorder %v317, 0.0
  %vm322 = vcmp.gt.f32.partialorder %v318, 0.0
  %vm323 = vcmp.gt.f32.partialorder %v319, 0.0
  %v324 = vmin.f32 %v316, 0.0
  %v325 = vmin.f32 %v317, 0.0
  %v326 = vmin.f32 %v318, 0.0
  %v327 = vmin.f32 %v319, 0.0
  %v328 = vmul.f32 %v324, 1.442695
  %v329 = vpow.pop %v328
  %v330 = vmul.f32 %v325, 1.442695
  %v331 = vpow.pop %v330
  %v332 = vmul.f32 %v326, 1.442695
  %v333 = vpow.pop %v332
  %v334 = vmul.f32 %v327, 1.442695
  %v335 = vpow.pop %v334
  %v336 = vsub.f32 %v329, 1.0
  %v337 = vsub.f32 %v331, 1.0
  %v338 = vsub.f32 %v333, 1.0
  %v339 = vsub.f32 %v335, 1.0
  %v340 = vsel %vm320, %v316, %v336
  %v341 = vsel %vm321, %v317, %v337
  %v342 = vsel %vm322, %v318, %v338
  %v343 = vsel %vm323, %v319, %v339
  %344 = vst.msk [vmem:[%s6] sm:$0xff] %vm174, %v340
  %345 = vst.msk [vmem:[%s6 + $0x8] sm:$0xff] %vm174, %v341
  %346 = vst.msk [vmem:[%s6 + $0x10] sm:$0xff] %vm174, %v342
  %347 = vst.msk [vmem:[%s6 + $0x18] sm:$0xff] %vm174, %v343
  %v348 = vsel %vm174, %v340, 0.0
  %v349 = vsel %vm174, %v341, 0.0
  %v350 = vadd.f32 %v348, %v349
  %v351 = vsel %vm174, %v342, 0.0
  %v352 = vadd.f32 %v350, %v351
  %v353 = vsel %vm174, %v343, 0.0
  %v354 = vadd.f32 %v352, %v353
  %v355 = vrot.slane %v354, 4
  %v356 = vadd.f32 %v354, %v355
  %v357 = vrot.slane %v356, 2
  %v358 = vadd.f32 %v356, %v357
  %v359 = vrot.slane %v358, 1
  %v360 = vadd.f32 %v358, %v359
  %v361 = vmul.f32 %v340, %v340
  %v362 = vmul.f32 %v341, %v341
  %v363 = vmul.f32 %v342, %v342
  %v364 = vmul.f32 %v343, %v343
  %v365 = vsel %vm174, %v361, 0.0
  %v366 = vsel %vm174, %v362, 0.0
  %v367 = vadd.f32 %v365, %v366
  %v368 = vsel %vm174, %v363, 0.0
  %v369 = vadd.f32 %v367, %v368
  %v370 = vsel %vm174, %v364, 0.0
  %v371 = vadd.f32 %v369, %v370
  %v372 = vrot.slane %v371, 4
  %v373 = vadd.f32 %v371, %v372
  %v374 = vrot.slane %v373, 2
  %v375 = vadd.f32 %v373, %v374
  %v376 = vrot.slane %v375, 1
  %v377 = vadd.f32 %v375, %v376
  %vm378 = vcmask 1040384
  %v379 = vsel %vm378, %v360, %v377
  %vm380 = vcmask 517120
  %381 = vst.msk [vmem:[%s7] sm:$0x3] %vm380, %v379
  // Predicated region
  $region26: #{vae_forward.15} parent=0 // pred_check
    _
  $region27: #{vae_forward.15} parent=0 // pred_check_branch
    %383 = sbr.rel (0) target = $region29
  $region28: #{vae_forward.15} parent=0 // pred_region
    _
  $region29: #{vae_forward.15} parent=0 // pred_fallthru
    _
  // Predicated region
  $region30: #{vae_forward.15} parent=0 // pred_check
    _
  $region31: #{vae_forward.15} parent=0 // pred_check_branch
    %385 = sbr.rel (0) target = $region33
  $region32: #{vae_forward.15} parent=0 // pred_region
    _
  $region33: #{vae_forward.15} parent=0 // pred_fallthru
    _
  // Predicated region
  $region34: #{vae_forward.15} parent=0 // pred_check
    _
  $region35: #{vae_forward.15} parent=0 // pred_check_branch
    %387 = sbr.rel (0) target = $region37
  $region36: #{vae_forward.15} parent=0 // pred_region
    _
  $region37: #{vae_forward.15} parent=0 // pred_fallthru
    _
  // Predicated region
  $region38: #{vae_forward.15} parent=0 // pred_check
    _
  $region39: #{vae_forward.15} parent=0 // pred_check_branch
    %389 = sbr.rel (0) target = $region41
  $region40: #{vae_forward.15} parent=0 // pred_region
    _
  $region41: #{vae_forward.15} parent=0 // pred_fallthru
    _

// kernel: vae_forward.13
$region0: #{vae_forward.13}
  #allocation0 [shape = 'u32[]', space=smem, size = 0x4, offset = 0x4, fixed_abs, tag = 'smem constant byte address 0x4 - core index']
  #allocation1 [shape = 'u32[144,128]{1,0:T(1,128)}', space=vmem, size = 0x12000, scoped, tag = 'internal scratch']
  %s0 = inlined_call_operand.vmem [shape: f32[8,256], index: 0, kind: input, shape index: {}]
  %s1 = inlined_call_operand.vmem [shape: f32[1,256], index: 1, kind: input, shape index: {}]
  %s2 = inlined_call_operand.vmem [shape: f32[1,256], index: 2, kind: input, shape index: {}]
  %s3 = inlined_call_operand.vmem [shape: f32[8,40], index: 3, kind: input, shape index: {}]
  %s4 = inlined_call_operand.vmem [shape: bf16[256,256], index: 4, kind: input, shape index: {}]
  %s5 = inlined_call_operand.vmem [shape: bf16[256,256], index: 5, kind: input, shape index: {}]
  %s6 = inlined_call_operand.vmem [shape: f32[1,256], index: 6, kind: input, shape index: {}]
  %s7 = inlined_call_operand.vmem [shape: f32[1,256], index: 7, kind: input, shape index: {}]
  %s8 = inlined_call_operand.vmem [shape: f32[1,256], index: 8, kind: input, shape index: {}]
  %s9 = inlined_call_operand.vmem [shape: bf16[256,40], index: 9, kind: input, shape index: {}]
  %s10 = inlined_call_operand.vmem [shape: f32[1,40], index: 10, kind: input, shape index: {}]
  %s11 = inlined_call_operand.vmem [shape: bf16[40,256], index: 11, kind: input, shape index: {}]
  %s12 = inlined_call_operand.vmem [shape: bf16[40,256], index: 12, kind: input, shape index: {}]
  %s13 = inlined_call_operand.vmem [shape: f32[1,256], index: 13, kind: input, shape index: {}]
  %s14 = inlined_call_operand.vmem [shape: bf16[256,256], index: 14, kind: input, shape index: {}]
  %s15 = inlined_call_operand.vmem [shape: bf16[256,256], index: 15, kind: input, shape index: {}]
  %s16 = inlined_call_operand.vmem [shape: f32[1,256], index: 16, kind: input, shape index: {}]
  %s17 = inlined_call_operand.vmem [shape: f32[8,40], index: 17, kind: output, shape index: {0}]
  %s18 = inlined_call_operand.vmem [shape: f32[8,256], index: 18, kind: output, shape index: {1}]
  %s19 = inlined_call_operand.vmem [shape: f32[1,2,256], index: 19, kind: output, shape index: {2}]
  %20 = xla_tuple %s17, %s18, %s19
  %s21 = sld [smem:[#allocation0]]
  $region94: #{vae_forward.13} parent=0
    _
  %s23 = ssub.s32 1, %s21
  %s24 = scalar_select 0, %s23, %s21
  // Predicated region
  $region2: #{vae_forward.13} parent=0 // pred_check
    _
  $region3: #{vae_forward.13} parent=0 // pred_check_branch
    %26 = sbr.rel (0) target = $region5
  $region4: #{vae_forward.13} parent=0 // pred_region
    _
  $region5: #{vae_forward.13} parent=0 // pred_fallthru
    _
  // Predicated region
  $region6: #{vae_forward.13} parent=0 // pred_check
    _
  $region7: #{vae_forward.13} parent=0 // pred_check_branch
    %28 = sbr.rel (0) target = $region9
  $region8: #{vae_forward.13} parent=0 // pred_region
    _
  $region9: #{vae_forward.13} parent=0 // pred_fallthru
    _
  // Predicated region
  $region10: #{vae_forward.13} parent=0 // pred_check
    _
  $region11: #{vae_forward.13} parent=0 // pred_check_branch
    %30 = sbr.rel (0) target = $region13
  $region12: #{vae_forward.13} parent=0 // pred_region
    _
  $region13: #{vae_forward.13} parent=0 // pred_fallthru
    _
  // Predicated region
  $region14: #{vae_forward.13} parent=0 // pred_check
    _
  $region15: #{vae_forward.13} parent=0 // pred_check_branch
    %32 = sbr.rel (0) target = $region17
  $region16: #{vae_forward.13} parent=0 // pred_region
    _
  $region17: #{vae_forward.13} parent=0 // pred_fallthru
    _
  // Predicated region
  $region18: #{vae_forward.13} parent=0 // pred_check
    _
  $region19: #{vae_forward.13} parent=0 // pred_check_branch
    %34 = sbr.rel (0) target = $region21
  $region20: #{vae_forward.13} parent=0 // pred_region
    _
  $region21: #{vae_forward.13} parent=0 // pred_fallthru
    _
  // Predicated region
  $region22: #{vae_forward.13} parent=0 // pred_check
    _
  $region23: #{vae_forward.13} parent=0 // pred_check_branch
    %36 = sbr.rel (0) target = $region25
  $region24: #{vae_forward.13} parent=0 // pred_region
    _
  $region25: #{vae_forward.13} parent=0 // pred_fallthru
    _
  // Predicated region
  $region26: #{vae_forward.13} parent=0 // pred_check
    _
  $region27: #{vae_forward.13} parent=0 // pred_check_branch
    %38 = sbr.rel (0) target = $region29
  $region28: #{vae_forward.13} parent=0 // pred_region
    _
  $region29: #{vae_forward.13} parent=0 // pred_fallthru
    _
  // Predicated region
  $region30: #{vae_forward.13} parent=0 // pred_check
    _
  $region31: #{vae_forward.13} parent=0 // pred_check_branch
    %40 = sbr.rel (0) target = $region33
  $region32: #{vae_forward.13} parent=0 // pred_region
    _
  $region33: #{vae_forward.13} parent=0 // pred_fallthru
    _
  // Predicated region
  $region34: #{vae_forward.13} parent=0 // pred_check
    _
  $region35: #{vae_forward.13} parent=0 // pred_check_branch
    %42 = sbr.rel (0) target = $region37
  $region36: #{vae_forward.13} parent=0 // pred_region
    _
  $region37: #{vae_forward.13} parent=0 // pred_fallthru
    _
  // Predicated region
  $region38: #{vae_forward.13} parent=0 // pred_check
    _
  $region39: #{vae_forward.13} parent=0 // pred_check_branch
    %44 = sbr.rel (0) target = $region41
  $region40: #{vae_forward.13} parent=0 // pred_region
    _
  $region41: #{vae_forward.13} parent=0 // pred_fallthru
    _
  // Predicated region
  $region42: #{vae_forward.13} parent=0 // pred_check
    _
  $region43: #{vae_forward.13} parent=0 // pred_check_branch
    %46 = sbr.rel (0) target = $region45
  $region44: #{vae_forward.13} parent=0 // pred_region
    _
  $region45: #{vae_forward.13} parent=0 // pred_fallthru
    _
  // Predicated region
  $region46: #{vae_forward.13} parent=0 // pred_check
    _
  $region47: #{vae_forward.13} parent=0 // pred_check_branch
    %48 = sbr.rel (0) target = $region49
  $region48: #{vae_forward.13} parent=0 // pred_region
    _
  $region49: #{vae_forward.13} parent=0 // pred_fallthru
    _
  // Predicated region
  $region50: #{vae_forward.13} parent=0 // pred_check
    _
  $region51: #{vae_forward.13} parent=0 // pred_check_branch
    %50 = sbr.rel (0) target = $region53
  $region52: #{vae_forward.13} parent=0 // pred_region
    _
  $region53: #{vae_forward.13} parent=0 // pred_fallthru
    _
  // Predicated region
  $region54: #{vae_forward.13} parent=0 // pred_check
    _
  $region55: #{vae_forward.13} parent=0 // pred_check_branch
    %52 = sbr.rel (0) target = $region57
  $region56: #{vae_forward.13} parent=0 // pred_region
    _
  $region57: #{vae_forward.13} parent=0 // pred_fallthru
    _
  // Predicated region
  $region58: #{vae_forward.13} parent=0 // pred_check
    _
  $region59: #{vae_forward.13} parent=0 // pred_check_branch
    %54 = sbr.rel (0) target = $region61
  $region60: #{vae_forward.13} parent=0 // pred_region
    _
  $region61: #{vae_forward.13} parent=0 // pred_fallthru
    _
  // Predicated region
  $region62: #{vae_forward.13} parent=0 // pred_check
    _
  $region63: #{vae_forward.13} parent=0 // pred_check_branch
    %56 = sbr.rel (0) target = $region65
  $region64: #{vae_forward.13} parent=0 // pred_region
    _
  $region65: #{vae_forward.13} parent=0 // pred_fallthru
    _
  // Predicated region
  $region66: #{vae_forward.13} parent=0 // pred_check
    _
  $region67: #{vae_forward.13} parent=0 // pred_check_branch
    %58 = sbr.rel (0) target = $region69
  $region68: #{vae_forward.13} parent=0 // pred_region
    _
  $region69: #{vae_forward.13} parent=0 // pred_fallthru
    _
  %v60 = vld [vmem:[%s0] sm:$0xff]
  %v61 = vld [vmem:[%s0 + $0x8] sm:$0xff]
  %v62 = vld [vmem:[%s1] sm:$0x3]
  %v64 = vlaneseq
  %v65 = vshrl.u32 %v64, 7
  %v66 = vsub.s32 0, %v65
  %v67 = vrot.slane %v62, %v66
  %v68 = vlaneseq
  %v69 = vshrl.u32 %v68, 7
  %v70 = vsub.s32 1, %v69
  %v71 = vrot.slane %v62, %v70
  %v74 = vmul.f32 %v60, %v67
  %v75 = vmul.f32 %v61, %v71
  %v76 = vld [vmem:[%s2] sm:$0x3]
  %v78 = vlaneseq
  %v79 = vshrl.u32 %v78, 7
  %v80 = vsub.s32 0, %v79
  %v81 = vrot.slane %v76, %v80
  %v82 = vlaneseq
  %v83 = vshrl.u32 %v82, 7
  %v84 = vsub.s32 1, %v83
  %v85 = vrot.slane %v76, %v84
  %v88 = vadd.f32 %v74, %v81
  %v89 = vadd.f32 %v75, %v85
  %v90 = vlaneseq
  %v91 = vshrl.u32 %v90, 7
  %vm92 = vcmp.lt.s32.totalorder %v91, 0
  %v93 = vsub.s32 0, %v91
  %v94 = vsel %vm92, %v93, %v91
  %v95 = vshrl.u32 %v94, 2
  %v96 = vand.u32 %v94, 3
  %v97 = vsub.s32 0, %v96
  %v98 = vsel %vm92, %v97, %v96
  %vm99 = vcmp.ne.s32.totalorder %v98, 0
  %vm100 = vcmp.lt.s32.totalorder %v98, 0
  %vm101 = vmand %vm100, %vm99
  %v102 = vadd.s32 %v98, 4
  %v103 = vsel %vm101, %v102, %v98
  %vm104 = vcmp.ne.s32.totalorder %v103, 0
  %v105 = vsel %vm104, 1, 0
  %v106 = vcvt.s32.f32 %v105
  %vm107 = vcmp.ne.s32.totalorder %v103, 3
  %v108 = vsel %vm107, 1, 0
  %v109 = vcvt.s32.f32 %v108
  %v110 = vrot.slane %v88, 7
  %v111 = vrot.slane %v89, 7
  %v112 = vmul.f32 %v110, %v106
  %v113 = vmul.f32 %v111, %v106
  %v114 = vpack.c.bf16 %v112, %v112
  %v115 = vpack.c.bf16 %v113, %v113
  %v116 = vld [vmem:[%s4] sm:$0xff]
  %v117 = vld [vmem:[%s4 + $0x8] sm:$0xff]
  %v118 = vld [vmem:[%s4 + $0x10] sm:$0xff]
  %v119 = vld [vmem:[%s4 + $0x18] sm:$0xff]
  %v120 = vld [vmem:[%s4 + $0x20] sm:$0xff]
  %v121 = vld [vmem:[%s4 + $0x28] sm:$0xff]
  %v122 = vld [vmem:[%s4 + $0x30] sm:$0xff]
  %v123 = vld [vmem:[%s4 + $0x38] sm:$0xff]
  %v124 = vld [vmem:[%s4 + $0x40] sm:$0xff]
  %v125 = vld [vmem:[%s4 + $0x48] sm:$0xff]
  %v126 = vld [vmem:[%s4 + $0x50] sm:$0xff]
  %v127 = vld [vmem:[%s4 + $0x58] sm:$0xff]
  %v128 = vld [vmem:[%s4 + $0x60] sm:$0xff]
  %v129 = vld [vmem:[%s4 + $0x68] sm:$0xff]
  %v130 = vld [vmem:[%s4 + $0x70] sm:$0xff]
  %v131 = vld [vmem:[%s4 + $0x78] sm:$0xff]
  %v132 = vld [vmem:[%s4 + $0x80] sm:$0xff]
  %v133 = vld [vmem:[%s4 + $0x88] sm:$0xff]
  %v134 = vld [vmem:[%s4 + $0x90] sm:$0xff]
  %v135 = vld [vmem:[%s4 + $0x98] sm:$0xff]
  %v136 = vld [vmem:[%s4 + $0xa0] sm:$0xff]
  %v137 = vld [vmem:[%s4 + $0xa8] sm:$0xff]
  %v138 = vld [vmem:[%s4 + $0xb0] sm:$0xff]
  %v139 = vld [vmem:[%s4 + $0xb8] sm:$0xff]
  %v140 = vld [vmem:[%s4 + $0xc0] sm:$0xff]
  %v141 = vld [vmem:[%s4 + $0xc8] sm:$0xff]
  %v142 = vld [vmem:[%s4 + $0xd0] sm:$0xff]
  %v143 = vld [vmem:[%s4 + $0xd8] sm:$0xff]
  %v144 = vld [vmem:[%s4 + $0xe0] sm:$0xff]
  %v145 = vld [vmem:[%s4 + $0xe8] sm:$0xff]
  %v146 = vld [vmem:[%s4 + $0xf0] sm:$0xff]
  %v147 = vld [vmem:[%s4 + $0xf8] sm:$0xff]
  %v148 = vpack.c.bf16 %v88, %v88
  %v149 = vpack.c.bf16 %v89, %v89
  %v150 = vld [vmem:[%s5] sm:$0xff]
  %v151 = vld [vmem:[%s5 + $0x8] sm:$0xff]
  %v152 = vld [vmem:[%s5 + $0x10] sm:$0xff]
  %v153 = vld [vmem:[%s5 + $0x18] sm:$0xff]
  %v154 = vld [vmem:[%s5 + $0x20] sm:$0xff]
  %v155 = vld [vmem:[%s5 + $0x28] sm:$0xff]
  %v156 = vld [vmem:[%s5 + $0x30] sm:$0xff]
  %v157 = vld [vmem:[%s5 + $0x38] sm:$0xff]
  %v158 = vld [vmem:[%s5 + $0x40] sm:$0xff]
  %v159 = vld [vmem:[%s5 + $0x48] sm:$0xff]
  %v160 = vld [vmem:[%s5 + $0x50] sm:$0xff]
  %v161 = vld [vmem:[%s5 + $0x58] sm:$0xff]
  %v162 = vld [vmem:[%s5 + $0x60] sm:$0xff]
  %v163 = vld [vmem:[%s5 + $0x68] sm:$0xff]
  %v164 = vld [vmem:[%s5 + $0x70] sm:$0xff]
  %v165 = vld [vmem:[%s5 + $0x78] sm:$0xff]
  %v166 = vld [vmem:[%s5 + $0x80] sm:$0xff]
  %v167 = vld [vmem:[%s5 + $0x88] sm:$0xff]
  %v168 = vld [vmem:[%s5 + $0x90] sm:$0xff]
  %v169 = vld [vmem:[%s5 + $0x98] sm:$0xff]
  %v170 = vld [vmem:[%s5 + $0xa0] sm:$0xff]
  %v171 = vld [vmem:[%s5 + $0xa8] sm:$0xff]
  %v172 = vld [vmem:[%s5 + $0xb0] sm:$0xff]
  %v173 = vld [vmem:[%s5 + $0xb8] sm:$0xff]
  %v174 = vld [vmem:[%s5 + $0xc0] sm:$0xff]
  %v175 = vld [vmem:[%s5 + $0xc8] sm:$0xff]
  %v176 = vld [vmem:[%s5 + $0xd0] sm:$0xff]
  %v177 = vld [vmem:[%s5 + $0xd8] sm:$0xff]
  %v178 = vld [vmem:[%s5 + $0xe0] sm:$0xff]
  %v179 = vld [vmem:[%s5 + $0xe8] sm:$0xff]
  %v180 = vld [vmem:[%s5 + $0xf0] sm:$0xff]
  %v181 = vld [vmem:[%s5 + $0xf8] sm:$0xff]
  %v214 = vunpack.c.l.b16 %v150
  %v215 = vunpack.c.h.b16 %v150
  %v216 = vunpack.c.l.b16 %v151
  %v217 = vunpack.c.h.b16 %v151
  %v218 = vunpack.c.l.b16 %v152
  %v219 = vunpack.c.h.b16 %v152
  %v220 = vunpack.c.l.b16 %v153
  %v221 = vunpack.c.h.b16 %v153
  %v222 = vunpack.c.l.b16 %v154
  %v223 = vunpack.c.h.b16 %v154
  %v224 = vunpack.c.l.b16 %v155
  %v225 = vunpack.c.h.b16 %v155
  %v226 = vunpack.c.l.b16 %v156
  %v227 = vunpack.c.h.b16 %v156
  %v228 = vunpack.c.l.b16 %v157
  %v229 = vunpack.c.h.b16 %v157
  %v230 = vunpack.c.l.b16 %v158
  %v231 = vunpack.c.h.b16 %v158
  %v232 = vunpack.c.l.b16 %v159
  %v233 = vunpack.c.h.b16 %v159
  %v234 = vunpack.c.l.b16 %v160
  %v235 = vunpack.c.h.b16 %v160
  %v236 = vunpack.c.l.b16 %v161
  %v237 = vunpack.c.h.b16 %v161
  %v238 = vunpack.c.l.b16 %v162
  %v239 = vunpack.c.h.b16 %v162
  %v240 = vunpack.c.l.b16 %v163
  %v241 = vunpack.c.h.b16 %v163
  %v242 = vunpack.c.l.b16 %v164
  %v243 = vunpack.c.h.b16 %v164
  %v244 = vunpack.c.l.b16 %v165
  %v245 = vunpack.c.h.b16 %v165
  %v246 = vunpack.c.l.b16 %v166
  %v247 = vunpack.c.h.b16 %v166
  %v248 = vunpack.c.l.b16 %v167
  %v249 = vunpack.c.h.b16 %v167
  %v250 = vunpack.c.l.b16 %v168
  %v251 = vunpack.c.h.b16 %v168
  %v252 = vunpack.c.l.b16 %v169
  %v253 = vunpack.c.h.b16 %v169
  %v254 = vunpack.c.l.b16 %v170
  %v255 = vunpack.c.h.b16 %v170
  %v256 = vunpack.c.l.b16 %v171
  %v257 = vunpack.c.h.b16 %v171
  %v258 = vunpack.c.l.b16 %v172
  %v259 = vunpack.c.h.b16 %v172
  %v260 = vunpack.c.l.b16 %v173
  %v261 = vunpack.c.h.b16 %v173
  %v262 = vunpack.c.l.b16 %v174
  %v263 = vunpack.c.h.b16 %v174
  %v264 = vunpack.c.l.b16 %v175
  %v265 = vunpack.c.h.b16 %v175
  %v266 = vunpack.c.l.b16 %v176
  %v267 = vunpack.c.h.b16 %v176
  %v268 = vunpack.c.l.b16 %v177
  %v269 = vunpack.c.h.b16 %v177
  %v270 = vunpack.c.l.b16 %v178
  %v271 = vunpack.c.h.b16 %v178
  %v272 = vunpack.c.l.b16 %v179
  %v273 = vunpack.c.h.b16 %v179
  %v274 = vunpack.c.l.b16 %v180
  %v275 = vunpack.c.h.b16 %v180
  %v276 = vunpack.c.l.b16 %v181
  %v277 = vunpack.c.h.b16 %v181
  %v278 = vpack.c.b16 %v216, %v214
  %v279 = vpack.c.b16 %v217, %v215
  %v280 = vpack.c.b16 %v220, %v218
  %v281 = vpack.c.b16 %v221, %v219
  %v282 = vpack.c.b16 %v224, %v222
  %v283 = vpack.c.b16 %v225, %v223
  %v284 = vpack.c.b16 %v228, %v226
  %v285 = vpack.c.b16 %v229, %v227
  %v286 = vpack.c.b16 %v232, %v230
  %v287 = vpack.c.b16 %v233, %v231
  %v288 = vpack.c.b16 %v236, %v234
  %v289 = vpack.c.b16 %v237, %v235
  %v290 = vpack.c.b16 %v240, %v238
  %v291 = vpack.c.b16 %v241, %v239
  %v292 = vpack.c.b16 %v244, %v242
  %v293 = vpack.c.b16 %v245, %v243
  %v294 = vpack.c.b16 %v248, %v246
  %v295 = vpack.c.b16 %v249, %v247
  %v296 = vpack.c.b16 %v252, %v250
  %v297 = vpack.c.b16 %v253, %v251
  %v298 = vpack.c.b16 %v256, %v254
  %v299 = vpack.c.b16 %v257, %v255
  %v300 = vpack.c.b16 %v260, %v258
  %v301 = vpack.c.b16 %v261, %v259
  %v302 = vpack.c.b16 %v264, %v262
  %v303 = vpack.c.b16 %v265, %v263
  %v304 = vpack.c.b16 %v268, %v266
  %v305 = vpack.c.b16 %v269, %v267
  %v306 = vpack.c.b16 %v272, %v270
  %v307 = vpack.c.b16 %v273, %v271
  %v308 = vpack.c.b16 %v276, %v274
  %v309 = vpack.c.b16 %v277, %v275
  %342 = vmatprep.subr.bf16.mxu0 %v279
  %343 = vmatpush1.bf16.msra.mxu0 %v278
  %344 = vmatprep.subr.bf16.mxu0 %v281
  %345 = vmatpush1.bf16.msra.mxu0 %v280
  %346 = vmatprep.subr.bf16.mxu0 %v283
  %347 = vmatpush1.bf16.msra.mxu0 %v282
  %348 = vmatprep.subr.bf16.mxu0 %v285
  %349 = vmatpush1.bf16.msra.mxu0 %v284
  %350 = vmatprep.subr.bf16.mxu0 %v287
  %351 = vmatpush1.bf16.msra.mxu0 %v286
  %352 = vmatprep.subr.bf16.mxu0 %v289
  %353 = vmatpush1.bf16.msra.mxu0 %v288
  %354 = vmatprep.subr.bf16.mxu0 %v291
  %355 = vmatpush1.bf16.msra.mxu0 %v290
  %356 = vmatprep.subr.bf16.mxu0 %v293
  %357 = vmatpush1.bf16.msra.mxu0 %v292
  %358 = vmatprep.subr.bf16.mxu0 %v295
  %359 = vmatpush1.bf16.msra.mxu0 %v294
  %360 = vmatprep.subr.bf16.mxu0 %v297
  %361 = vmatpush1.bf16.msra.mxu0 %v296
  %362 = vmatprep.subr.bf16.mxu0 %v299
  %363 = vmatpush1.bf16.msra.mxu0 %v298
  %364 = vmatprep.subr.bf16.mxu0 %v301
  %365 = vmatpush1.bf16.msra.mxu0 %v300
  %366 = vmatprep.subr.bf16.mxu0 %v303
  %367 = vmatpush1.bf16.msra.mxu0 %v302
  %368 = vmatprep.subr.bf16.mxu0 %v305
  %369 = vmatpush1.bf16.msra.mxu0 %v304
  %370 = vmatprep.subr.bf16.mxu0 %v307
  %371 = vmatpush1.bf16.msra.mxu0 %v306
  %372 = vmatprep.subr.bf16.mxu0 %v309
  %373 = vmatpush1.bf16.msra.mxu0 %v308
  %374 = vmatprep.mubr.bf16.mxu0 %v149
  %375 = vmatmul.mubr.bf16.gmra.mrb[0].mxu0 %v148
  %v376 = vpop.f32.mrb[0].mxu0
  %v377 = vadd.f32 0.0, %v376
  %v378 = vpop.f32.mrb[0].mxu0
  %v379 = vadd.f32 0.0, %v378
  %v380 = vpop.f32.mrb[0].mxu0
  %v381 = vpop.f32.mrb[0].mxu0
  %382 = vdwg.mxu0
  %v415 = vunpack.c.l.b16 %v116
  %v416 = vunpack.c.h.b16 %v116
  %v417 = vunpack.c.l.b16 %v117
  %v418 = vunpack.c.h.b16 %v117
  %v419 = vunpack.c.l.b16 %v118
  %v420 = vunpack.c.h.b16 %v118
  %v421 = vunpack.c.l.b16 %v119
  %v422 = vunpack.c.h.b16 %v119
  %v423 = vunpack.c.l.b16 %v120
  %v424 = vunpack.c.h.b16 %v120
  %v425 = vunpack.c.l.b16 %v121
  %v426 = vunpack.c.h.b16 %v121
  %v427 = vunpack.c.l.b16 %v122
  %v428 = vunpack.c.h.b16 %v122
  %v429 = vunpack.c.l.b16 %v123
  %v430 = vunpack.c.h.b16 %v123
  %v431 = vunpack.c.l.b16 %v124
  %v432 = vunpack.c.h.b16 %v124
  %v433 = vunpack.c.l.b16 %v125
  %v434 = vunpack.c.h.b16 %v125
  %v435 = vunpack.c.l.b16 %v126
  %v436 = vunpack.c.h.b16 %v126
  %v437 = vunpack.c.l.b16 %v127
  %v438 = vunpack.c.h.b16 %v127
  %v439 = vunpack.c.l.b16 %v128
  %v440 = vunpack.c.h.b16 %v128
  %v441 = vunpack.c.l.b16 %v129
  %v442 = vunpack.c.h.b16 %v129
  %v443 = vunpack.c.l.b16 %v130
  %v444 = vunpack.c.h.b16 %v130
  %v445 = vunpack.c.l.b16 %v131
  %v446 = vunpack.c.h.b16 %v131
  %v447 = vunpack.c.l.b16 %v132
  %v448 = vunpack.c.h.b16 %v132
  %v449 = vunpack.c.l.b16 %v133
  %v450 = vunpack.c.h.b16 %v133
  %v451 = vunpack.c.l.b16 %v134
  %v452 = vunpack.c.h.b16 %v134
  %v453 = vunpack.c.l.b16 %v135
  %v454 = vunpack.c.h.b16 %v135
  %v455 = vunpack.c.l.b16 %v136
  %v456 = vunpack.c.h.b16 %v136
  %v457 = vunpack.c.l.b16 %v137
  %v458 = vunpack.c.h.b16 %v137
  %v459 = vunpack.c.l.b16 %v138
  %v460 = vunpack.c.h.b16 %v138
  %v461 = vunpack.c.l.b16 %v139
  %v462 = vunpack.c.h.b16 %v139
  %v463 = vunpack.c.l.b16 %v140
  %v464 = vunpack.c.h.b16 %v140
  %v465 = vunpack.c.l.b16 %v141
  %v466 = vunpack.c.h.b16 %v141
  %v467 = vunpack.c.l.b16 %v142
  %v468 = vunpack.c.h.b16 %v142
  %v469 = vunpack.c.l.b16 %v143
  %v470 = vunpack.c.h.b16 %v143
  %v471 = vunpack.c.l.b16 %v144
  %v472 = vunpack.c.h.b16 %v144
  %v473 = vunpack.c.l.b16 %v145
  %v474 = vunpack.c.h.b16 %v145
  %v475 = vunpack.c.l.b16 %v146
  %v476 = vunpack.c.h.b16 %v146
  %v477 = vunpack.c.l.b16 %v147
  %v478 = vunpack.c.h.b16 %v147
  %v479 = vpack.c.b16 %v417, %v415
  %v480 = vpack.c.b16 %v418, %v416
  %v481 = vpack.c.b16 %v421, %v419
  %v482 = vpack.c.b16 %v422, %v420
  %v483 = vpack.c.b16 %v425, %v423
  %v484 = vpack.c.b16 %v426, %v424
  %v485 = vpack.c.b16 %v429, %v427
  %v486 = vpack.c.b16 %v430, %v428
  %v487 = vpack.c.b16 %v433, %v431
  %v488 = vpack.c.b16 %v434, %v432
  %v489 = vpack.c.b16 %v437, %v435
  %v490 = vpack.c.b16 %v438, %v436
  %v491 = vpack.c.b16 %v441, %v439
  %v492 = vpack.c.b16 %v442, %v440
  %v493 = vpack.c.b16 %v445, %v443
  %v494 = vpack.c.b16 %v446, %v444
  %v495 = vpack.c.b16 %v449, %v447
  %v496 = vpack.c.b16 %v450, %v448
  %v497 = vpack.c.b16 %v453, %v451
  %v498 = vpack.c.b16 %v454, %v452
  %v499 = vpack.c.b16 %v457, %v455
  %v500 = vpack.c.b16 %v458, %v456
  %v501 = vpack.c.b16 %v461, %v459
  %v502 = vpack.c.b16 %v462, %v460
  %v503 = vpack.c.b16 %v465, %v463
  %v504 = vpack.c.b16 %v466, %v464
  %v505 = vpack.c.b16 %v469, %v467
  %v506 = vpack.c.b16 %v470, %v468
  %v507 = vpack.c.b16 %v473, %v471
  %v508 = vpack.c.b16 %v474, %v472
  %v509 = vpack.c.b16 %v477, %v475
  %v510 = vpack.c.b16 %v478, %v476
  %543 = vmatprep.subr.bf16.mxu0 %v480
  %544 = vmatpush1.bf16.msra.mxu0 %v479
  %545 = vmatprep.subr.bf16.mxu0 %v482
  %546 = vmatpush1.bf16.msra.mxu0 %v481
  %547 = vmatprep.subr.bf16.mxu0 %v484
  %548 = vmatpush1.bf16.msra.mxu0 %v483
  %549 = vmatprep.subr.bf16.mxu0 %v486
  %550 = vmatpush1.bf16.msra.mxu0 %v485
  %551 = vmatprep.subr.bf16.mxu0 %v488
  %552 = vmatpush1.bf16.msra.mxu0 %v487
  %553 = vmatprep.subr.bf16.mxu0 %v490
  %554 = vmatpush1.bf16.msra.mxu0 %v489
  %555 = vmatprep.subr.bf16.mxu0 %v492
  %556 = vmatpush1.bf16.msra.mxu0 %v491
  %557 = vmatprep.subr.bf16.mxu0 %v494
  %558 = vmatpush1.bf16.msra.mxu0 %v493
  %559 = vmatprep.subr.bf16.mxu0 %v496
  %560 = vmatpush1.bf16.msra.mxu0 %v495
  %561 = vmatprep.subr.bf16.mxu0 %v498
  %562 = vmatpush1.bf16.msra.mxu0 %v497
  %563 = vmatprep.subr.bf16.mxu0 %v500
  %564 = vmatpush1.bf16.msra.mxu0 %v499
  %565 = vmatprep.subr.bf16.mxu0 %v502
  %566 = vmatpush1.bf16.msra.mxu0 %v501
  %567 = vmatprep.subr.bf16.mxu0 %v504
  %568 = vmatpush1.bf16.msra.mxu0 %v503
  %569 = vmatprep.subr.bf16.mxu0 %v506
  %570 = vmatpush1.bf16.msra.mxu0 %v505
  %571 = vmatprep.subr.bf16.mxu0 %v508
  %572 = vmatpush1.bf16.msra.mxu0 %v507
  %573 = vmatprep.subr.bf16.mxu0 %v510
  %574 = vmatpush1.bf16.msra.mxu0 %v509
  %575 = vmatprep.mubr.bf16.mxu0 %v115
  %576 = vmatmul.mubr.bf16.gmra.mrb[0].mxu0 %v114
  %v577 = vpop.f32.mrb[0].mxu0
  %v578 = vadd.f32 %v377, %v577
  %v579 = vpop.f32.mrb[0].mxu0
  %v580 = vadd.f32 %v379, %v579
  %v581 = vpop.f32.mrb[0].mxu0
  %v582 = vpop.f32.mrb[0].mxu0
  %583 = vdwg.mxu0
  %v584 = vld [vmem:[%s6] sm:$0x3]
  %v586 = vlaneseq
  %v587 = vshrl.u32 %v586, 7
  %v588 = vsub.s32 0, %v587
  %v589 = vrot.slane %v584, %v588
  %v590 = vlaneseq
  %v591 = vshrl.u32 %v590, 7
  %v592 = vsub.s32 1, %v591
  %v593 = vrot.slane %v584, %v592
  %v596 = vadd.f32 %v578, %v589
  %v597 = vadd.f32 %v580, %v593
  %vm598 = vcmp.gt.f32.partialorder %v596, 0.0
  %vm599 = vcmp.gt.f32.partialorder %v597, 0.0
  %v600 = vmin.f32 %v596, 0.0
  %v601 = vmin.f32 %v597, 0.0
  %v602 = vmul.f32 %v600, 1.442695
  %v603 = vpow.pop %v602
  %v604 = vmul.f32 %v601, 1.442695
  %v605 = vpow.pop %v604
  %v606 = vsub.f32 %v603, 1.0
  %v607 = vsub.f32 %v605, 1.0
  %v608 = vsel %vm598, %v596, %v606
  %v609 = vsel %vm599, %v597, %v607
  %v610 = vrot.slane %v608, 4
  %v611 = vadd.f32 %v608, %v610
  %v612 = vrot.slane %v611, 2
  %v613 = vadd.f32 %v611, %v612
  %v614 = vrot.slane %v613, 1
  %v615 = vadd.f32 %v613, %v614
  %v616 = vrot.slane %v609, 4
  %v617 = vadd.f32 %v609, %v616
  %v618 = vrot.slane %v617, 2
  %v619 = vadd.f32 %v617, %v618
  %v620 = vrot.slane %v619, 1
  %v621 = vadd.f32 %v619, %v620
  %v622 = vmul.f32 %v615, 0.125
  %v623 = vmul.f32 %v621, 0.125
  %v624 = vmul.f32 %v608, %v608
  %v625 = vmul.f32 %v609, %v609
  %v626 = vrot.slane %v624, 4
  %v627 = vadd.f32 %v624, %v626
  %v628 = vrot.slane %v627, 2
  %v629 = vadd.f32 %v627, %v628
  %v630 = vrot.slane %v629, 1
  %v631 = vadd.f32 %v629, %v630
  %v632 = vrot.slane %v625, 4
  %v633 = vadd.f32 %v625, %v632
  %v634 = vrot.slane %v633, 2
  %v635 = vadd.f32 %v633, %v634
  %v636 = vrot.slane %v635, 1
  %v637 = vadd.f32 %v635, %v636
  %v638 = vmul.f32 %v631, 0.125
  %v639 = vmul.f32 %v637, 0.125
  %v640 = vmul.f32 %v622, %v622
  %v641 = vmul.f32 %v623, %v623
  %v642 = vsub.f32 %v638, %v640
  %v643 = vsub.f32 %v639, %v641
  %v644 = vmax.f32 %v642, 0.0
  %v645 = vmax.f32 %v643, 0.0
  %v646 = vsub.f32 %v608, %v622
  %v647 = vsub.f32 %v609, %v623
  %v648 = vadd.f32 %v644, 1e-05
  %v649 = vadd.f32 %v645, 1e-05
  %v650 = vrsqrt.pop %v648
  %v651 = vrsqrt.pop %v649
  %v652 = vld [vmem:[%s7] sm:$0x3]
  %v654 = vlaneseq
  %v655 = vshrl.u32 %v654, 7
  %v656 = vsub.s32 0, %v655
  %v657 = vrot.slane %v652, %v656
  %v658 = vlaneseq
  %v659 = vshrl.u32 %v658, 7
  %v660 = vsub.s32 1, %v659
  %v661 = vrot.slane %v652, %v660
  %v664 = vmul.f32 %v650, %v657
  %v665 = vmul.f32 %v651, %v661
  %v666 = vlaneseq
  %v667 = vshrl.u32 %v666, 7
  %v668 = vsub.s32 0, %v667
  %v669 = vrot.slane %v664, %v668
  %v670 = vlaneseq
  %v671 = vshrl.u32 %v670, 7
  %v672 = vsub.s32 0, %v671
  %v673 = vrot.slane %v665, %v672
  %v674 = vmul.f32 %v646, %v669
  %v675 = vmul.f32 %v647, %v673
  %v676 = vld [vmem:[%s8] sm:$0x3]
  %v678 = vlaneseq
  %v679 = vshrl.u32 %v678, 7
  %v680 = vsub.s32 0, %v679
  %v681 = vrot.slane %v676, %v680
  %v682 = vlaneseq
  %v683 = vshrl.u32 %v682, 7
  %v684 = vsub.s32 1, %v683
  %v685 = vrot.slane %v676, %v684
  %v688 = vadd.f32 %v674, %v681
  %v689 = vadd.f32 %v675, %v685
  %v690 = vpack.c.bf16 %v688, %v688
  %v691 = vpack.c.bf16 %v689, %v689
  %v692 = vld [vmem:[%s9] sm:$0xf]
  %v693 = vld [vmem:[%s9 + $0x4] sm:$0xf]
  %v694 = vld [vmem:[%s9 + $0x8] sm:$0xf]
  %v695 = vld [vmem:[%s9 + $0xc] sm:$0xf]
  %v696 = vld [vmem:[%s9 + $0x10] sm:$0xf]
  %v697 = vld [vmem:[%s9 + $0x14] sm:$0xf]
  %v698 = vld [vmem:[%s9 + $0x18] sm:$0xf]
  %v699 = vld [vmem:[%s9 + $0x1c] sm:$0xf]
  %v700 = vld [vmem:[%s9 + $0x20] sm:$0xf]
  %v701 = vld [vmem:[%s9 + $0x24] sm:$0xf]
  %v702 = vld [vmem:[%s9 + $0x28] sm:$0xf]
  %v703 = vld [vmem:[%s9 + $0x2c] sm:$0xf]
  %v704 = vld [vmem:[%s9 + $0x30] sm:$0xf]
  %v705 = vld [vmem:[%s9 + $0x34] sm:$0xf]
  %v706 = vld [vmem:[%s9 + $0x38] sm:$0xf]
  %v707 = vld [vmem:[%s9 + $0x3c] sm:$0xf]
  %v708 = vld [vmem:[%s9 + $0x40] sm:$0xf]
  %v709 = vld [vmem:[%s9 + $0x44] sm:$0xf]
  %v710 = vld [vmem:[%s9 + $0x48] sm:$0xf]
  %v711 = vld [vmem:[%s9 + $0x4c] sm:$0xf]
  %v712 = vld [vmem:[%s9 + $0x50] sm:$0xf]
  %v713 = vld [vmem:[%s9 + $0x54] sm:$0xf]
  %v714 = vld [vmem:[%s9 + $0x58] sm:$0xf]
  %v715 = vld [vmem:[%s9 + $0x5c] sm:$0xf]
  %v716 = vld [vmem:[%s9 + $0x60] sm:$0xf]
  %v717 = vld [vmem:[%s9 + $0x64] sm:$0xf]
  %v718 = vld [vmem:[%s9 + $0x68] sm:$0xf]
  %v719 = vld [vmem:[%s9 + $0x6c] sm:$0xf]
  %v720 = vld [vmem:[%s9 + $0x70] sm:$0xf]
  %v721 = vld [vmem:[%s9 + $0x74] sm:$0xf]
  %v722 = vld [vmem:[%s9 + $0x78] sm:$0xf]
  %v723 = vld [vmem:[%s9 + $0x7c] sm:$0xf]
  %v724 = vld [vmem:[%s10] sm:$0x1]
  %v726 = vlaneseq
  %v727 = vshrl.u32 %v726, 7
  %v728 = vsub.s32 0, %v727
  %v729 = vrot.slane %v724, %v728
  %v763 = vunpack.c.l.b16 %v692
  %v764 = vunpack.c.l.b16 %v693
  %v765 = vunpack.c.l.b16 %v694
  %v766 = vunpack.c.l.b16 %v695
  %v767 = vunpack.c.l.b16 %v696
  %v768 = vunpack.c.l.b16 %v697
  %v769 = vunpack.c.l.b16 %v698
  %v770 = vunpack.c.l.b16 %v699
  %v771 = vunpack.c.l.b16 %v700
  %v772 = vunpack.c.l.b16 %v701
  %v773 = vunpack.c.l.b16 %v702
  %v774 = vunpack.c.l.b16 %v703
  %v775 = vunpack.c.l.b16 %v704
  %v776 = vunpack.c.l.b16 %v705
  %v777 = vunpack.c.l.b16 %v706
  %v778 = vunpack.c.l.b16 %v707
  %v779 = vunpack.c.l.b16 %v708
  %v780 = vunpack.c.l.b16 %v709
  %v781 = vunpack.c.l.b16 %v710
  %v782 = vunpack.c.l.b16 %v711
  %v783 = vunpack.c.l.b16 %v712
  %v784 = vunpack.c.l.b16 %v713
  %v785 = vunpack.c.l.b16 %v714
  %v786 = vunpack.c.l.b16 %v715
  %v787 = vunpack.c.l.b16 %v716
  %v788 = vunpack.c.l.b16 %v717
  %v789 = vunpack.c.l.b16 %v718
  %v790 = vunpack.c.l.b16 %v719
  %v791 = vunpack.c.l.b16 %v720
  %v792 = vunpack.c.l.b16 %v721
  %v793 = vunpack.c.l.b16 %v722
  %v794 = vunpack.c.l.b16 %v723
  %v795 = vpack.c.b16 %v764, %v763
  %v796 = vpack.c.b16 %v766, %v765
  %v797 = vpack.c.b16 %v768, %v767
  %v798 = vpack.c.b16 %v770, %v769
  %v799 = vpack.c.b16 %v772, %v771
  %v800 = vpack.c.b16 %v774, %v773
  %v801 = vpack.c.b16 %v776, %v775
  %v802 = vpack.c.b16 %v778, %v777
  %v803 = vpack.c.b16 %v780, %v779
  %v804 = vpack.c.b16 %v782, %v781
  %v805 = vpack.c.b16 %v784, %v783
  %v806 = vpack.c.b16 %v786, %v785
  %v807 = vpack.c.b16 %v788, %v787
  %v808 = vpack.c.b16 %v790, %v789
  %v809 = vpack.c.b16 %v792, %v791
  %v810 = vpack.c.b16 %v794, %v793
  %827 = vmatprep.subr.bf16.mxu0 0
  %828 = vmatpush1.bf16.msra.mxu0 %v795
  %829 = vmatprep.subr.bf16.mxu0 0
  %830 = vmatpush1.bf16.msra.mxu0 %v796
  %831 = vmatprep.subr.bf16.mxu0 0
  %832 = vmatpush1.bf16.msra.mxu0 %v797
  %833 = vmatprep.subr.bf16.mxu0 0
  %834 = vmatpush1.bf16.msra.mxu0 %v798
  %835 = vmatprep.subr.bf16.mxu0 0
  %836 = vmatpush1.bf16.msra.mxu0 %v799
  %837 = vmatprep.subr.bf16.mxu0 0
  %838 = vmatpush1.bf16.msra.mxu0 %v800
  %839 = vmatprep.subr.bf16.mxu0 0
  %840 = vmatpush1.bf16.msra.mxu0 %v801
  %841 = vmatprep.subr.bf16.mxu0 0
  %842 = vmatpush1.bf16.msra.mxu0 %v802
  %843 = vmatprep.subr.bf16.mxu0 0
  %844 = vmatpush1.bf16.msra.mxu0 %v803
  %845 = vmatprep.subr.bf16.mxu0 0
  %846 = vmatpush1.bf16.msra.mxu0 %v804
  %847 = vmatprep.subr.bf16.mxu0 0
  %848 = vmatpush1.bf16.msra.mxu0 %v805
  %849 = vmatprep.subr.bf16.mxu0 0
  %850 = vmatpush1.bf16.msra.mxu0 %v806
  %851 = vmatprep.subr.bf16.mxu0 0
  %852 = vmatpush1.bf16.msra.mxu0 %v807
  %853 = vmatprep.subr.bf16.mxu0 0
  %854 = vmatpush1.bf16.msra.mxu0 %v808
  %855 = vmatprep.subr.bf16.mxu0 0
  %856 = vmatpush1.bf16.msra.mxu0 %v809
  %857 = vmatprep.subr.bf16.mxu0 0
  %858 = vmatpush1.bf16.msra.mxu0 %v810
  %859 = vmatprep.mubr.bf16.mxu0 %v691
  %860 = vmatmul.mubr.bf16.gmra.mrb[0].mxu0 %v690
  %v861 = vpop.f32.mrb[0].mxu0
  %v862 = vadd.f32 %v729, %v861
  %v863 = vpop.f32.mrb[0].mxu0
  %v864 = vpop.f32.mrb[0].mxu0
  %v865 = vpop.f32.mrb[0].mxu0
  %866 = vdwg.mxu0
  %vm867 = vcmask 326656
  %868 = vst.msk [vmem:[%s17] sm:$0xff] %vm867, %v862
  %v869 = vld [vmem:[%s3] sm:$0xff]
  %v870 = vmin.f32 %v862, 80.0
  %v871 = vmul.f32 %v870, 0.5
  %v872 = vmul.f32 %v871, 1.442695
  %v873 = vpow.pop %v872
  %v874 = vmul.f32 %v869, %v873
  %v875 = vpack.c.bf16 %v862, %v862
  %v876 = vld [vmem:[%s11] sm:$0xff]
  %v877 = vld [vmem:[%s11 + $0x8] sm:$0xff]
  %v878 = vld [vmem:[%s11 + $0x10] sm:$0xff]
  %v879 = vld [vmem:[%s11 + $0x18] sm:$0xff]
  %v880 = vld [vmem:[%s11 + $0x20] sm:$0xff]
  %v881 = vpack.c.bf16 %v874, %v874
  %v882 = vld [vmem:[%s12] sm:$0xff]
  %v883 = vld [vmem:[%s12 + $0x8] sm:$0xff]
  %v884 = vld [vmem:[%s12 + $0x10] sm:$0xff]
  %v885 = vld [vmem:[%s12 + $0x18] sm:$0xff]
  %v886 = vld [vmem:[%s12 + $0x20] sm:$0xff]
  %v892 = vunpack.c.l.b16 %v882
  %v893 = vunpack.c.h.b16 %v882
  %v894 = vunpack.c.l.b16 %v883
  %v895 = vunpack.c.h.b16 %v883
  %v896 = vunpack.c.l.b16 %v884
  %v897 = vunpack.c.h.b16 %v884
  %v898 = vunpack.c.l.b16 %v885
  %v899 = vunpack.c.h.b16 %v885
  %v900 = vunpack.c.l.b16 %v886
  %v901 = vunpack.c.h.b16 %v886
  %v902 = vpack.c.b16 %v894, %v892
  %v903 = vpack.c.b16 %v895, %v893
  %v904 = vpack.c.b16 %v898, %v896
  %v905 = vpack.c.b16 %v899, %v897
  %v906 = vpack.c.b16 %v900, %v900
  %v907 = vpack.c.b16 %v901, %v901
  %v913 = vsel %vm867, %v881, 0
  %vm915 = vcmask 1043456
  %v917 = vsel %vm915, %v906, 0
  %v920 = vsel %vm915, %v907, 0
  %922 = vmatprep.subr.bf16.mxu0 %v903
  %923 = vmatpush1.bf16.msra.mxu0 %v902
  %924 = vmatprep.subr.bf16.mxu0 %v905
  %925 = vmatpush1.bf16.msra.mxu0 %v904
  %926 = vmatprep.subr.bf16.mxu0 %v920
  %927 = vmatpush1.bf16.msra.mxu0 %v917
  %928 = vmatprep.subr.bf16.mxu0 0
  %929 = vmatpush1.bf16.msra.mxu0 0
  %930 = vmatprep.subr.bf16.mxu0 0
  %931 = vmatpush1.bf16.msra.mxu0 0
  %932 = vmatprep.subr.bf16.mxu0 0
  %933 = vmatpush1.bf16.msra.mxu0 0
  %934 = vmatprep.subr.bf16.mxu0 0
  %935 = vmatpush1.bf16.msra.mxu0 0
  %936 = vmatprep.subr.bf16.mxu0 0
  %937 = vmatpush1.bf16.msra.mxu0 0
  %938 = vmatprep.subr.bf16.mxu0 0
  %939 = vmatpush1.bf16.msra.mxu0 0
  %940 = vmatprep.subr.bf16.mxu0 0
  %941 = vmatpush1.bf16.msra.mxu0 0
  %942 = vmatprep.subr.bf16.mxu0 0
  %943 = vmatpush1.bf16.msra.mxu0 0
  %944 = vmatprep.subr.bf16.mxu0 0
  %945 = vmatpush1.bf16.msra.mxu0 0
  %946 = vmatprep.subr.bf16.mxu0 0
  %947 = vmatpush1.bf16.msra.mxu0 0
  %948 = vmatprep.subr.bf16.mxu0 0
  %949 = vmatpush1.bf16.msra.mxu0 0
  %950 = vmatprep.subr.bf16.mxu0 0
  %951 = vmatpush1.bf16.msra.mxu0 0
  %952 = vmatprep.subr.bf16.mxu0 0
  %953 = vmatpush1.bf16.msra.mxu0 0
  %954 = vmatprep.mubr.bf16.mxu0 0
  %955 = vmatmul.mubr.bf16.gmra.mrb[0].mxu0 %v913
  %v956 = vpop.f32.mrb[0].mxu0
  %v957 = vadd.f32 0.0, %v956
  %v958 = vpop.f32.mrb[0].mxu0
  %v959 = vadd.f32 0.0, %v958
  %v960 = vpop.f32.mrb[0].mxu0
  %v961 = vpop.f32.mrb[0].mxu0
  %962 = vdwg.mxu0
  %v968 = vunpack.c.l.b16 %v876
  %v969 = vunpack.c.h.b16 %v876
  %v970 = vunpack.c.l.b16 %v877
  %v971 = vunpack.c.h.b16 %v877
  %v972 = vunpack.c.l.b16 %v878
  %v973 = vunpack.c.h.b16 %v878
  %v974 = vunpack.c.l.b16 %v879
  %v975 = vunpack.c.h.b16 %v879
  %v976 = vunpack.c.l.b16 %v880
  %v977 = vunpack.c.h.b16 %v880
  %v978 = vpack.c.b16 %v970, %v968
  %v979 = vpack.c.b16 %v971, %v969
  %v980 = vpack.c.b16 %v974, %v972
  %v981 = vpack.c.b16 %v975, %v973
  %v982 = vpack.c.b16 %v976, %v976
  %v983 = vpack.c.b16 %v977, %v977
  %v989 = vsel %vm867, %v875, 0
  %v992 = vsel %vm915, %v982, 0
  %v995 = vsel %vm915, %v983, 0
  %997 = vmatprep.subr.bf16.mxu0 %v979
  %998 = vmatpush1.bf16.msra.mxu0 %v978
  %999 = vmatprep.subr.bf16.mxu0 %v981
  %1000 = vmatpush1.bf16.msra.mxu0 %v980
  %1001 = vmatprep.subr.bf16.mxu0 %v995
  %1002 = vmatpush1.bf16.msra.mxu0 %v992
  %1003 = vmatprep.subr.bf16.mxu0 0
  %1004 = vmatpush1.bf16.msra.mxu0 0
  %1005 = vmatprep.subr.bf16.mxu0 0
  %1006 = vmatpush1.bf16.msra.mxu0 0
  %1007 = vmatprep.subr.bf16.mxu0 0
  %1008 = vmatpush1.bf16.msra.mxu0 0
  %1009 = vmatprep.subr.bf16.mxu0 0
  %1010 = vmatpush1.bf16.msra.mxu0 0
  %1011 = vmatprep.subr.bf16.mxu0 0
  %1012 = vmatpush1.bf16.msra.mxu0 0
  %1013 = vmatprep.subr.bf16.mxu0 0
  %1014 = vmatpush1.bf16.msra.mxu0 0
  %1015 = vmatprep.subr.bf16.mxu0 0
  %1016 = vmatpush1.bf16.msra.mxu0 0
  %1017 = vmatprep.subr.bf16.mxu0 0
  %1018 = vmatpush1.bf16.msra.mxu0 0
  %1019 = vmatprep.subr.bf16.mxu0 0
  %1020 = vmatpush1.bf16.msra.mxu0 0
  %1021 = vmatprep.subr.bf16.mxu0 0
  %1022 = vmatpush1.bf16.msra.mxu0 0
  %1023 = vmatprep.subr.bf16.mxu0 0
  %1024 = vmatpush1.bf16.msra.mxu0 0
  %1025 = vmatprep.subr.bf16.mxu0 0
  %1026 = vmatpush1.bf16.msra.mxu0 0
  %1027 = vmatprep.subr.bf16.mxu0 0
  %1028 = vmatpush1.bf16.msra.mxu0 0
  %1029 = vmatprep.mubr.bf16.mxu0 0
  %1030 = vmatmul.mubr.bf16.gmra.mrb[0].mxu0 %v989
  %v1031 = vpop.f32.mrb[0].mxu0
  %v1032 = vadd.f32 %v957, %v1031
  %v1033 = vpop.f32.mrb[0].mxu0
  %v1034 = vadd.f32 %v959, %v1033
  %v1035 = vpop.f32.mrb[0].mxu0
  %v1036 = vpop.f32.mrb[0].mxu0
  %1037 = vdwg.mxu0
  %v1038 = vld [vmem:[%s13] sm:$0x3]
  %v1040 = vlaneseq
  %v1041 = vshrl.u32 %v1040, 7
  %v1042 = vsub.s32 0, %v1041
  %v1043 = vrot.slane %v1038, %v1042
  %v1044 = vlaneseq
  %v1045 = vshrl.u32 %v1044, 7
  %v1046 = vsub.s32 1, %v1045
  %v1047 = vrot.slane %v1038, %v1046
  %v1050 = vadd.f32 %v1032, %v1043
  %v1051 = vadd.f32 %v1034, %v1047
  %v1052 = vrot.slane %v1050, 1
  %v1053 = vrot.slane %v1051, 1
  %v1054 = vmul.f32 %v1052, %v109
  %v1055 = vmul.f32 %v1053, %v109
  %v1056 = vpack.c.bf16 %v1050, %v1050
  %v1057 = vpack.c.bf16 %v1051, %v1051
  %v1058 = vld [vmem:[%s14] sm:$0xff]
  %v1059 = vld [vmem:[%s14 + $0x8] sm:$0xff]
  %v1060 = vld [vmem:[%s14 + $0x10] sm:$0xff]
  %v1061 = vld [vmem:[%s14 + $0x18] sm:$0xff]
  %v1062 = vld [vmem:[%s14 + $0x20] sm:$0xff]
  %v1063 = vld [vmem:[%s14 + $0x28] sm:$0xff]
  %v1064 = vld [vmem:[%s14 + $0x30] sm:$0xff]
  %v1065 = vld [vmem:[%s14 + $0x38] sm:$0xff]
  %v1066 = vld [vmem:[%s14 + $0x40] sm:$0xff]
  %v1067 = vld [vmem:[%s14 + $0x48] sm:$0xff]
  %v1068 = vld [vmem:[%s14 + $0x50] sm:$0xff]
  %v1069 = vld [vmem:[%s14 + $0x58] sm:$0xff]
  %v1070 = vld [vmem:[%s14 + $0x60] sm:$0xff]
  %v1071 = vld [vmem:[%s14 + $0x68] sm:$0xff]
  %v1072 = vld [vmem:[%s14 + $0x70] sm:$0xff]
  %v1073 = vld [vmem:[%s14 + $0x78] sm:$0xff]
  %v1074 = vld [vmem:[%s14 + $0x80] sm:$0xff]
  %v1075 = vld [vmem:[%s14 + $0x88] sm:$0xff]
  %v1076 = vld [vmem:[%s14 + $0x90] sm:$0xff]
  %v1077 = vld [vmem:[%s14 + $0x98] sm:$0xff]
  %v1078 = vld [vmem:[%s14 + $0xa0] sm:$0xff]
  %v1079 = vld [vmem:[%s14 + $0xa8] sm:$0xff]
  %v1080 = vld [vmem:[%s14 + $0xb0] sm:$0xff]
  %v1081 = vld [vmem:[%s14 + $0xb8] sm:$0xff]
  %v1082 = vld [vmem:[%s14 + $0xc0] sm:$0xff]
  %v1083 = vld [vmem:[%s14 + $0xc8] sm:$0xff]
  %v1084 = vld [vmem:[%s14 + $0xd0] sm:$0xff]
  %v1085 = vld [vmem:[%s14 + $0xd8] sm:$0xff]
  %v1086 = vld [vmem:[%s14 + $0xe0] sm:$0xff]
  %v1087 = vld [vmem:[%s14 + $0xe8] sm:$0xff]
  %v1088 = vld [vmem:[%s14 + $0xf0] sm:$0xff]
  %v1089 = vld [vmem:[%s14 + $0xf8] sm:$0xff]
  %v1090 = vpack.c.bf16 %v1054, %v1054
  %v1091 = vpack.c.bf16 %v1055, %v1055
  %v1092 = vld [vmem:[%s15] sm:$0xff]
  %v1093 = vld [vmem:[%s15 + $0x8] sm:$0xff]
  %v1094 = vld [vmem:[%s15 + $0x10] sm:$0xff]
  %v1095 = vld [vmem:[%s15 + $0x18] sm:$0xff]
  %v1096 = vld [vmem:[%s15 + $0x20] sm:$0xff]
  %v1097 = vld [vmem:[%s15 + $0x28] sm:$0xff]
  %v1098 = vld [vmem:[%s15 + $0x30] sm:$0xff]
  %v1099 = vld [vmem:[%s15 + $0x38] sm:$0xff]
  %v1100 = vld [vmem:[%s15 + $0x40] sm:$0xff]
  %v1101 = vld [vmem:[%s15 + $0x48] sm:$0xff]
  %v1102 = vld [vmem:[%s15 + $0x50] sm:$0xff]
  %v1103 = vld [vmem:[%s15 + $0x58] sm:$0xff]
  %v1104 = vld [vmem:[%s15 + $0x60] sm:$0xff]
  %v1105 = vld [vmem:[%s15 + $0x68] sm:$0xff]
  %v1106 = vld [vmem:[%s15 + $0x70] sm:$0xff]
  %v1107 = vld [vmem:[%s15 + $0x78] sm:$0xff]
  %v1108 = vld [vmem:[%s15 + $0x80] sm:$0xff]
  %v1109 = vld [vmem:[%s15 + $0x88] sm:$0xff]
  %v1110 = vld [vmem:[%s15 + $0x90] sm:$0xff]
  %v1111 = vld [vmem:[%s15 + $0x98] sm:$0xff]
  %v1112 = vld [vmem:[%s15 + $0xa0] sm:$0xff]
  %v1113 = vld [vmem:[%s15 + $0xa8] sm:$0xff]
  %v1114 = vld [vmem:[%s15 + $0xb0] sm:$0xff]
  %v1115 = vld [vmem:[%s15 + $0xb8] sm:$0xff]
  %v1116 = vld [vmem:[%s15 + $0xc0] sm:$0xff]
  %v1117 = vld [vmem:[%s15 + $0xc8] sm:$0xff]
  %v1118 = vld [vmem:[%s15 + $0xd0] sm:$0xff]
  %v1119 = vld [vmem:[%s15 + $0xd8] sm:$0xff]
  %v1120 = vld [vmem:[%s15 + $0xe0] sm:$0xff]
  %v1121 = vld [vmem:[%s15 + $0xe8] sm:$0xff]
  %v1122 = vld [vmem:[%s15 + $0xf0] sm:$0xff]
  %v1123 = vld [vmem:[%s15 + $0xf8] sm:$0xff]
  %v1156 = vunpack.c.l.b16 %v1092
  %v1157 = vunpack.c.h.b16 %v1092
  %v1158 = vunpack.c.l.b16 %v1093
  %v1159 = vunpack.c.h.b16 %v1093
  %v1160 = vunpack.c.l.b16 %v1094
  %v1161 = vunpack.c.h.b16 %v1094
  %v1162 = vunpack.c.l.b16 %v1095
  %v1163 = vunpack.c.h.b16 %v1095
  %v1164 = vunpack.c.l.b16 %v1096
  %v1165 = vunpack.c.h.b16 %v1096
  %v1166 = vunpack.c.l.b16 %v1097
  %v1167 = vunpack.c.h.b16 %v1097
  %v1168 = vunpack.c.l.b16 %v1098
  %v1169 = vunpack.c.h.b16 %v1098
  %v1170 = vunpack.c.l.b16 %v1099
  %v1171 = vunpack.c.h.b16 %v1099
  %v1172 = vunpack.c.l.b16 %v1100
  %v1173 = vunpack.c.h.b16 %v1100
  %v1174 = vunpack.c.l.b16 %v1101
  %v1175 = vunpack.c.h.b16 %v1101
  %v1176 = vunpack.c.l.b16 %v1102
  %v1177 = vunpack.c.h.b16 %v1102
  %v1178 = vunpack.c.l.b16 %v1103
  %v1179 = vunpack.c.h.b16 %v1103
  %v1180 = vunpack.c.l.b16 %v1104
  %v1181 = vunpack.c.h.b16 %v1104
  %v1182 = vunpack.c.l.b16 %v1105
  %v1183 = vunpack.c.h.b16 %v1105
  %v1184 = vunpack.c.l.b16 %v1106
  %v1185 = vunpack.c.h.b16 %v1106
  %v1186 = vunpack.c.l.b16 %v1107
  %v1187 = vunpack.c.h.b16 %v1107
  %v1188 = vunpack.c.l.b16 %v1108
  %v1189 = vunpack.c.h.b16 %v1108
  %v1190 = vunpack.c.l.b16 %v1109
  %v1191 = vunpack.c.h.b16 %v1109
  %v1192 = vunpack.c.l.b16 %v1110
  %v1193 = vunpack.c.h.b16 %v1110
  %v1194 = vunpack.c.l.b16 %v1111
  %v1195 = vunpack.c.h.b16 %v1111
  %v1196 = vunpack.c.l.b16 %v1112
  %v1197 = vunpack.c.h.b16 %v1112
  %v1198 = vunpack.c.l.b16 %v1113
  %v1199 = vunpack.c.h.b16 %v1113
  %v1200 = vunpack.c.l.b16 %v1114
  %v1201 = vunpack.c.h.b16 %v1114
  %v1202 = vunpack.c.l.b16 %v1115
  %v1203 = vunpack.c.h.b16 %v1115
  %v1204 = vunpack.c.l.b16 %v1116
  %v1205 = vunpack.c.h.b16 %v1116
  %v1206 = vunpack.c.l.b16 %v1117
  %v1207 = vunpack.c.h.b16 %v1117
  %v1208 = vunpack.c.l.b16 %v1118
  %v1209 = vunpack.c.h.b16 %v1118
  %v1210 = vunpack.c.l.b16 %v1119
  %v1211 = vunpack.c.h.b16 %v1119
  %v1212 = vunpack.c.l.b16 %v1120
  %v1213 = vunpack.c.h.b16 %v1120
  %v1214 = vunpack.c.l.b16 %v1121
  %v1215 = vunpack.c.h.b16 %v1121
  %v1216 = vunpack.c.l.b16 %v1122
  %v1217 = vunpack.c.h.b16 %v1122
  %v1218 = vunpack.c.l.b16 %v1123
  %v1219 = vunpack.c.h.b16 %v1123
  %v1220 = vpack.c.b16 %v1158, %v1156
  %v1221 = vpack.c.b16 %v1159, %v1157
  %v1222 = vpack.c.b16 %v1162, %v1160
  %v1223 = vpack.c.b16 %v1163, %v1161
  %v1224 = vpack.c.b16 %v1166, %v1164
  %v1225 = vpack.c.b16 %v1167, %v1165
  %v1226 = vpack.c.b16 %v1170, %v1168
  %v1227 = vpack.c.b16 %v1171, %v1169
  %v1228 = vpack.c.b16 %v1174, %v1172
  %v1229 = vpack.c.b16 %v1175, %v1173
  %v1230 = vpack.c.b16 %v1178, %v1176
  %v1231 = vpack.c.b16 %v1179, %v1177
  %v1232 = vpack.c.b16 %v1182, %v1180
  %v1233 = vpack.c.b16 %v1183, %v1181
  %v1234 = vpack.c.b16 %v1186, %v1184
  %v1235 = vpack.c.b16 %v1187, %v1185
  %v1236 = vpack.c.b16 %v1190, %v1188
  %v1237 = vpack.c.b16 %v1191, %v1189
  %v1238 = vpack.c.b16 %v1194, %v1192
  %v1239 = vpack.c.b16 %v1195, %v1193
  %v1240 = vpack.c.b16 %v1198, %v1196
  %v1241 = vpack.c.b16 %v1199, %v1197
  %v1242 = vpack.c.b16 %v1202, %v1200
  %v1243 = vpack.c.b16 %v1203, %v1201
  %v1244 = vpack.c.b16 %v1206, %v1204
  %v1245 = vpack.c.b16 %v1207, %v1205
  %v1246 = vpack.c.b16 %v1210, %v1208
  %v1247 = vpack.c.b16 %v1211, %v1209
  %v1248 = vpack.c.b16 %v1214, %v1212
  %v1249 = vpack.c.b16 %v1215, %v1213
  %v1250 = vpack.c.b16 %v1218, %v1216
  %v1251 = vpack.c.b16 %v1219, %v1217
  %1284 = vmatprep.subr.bf16.mxu0 %v1221
  %1285 = vmatpush1.bf16.msra.mxu0 %v1220
  %1286 = vmatprep.subr.bf16.mxu0 %v1223
  %1287 = vmatpush1.bf16.msra.mxu0 %v1222
  %1288 = vmatprep.subr.bf16.mxu0 %v1225
  %1289 = vmatpush1.bf16.msra.mxu0 %v1224
  %1290 = vmatprep.subr.bf16.mxu0 %v1227
  %1291 = vmatpush1.bf16.msra.mxu0 %v1226
  %1292 = vmatprep.subr.bf16.mxu0 %v1229
  %1293 = vmatpush1.bf16.msra.mxu0 %v1228
  %1294 = vmatprep.subr.bf16.mxu0 %v1231
  %1295 = vmatpush1.bf16.msra.mxu0 %v1230
  %1296 = vmatprep.subr.bf16.mxu0 %v1233
  %1297 = vmatpush1.bf16.msra.mxu0 %v1232
  %1298 = vmatprep.subr.bf16.mxu0 %v1235
  %1299 = vmatpush1.bf16.msra.mxu0 %v1234
  %1300 = vmatprep.subr.bf16.mxu0 %v1237
  %1301 = vmatpush1.bf16.msra.mxu0 %v1236
  %1302 = vmatprep.subr.bf16.mxu0 %v1239
  %1303 = vmatpush1.bf16.msra.mxu0 %v1238
  %1304 = vmatprep.subr.bf16.mxu0 %v1241
  %1305 = vmatpush1.bf16.msra.mxu0 %v1240
  %1306 = vmatprep.subr.bf16.mxu0 %v1243
  %1307 = vmatpush1.bf16.msra.mxu0 %v1242
  %1308 = vmatprep.subr.bf16.mxu0 %v1245
  %1309 = vmatpush1.bf16.msra.mxu0 %v1244
  %1310 = vmatprep.subr.bf16.mxu0 %v1247
  %1311 = vmatpush1.bf16.msra.mxu0 %v1246
  %1312 = vmatprep.subr.bf16.mxu0 %v1249
  %1313 = vmatpush1.bf16.msra.mxu0 %v1248
  %1314 = vmatprep.subr.bf16.mxu0 %v1251
  %1315 = vmatpush1.bf16.msra.mxu0 %v1250
  %1316 = vmatprep.mubr.bf16.mxu0 %v1091
  %1317 = vmatmul.mubr.bf16.gmra.mrb[0].mxu0 %v1090
  %v1318 = vpop.f32.mrb[0].mxu0
  %v1319 = vadd.f32 0.0, %v1318
  %v1320 = vpop.f32.mrb[0].mxu0
  %v1321 = vadd.f32 0.0, %v1320
  %v1322 = vpop.f32.mrb[0].mxu0
  %v1323 = vpop.f32.mrb[0].mxu0
  %1324 = vdwg.mxu0
  %v1357 = vunpack.c.l.b16 %v1058
  %v1358 = vunpack.c.h.b16 %v1058
  %v1359 = vunpack.c.l.b16 %v1059
  %v1360 = vunpack.c.h.b16 %v1059
  %v1361 = vunpack.c.l.b16 %v1060
  %v1362 = vunpack.c.h.b16 %v1060
  %v1363 = vunpack.c.l.b16 %v1061
  %v1364 = vunpack.c.h.b16 %v1061
  %v1365 = vunpack.c.l.b16 %v1062
  %v1366 = vunpack.c.h.b16 %v1062
  %v1367 = vunpack.c.l.b16 %v1063
  %v1368 = vunpack.c.h.b16 %v1063
  %v1369 = vunpack.c.l.b16 %v1064
  %v1370 = vunpack.c.h.b16 %v1064
  %v1371 = vunpack.c.l.b16 %v1065
  %v1372 = vunpack.c.h.b16 %v1065
  %v1373 = vunpack.c.l.b16 %v1066
  %v1374 = vunpack.c.h.b16 %v1066
  %v1375 = vunpack.c.l.b16 %v1067
  %v1376 = vunpack.c.h.b16 %v1067
  %v1377 = vunpack.c.l.b16 %v1068
  %v1378 = vunpack.c.h.b16 %v1068
  %v1379 = vunpack.c.l.b16 %v1069
  %v1380 = vunpack.c.h.b16 %v1069
  %v1381 = vunpack.c.l.b16 %v1070
  %v1382 = vunpack.c.h.b16 %v1070
  %v1383 = vunpack.c.l.b16 %v1071
  %v1384 = vunpack.c.h.b16 %v1071
  %v1385 = vunpack.c.l.b16 %v1072
  %v1386 = vunpack.c.h.b16 %v1072
  %v1387 = vunpack.c.l.b16 %v1073
  %v1388 = vunpack.c.h.b16 %v1073
  %v1389 = vunpack.c.l.b16 %v1074
  %v1390 = vunpack.c.h.b16 %v1074
  %v1391 = vunpack.c.l.b16 %v1075
  %v1392 = vunpack.c.h.b16 %v1075
  %v1393 = vunpack.c.l.b16 %v1076
  %v1394 = vunpack.c.h.b16 %v1076
  %v1395 = vunpack.c.l.b16 %v1077
  %v1396 = vunpack.c.h.b16 %v1077
  %v1397 = vunpack.c.l.b16 %v1078
  %v1398 = vunpack.c.h.b16 %v1078
  %v1399 = vunpack.c.l.b16 %v1079
  %v1400 = vunpack.c.h.b16 %v1079
  %v1401 = vunpack.c.l.b16 %v1080
  %v1402 = vunpack.c.h.b16 %v1080
  %v1403 = vunpack.c.l.b16 %v1081
  %v1404 = vunpack.c.h.b16 %v1081
  %v1405 = vunpack.c.l.b16 %v1082
  %v1406 = vunpack.c.h.b16 %v1082
  %v1407 = vunpack.c.l.b16 %v1083
  %v1408 = vunpack.c.h.b16 %v1083
  %v1409 = vunpack.c.l.b16 %v1084
  %v1410 = vunpack.c.h.b16 %v1084
  %v1411 = vunpack.c.l.b16 %v1085
  %v1412 = vunpack.c.h.b16 %v1085
  %v1413 = vunpack.c.l.b16 %v1086
  %v1414 = vunpack.c.h.b16 %v1086
  %v1415 = vunpack.c.l.b16 %v1087
  %v1416 = vunpack.c.h.b16 %v1087
  %v1417 = vunpack.c.l.b16 %v1088
  %v1418 = vunpack.c.h.b16 %v1088
  %v1419 = vunpack.c.l.b16 %v1089
  %v1420 = vunpack.c.h.b16 %v1089
  %v1421 = vpack.c.b16 %v1359, %v1357
  %v1422 = vpack.c.b16 %v1360, %v1358
  %v1423 = vpack.c.b16 %v1363, %v1361
  %v1424 = vpack.c.b16 %v1364, %v1362
  %v1425 = vpack.c.b16 %v1367, %v1365
  %v1426 = vpack.c.b16 %v1368, %v1366
  %v1427 = vpack.c.b16 %v1371, %v1369
  %v1428 = vpack.c.b16 %v1372, %v1370
  %v1429 = vpack.c.b16 %v1375, %v1373
  %v1430 = vpack.c.b16 %v1376, %v1374
  %v1431 = vpack.c.b16 %v1379, %v1377
  %v1432 = vpack.c.b16 %v1380, %v1378
  %v1433 = vpack.c.b16 %v1383, %v1381
  %v1434 = vpack.c.b16 %v1384, %v1382
  %v1435 = vpack.c.b16 %v1387, %v1385
  %v1436 = vpack.c.b16 %v1388, %v1386
  %v1437 = vpack.c.b16 %v1391, %v1389
  %v1438 = vpack.c.b16 %v1392, %v1390
  %v1439 = vpack.c.b16 %v1395, %v1393
  %v1440 = vpack.c.b16 %v1396, %v1394
  %v1441 = vpack.c.b16 %v1399, %v1397
  %v1442 = vpack.c.b16 %v1400, %v1398
  %v1443 = vpack.c.b16 %v1403, %v1401
  %v1444 = vpack.c.b16 %v1404, %v1402
  %v1445 = vpack.c.b16 %v1407, %v1405
  %v1446 = vpack.c.b16 %v1408, %v1406
  %v1447 = vpack.c.b16 %v1411, %v1409
  %v1448 = vpack.c.b16 %v1412, %v1410
  %v1449 = vpack.c.b16 %v1415, %v1413
  %v1450 = vpack.c.b16 %v1416, %v1414
  %v1451 = vpack.c.b16 %v1419, %v1417
  %v1452 = vpack.c.b16 %v1420, %v1418
  %1485 = vmatprep.subr.bf16.mxu0 %v1422
  %1486 = vmatpush1.bf16.msra.mxu0 %v1421
  %1487 = vmatprep.subr.bf16.mxu0 %v1424
  %1488 = vmatpush1.bf16.msra.mxu0 %v1423
  %1489 = vmatprep.subr.bf16.mxu0 %v1426
  %1490 = vmatpush1.bf16.msra.mxu0 %v1425
  %1491 = vmatprep.subr.bf16.mxu0 %v1428
  %1492 = vmatpush1.bf16.msra.mxu0 %v1427
  %1493 = vmatprep.subr.bf16.mxu0 %v1430
  %1494 = vmatpush1.bf16.msra.mxu0 %v1429
  %1495 = vmatprep.subr.bf16.mxu0 %v1432
  %1496 = vmatpush1.bf16.msra.mxu0 %v1431
  %1497 = vmatprep.subr.bf16.mxu0 %v1434
  %1498 = vmatpush1.bf16.msra.mxu0 %v1433
  %1499 = vmatprep.subr.bf16.mxu0 %v1436
  %1500 = vmatpush1.bf16.msra.mxu0 %v1435
  %1501 = vmatprep.subr.bf16.mxu0 %v1438
  %1502 = vmatpush1.bf16.msra.mxu0 %v1437
  %1503 = vmatprep.subr.bf16.mxu0 %v1440
  %1504 = vmatpush1.bf16.msra.mxu0 %v1439
  %1505 = vmatprep.subr.bf16.mxu0 %v1442
  %1506 = vmatpush1.bf16.msra.mxu0 %v1441
  %1507 = vmatprep.subr.bf16.mxu0 %v1444
  %1508 = vmatpush1.bf16.msra.mxu0 %v1443
  %1509 = vmatprep.subr.bf16.mxu0 %v1446
  %1510 = vmatpush1.bf16.msra.mxu0 %v1445
  %1511 = vmatprep.subr.bf16.mxu0 %v1448
  %1512 = vmatpush1.bf16.msra.mxu0 %v1447
  %1513 = vmatprep.subr.bf16.mxu0 %v1450
  %1514 = vmatpush1.bf16.msra.mxu0 %v1449
  %1515 = vmatprep.subr.bf16.mxu0 %v1452
  %1516 = vmatpush1.bf16.msra.mxu0 %v1451
  %1517 = vmatprep.mubr.bf16.mxu0 %v1057
  %1518 = vmatmul.mubr.bf16.gmra.mrb[0].mxu0 %v1056
  %v1519 = vpop.f32.mrb[0].mxu0
  %v1520 = vadd.f32 %v1319, %v1519
  %v1521 = vpop.f32.mrb[0].mxu0
  %v1522 = vadd.f32 %v1321, %v1521
  %v1523 = vpop.f32.mrb[0].mxu0
  %v1524 = vpop.f32.mrb[0].mxu0
  %1525 = vdwg.mxu0
  %v1526 = vld [vmem:[%s16] sm:$0x3]
  %v1528 = vlaneseq
  %v1529 = vshrl.u32 %v1528, 7
  %v1530 = vsub.s32 0, %v1529
  %v1531 = vrot.slane %v1526, %v1530
  %v1532 = vlaneseq
  %v1533 = vshrl.u32 %v1532, 7
  %v1534 = vsub.s32 1, %v1533
  %v1535 = vrot.slane %v1526, %v1534
  %v1538 = vadd.f32 %v1520, %v1531
  %v1539 = vadd.f32 %v1522, %v1535
  %vm1540 = vcmp.gt.f32.partialorder %v1538, 0.0
  %vm1541 = vcmp.gt.f32.partialorder %v1539, 0.0
  %v1542 = vmin.f32 %v1538, 0.0
  %v1543 = vmin.f32 %v1539, 0.0
  %v1544 = vmul.f32 %v1542, 1.442695
  %v1545 = vpow.pop %v1544
  %v1546 = vmul.f32 %v1543, 1.442695
  %v1547 = vpow.pop %v1546
  %v1548 = vsub.f32 %v1545, 1.0
  %v1549 = vsub.f32 %v1547, 1.0
  %v1550 = vsel %vm1540, %v1538, %v1548
  %v1551 = vsel %vm1541, %v1539, %v1549
  %1552 = vst [vmem:[%s18] sm:$0xff] %v1550
  %1553 = vst [vmem:[%s18 + $0x8] sm:$0xff] %v1551
  %v1554 = vrot.slane %v1550, 4
  %v1555 = vadd.f32 %v1550, %v1554
  %v1556 = vrot.slane %v1555, 2
  %v1557 = vadd.f32 %v1555, %v1556
  %v1558 = vrot.slane %v1557, 1
  %v1559 = vadd.f32 %v1557, %v1558
  %v1560 = vrot.slane %v1551, 4
  %v1561 = vadd.f32 %v1551, %v1560
  %v1562 = vrot.slane %v1561, 2
  %v1563 = vadd.f32 %v1561, %v1562
  %v1564 = vrot.slane %v1563, 1
  %v1565 = vadd.f32 %v1563, %v1564
  %v1566 = vmul.f32 %v1550, %v1550
  %v1567 = vmul.f32 %v1551, %v1551
  %v1568 = vrot.slane %v1566, 4
  %v1569 = vadd.f32 %v1566, %v1568
  %v1570 = vrot.slane %v1569, 2
  %v1571 = vadd.f32 %v1569, %v1570
  %v1572 = vrot.slane %v1571, 1
  %v1573 = vadd.f32 %v1571, %v1572
  %v1574 = vrot.slane %v1567, 4
  %v1575 = vadd.f32 %v1567, %v1574
  %v1576 = vrot.slane %v1575, 2
  %v1577 = vadd.f32 %v1575, %v1576
  %v1578 = vrot.slane %v1577, 1
  %v1579 = vadd.f32 %v1577, %v1578
  %vm1580 = vcmask 1040384
  %v1581 = vsel %vm1580, %v1559, %v1573
  %v1582 = vsel %vm1580, %v1565, %v1579
  %v1585 = vcombine.low %v1581, %v1582
  %v1587 = vunpack.c.l.s4 1983009808
  %v1588 = vunpack.c.0.s8 %v1587
  %v1589 = vlaneseq
  %v1590 = vshrl.u32 %v1589, 7
  %v1591 = vsub.s32 %v1588, %v1590
  %v1592 = vrot.slane %v1585, %v1591
  %1594 = vst [vmem:[%s19] sm:$0xf] %v1592
  // Predicated region
  $region70: #{vae_forward.13} parent=0 // pred_check
    _
  $region71: #{vae_forward.13} parent=0 // pred_check_branch
    %1596 = sbr.rel (0) target = $region73
  $region72: #{vae_forward.13} parent=0 // pred_region
    _
  $region73: #{vae_forward.13} parent=0 // pred_fallthru
    _
  // Predicated region
  $region74: #{vae_forward.13} parent=0 // pred_check
    _
  $region75: #{vae_forward.13} parent=0 // pred_check_branch
    %1598 = sbr.rel (0) target = $region77
  $region76: #{vae_forward.13} parent=0 // pred_region
    _
  $region77: #{vae_forward.13} parent=0 // pred_fallthru
    _
  // Predicated region
  $region78: #{vae_forward.13} parent=0 // pred_check
    _
  $region79: #{vae_forward.13} parent=0 // pred_check_branch
    %1600 = sbr.rel (0) target = $region81
  $region80: #{vae_forward.13} parent=0 // pred_region
    _
  $region81: #{vae_forward.13} parent=0 // pred_fallthru
    _
  // Predicated region
  $region82: #{vae_forward.13} parent=0 // pred_check
    _
  $region83: #{vae_forward.13} parent=0 // pred_check_branch
    %1602 = sbr.rel (0) target = $region85
  $region84: #{vae_forward.13} parent=0 // pred_region
    _
  $region85: #{vae_forward.13} parent=0 // pred_fallthru
    _
  // Predicated region
  $region86: #{vae_forward.13} parent=0 // pred_check
    _
  $region87: #{vae_forward.13} parent=0 // pred_check_branch
    %1604 = sbr.rel (0) target = $region89
  $region88: #{vae_forward.13} parent=0 // pred_region
    _
  $region89: #{vae_forward.13} parent=0 // pred_fallthru
    _
  // Predicated region
  $region90: #{vae_forward.13} parent=0 // pred_check
    _
  $region91: #{vae_forward.13} parent=0 // pred_check_branch
    %1606 = sbr.rel (0) target = $region93
  $region92: #{vae_forward.13} parent=0 // pred_region
    _
  $region93: #{vae_forward.13} parent=0 // pred_fallthru
    _

// kernel: vae_forward.17
$region0: #{vae_forward.17}
  #allocation0 [shape = 'u32[]', space=smem, size = 0x4, offset = 0x4, fixed_abs, tag = 'smem constant byte address 0x4 - core index']
  #allocation1 [shape = 'u32[144,128]{1,0:T(1,128)}', space=vmem, size = 0x12000, scoped, tag = 'internal scratch']
  %s0 = inlined_call_operand.vmem [shape: f32[2,64,16], index: 0, kind: input, shape index: {}]
  %s1 = inlined_call_operand.vmem [shape: f32[1,16], index: 1, kind: input, shape index: {}]
  %s2 = inlined_call_operand.vmem [shape: f32[1,16], index: 2, kind: input, shape index: {}]
  %s3 = inlined_call_operand.vmem [shape: f32[2,16], index: 3, kind: input, shape index: {}]
  %s4 = inlined_call_operand.vmem [shape: f32[2,16], index: 4, kind: input, shape index: {}]
  %s5 = inlined_call_operand.vmem [shape: f32[2,16], index: 5, kind: input, shape index: {}]
  %s6 = inlined_call_operand.vmem [shape: f32[2,1], index: 6, kind: input, shape index: {}]
  %s7 = inlined_call_operand.hbm [shape: f32[2,2,128], index: 7, kind: output, shape index: {}]
  %s8 = sld [smem:[#allocation0]]
  $region61: #{vae_forward.17} parent=0
    _
  %s10 = ssub.s32 1, %s8
  %s11 = scalar_select 0, %s10, %s8
  $region1: #{vae_forward.17} parent=0
    #allocation2 [shape = 'u8[2048]{0}', space=vmem, size = 0x800, scoped, tag = 'output window, operand 0']
    #allocation3 [shape = 's32[2]{0}', space=sflag, size = 0x8, scoped, tag = 'scoped memory for vae_forward.17']
    %12 = vsyncpa [#allocation3], 0
    %s13 = scalar_lea.sflag [#allocation3], 1
    %14 = vsyncpa %s13, 0
    loop: start=0, step=1, limit=4
    $region2: #{vae_forward.17} parent=1 // loop_pre_header
      _
    $region3: #{vae_forward.17} parent=1 // loop_header
      %s16 = sphi 0, %s20
      %p17 = scmp.ge.s32.totalorder %s16, 4
      %s26 = sphi 0, %s28
      %s29 = sphi 0, %s26
      %s30 = sphi 0, %s29
      %s46 = sphi 0, %s30
      %s50 = sphi 0, %s50
      %s52 = sphi 0, %s50
      %s53 = sphi 0, %s52
      %s67 = sphi 0, %s53
      %s71 = sphi 0, %s71
      %s73 = sphi 0, %s71
      %s74 = sphi 0, %s73
      %s88 = sphi 0, %s74
      %s92 = sphi 0, %s92
      %s94 = sphi 0, %s92
      %s95 = sphi 0, %s94
      %s109 = sphi 0, %s95
      %s113 = sphi 0, %s113
      %s115 = sphi 0, %s113
      %s116 = sphi 0, %s115
      %s130 = sphi 0, %s116
      %s134 = sphi 0, %s134
      %s136 = sphi 0, %s134
      %s137 = sphi 0, %s136
      %s151 = sphi 0, %s137
      %s155 = sphi 0, %s155
      %s157 = sphi 0, %s155
      %s158 = sphi 0, %s157
      %s172 = sphi 0, %s158
      %s178 = sphi 0, %s180
      %s181 = sphi 0, %s178
      %s182 = sphi 0, %s181
      %s198 = sphi 0, %s182
    $region4: #{vae_forward.17} parent=1 // loop_header_branch
      %19 = sbr.rel (%p17) target = $region8
    $region5: #{vae_forward.17} parent=1 // loop_body
      %s21 = ssub.s32 %s16, 1
      %s22 = ssub.s32 %s16, 2
      %s23 = sadd.s32 %s16, 1
      %s24 = ssub.s32 %s16, %s23
      %p25 = scmp.eq.s32.totalorder %s24, 0
      %s27 = sadd.s32 %s26, 1
      %s28 = scalar_select %p25, %s26, %s27
      %p31 = pneg %p25
      %p32 = scmp.eq.s32.totalorder %s16, 1
      %p33 = por %p31, %p32
      %p34 = scmp.ne.s32.totalorder %s26, %s29
      %p35 = scmp.eq.s32.totalorder %s16, 0
      %p36 = por %p34, %p35
      %p37 = scmp.ne.s32.totalorder %s26, %s29
      %p38 = scmp.eq.s32.totalorder %s21, 1
      %p39 = por %p37, %p38
      %p40 = scmp.ne.s32.totalorder %s29, %s30
      %p41 = scmp.eq.s32.totalorder %s21, 0
      %p42 = por %p40, %p41
      %p43 = scmp.ne.s32.totalorder %s29, %s30
      %p44 = scmp.eq.s32.totalorder %s22, 1
      %p45 = por %p43, %p44
      %p47 = scmp.ne.s32.totalorder %s30, %s46
      %p48 = scmp.eq.s32.totalorder %s22, 0
      %p49 = por %p47, %p48
      %s51 = sadd.s32 %s50, 1
      %p54 = scmp.eq.s32.totalorder %s16, 1
      %p55 = scmp.ne.s32.totalorder %s50, %s52
      %p56 = scmp.eq.s32.totalorder %s16, 0
      %p57 = por %p55, %p56
      %p58 = scmp.ne.s32.totalorder %s50, %s52
      %p59 = scmp.eq.s32.totalorder %s21, 1
      %p60 = por %p58, %p59
      %p61 = scmp.ne.s32.totalorder %s52, %s53
      %p62 = scmp.eq.s32.totalorder %s21, 0
      %p63 = por %p61, %p62
      %p64 = scmp.ne.s32.totalorder %s52, %s53
      %p65 = scmp.eq.s32.totalorder %s22, 1
      %p66 = por %p64, %p65
      %p68 = scmp.ne.s32.totalorder %s53, %s67
      %p69 = scmp.eq.s32.totalorder %s22, 0
      %p70 = por %p68, %p69
      %s72 = sadd.s32 %s71, 1
      %p75 = scmp.eq.s32.totalorder %s16, 1
      %p76 = scmp.ne.s32.totalorder %s71, %s73
      %p77 = scmp.eq.s32.totalorder %s16, 0
      %p78 = por %p76, %p77
      %p79 = scmp.ne.s32.totalorder %s71, %s73
      %p80 = scmp.eq.s32.totalorder %s21, 1
      %p81 = por %p79, %p80
      %p82 = scmp.ne.s32.totalorder %s73, %s74
      %p83 = scmp.eq.s32.totalorder %s21, 0
      %p84 = por %p82, %p83
      %p85 = scmp.ne.s32.totalorder %s73, %s74
      %p86 = scmp.eq.s32.totalorder %s22, 1
      %p87 = por %p85, %p86
      %p89 = scmp.ne.s32.totalorder %s74, %s88
      %p90 = scmp.eq.s32.totalorder %s22, 0
      %p91 = por %p89, %p90
      %s93 = sadd.s32 %s92, 1
      %p96 = scmp.eq.s32.totalorder %s16, 1
      %p97 = scmp.ne.s32.totalorder %s92, %s94
      %p98 = scmp.eq.s32.totalorder %s16, 0
      %p99 = por %p97, %p98
      %p100 = scmp.ne.s32.totalorder %s92, %s94
      %p101 = scmp.eq.s32.totalorder %s21, 1
      %p102 = por %p100, %p101
      %p103 = scmp.ne.s32.totalorder %s94, %s95
      %p104 = scmp.eq.s32.totalorder %s21, 0
      %p105 = por %p103, %p104
      %p106 = scmp.ne.s32.totalorder %s94, %s95
      %p107 = scmp.eq.s32.totalorder %s22, 1
      %p108 = por %p106, %p107
      %p110 = scmp.ne.s32.totalorder %s95, %s109
      %p111 = scmp.eq.s32.totalorder %s22, 0
      %p112 = por %p110, %p111
      %s114 = sadd.s32 %s113, 1
      %p117 = scmp.eq.s32.totalorder %s16, 1
      %p118 = scmp.ne.s32.totalorder %s113, %s115
      %p119 = scmp.eq.s32.totalorder %s16, 0
      %p120 = por %p118, %p119
      %p121 = scmp.ne.s32.totalorder %s113, %s115
      %p122 = scmp.eq.s32.totalorder %s21, 1
      %p123 = por %p121, %p122
      %p124 = scmp.ne.s32.totalorder %s115, %s116
      %p125 = scmp.eq.s32.totalorder %s21, 0
      %p126 = por %p124, %p125
      %p127 = scmp.ne.s32.totalorder %s115, %s116
      %p128 = scmp.eq.s32.totalorder %s22, 1
      %p129 = por %p127, %p128
      %p131 = scmp.ne.s32.totalorder %s116, %s130
      %p132 = scmp.eq.s32.totalorder %s22, 0
      %p133 = por %p131, %p132
      %s135 = sadd.s32 %s134, 1
      %p138 = scmp.eq.s32.totalorder %s16, 1
      %p139 = scmp.ne.s32.totalorder %s134, %s136
      %p140 = scmp.eq.s32.totalorder %s16, 0
      %p141 = por %p139, %p140
      %p142 = scmp.ne.s32.totalorder %s134, %s136
      %p143 = scmp.eq.s32.totalorder %s21, 1
      %p144 = por %p142, %p143
      %p145 = scmp.ne.s32.totalorder %s136, %s137
      %p146 = scmp.eq.s32.totalorder %s21, 0
      %p147 = por %p145, %p146
      %p148 = scmp.ne.s32.totalorder %s136, %s137
      %p149 = scmp.eq.s32.totalorder %s22, 1
      %p150 = por %p148, %p149
      %p152 = scmp.ne.s32.totalorder %s137, %s151
      %p153 = scmp.eq.s32.totalorder %s22, 0
      %p154 = por %p152, %p153
      %s156 = sadd.s32 %s155, 1
      %p159 = scmp.eq.s32.totalorder %s16, 1
      %p160 = scmp.ne.s32.totalorder %s155, %s157
      %p161 = scmp.eq.s32.totalorder %s16, 0
      %p162 = por %p160, %p161
      %p163 = scmp.ne.s32.totalorder %s155, %s157
      %p164 = scmp.eq.s32.totalorder %s21, 1
      %p165 = por %p163, %p164
      %p166 = scmp.ne.s32.totalorder %s157, %s158
      %p167 = scmp.eq.s32.totalorder %s21, 0
      %p168 = por %p166, %p167
      %p169 = scmp.ne.s32.totalorder %s157, %s158
      %p170 = scmp.eq.s32.totalorder %s22, 1
      %p171 = por %p169, %p170
      %p173 = scmp.ne.s32.totalorder %s158, %s172
      %p174 = scmp.eq.s32.totalorder %s22, 0
      %p175 = por %p173, %p174
      %s176 = ssub.s32 %s16, %s23
      %p177 = scmp.eq.s32.totalorder %s176, 0
      %s179 = sadd.s32 %s178, 1
      %s180 = scalar_select %p177, %s178, %s179
      %p183 = pneg %p177
      %p184 = scmp.eq.s32.totalorder %s16, 1
      %p185 = por %p183, %p184
      %p186 = scmp.ne.s32.totalorder %s178, %s181
      %p187 = scmp.eq.s32.totalorder %s16, 0
      %p188 = por %p186, %p187
      %p189 = scmp.ne.s32.totalorder %s178, %s181
      %p190 = scmp.eq.s32.totalorder %s21, 1
      %p191 = por %p189, %p190
      %p192 = scmp.ne.s32.totalorder %s181, %s182
      %p193 = scmp.eq.s32.totalorder %s21, 0
      %p194 = por %p192, %p193
      %p195 = scmp.ne.s32.totalorder %s181, %s182
      %p196 = scmp.eq.s32.totalorder %s22, 1
      %p197 = por %p195, %p196
      %p199 = scmp.ne.s32.totalorder %s182, %s198
      %p200 = scmp.eq.s32.totalorder %s22, 0
      %p201 = por %p199, %p200
      %p202 = scmp.le.s32.totalorder 1, %s16
      %p203 = scmp.lt.s32.totalorder %s16, 3
      %p204 = pnand %p202, %p203
      %p205 = pneg %p204
      // Predicated region
      $region9: #{vae_forward.17} parent=5 // pred_check
        _
      $region10: #{vae_forward.17} parent=5 // pred_check_branch
        %207 = sbr.rel (%p204) target = $region12
      $region11: #{vae_forward.17} parent=5 // pred_region
        %s208 = ssub.s32 %s16, 1
        // Predicated region
        $region13: #{vae_forward.17} parent=11 // pred_check
          %p209 = pneg %p63
        $region14: #{vae_forward.17} parent=11 // pred_check_branch
          %211 = sbr.rel (%p209) target = $region16
        $region15: #{vae_forward.17} parent=11 // pred_region
          _
        $region16: #{vae_forward.17} parent=11 // pred_fallthru
          _
        // Predicated region
        $region17: #{vae_forward.17} parent=11 // pred_check
          %p212 = pneg %p84
        $region18: #{vae_forward.17} parent=11 // pred_check_branch
          %214 = sbr.rel (%p212) target = $region20
        $region19: #{vae_forward.17} parent=11 // pred_region
          _
        $region20: #{vae_forward.17} parent=11 // pred_fallthru
          _
        // Predicated region
        $region21: #{vae_forward.17} parent=11 // pred_check
          %p215 = pneg %p105
        $region22: #{vae_forward.17} parent=11 // pred_check_branch
          %217 = sbr.rel (%p215) target = $region24
        $region23: #{vae_forward.17} parent=11 // pred_region
          _
        $region24: #{vae_forward.17} parent=11 // pred_fallthru
          _
        // Predicated region
        $region25: #{vae_forward.17} parent=11 // pred_check
          %p218 = pneg %p126
        $region26: #{vae_forward.17} parent=11 // pred_check_branch
          %220 = sbr.rel (%p218) target = $region28
        $region27: #{vae_forward.17} parent=11 // pred_region
          _
        $region28: #{vae_forward.17} parent=11 // pred_fallthru
          _
        // Predicated region
        $region29: #{vae_forward.17} parent=11 // pred_check
          %p221 = pneg %p147
        $region30: #{vae_forward.17} parent=11 // pred_check_branch
          %223 = sbr.rel (%p221) target = $region32
        $region31: #{vae_forward.17} parent=11 // pred_region
          _
        $region32: #{vae_forward.17} parent=11 // pred_fallthru
          _
        // Predicated region
        $region33: #{vae_forward.17} parent=11 // pred_check
          %p224 = pneg %p168
        $region34: #{vae_forward.17} parent=11 // pred_check_branch
          %226 = sbr.rel (%p224) target = $region36
        $region35: #{vae_forward.17} parent=11 // pred_region
          _
        $region36: #{vae_forward.17} parent=11 // pred_fallthru
          _
      $region12: #{vae_forward.17} parent=5 // pred_fallthru
        _
      %p227 = scmp.lt.s32.totalorder %s16, 2
      // Predicated region
      $region37: #{vae_forward.17} parent=5 // pred_check
        %p228 = pneg %p227
      $region38: #{vae_forward.17} parent=5 // pred_check_branch
        %230 = sbr.rel (%p228) target = $region40
      $region39: #{vae_forward.17} parent=5 // pred_region
        // Predicated region
        $region41: #{vae_forward.17} parent=39 // pred_check
          %p231 = pneg %p36
        $region42: #{vae_forward.17} parent=39 // pred_check_branch
          %233 = sbr.rel (%p231) target = $region44
        $region43: #{vae_forward.17} parent=39 // pred_region
          %p234 = scmp.lt.s32.totalorder %s16, 1
          %s235 = scalar_select %p234, %s16, 1
          %s236 = smul.addr %s235, 8
          %s237 = smul.addr %s236, 8
          %s238 = scalar_lea.vmem %s0, %s237
        $region44: #{vae_forward.17} parent=39 // pred_fallthru
          _
      $region40: #{vae_forward.17} parent=5 // pred_fallthru
        _
      %p239 = scmp.le.s32.totalorder 1, %s16
      %p240 = scmp.lt.s32.totalorder %s16, 3
      %p241 = pnand %p239, %p240
      %p242 = pneg %p241
      // Predicated region
      $region45: #{vae_forward.17} parent=5 // pred_check
        _
      $region46: #{vae_forward.17} parent=5 // pred_check_branch
        %244 = sbr.rel (%p241) target = $region48
      $region47: #{vae_forward.17} parent=5 // pred_region
        %s245 = ssub.s32 %s16, 1
        %p246 = scmp.lt.s32.totalorder %s21, 1
        %s247 = scalar_select %p246, %s21, 1
        %s248 = smul.addr %s247, 8
        %s249 = smul.addr %s248, 8
        %s250 = scalar_lea.vmem %s0, %s249
        %p251 = pneg %p42
        %p252 = pneg %p39
        %p253 = pneg %p63
        %p254 = pneg %p60
        %p255 = pneg %p84
        %p256 = pneg %p81
        %p257 = pneg %p105
        %p258 = pneg %p102
        %p259 = pneg %p126
        %p260 = pneg %p123
        %p261 = pneg %p147
        %p262 = pneg %p144
        %p263 = pneg %p168
        %p264 = pneg %p165
        %p265 = pneg %p194
        %p266 = pneg %p191
        %s267 = sand.u32 %s181, 1
        %s268 = scalar_lea.sflag [#allocation3], %s267
        %s269 = sand.u32 %s181, 1
        %s270 = smul.addr %s269, 2
        %s271 = scalar_lea.vmem [#allocation2], %s270
        %p272 = scmp.lt.s32.totalorder %s21, 1
        %s273 = scalar_select %p272, %s21, 1
        %s274 = smul.addr %s273, 8
        %s275 = smul.addr %s274, 8
        %s276 = scalar_lea.vmem %s0, %s275
        %v277 = vld [vmem:[%s276] sm:$0xff]
        %v278 = vld [vmem:[%s276 + $0x8] sm:$0xff]
        %v279 = vld [vmem:[%s276 + $0x10] sm:$0xff]
        %v280 = vld [vmem:[%s276 + $0x18] sm:$0xff]
        %v281 = vld [vmem:[%s276 + $0x20] sm:$0xff]
        %v282 = vld [vmem:[%s276 + $0x28] sm:$0xff]
        %v283 = vld [vmem:[%s276 + $0x30] sm:$0xff]
        %v284 = vld [vmem:[%s276 + $0x38] sm:$0xff]
        %v285 = vld [vmem:[%s1] sm:$0x1]
        %v287 = vlaneseq
        %v288 = vshrl.u32 %v287, 7
        %v289 = vsub.s32 0, %v288
        %v290 = vrot.slane %v285, %v289
        %v292 = vmul.f32 %v277, %v290
        %v293 = vmul.f32 %v278, %v290
        %v294 = vmul.f32 %v279, %v290
        %v295 = vmul.f32 %v280, %v290
        %v296 = vmul.f32 %v281, %v290
        %v297 = vmul.f32 %v282, %v290
        %v298 = vmul.f32 %v283, %v290
        %v299 = vmul.f32 %v284, %v290
        %v300 = vld [vmem:[%s2] sm:$0x1]
        %v302 = vlaneseq
        %v303 = vshrl.u32 %v302, 7
        %v304 = vsub.s32 0, %v303
        %v305 = vrot.slane %v300, %v304
        %v307 = vadd.f32 %v292, %v305
        %v308 = vadd.f32 %v293, %v305
        %v309 = vadd.f32 %v294, %v305
        %v310 = vadd.f32 %v295, %v305
        %v311 = vadd.f32 %v296, %v305
        %v312 = vadd.f32 %v297, %v305
        %v313 = vadd.f32 %v298, %v305
        %v314 = vadd.f32 %v299, %v305
        %v315 = vlaneseq
        %v316 = vshrl.u32 %v315, 7
        %v317 = vadd.s32 %v316, 8
        %v318 = vadd.s32 %v316, 16
        %v319 = vadd.s32 %v316, 24
        %v320 = vadd.s32 %v316, 32
        %v321 = vadd.s32 %v316, 40
        %v322 = vadd.s32 %v316, 48
        %v323 = vadd.s32 %v316, 56
        %vm324 = vcmp.ne.s32.totalorder %v316, 63
        %vm325 = vcmp.ne.s32.totalorder %v317, 63
        %vm326 = vcmp.ne.s32.totalorder %v318, 63
        %vm327 = vcmp.ne.s32.totalorder %v319, 63
        %vm328 = vcmp.ne.s32.totalorder %v320, 63
        %vm329 = vcmp.ne.s32.totalorder %v321, 63
        %vm330 = vcmp.ne.s32.totalorder %v322, 63
        %vm331 = vcmp.ne.s32.totalorder %v323, 63
        %v332 = vsel %vm324, 1, 0
        %v333 = vsel %vm325, 1, 0
        %v334 = vsel %vm326, 1, 0
        %v335 = vsel %vm327, 1, 0
        %v336 = vsel %vm328, 1, 0
        %v337 = vsel %vm329, 1, 0
        %v338 = vsel %vm330, 1, 0
        %v339 = vsel %vm331, 1, 0
        %v340 = vcvt.s32.f32 %v332
        %v341 = vcvt.s32.f32 %v333
        %v342 = vcvt.s32.f32 %v334
        %v343 = vcvt.s32.f32 %v335
        %v344 = vcvt.s32.f32 %v336
        %v345 = vcvt.s32.f32 %v337
        %v346 = vcvt.s32.f32 %v338
        %v347 = vcvt.s32.f32 %v339
        %v348 = vrot.slane %v307, 1
        %v349 = vrot.slane %v308, 1
        %v350 = vrot.slane %v309, 1
        %v351 = vrot.slane %v310, 1
        %v352 = vrot.slane %v311, 1
        %v353 = vrot.slane %v312, 1
        %v354 = vrot.slane %v313, 1
        %v355 = vrot.slane %v314, 1
        %vm356 = vcmp.lt.s32.totalorder %v316, 7
        %v357 = vsel %vm356, %v354, %v355
        %v358 = vsel %vm356, %v353, %v354
        %v359 = vsel %vm356, %v352, %v353
        %v360 = vsel %vm356, %v351, %v352
        %v361 = vsel %vm356, %v350, %v351
        %v362 = vsel %vm356, %v349, %v350
        %v363 = vsel %vm356, %v348, %v349
        %v364 = vsel %vm356, %v355, %v348
        %v365 = vmul.f32 %v363, %v340
        %v366 = vmul.f32 %v362, %v341
        %v367 = vmul.f32 %v361, %v342
        %v368 = vmul.f32 %v360, %v343
        %v369 = vmul.f32 %v359, %v344
        %v370 = vmul.f32 %v358, %v345
        %v371 = vmul.f32 %v357, %v346
        %v372 = vmul.f32 %v364, %v347
        %v373 = vld [vmem:[%s3] sm:$0x3]
        %vm374 = vcmask 130048
        %v376 = vsel %vm374, %v373, 0
        %v379 = vsel %vm374, %v307, 0
        %v382 = vsel %vm374, %v308, 0
        %v385 = vsel %vm374, %v309, 0
        %v388 = vsel %vm374, %v310, 0
        %v391 = vsel %vm374, %v311, 0
        %v394 = vsel %vm374, %v312, 0
        %v397 = vsel %vm374, %v313, 0
        %v400 = vsel %vm374, %v314, 0
        %402 = vmatprep.subr.mxu0 0.0
        %403 = vmatpush1.xpose.msra.mxu0 %v379
        %404 = vmatprep.subr.mxu0 0.0
        %405 = vmatpush1.xpose.msra.mxu0 %v382
        %406 = vmatprep.subr.mxu0 0.0
        %407 = vmatpush1.xpose.msra.mxu0 %v385
        %408 = vmatprep.subr.mxu0 0.0
        %409 = vmatpush1.xpose.msra.mxu0 %v388
        %410 = vmatprep.subr.mxu0 0.0
        %411 = vmatpush1.xpose.msra.mxu0 %v391
        %412 = vmatprep.subr.mxu0 0.0
        %413 = vmatpush1.xpose.msra.mxu0 %v394
        %414 = vmatprep.subr.mxu0 0.0
        %415 = vmatpush1.xpose.msra.mxu0 %v397
        %416 = vmatprep.subr.mxu0 0.0
        %417 = vmatpush1.xpose.msra.mxu0 %v400
        %418 = vmatprep.subr.mxu0 0.0
        %419 = vmatpush1.xpose.msra.mxu0 0.0
        %420 = vmatprep.subr.mxu0 0.0
        %421 = vmatpush1.xpose.msra.mxu0 0.0
        %422 = vmatprep.subr.mxu0 0.0
        %423 = vmatpush1.xpose.msra.mxu0 0.0
        %424 = vmatprep.subr.mxu0 0.0
        %425 = vmatpush1.xpose.msra.mxu0 0.0
        %426 = vmatprep.subr.mxu0 0.0
        %427 = vmatpush1.xpose.msra.mxu0 0.0
        %428 = vmatprep.subr.mxu0 0.0
        %429 = vmatpush1.xpose.msra.mxu0 0.0
        %430 = vmatprep.subr.mxu0 0.0
        %431 = vmatpush1.xpose.msra.mxu0 0.0
        %432 = vmatprep.subr.mxu0 0.0
        %433 = vmatpush1.xpose.msra.mxu0 0.0
        %434 = vmatprep.subr.mxu0 0.0
        %435 = vmatpush1.xpose.msra.mxu0 0.0
        %436 = vmatprep.subr.mxu0 0.0
        %437 = vmatpush1.xpose.msra.mxu0 0.0
        %438 = vmatprep.subr.mxu0 0.0
        %439 = vmatpush1.xpose.msra.mxu0 0.0
        %440 = vmatprep.subr.mxu0 0.0
        %441 = vmatpush1.xpose.msra.mxu0 0.0
        %442 = vmatprep.subr.mxu0 0.0
        %443 = vmatpush1.xpose.msra.mxu0 0.0
        %444 = vmatprep.subr.mxu0 0.0
        %445 = vmatpush1.xpose.msra.mxu0 0.0
        %446 = vmatprep.subr.mxu0 0.0
        %447 = vmatpush1.xpose.msra.mxu0 0.0
        %448 = vmatprep.subr.mxu0 0.0
        %449 = vmatpush1.xpose.msra.mxu0 0.0
        %450 = vmatprep.subr.mxu0 0.0
        %451 = vmatpush1.xpose.msra.mxu0 0.0
        %452 = vmatprep.subr.mxu0 0.0
        %453 = vmatpush1.xpose.msra.mxu0 0.0
        %454 = vmatprep.subr.mxu0 0.0
        %455 = vmatpush1.xpose.msra.mxu0 0.0
        %456 = vmatprep.subr.mxu0 0.0
        %457 = vmatpush1.xpose.msra.mxu0 0.0
        %458 = vmatprep.subr.mxu0 0.0
        %459 = vmatpush1.xpose.msra.mxu0 0.0
        %460 = vmatprep.subr.mxu0 0.0
        %461 = vmatpush1.xpose.msra.mxu0 0.0
        %462 = vmatprep.subr.mxu0 0.0
        %463 = vmatpush1.xpose.msra.mxu0 0.0
        %464 = vmatprep.subr.mxu0 0.0
        %465 = vmatpush1.xpose.msra.mxu0 0.0
        %466 = vmatprep.mubr.f32.mxu0 0.0
        %467 = vmatmul.mubr.f32.gmra.mrb[0].mxu0 %v376
        %v468 = vpop.f32.mrb[0].mxu0
        %v469 = vadd.f32 0.0, %v468
        %v470 = vpop.f32.mrb[0].mxu0
        %471 = vdwg.mxu0
        %v472 = vld [vmem:[%s4] sm:$0x3]
        %v473 = vld [vmem:[%s5] sm:$0x3]
        %v475 = vsel %vm374, %v473, 0
        %v478 = vsel %vm374, %v365, 0
        %v481 = vsel %vm374, %v366, 0
        %v484 = vsel %vm374, %v367, 0
        %v487 = vsel %vm374, %v368, 0
        %v490 = vsel %vm374, %v369, 0
        %v493 = vsel %vm374, %v370, 0
        %v496 = vsel %vm374, %v371, 0
        %v499 = vsel %vm374, %v372, 0
        %501 = vmatprep.subr.mxu0 0.0
        %502 = vmatpush1.xpose.msra.mxu0 %v478
        %503 = vmatprep.subr.mxu0 0.0
        %504 = vmatpush1.xpose.msra.mxu0 %v481
        %505 = vmatprep.subr.mxu0 0.0
        %506 = vmatpush1.xpose.msra.mxu0 %v484
        %507 = vmatprep.subr.mxu0 0.0
        %508 = vmatpush1.xpose.msra.mxu0 %v487
        %509 = vmatprep.subr.mxu0 0.0
        %510 = vmatpush1.xpose.msra.mxu0 %v490
        %511 = vmatprep.subr.mxu0 0.0
        %512 = vmatpush1.xpose.msra.mxu0 %v493
        %513 = vmatprep.subr.mxu0 0.0
        %514 = vmatpush1.xpose.msra.mxu0 %v496
        %515 = vmatprep.subr.mxu0 0.0
        %516 = vmatpush1.xpose.msra.mxu0 %v499
        %517 = vmatprep.subr.mxu0 0.0
        %518 = vmatpush1.xpose.msra.mxu0 0.0
        %519 = vmatprep.subr.mxu0 0.0
        %520 = vmatpush1.xpose.msra.mxu0 0.0
        %521 = vmatprep.subr.mxu0 0.0
        %522 = vmatpush1.xpose.msra.mxu0 0.0
        %523 = vmatprep.subr.mxu0 0.0
        %524 = vmatpush1.xpose.msra.mxu0 0.0
        %525 = vmatprep.subr.mxu0 0.0
        %526 = vmatpush1.xpose.msra.mxu0 0.0
        %527 = vmatprep.subr.mxu0 0.0
        %528 = vmatpush1.xpose.msra.mxu0 0.0
        %529 = vmatprep.subr.mxu0 0.0
        %530 = vmatpush1.xpose.msra.mxu0 0.0
        %531 = vmatprep.subr.mxu0 0.0
        %532 = vmatpush1.xpose.msra.mxu0 0.0
        %533 = vmatprep.subr.mxu0 0.0
        %534 = vmatpush1.xpose.msra.mxu0 0.0
        %535 = vmatprep.subr.mxu0 0.0
        %536 = vmatpush1.xpose.msra.mxu0 0.0
        %537 = vmatprep.subr.mxu0 0.0
        %538 = vmatpush1.xpose.msra.mxu0 0.0
        %539 = vmatprep.subr.mxu0 0.0
        %540 = vmatpush1.xpose.msra.mxu0 0.0
        %541 = vmatprep.subr.mxu0 0.0
        %542 = vmatpush1.xpose.msra.mxu0 0.0
        %543 = vmatprep.subr.mxu0 0.0
        %544 = vmatpush1.xpose.msra.mxu0 0.0
        %545 = vmatprep.subr.mxu0 0.0
        %546 = vmatpush1.xpose.msra.mxu0 0.0
        %547 = vmatprep.subr.mxu0 0.0
        %548 = vmatpush1.xpose.msra.mxu0 0.0
        %549 = vmatprep.subr.mxu0 0.0
        %550 = vmatpush1.xpose.msra.mxu0 0.0
        %551 = vmatprep.subr.mxu0 0.0
        %552 = vmatpush1.xpose.msra.mxu0 0.0
        %553 = vmatprep.subr.mxu0 0.0
        %554 = vmatpush1.xpose.msra.mxu0 0.0
        %555 = vmatprep.subr.mxu0 0.0
        %556 = vmatpush1.xpose.msra.mxu0 0.0
        %557 = vmatprep.subr.mxu0 0.0
        %558 = vmatpush1.xpose.msra.mxu0 0.0
        %559 = vmatprep.subr.mxu0 0.0
        %560 = vmatpush1.xpose.msra.mxu0 0.0
        %561 = vmatprep.subr.mxu0 0.0
        %562 = vmatpush1.xpose.msra.mxu0 0.0
        %563 = vmatprep.subr.mxu0 0.0
        %564 = vmatpush1.xpose.msra.mxu0 0.0
        %565 = vmatprep.mubr.f32.mxu0 0.0
        %566 = vmatmul.mubr.f32.gmra.mrb[0].mxu0 %v475
        %v567 = vpop.f32.mrb[0].mxu0
        %v568 = vadd.f32 0.0, %v567
        %v569 = vpop.f32.mrb[0].mxu0
        %570 = vdwg.mxu0
        %v572 = vsel %vm374, %v472, 0
        %574 = vmatprep.subr.mxu0 0.0
        %575 = vmatpush1.xpose.msra.mxu0 %v379
        %576 = vmatprep.subr.mxu0 0.0
        %577 = vmatpush1.xpose.msra.mxu0 %v382
        %578 = vmatprep.subr.mxu0 0.0
        %579 = vmatpush1.xpose.msra.mxu0 %v385
        %580 = vmatprep.subr.mxu0 0.0
        %581 = vmatpush1.xpose.msra.mxu0 %v388
        %582 = vmatprep.subr.mxu0 0.0
        %583 = vmatpush1.xpose.msra.mxu0 %v391
        %584 = vmatprep.subr.mxu0 0.0
        %585 = vmatpush1.xpose.msra.mxu0 %v394
        %586 = vmatprep.subr.mxu0 0.0
        %587 = vmatpush1.xpose.msra.mxu0 %v397
        %588 = vmatprep.subr.mxu0 0.0
        %589 = vmatpush1.xpose.msra.mxu0 %v400
        %590 = vmatprep.subr.mxu0 0.0
        %591 = vmatpush1.xpose.msra.mxu0 0.0
        %592 = vmatprep.subr.mxu0 0.0
        %593 = vmatpush1.xpose.msra.mxu0 0.0
        %594 = vmatprep.subr.mxu0 0.0
        %595 = vmatpush1.xpose.msra.mxu0 0.0
        %596 = vmatprep.subr.mxu0 0.0
        %597 = vmatpush1.xpose.msra.mxu0 0.0
        %598 = vmatprep.subr.mxu0 0.0
        %599 = vmatpush1.xpose.msra.mxu0 0.0
        %600 = vmatprep.subr.mxu0 0.0
        %601 = vmatpush1.xpose.msra.mxu0 0.0
        %602 = vmatprep.subr.mxu0 0.0
        %603 = vmatpush1.xpose.msra.mxu0 0.0
        %604 = vmatprep.subr.mxu0 0.0
        %605 = vmatpush1.xpose.msra.mxu0 0.0
        %606 = vmatprep.subr.mxu0 0.0
        %607 = vmatpush1.xpose.msra.mxu0 0.0
        %608 = vmatprep.subr.mxu0 0.0
        %609 = vmatpush1.xpose.msra.mxu0 0.0
        %610 = vmatprep.subr.mxu0 0.0
        %611 = vmatpush1.xpose.msra.mxu0 0.0
        %612 = vmatprep.subr.mxu0 0.0
        %613 = vmatpush1.xpose.msra.mxu0 0.0
        %614 = vmatprep.subr.mxu0 0.0
        %615 = vmatpush1.xpose.msra.mxu0 0.0
        %616 = vmatprep.subr.mxu0 0.0
        %617 = vmatpush1.xpose.msra.mxu0 0.0
        %618 = vmatprep.subr.mxu0 0.0
        %619 = vmatpush1.xpose.msra.mxu0 0.0
        %620 = vmatprep.subr.mxu0 0.0
        %621 = vmatpush1.xpose.msra.mxu0 0.0
        %622 = vmatprep.subr.mxu0 0.0
        %623 = vmatpush1.xpose.msra.mxu0 0.0
        %624 = vmatprep.subr.mxu0 0.0
        %625 = vmatpush1.xpose.msra.mxu0 0.0
        %626 = vmatprep.subr.mxu0 0.0
        %627 = vmatpush1.xpose.msra.mxu0 0.0
        %628 = vmatprep.subr.mxu0 0.0
        %629 = vmatpush1.xpose.msra.mxu0 0.0
        %630 = vmatprep.subr.mxu0 0.0
        %631 = vmatpush1.xpose.msra.mxu0 0.0
        %632 = vmatprep.subr.mxu0 0.0
        %633 = vmatpush1.xpose.msra.mxu0 0.0
        %634 = vmatprep.subr.mxu0 0.0
        %635 = vmatpush1.xpose.msra.mxu0 0.0
        %636 = vmatprep.subr.mxu0 0.0
        %637 = vmatpush1.xpose.msra.mxu0 0.0
        %638 = vmatprep.mubr.f32.mxu0 0.0
        %639 = vmatmul.mubr.f32.gmra.mrb[0].mxu0 %v572
        %v640 = vpop.f32.mrb[0].mxu0
        %v641 = vadd.f32 %v568, %v640
        %v642 = vpop.f32.mrb[0].mxu0
        %643 = vdwg.mxu0
        %v644 = vlaneseq
        %v645 = vand.u32 %v644, 127
        %v646 = vmul.u32 %v316, 2
        %v647 = vmul.u32 %v317, 2
        %v648 = vmul.u32 %v318, 2
        %v649 = vmul.u32 %v319, 2
        %v650 = vmul.u32 %v320, 2
        %v651 = vmul.u32 %v321, 2
        %v652 = vmul.u32 %v322, 2
        %v653 = vmul.u32 %v323, 2
        %vm654 = vcmp.eq.s32.totalorder %v645, %v646
        %vm655 = vcmp.eq.s32.totalorder %v645, %v647
        %vm656 = vcmp.eq.s32.totalorder %v645, %v648
        %vm657 = vcmp.eq.s32.totalorder %v645, %v649
        %vm658 = vcmp.eq.s32.totalorder %v645, %v650
        %vm659 = vcmp.eq.s32.totalorder %v645, %v651
        %vm660 = vcmp.eq.s32.totalorder %v645, %v652
        %vm661 = vcmp.eq.s32.totalorder %v645, %v653
        %v662 = vsel %vm654, 1, 0
        %v663 = vsel %vm655, 1, 0
        %v664 = vsel %vm656, 1, 0
        %v665 = vsel %vm657, 1, 0
        %v666 = vsel %vm658, 1, 0
        %v667 = vsel %vm659, 1, 0
        %v668 = vsel %vm660, 1, 0
        %v669 = vsel %vm661, 1, 0
        %v670 = vcvt.s32.f32 %v662
        %v671 = vcvt.s32.f32 %v663
        %v672 = vcvt.s32.f32 %v664
        %v673 = vcvt.s32.f32 %v665
        %v674 = vcvt.s32.f32 %v666
        %v675 = vcvt.s32.f32 %v667
        %v676 = vcvt.s32.f32 %v668
        %v677 = vcvt.s32.f32 %v669
        %v678 = vadd.s32 %v646, 1
        %v679 = vadd.s32 %v647, 1
        %v680 = vadd.s32 %v648, 1
        %v681 = vadd.s32 %v649, 1
        %v682 = vadd.s32 %v650, 1
        %v683 = vadd.s32 %v651, 1
        %v684 = vadd.s32 %v652, 1
        %v685 = vadd.s32 %v653, 1
        %vm686 = vcmp.eq.s32.totalorder %v645, %v678
        %vm687 = vcmp.eq.s32.totalorder %v645, %v679
        %vm688 = vcmp.eq.s32.totalorder %v645, %v680
        %vm689 = vcmp.eq.s32.totalorder %v645, %v681
        %vm690 = vcmp.eq.s32.totalorder %v645, %v682
        %vm691 = vcmp.eq.s32.totalorder %v645, %v683
        %vm692 = vcmp.eq.s32.totalorder %v645, %v684
        %vm693 = vcmp.eq.s32.totalorder %v645, %v685
        %v694 = vsel %vm686, 1, 0
        %v695 = vsel %vm687, 1, 0
        %v696 = vsel %vm688, 1, 0
        %v697 = vsel %vm689, 1, 0
        %v698 = vsel %vm690, 1, 0
        %v699 = vsel %vm691, 1, 0
        %v700 = vsel %vm692, 1, 0
        %v701 = vsel %vm693, 1, 0
        %v702 = vcvt.s32.f32 %v694
        %v703 = vcvt.s32.f32 %v695
        %v704 = vcvt.s32.f32 %v696
        %v705 = vcvt.s32.f32 %v697
        %v706 = vcvt.s32.f32 %v698
        %v707 = vcvt.s32.f32 %v699
        %v708 = vcvt.s32.f32 %v700
        %v709 = vcvt.s32.f32 %v701
        %vm710 = vcmask 523264
        %v712 = vsel %vm710, %v641, 0
        %714 = vmatprep.subr.mxu0 0.0
        %715 = vmatpush1.msra.mxu0 %v702
        %716 = vmatprep.subr.mxu0 0.0
        %717 = vmatpush1.msra.mxu0 %v703
        %718 = vmatprep.subr.mxu0 0.0
        %719 = vmatpush1.msra.mxu0 %v704
        %720 = vmatprep.subr.mxu0 0.0
        %721 = vmatpush1.msra.mxu0 %v705
        %722 = vmatprep.subr.mxu0 0.0
        %723 = vmatpush1.msra.mxu0 %v706
        %724 = vmatprep.subr.mxu0 0.0
        %725 = vmatpush1.msra.mxu0 %v707
        %726 = vmatprep.subr.mxu0 0.0
        %727 = vmatpush1.msra.mxu0 %v708
        %728 = vmatprep.subr.mxu0 0.0
        %729 = vmatpush1.msra.mxu0 %v709
        %730 = vmatprep.subr.mxu0 0.0
        %731 = vmatpush1.msra.mxu0 0.0
        %732 = vmatprep.subr.mxu0 0.0
        %733 = vmatpush1.msra.mxu0 0.0
        %734 = vmatprep.subr.mxu0 0.0
        %735 = vmatpush1.msra.mxu0 0.0
        %736 = vmatprep.subr.mxu0 0.0
        %737 = vmatpush1.msra.mxu0 0.0
        %738 = vmatprep.subr.mxu0 0.0
        %739 = vmatpush1.msra.mxu0 0.0
        %740 = vmatprep.subr.mxu0 0.0
        %741 = vmatpush1.msra.mxu0 0.0
        %742 = vmatprep.subr.mxu0 0.0
        %743 = vmatpush1.msra.mxu0 0.0
        %744 = vmatprep.subr.mxu0 0.0
        %745 = vmatpush1.msra.mxu0 0.0
        %746 = vmatprep.subr.mxu0 0.0
        %747 = vmatpush1.msra.mxu0 0.0
        %748 = vmatprep.subr.mxu0 0.0
        %749 = vmatpush1.msra.mxu0 0.0
        %750 = vmatprep.subr.mxu0 0.0
        %751 = vmatpush1.msra.mxu0 0.0
        %752 = vmatprep.subr.mxu0 0.0
        %753 = vmatpush1.msra.mxu0 0.0
        %754 = vmatprep.subr.mxu0 0.0
        %755 = vmatpush1.msra.mxu0 0.0
        %756 = vmatprep.subr.mxu0 0.0
        %757 = vmatpush1.msra.mxu0 0.0
        %758 = vmatprep.subr.mxu0 0.0
        %759 = vmatpush1.msra.mxu0 0.0
        %760 = vmatprep.subr.mxu0 0.0
        %761 = vmatpush1.msra.mxu0 0.0
        %762 = vmatprep.subr.mxu0 0.0
        %763 = vmatpush1.msra.mxu0 0.0
        %764 = vmatprep.subr.mxu0 0.0
        %765 = vmatpush1.msra.mxu0 0.0
        %766 = vmatprep.subr.mxu0 0.0
        %767 = vmatpush1.msra.mxu0 0.0
        %768 = vmatprep.subr.mxu0 0.0
        %769 = vmatpush1.msra.mxu0 0.0
        %770 = vmatprep.subr.mxu0 0.0
        %771 = vmatpush1.msra.mxu0 0.0
        %772 = vmatprep.subr.mxu0 0.0
        %773 = vmatpush1.msra.mxu0 0.0
        %774 = vmatprep.subr.mxu0 0.0
        %775 = vmatpush1.msra.mxu0 0.0
        %776 = vmatprep.subr.mxu0 0.0
        %777 = vmatpush1.msra.mxu0 0.0
        %778 = vmatprep.mubr.f32.mxu0 0.0
        %779 = vmatmul.mubr.f32.gmra.mrb[0].mxu0 %v712
        %v780 = vpop.f32.mrb[0].mxu0
        %v781 = vadd.f32 0.0, %v780
        %v782 = vpop.f32.mrb[0].mxu0
        %783 = vdwg.mxu0
        %v785 = vsel %vm710, %v469, 0
        %787 = vmatprep.subr.mxu0 0.0
        %788 = vmatpush1.msra.mxu0 %v670
        %789 = vmatprep.subr.mxu0 0.0
        %790 = vmatpush1.msra.mxu0 %v671
        %791 = vmatprep.subr.mxu0 0.0
        %792 = vmatpush1.msra.mxu0 %v672
        %793 = vmatprep.subr.mxu0 0.0
        %794 = vmatpush1.msra.mxu0 %v673
        %795 = vmatprep.subr.mxu0 0.0
        %796 = vmatpush1.msra.mxu0 %v674
        %797 = vmatprep.subr.mxu0 0.0
        %798 = vmatpush1.msra.mxu0 %v675
        %799 = vmatprep.subr.mxu0 0.0
        %800 = vmatpush1.msra.mxu0 %v676
        %801 = vmatprep.subr.mxu0 0.0
        %802 = vmatpush1.msra.mxu0 %v677
        %803 = vmatprep.subr.mxu0 0.0
        %804 = vmatpush1.msra.mxu0 0.0
        %805 = vmatprep.subr.mxu0 0.0
        %806 = vmatpush1.msra.mxu0 0.0
        %807 = vmatprep.subr.mxu0 0.0
        %808 = vmatpush1.msra.mxu0 0.0
        %809 = vmatprep.subr.mxu0 0.0
        %810 = vmatpush1.msra.mxu0 0.0
        %811 = vmatprep.subr.mxu0 0.0
        %812 = vmatpush1.msra.mxu0 0.0
        %813 = vmatprep.subr.mxu0 0.0
        %814 = vmatpush1.msra.mxu0 0.0
        %815 = vmatprep.subr.mxu0 0.0
        %816 = vmatpush1.msra.mxu0 0.0
        %817 = vmatprep.subr.mxu0 0.0
        %818 = vmatpush1.msra.mxu0 0.0
        %819 = vmatprep.subr.mxu0 0.0
        %820 = vmatpush1.msra.mxu0 0.0
        %821 = vmatprep.subr.mxu0 0.0
        %822 = vmatpush1.msra.mxu0 0.0
        %823 = vmatprep.subr.mxu0 0.0
        %824 = vmatpush1.msra.mxu0 0.0
        %825 = vmatprep.subr.mxu0 0.0
        %826 = vmatpush1.msra.mxu0 0.0
        %827 = vmatprep.subr.mxu0 0.0
        %828 = vmatpush1.msra.mxu0 0.0
        %829 = vmatprep.subr.mxu0 0.0
        %830 = vmatpush1.msra.mxu0 0.0
        %831 = vmatprep.subr.mxu0 0.0
        %832 = vmatpush1.msra.mxu0 0.0
        %833 = vmatprep.subr.mxu0 0.0
        %834 = vmatpush1.msra.mxu0 0.0
        %835 = vmatprep.subr.mxu0 0.0
        %836 = vmatpush1.msra.mxu0 0.0
        %837 = vmatprep.subr.mxu0 0.0
        %838 = vmatpush1.msra.mxu0 0.0
        %839 = vmatprep.subr.mxu0 0.0
        %840 = vmatpush1.msra.mxu0 0.0
        %841 = vmatprep.subr.mxu0 0.0
        %842 = vmatpush1.msra.mxu0 0.0
        %843 = vmatprep.subr.mxu0 0.0
        %844 = vmatpush1.msra.mxu0 0.0
        %845 = vmatprep.subr.mxu0 0.0
        %846 = vmatpush1.msra.mxu0 0.0
        %847 = vmatprep.subr.mxu0 0.0
        %848 = vmatpush1.msra.mxu0 0.0
        %849 = vmatprep.subr.mxu0 0.0
        %850 = vmatpush1.msra.mxu0 0.0
        %851 = vmatprep.mubr.f32.mxu0 0.0
        %852 = vmatmul.mubr.f32.gmra.mrb[0].mxu0 %v785
        %v853 = vpop.f32.mrb[0].mxu0
        %v854 = vadd.f32 %v781, %v853
        %v855 = vpop.f32.mrb[0].mxu0
        %856 = vdwg.mxu0
        %v857 = vld [vmem:[%s6] sm:$0x3]
        %859 = vset.pattern.permute.xlu0 0
        %860 = vperm.xlu0 %859, %v857
        %v861 = vpop.permute.xlu0 %860
        %v863 = vadd.f32 %v854, %v861
        %864 = vst [vmem:[%s271] sm:$0x3] %v863
        %s865 = sand.u32 %s181, 1
        %s866 = scalar_lea.sflag [#allocation3], %s865
        %s867 = sand.u32 %s181, 1
        %s868 = smul.addr %s867, 2
        %s869 = scalar_lea.vmem [#allocation2], %s868
        // Predicated region
        $region49: #{vae_forward.17} parent=47 // pred_check
          %p870 = pneg %p191
        $region50: #{vae_forward.17} parent=47 // pred_check_branch
          %872 = sbr.rel (%p870) target = $region52
        $region51: #{vae_forward.17} parent=47 // pred_region
          %s874 = ssub.s32 32, 32
          %875 = vsyncadd %s866, %s874
          %s876 = smul.addr %s21, 32
          %s877 = scalar_lea.hbm %s7, %s876
          %s879 = sshll.u32 %s869, 4
          %s880 = int_to_ptr.vmem [resolvable:$true] %s879
          %882 = dma.vmem_to_hbm [thread:$0]  %s880, 32, %s877, %s866
        $region52: #{vae_forward.17} parent=47 // pred_fallthru
          _
      $region48: #{vae_forward.17} parent=5 // pred_fallthru
        _
      %p883 = scmp.le.s32.totalorder 2, %s16
      // Predicated region
      $region53: #{vae_forward.17} parent=5 // pred_check
        %p884 = pneg %p883
      $region54: #{vae_forward.17} parent=5 // pred_check_branch
        %886 = sbr.rel (%p884) target = $region56
      $region55: #{vae_forward.17} parent=5 // pred_region
        %s887 = ssub.s32 %s16, 2
        // Predicated region
        $region57: #{vae_forward.17} parent=55 // pred_check
          %p888 = pneg %p197
        $region58: #{vae_forward.17} parent=55 // pred_check_branch
          %890 = sbr.rel (%p888) target = $region60
        $region59: #{vae_forward.17} parent=55 // pred_region
          %s891 = sand.u32 %s182, 1
          %s892 = scalar_lea.sflag [#allocation3], %s891
          %s893 = sand.u32 %s182, 1
          %s894 = smul.addr %s893, 2
          %s895 = scalar_lea.vmem [#allocation2], %s894
          %896 = dma.done %s892, 32
        $region60: #{vae_forward.17} parent=55 // pred_fallthru
          _
      $region56: #{vae_forward.17} parent=5 // pred_fallthru
        _
    $region6: #{vae_forward.17} parent=1 // loop_footer
      %s20 = sadd.s32 1, %s16
    $region7: #{vae_forward.17} parent=1 // loop_footer_branch
      %15 = sbr.rel target = $region3
    $region8: #{vae_forward.17} parent=1 // loop_exit
      _
    %897 = vsyncpa [#allocation3], 1
    %s898 = scalar_lea.sflag [#allocation3], 1
    %899 = vsyncpa %s898, 1

</llo_original>
